<compile_context>
chip_gen: v6e
topology: v6e:2x2x1
jax: 0.10.0
libtpu: 0.0.40
codegen_flags: <defaults>
</compile_context>

<pallas_src>
import functools
import math

import jax
import jax.numpy as jnp
from jax.experimental import pallas as pl
from jax.experimental.pallas import tpu as pltpu


def _round_up(x, m):
    return (x + m - 1) // m * m


# ---------------------------------------------------------------------------
# Pallas kernel: one gated-GNN component per grid step (lane-dense, padded).
# ---------------------------------------------------------------------------
def fused_gnn_kernel(a_in_ref, a_out_ref, h_ref, w_e_ref, w_g_ref,
                     b_e_ref, b_g_ref, out_ref, *, step, mm_dtype):
    """All refs carry a leading size-1 component-block axis.

    a_in_ref / a_out_ref : (1, Mp, Mp)       block-diagonal adjacency, mm_dtype
    h_ref                : (1, Mp, Dp)       initial hidden, f32, zero-padded
    w_e_ref              : (1, 2, Dp, Dp)    [W_ein^T, W_eout^T], mm_dtype
    w_g_ref              : (1, 3, Dp, 3Dp)   [W_ih_in^T, W_ih_out^T, W_hh^T],
                                             fused per gate (r|i|n column blocks)
    b_e_ref              : (1, 2, Dp)        [b_ein, b_eout], f32
    b_g_ref              : (1, 2, 3Dp)       [b_ih (b_iah/b_oah folded), b_hh], f32
    out_ref              : (1, Mp, Dp)       propagated hidden, f32
    """
    Dp = h_ref.shape[-1]
    h = h_ref[0]                                        # (Mp, Dp) f32 state

    for _ in range(step):                               # small & static -> unrolled
        h_mm = h.astype(mm_dtype)
        b_e = b_e_ref[0]                                # (2, Dp)  read near use
        b_g = b_g_ref[0]                                # (2, 3Dp)

        # Edge linears (weights read at point of use, not hoisted).
        e_in = (jnp.dot(h_mm, w_e_ref[0, 0], preferred_element_type=jnp.float32)
                + b_e[0:1, :]).astype(mm_dtype)
        e_out = (jnp.dot(h_mm, w_e_ref[0, 1], preferred_element_type=jnp.float32)
                 + b_e[1:2, :]).astype(mm_dtype)

        # Block-diagonal adjacency matmuls (replaces the batched einsum).
        inp_in = jnp.dot(a_in_ref[0], e_in,
                         preferred_element_type=jnp.float32).astype(mm_dtype)
        inp_out = jnp.dot(a_out_ref[0], e_out,
                          preferred_element_type=jnp.float32).astype(mm_dtype)

        # Fused gate matmuls: (Mp, Dp) x (Dp, 3Dp); f32 accumulation.
        gi = (jnp.dot(inp_in, w_g_ref[0, 0], preferred_element_type=jnp.float32)
              + jnp.dot(inp_out, w_g_ref[0, 1], preferred_element_type=jnp.float32)
              + b_g[0:1, :])
        gh = (jnp.dot(h_mm, w_g_ref[0, 2], preferred_element_type=jnp.float32)
              + b_g[1:2, :])

        # 128-lane-aligned static slices (r, i, n).
        i_r, i_i, i_n = gi[:, :Dp], gi[:, Dp:2 * Dp], gi[:, 2 * Dp:]
        h_r, h_i, h_n = gh[:, :Dp], gh[:, Dp:2 * Dp], gh[:, 2 * Dp:]

        # Elementwise gate math stays f32 (v5e VPU/EUP have no bf16).
        resetgate = jax.nn.sigmoid(i_r + h_r)
        inputgate = jax.nn.sigmoid(i_i + h_i)
        newgate = jnp.tanh(i_n + resetgate * h_n)
        h = newgate + inputgate * (h - newgate)

    out_ref[0] = h.astype(out_ref.dtype)                # lane-dense store


# ---------------------------------------------------------------------------
# Wrapper: padding / weight prep / block-diag adjacency + single pallas_call.
# ---------------------------------------------------------------------------
def _prep_component(A, hidden, params, Dp, Mp, mm_dtype):
    B, N, D = hidden.shape
    BN = B * N
    assert A.shape == (B, N, 2 * N), (A.shape, hidden.shape)

    def pad_to(x, shape):
        return jnp.pad(x, [(0, t - s) for s, t in zip(x.shape, shape)])

    # Block-diagonal adjacency: (B, N, N) -> (B*N, B*N), zero-padded to Mp.
    eye = jnp.eye(B, dtype=A.dtype)

    def block_diag(a):
        return (eye[:, None, :, None] * a[:, :, None, :]).reshape(BN, BN)

    a_in = pad_to(block_diag(A[:, :, :N]), (Mp, Mp)).astype(mm_dtype)
    a_out = pad_to(block_diag(A[:, :, N:]), (Mp, Mp)).astype(mm_dtype)
    h0 = pad_to(hidden.astype(jnp.float32).reshape(BN, D), (Mp, Dp))

    # Split w_ih per input half and fold b_iah / b_oah into b_ih (exact).
    w_ih, w_hh = params["w_ih"], params["w_hh"]
    w_ih_in, w_ih_out = w_ih[:, :D], w_ih[:, D:]
    b_ih_fold = (params["b_ih"] + params["b_iah"] @ w_ih_in.T
                 + params["b_oah"] @ w_ih_out.T)[0]          # (3D,)
    b_hh = params["b_hh"][0]                                  # (3D,)

    def gate_fused_t(w):   # (3D, D) -> (Dp, 3Dp): per-gate transposed blocks
        return jnp.concatenate(
            [pad_to(w[g * D:(g + 1) * D, :].T, (Dp, Dp)) for g in range(3)], axis=1)

    def gate_bias(b):      # (3D,) -> (3Dp,)
        return jnp.concatenate(
            [pad_to(b[g * D:(g + 1) * D], (Dp,)) for g in range(3)])

    w_e = jnp.stack([pad_to(params["w_ein"].T, (Dp, Dp)),
                     pad_to(params["w_eout"].T, (Dp, Dp))]).astype(mm_dtype)
    w_g = jnp.stack([gate_fused_t(w_ih_in), gate_fused_t(w_ih_out),
                     gate_fused_t(w_hh)]).astype(mm_dtype)
    b_e = jnp.stack([pad_to(params["b_ein"][0], (Dp,)),
                     pad_to(params["b_eout"][0], (Dp,))]).astype(jnp.float32)
    b_g = jnp.stack([gate_bias(b_ih_fold), gate_bias(b_hh)]).astype(jnp.float32)
    return a_in, a_out, h0, w_e, w_g, b_e, b_g


def fused_gnn_forward(components, step=1, mm_dtype=jnp.bfloat16):
    """components: list of dicts {A:(B,N,2N), hidden:(B,N,D), params:{...}}.
    Returns the list of propagated hidden states; one pallas_call total."""
    B, N, _ = components[0]["hidden"].shape
    for comp in components:
        assert comp["hidden"].shape[:2] == (B, N)

    Dp = max(_round_up(comp["hidden"].shape[2], 128) for comp in components)
    Mp = _round_up(B * N, 8)
    C = len(components)

    prepped = [_prep_component(comp["A"], comp["hidden"], comp["params"],
                               Dp, Mp, mm_dtype) for comp in components]
    a_in, a_out, h0, w_e, w_g, b_e, b_g = (jnp.stack(x) for x in zip(*prepped))

    kernel = functools.partial(fused_gnn_kernel, step=step, mm_dtype=mm_dtype)
    # NOTE: at scaled shapes (large B*N), tile the batch with BlockSpecs and
    # set vmem_limit_bytes explicitly; at these sizes everything fits easily.
    out = pl.pallas_call(
        kernel,
        out_shape=jax.ShapeDtypeStruct((C, Mp, Dp), jnp.float32),
        grid=(C,),
        in_specs=[
            pl.BlockSpec((1, Mp, Mp), lambda c: (c, 0, 0)),          # A_in  (block-diag)
            pl.BlockSpec((1, Mp, Mp), lambda c: (c, 0, 0)),          # A_out (block-diag)
            pl.BlockSpec((1, Mp, Dp), lambda c: (c, 0, 0)),          # h0
            pl.BlockSpec((1, 2, Dp, Dp), lambda c: (c, 0, 0, 0)),    # edge weights
            pl.BlockSpec((1, 3, Dp, 3 * Dp), lambda c: (c, 0, 0, 0)),# fused gate weights
            pl.BlockSpec((1, 2, Dp), lambda c: (c, 0, 0)),           # edge biases
            pl.BlockSpec((1, 2, 3 * Dp), lambda c: (c, 0, 0)),       # gate biases
        ],
        out_specs=pl.BlockSpec((1, Mp, Dp), lambda c: (c, 0, 0)),
        compiler_params=pltpu.CompilerParams(
            dimension_semantics=("parallel",)),   # components are independent
    )(a_in, a_out, h0, w_e, w_g, b_e, b_g)

    results = []
    for ci, comp in enumerate(components):
        Bc, Nc, Dc = comp["hidden"].shape
        results.append(out[ci, :Bc * Nc, :Dc].reshape(Bc, Nc, Dc))
    return results


# ---------------------------------------------------------------------------
# Parameter init (synthetic, deterministic) + full forward.
# ---------------------------------------------------------------------------
def init_gnn_params(key, D, stdv):
    ks = jax.random.split(key, 10)
    u = lambda k, s: jax.random.uniform(k, s, jnp.float32, -stdv, stdv)
    return dict(
        w_ein=u(ks[0], (D, D)),        b_ein=u(ks[1], (1, D)),
        w_eout=u(ks[2], (D, D)),       b_eout=u(ks[3], (1, D)),
        b_iah=u(ks[4], (1, D)),        b_oah=u(ks[5], (1, D)),
        w_ih=u(ks[6], (3 * D, 2 * D)), b_ih=u(ks[7], (1, 3 * D)),
        w_hh=u(ks[8], (3 * D, D)),     b_hh=u(ks[9], (1, 3 * D)),
    )


def init_sequence_model_params(key, num_games, num_durations, num_intervals,
                               Dg, Dd, Di, hidden_size):
    stdv = 1.0 / math.sqrt(hidden_size)
    ks = jax.random.split(key, 6)
    u = lambda k, s: jax.random.uniform(k, s, jnp.float32, -stdv, stdv)
    return dict(
        game_emb=u(ks[0], (num_games, Dg)),
        duration_emb=u(ks[1], (num_durations, Dd)),
        interval_emb=u(ks[2], (num_intervals, Di)),
        game_gnn=init_gnn_params(ks[3], Dg, stdv),
        duration_gnn=init_gnn_params(ks[4], Dd, stdv),
        interval_gnn=init_gnn_params(ks[5], Di, stdv),
    )
    # NOTE: linear_one/two/three/transform (and *1/*2), loss and optimizer from
    # __init__ are not used in forward(), so they are not needed here.


def sequence_model_forward(params, games, durations, intervals,
                           A_game, A_duration, A_interval,
                           alias_game, alias_duration, alias_interval,
                           step=1, mm_dtype=jnp.bfloat16):
    # Embedding lookups (glue).
    game_embed = jnp.take(params["game_emb"], games, axis=0)            # (B,N,Dg)
    duration_embed = jnp.take(params["duration_emb"], durations, axis=0)
    interval_embed = jnp.take(params["interval_emb"], intervals, axis=0)

    # Gated-GNN propagation: single fused Pallas kernel launch.
    game_embed, duration_embed, interval_embed = fused_gnn_forward(
        [dict(A=A_game, hidden=game_embed, params=params["game_gnn"]),
         dict(A=A_duration, hidden=duration_embed, params=params["duration_gnn"]),
         dict(A=A_interval, hidden=interval_embed, params=params["interval_gnn"])],
        step=step, mm_dtype=mm_dtype)

    # Per-batch alias gather (glue): seq[b, l] = embed[b, alias[b, l]].
    seq_g = jnp.take_along_axis(game_embed, alias_game[..., None], axis=1)
    seq_d = jnp.take_along_axis(duration_embed, alias_duration[..., None], axis=1)
    seq_i = jnp.take_along_axis(interval_embed, alias_interval[..., None], axis=1)
    return jnp.concatenate([seq_g, seq_d, seq_i], axis=2)


# ---------------------------------------------------------------------------
# Pure-JAX reference (mirrors the PyTorch module) for a correctness check.
# ---------------------------------------------------------------------------
def _gnn_forward_ref(A, h, p, step):
    N, D = h.shape[1], h.shape[2]
    for _ in range(step):
        e_in = h @ p["w_ein"].T + p["b_ein"]
        e_out = h @ p["w_eout"].T + p["b_eout"]
        input_in = jnp.einsum('bnm,bmd->bnd', A[:, :, :N], e_in) + p["b_iah"]
        input_out = jnp.einsum('bnm,bmd->bnd', A[:, :, N:], e_out) + p["b_oah"]
        inputs = jnp.concatenate([input_in, input_out], axis=2)
        gi = inputs @ p["w_ih"].T + p["b_ih"]
        gh = h @ p["w_hh"].T + p["b_hh"]
        i_r, i_i, i_n = gi[..., :D], gi[..., D:2 * D], gi[..., 2 * D:]
        h_r, h_i, h_n = gh[..., :D], gh[..., D:2 * D], gh[..., 2 * D:]
        r = jax.nn.sigmoid(i_r + h_r)
        z = jax.nn.sigmoid(i_i + h_i)
        n = jnp.tanh(i_n + r * h_n)
        h = n + z * (h - n)
    return h


def sequence_model_forward_ref(params, games, durations, intervals,
                               A_game, A_duration, A_interval,
                               alias_game, alias_duration, alias_interval, step=1):
    ge = _gnn_forward_ref(A_game, jnp.take(params["game_emb"], games, axis=0),
                          params["game_gnn"], step)
    de = _gnn_forward_ref(A_duration, jnp.take(params["duration_emb"], durations, axis=0),
                          params["duration_gnn"], step)
    ie = _gnn_forward_ref(A_interval, jnp.take(params["interval_emb"], intervals, axis=0),
                          params["interval_gnn"], step)
    seq_g = jnp.take_along_axis(ge, alias_game[..., None], axis=1)
    seq_d = jnp.take_along_axis(de, alias_duration[..., None], axis=1)
    seq_i = jnp.take_along_axis(ie, alias_interval[..., None], axis=1)
    return jnp.concatenate([seq_g, seq_d, seq_i], axis=2)


# ---------------------------------------------------------------------------
# Demo
# ---------------------------------------------------------------------------
if __name__ == "__main__":
    # Full-precision matmuls in the plain-JAX reference path.
    jax.config.update("jax_default_matmul_precision", "highest")

    B, N, L = 2, 8, 8                 # batch, graph nodes, sequence length
    Dg, Dd, Di = 32, 16, 16           # game / duration / interval embed sizes
    num_games, num_durations, num_intervals = 10, 6, 6
    hidden_size = 32
    step = 1

    key = jax.random.PRNGKey(0)
    kp, k1, k2, k3, k4, k5, k6, k7, k8, k9 = jax.random.split(key, 10)

    params = init_sequence_model_params(
        kp, num_games, num_durations, num_intervals, Dg, Dd, Di, hidden_size)

    games = jax.random.randint(k1, (B, N), 0, num_games, dtype=jnp.int32)
    durations = jax.random.randint(k2, (B, N), 0, num_durations, dtype=jnp.int32)
    intervals = jax.random.randint(k3, (B, N), 0, num_intervals, dtype=jnp.int32)

    A_game = jax.random.uniform(k4, (B, N, 2 * N), jnp.float32)
    A_duration = jax.random.uniform(k5, (B, N, 2 * N), jnp.float32)
    A_interval = jax.random.uniform(k6, (B, N, 2 * N), jnp.float32)

    alias_game = jax.random.randint(k7, (B, L), 0, N, dtype=jnp.int32)
    alias_duration = jax.random.randint(k8, (B, L), 0, N, dtype=jnp.int32)
    alias_interval = jax.random.randint(k9, (B, L), 0, N, dtype=jnp.int32)

    args = (params, games, durations, intervals,
            A_game, A_duration, A_interval,
            alias_game, alias_duration, alias_interval)

    ref = sequence_model_forward_ref(*args, step=step)

    # f32-operand path: validates padding / block-diag / gate fusion / bias
    # folding against the straightforward (PyTorch-equivalent) formulation.
    out_f32 = jax.block_until_ready(
        sequence_model_forward(*args, step=step, mm_dtype=jnp.float32))
    assert out_f32.shape == (B, L, Dg + Dd + Di), out_f32.shape
    assert out_f32.dtype == jnp.float32
    err_f32 = float(jnp.max(jnp.abs(out_f32 - ref)))
    assert err_f32 < 2e-3, f"f32 path max abs error vs reference: {err_f32}"

    # bf16-operand path (default; MXU-native on v5e/v6e/v7x, f32 accumulation).
    out_bf16 = jax.block_until_ready(
        sequence_model_forward(*args, step=step, mm_dtype=jnp.bfloat16))
    assert out_bf16.shape == (B, L, Dg + Dd + Di), out_bf16.shape
    err_bf16 = float(jnp.max(jnp.abs(out_bf16 - ref)))
    assert err_bf16 < 5e-2, f"bf16 path max abs error vs reference: {err_bf16}"

    print("KERNEL_OK")
</pallas_src>

<mosaic_0001>
module attributes {stable_mosaic.version = 11 : i64} {
  func.func @fused_gnn_kernel(%arg0: i32, %arg1: memref<1x16x16xf32, #tpu.memory_space<vmem>>, %arg2: memref<1x16x16xf32, #tpu.memory_space<vmem>>, %arg3: memref<1x16x128xf32, #tpu.memory_space<vmem>>, %arg4: memref<1x2x128x128xf32, #tpu.memory_space<vmem>>, %arg5: memref<1x3x128x384xf32, #tpu.memory_space<vmem>>, %arg6: memref<1x2x128xf32, #tpu.memory_space<vmem>>, %arg7: memref<1x2x384xf32, #tpu.memory_space<vmem>>, %arg8: memref<1x16x128xf32, #tpu.memory_space<vmem>>) attributes {dimension_semantics = [#tpu.dimension_semantics<parallel>], iteration_bounds = array<i64: 3>, scalar_prefetch = 0 : i64, scratch_operands = 0 : i64, tpu.core_type = #tpu.core_type<tc>, window_params = [{transform_indices = @transform_0, window_bounds = array<i64: 1, 16, 16>}, {transform_indices = @transform_1, window_bounds = array<i64: 1, 16, 16>}, {transform_indices = @transform_2, window_bounds = array<i64: 1, 16, 128>}, {transform_indices = @transform_3, window_bounds = array<i64: 1, 2, 128, 128>}, {transform_indices = @transform_4, window_bounds = array<i64: 1, 3, 128, 384>}, {transform_indices = @transform_5, window_bounds = array<i64: 1, 2, 128>}, {transform_indices = @transform_6, window_bounds = array<i64: 1, 2, 384>}, {transform_indices = @transform_7, window_bounds = array<i64: 1, 16, 128>}]} {
    %c0 = arith.constant 0 : index
    %c0_0 = arith.constant 0 : index
    %c0_1 = arith.constant 0 : index
    %0 = vector.load %arg3[%c0, %c0_0, %c0_1] : memref<1x16x128xf32, #tpu.memory_space<vmem>>, vector<1x16x128xf32>
    %1 = vector.shape_cast %0 : vector<1x16x128xf32> to vector<16x128xf32>
    %c0_2 = arith.constant 0 : index
    %c0_3 = arith.constant 0 : index
    %c0_4 = arith.constant 0 : index
    %2 = vector.load %arg6[%c0_2, %c0_3, %c0_4] : memref<1x2x128xf32, #tpu.memory_space<vmem>>, vector<1x2x128xf32>
    %3 = vector.shape_cast %2 : vector<1x2x128xf32> to vector<2x128xf32>
    %c0_5 = arith.constant 0 : index
    %c0_6 = arith.constant 0 : index
    %c0_7 = arith.constant 0 : index
    %4 = vector.load %arg7[%c0_5, %c0_6, %c0_7] : memref<1x2x384xf32, #tpu.memory_space<vmem>>, vector<1x2x384xf32>
    %5 = vector.shape_cast %4 : vector<1x2x384xf32> to vector<2x384xf32>
    %c0_8 = arith.constant 0 : index
    %c0_9 = arith.constant 0 : index
    %c0_10 = arith.constant 0 : index
    %c0_11 = arith.constant 0 : index
    %6 = vector.load %arg4[%c0_8, %c0_9, %c0_10, %c0_11] : memref<1x2x128x128xf32, #tpu.memory_space<vmem>>, vector<1x1x128x128xf32>
    %7 = vector.shape_cast %6 : vector<1x1x128x128xf32> to vector<128x128xf32>
    %cst = arith.constant dense<0.000000e+00> : vector<16x128xf32>
    %8 = tpu.matmul %1, %7, %cst {dimension_numbers = #tpu.dot_dimension_numbers<[1], [0], [0], [1], [0, 0, 1, 1], [], []>, precision = #tpu.contract_precision<fp32>} : vector<16x128xf32>, vector<128x128xf32>, vector<16x128xf32> -> vector<16x128xf32>
    %9 = vector.extract_strided_slice %3 {offsets = [0, 0], sizes = [1, 128], strides = [1, 1]} : vector<2x128xf32> to vector<1x128xf32>
    %10 = vector.broadcast %9 : vector<1x128xf32> to vector<16x128xf32>
    %11 = arith.addf %8, %10 : vector<16x128xf32>
    %c0_12 = arith.constant 0 : index
    %c1 = arith.constant 1 : index
    %c0_13 = arith.constant 0 : index
    %c0_14 = arith.constant 0 : index
    %12 = vector.load %arg4[%c0_12, %c1, %c0_13, %c0_14] : memref<1x2x128x128xf32, #tpu.memory_space<vmem>>, vector<1x1x128x128xf32>
    %13 = vector.shape_cast %12 : vector<1x1x128x128xf32> to vector<128x128xf32>
    %cst_15 = arith.constant dense<0.000000e+00> : vector<16x128xf32>
    %14 = tpu.matmul %1, %13, %cst_15 {dimension_numbers = #tpu.dot_dimension_numbers<[1], [0], [0], [1], [0, 0, 1, 1], [], []>, precision = #tpu.contract_precision<fp32>} : vector<16x128xf32>, vector<128x128xf32>, vector<16x128xf32> -> vector<16x128xf32>
    %15 = vector.extract_strided_slice %3 {offsets = [1, 0], sizes = [1, 128], strides = [1, 1]} : vector<2x128xf32> to vector<1x128xf32>
    %16 = vector.broadcast %15 : vector<1x128xf32> to vector<16x128xf32>
    %17 = arith.addf %14, %16 : vector<16x128xf32>
    %c0_16 = arith.constant 0 : index
    %c0_17 = arith.constant 0 : index
    %c0_18 = arith.constant 0 : index
    %18 = vector.load %arg1[%c0_16, %c0_17, %c0_18] : memref<1x16x16xf32, #tpu.memory_space<vmem>>, vector<1x16x16xf32>
    %19 = vector.shape_cast %18 : vector<1x16x16xf32> to vector<16x16xf32>
    %cst_19 = arith.constant dense<0.000000e+00> : vector<16x128xf32>
    %20 = tpu.matmul %19, %11, %cst_19 {dimension_numbers = #tpu.dot_dimension_numbers<[1], [0], [0], [1], [0, 0, 1, 1], [], []>, precision = #tpu.contract_precision<fp32>} : vector<16x16xf32>, vector<16x128xf32>, vector<16x128xf32> -> vector<16x128xf32>
    %c0_20 = arith.constant 0 : index
    %c0_21 = arith.constant 0 : index
    %c0_22 = arith.constant 0 : index
    %21 = vector.load %arg2[%c0_20, %c0_21, %c0_22] : memref<1x16x16xf32, #tpu.memory_space<vmem>>, vector<1x16x16xf32>
    %22 = vector.shape_cast %21 : vector<1x16x16xf32> to vector<16x16xf32>
    %cst_23 = arith.constant dense<0.000000e+00> : vector<16x128xf32>
    %23 = tpu.matmul %22, %17, %cst_23 {dimension_numbers = #tpu.dot_dimension_numbers<[1], [0], [0], [1], [0, 0, 1, 1], [], []>, precision = #tpu.contract_precision<fp32>} : vector<16x16xf32>, vector<16x128xf32>, vector<16x128xf32> -> vector<16x128xf32>
    %c0_24 = arith.constant 0 : index
    %c0_25 = arith.constant 0 : index
    %c0_26 = arith.constant 0 : index
    %c0_27 = arith.constant 0 : index
    %24 = vector.load %arg5[%c0_24, %c0_25, %c0_26, %c0_27] : memref<1x3x128x384xf32, #tpu.memory_space<vmem>>, vector<1x1x128x384xf32>
    %25 = vector.shape_cast %24 : vector<1x1x128x384xf32> to vector<128x384xf32>
    %cst_28 = arith.constant dense<0.000000e+00> : vector<16x384xf32>
    %26 = tpu.matmul %20, %25, %cst_28 {dimension_numbers = #tpu.dot_dimension_numbers<[1], [0], [0], [1], [0, 0, 1, 1], [], []>, precision = #tpu.contract_precision<fp32>} : vector<16x128xf32>, vector<128x384xf32>, vector<16x384xf32> -> vector<16x384xf32>
    %c0_29 = arith.constant 0 : index
    %c1_30 = arith.constant 1 : index
    %c0_31 = arith.constant 0 : index
    %c0_32 = arith.constant 0 : index
    %27 = vector.load %arg5[%c0_29, %c1_30, %c0_31, %c0_32] : memref<1x3x128x384xf32, #tpu.memory_space<vmem>>, vector<1x1x128x384xf32>
    %28 = vector.shape_cast %27 : vector<1x1x128x384xf32> to vector<128x384xf32>
    %cst_33 = arith.constant dense<0.000000e+00> : vector<16x384xf32>
    %29 = tpu.matmul %23, %28, %cst_33 {dimension_numbers = #tpu.dot_dimension_numbers<[1], [0], [0], [1], [0, 0, 1, 1], [], []>, precision = #tpu.contract_precision<fp32>} : vector<16x128xf32>, vector<128x384xf32>, vector<16x384xf32> -> vector<16x384xf32>
    %30 = arith.addf %26, %29 : vector<16x384xf32>
    %31 = vector.extract_strided_slice %5 {offsets = [0, 0], sizes = [1, 384], strides = [1, 1]} : vector<2x384xf32> to vector<1x384xf32>
    %32 = vector.broadcast %31 : vector<1x384xf32> to vector<16x384xf32>
    %33 = arith.addf %30, %32 : vector<16x384xf32>
    %c0_34 = arith.constant 0 : index
    %c2 = arith.constant 2 : index
    %c0_35 = arith.constant 0 : index
    %c0_36 = arith.constant 0 : index
    %34 = vector.load %arg5[%c0_34, %c2, %c0_35, %c0_36] : memref<1x3x128x384xf32, #tpu.memory_space<vmem>>, vector<1x1x128x384xf32>
    %35 = vector.shape_cast %34 : vector<1x1x128x384xf32> to vector<128x384xf32>
    %cst_37 = arith.constant dense<0.000000e+00> : vector<16x384xf32>
    %36 = tpu.matmul %1, %35, %cst_37 {dimension_numbers = #tpu.dot_dimension_numbers<[1], [0], [0], [1], [0, 0, 1, 1], [], []>, precision = #tpu.contract_precision<fp32>} : vector<16x128xf32>, vector<128x384xf32>, vector<16x384xf32> -> vector<16x384xf32>
    %37 = vector.extract_strided_slice %5 {offsets = [1, 0], sizes = [1, 384], strides = [1, 1]} : vector<2x384xf32> to vector<1x384xf32>
    %38 = vector.broadcast %37 : vector<1x384xf32> to vector<16x384xf32>
    %39 = arith.addf %36, %38 : vector<16x384xf32>
    %40 = vector.extract_strided_slice %33 {offsets = [0, 0], sizes = [16, 128], strides = [1, 1]} : vector<16x384xf32> to vector<16x128xf32>
    %41 = vector.extract_strided_slice %33 {offsets = [0, 128], sizes = [16, 128], strides = [1, 1]} : vector<16x384xf32> to vector<16x128xf32>
    %42 = vector.extract_strided_slice %33 {offsets = [0, 256], sizes = [16, 128], strides = [1, 1]} : vector<16x384xf32> to vector<16x128xf32>
    %43 = vector.extract_strided_slice %39 {offsets = [0, 0], sizes = [16, 128], strides = [1, 1]} : vector<16x384xf32> to vector<16x128xf32>
    %44 = vector.extract_strided_slice %39 {offsets = [0, 128], sizes = [16, 128], strides = [1, 1]} : vector<16x384xf32> to vector<16x128xf32>
    %45 = vector.extract_strided_slice %39 {offsets = [0, 256], sizes = [16, 128], strides = [1, 1]} : vector<16x384xf32> to vector<16x128xf32>
    %46 = arith.addf %40, %43 : vector<16x128xf32>
    %47 = arith.negf %46 : vector<16x128xf32>
    %48 = math.exp %47 : vector<16x128xf32>
    %cst_38 = arith.constant 1.000000e+00 : f32
    %49 = vector.broadcast %cst_38 : f32 to vector<16x128xf32>
    %50 = arith.addf %49, %48 : vector<16x128xf32>
    %51 = arith.divf %49, %50 : vector<16x128xf32>
    %52 = arith.addf %41, %44 : vector<16x128xf32>
    %53 = arith.negf %52 : vector<16x128xf32>
    %54 = math.exp %53 : vector<16x128xf32>
    %cst_39 = arith.constant 1.000000e+00 : f32
    %55 = vector.broadcast %cst_39 : f32 to vector<16x128xf32>
    %56 = arith.addf %55, %54 : vector<16x128xf32>
    %57 = arith.divf %55, %56 : vector<16x128xf32>
    %58 = arith.mulf %51, %45 : vector<16x128xf32>
    %59 = arith.addf %42, %58 : vector<16x128xf32>
    %60 = math.tanh %59 : vector<16x128xf32>
    %61 = arith.subf %1, %60 : vector<16x128xf32>
    %62 = arith.mulf %57, %61 : vector<16x128xf32>
    %63 = arith.addf %60, %62 : vector<16x128xf32>
    %c0_40 = arith.constant 0 : index
    %c0_41 = arith.constant 0 : index
    %c0_42 = arith.constant 0 : index
    %64 = vector.load %arg8[%c0_40, %c0_41, %c0_42] : memref<1x16x128xf32, #tpu.memory_space<vmem>>, vector<1x16x128xf32>
    %65 = vector.shape_cast %64 : vector<1x16x128xf32> to vector<16x128xf32>
    %66 = vector.shape_cast %63 : vector<16x128xf32> to vector<1x16x128xf32>
    tpu.vector_store %arg8[%c0_40, %c0_41, %c0_42], %66 {strides = array<i32>} : memref<1x16x128xf32, #tpu.memory_space<vmem>>, vector<1x16x128xf32>,
    return
  }
  func.func @transform_0(%arg0: i32) -> (i32, i32, i32) {
    %c0_i32 = arith.constant 0 : i32
    %c0_i32_0 = arith.constant 0 : i32
    %c0_i32_1 = arith.constant 0 : i32
    return %arg0, %c0_i32, %c0_i32_0 : i32, i32, i32
  }
  func.func @transform_1(%arg0: i32) -> (i32, i32, i32) {
    %c0_i32 = arith.constant 0 : i32
    %c0_i32_0 = arith.constant 0 : i32
    %c0_i32_1 = arith.constant 0 : i32
    return %arg0, %c0_i32, %c0_i32_0 : i32, i32, i32
  }
  func.func @transform_2(%arg0: i32) -> (i32, i32, i32) {
    %c0_i32 = arith.constant 0 : i32
    %c0_i32_0 = arith.constant 0 : i32
    %c0_i32_1 = arith.constant 0 : i32
    return %arg0, %c0_i32, %c0_i32_0 : i32, i32, i32
  }
  func.func @transform_3(%arg0: i32) -> (i32, i32, i32, i32) {
    %c0_i32 = arith.constant 0 : i32
    %c0_i32_0 = arith.constant 0 : i32
    %c0_i32_1 = arith.constant 0 : i32
    %c0_i32_2 = arith.constant 0 : i32
    return %arg0, %c0_i32, %c0_i32_0, %c0_i32_1 : i32, i32, i32, i32
  }
  func.func @transform_4(%arg0: i32) -> (i32, i32, i32, i32) {
    %c0_i32 = arith.constant 0 : i32
    %c0_i32_0 = arith.constant 0 : i32
    %c0_i32_1 = arith.constant 0 : i32
    %c0_i32_2 = arith.constant 0 : i32
    return %arg0, %c0_i32, %c0_i32_0, %c0_i32_1 : i32, i32, i32, i32
  }
  func.func @transform_5(%arg0: i32) -> (i32, i32, i32) {
    %c0_i32 = arith.constant 0 : i32
    %c0_i32_0 = arith.constant 0 : i32
    %c0_i32_1 = arith.constant 0 : i32
    return %arg0, %c0_i32, %c0_i32_0 : i32, i32, i32
  }
  func.func @transform_6(%arg0: i32) -> (i32, i32, i32) {
    %c0_i32 = arith.constant 0 : i32
    %c0_i32_0 = arith.constant 0 : i32
    %c0_i32_1 = arith.constant 0 : i32
    return %arg0, %c0_i32, %c0_i32_0 : i32, i32, i32
  }
  func.func @transform_7(%arg0: i32) -> (i32, i32, i32) {
    %c0_i32 = arith.constant 0 : i32
    %c0_i32_0 = arith.constant 0 : i32
    %c0_i32_1 = arith.constant 0 : i32
    return %arg0, %c0_i32, %c0_i32_0 : i32, i32, i32
  }
}

</mosaic_0001>

<llo_original>
// kernel: tpu_custom_call.1
$region0: #{tpu_custom_call.1}
  #allocation0 [shape = 'u32[]', space=smem, size = 0x4, offset = 0x4, fixed_abs, tag = 'smem constant byte address 0x4 - core index']
  #allocation1 [shape = 'u32[144,128]{1,0:T(1,128)}', space=vmem, size = 0x12000, scoped, tag = 'internal scratch']
  %s0 = inlined_call_operand.hbm [shape: f32[3,16,16], index: 0, kind: input, shape index: {}]
  %s1 = inlined_call_operand.hbm [shape: f32[3,16,16], index: 1, kind: input, shape index: {}]
  %s2 = inlined_call_operand.hbm [shape: f32[3,16,128], index: 2, kind: input, shape index: {}]
  %s3 = inlined_call_operand.hbm [shape: f32[3,2,128,128], index: 3, kind: input, shape index: {}]
  %s4 = inlined_call_operand.hbm [shape: f32[3,3,128,384], index: 4, kind: input, shape index: {}]
  %s5 = inlined_call_operand.hbm [shape: f32[3,2,128], index: 5, kind: input, shape index: {}]
  %s6 = inlined_call_operand.hbm [shape: f32[3,2,384], index: 6, kind: input, shape index: {}]
  %s7 = inlined_call_operand.hbm [shape: f32[3,16,128], index: 7, kind: output, shape index: {}]
  %s8 = sld [smem:[#allocation0]]
  $region89: #{tpu_custom_call.1} parent=0
    _
  %s10 = ssub.s32 1, %s8
  %s11 = scalar_select 0, %s10, %s8
  $region1: #{tpu_custom_call.1} parent=0
    #allocation2 [shape = 'u8[16384]{0}', space=vmem, size = 0x4000, scoped, tag = 'input window, operand 0']
    #allocation3 [shape = 's32[2]{0}', space=sflag, size = 0x8, scoped, tag = 'scoped memory for tpu_custom_call.1']
    #allocation4 [shape = 's32[2]{0}', space=sflag, size = 0x8, scoped, tag = 'scoped memory for tpu_custom_call.1']
    #allocation5 [shape = 'u8[16384]{0}', space=vmem, size = 0x4000, scoped, tag = 'input window, operand 1']
    #allocation6 [shape = 's32[2]{0}', space=sflag, size = 0x8, scoped, tag = 'scoped memory for tpu_custom_call.1']
    #allocation7 [shape = 'u8[16384]{0}', space=vmem, size = 0x4000, scoped, tag = 'input window, operand 2']
    #allocation8 [shape = 'u8[262144]{0}', space=vmem, size = 0x40000, scoped, tag = 'input window, operand 3']
    #allocation9 [shape = 's32[2]{0}', space=sflag, size = 0x8, scoped, tag = 'scoped memory for tpu_custom_call.1']
    #allocation10 [shape = 'u8[1179648]{0}', space=vmem, size = 0x120000, scoped, tag = 'input window, operand 4']
    #allocation11 [shape = 'u8[2048]{0}', space=vmem, size = 0x800, scoped, tag = 'input window, operand 5']
    #allocation12 [shape = 's32[2]{0}', space=sflag, size = 0x8, scoped, tag = 'scoped memory for tpu_custom_call.1']
    #allocation13 [shape = 'u8[6144]{0}', space=vmem, size = 0x1800, scoped, tag = 'input window, operand 6']
    #allocation14 [shape = 'u8[16384]{0}', space=vmem, size = 0x4000, scoped, tag = 'output window, operand 0']
    %12 = vsyncpa [#allocation3], 0
    %s13 = scalar_lea.sflag [#allocation3], 1
    %14 = vsyncpa %s13, 0
    %15 = vsyncpa [#allocation6], 0
    %s16 = scalar_lea.sflag [#allocation6], 1
    %17 = vsyncpa %s16, 0
    %18 = vsyncpa [#allocation9], 0
    %s19 = scalar_lea.sflag [#allocation9], 1
    %20 = vsyncpa %s19, 0
    %21 = vsyncpa [#allocation12], 0
    %s22 = scalar_lea.sflag [#allocation12], 1
    %23 = vsyncpa %s22, 0
    %24 = vsyncpa [#allocation4], 0
    %s25 = scalar_lea.sflag [#allocation4], 1
    %26 = vsyncpa %s25, 0
    loop: start=0, step=1, limit=5
    $region2: #{tpu_custom_call.1} parent=1 // loop_pre_header
      _
    $region3: #{tpu_custom_call.1} parent=1 // loop_header
      %s28 = sphi 0, %s32
      %p29 = scmp.ge.s32.totalorder %s28, 5
      %s38 = sphi 0, %s40
      %s41 = sphi 0, %s38
      %s42 = sphi 0, %s41
      %s58 = sphi 0, %s42
      %s64 = sphi 0, %s66
      %s67 = sphi 0, %s64
      %s68 = sphi 0, %s67
      %s84 = sphi 0, %s68
      %s90 = sphi 0, %s92
      %s93 = sphi 0, %s90
      %s94 = sphi 0, %s93
      %s110 = sphi 0, %s94
      %s116 = sphi 0, %s118
      %s119 = sphi 0, %s116
      %s120 = sphi 0, %s119
      %s136 = sphi 0, %s120
      %s142 = sphi 0, %s144
      %s145 = sphi 0, %s142
      %s146 = sphi 0, %s145
      %s162 = sphi 0, %s146
      %s168 = sphi 0, %s170
      %s171 = sphi 0, %s168
      %s172 = sphi 0, %s171
      %s188 = sphi 0, %s172
      %s194 = sphi 0, %s196
      %s197 = sphi 0, %s194
      %s198 = sphi 0, %s197
      %s214 = sphi 0, %s198
      %s220 = sphi 0, %s222
      %s223 = sphi 0, %s220
      %s224 = sphi 0, %s223
      %s240 = sphi 0, %s224
    $region4: #{tpu_custom_call.1} parent=1 // loop_header_branch
      %31 = sbr.rel (%p29) target = $region8
    $region5: #{tpu_custom_call.1} parent=1 // loop_body
      %s33 = ssub.s32 %s28, 1
      %s34 = ssub.s32 %s28, 2
      %s35 = sadd.s32 %s28, 1
      %s36 = ssub.s32 %s28, %s35
      %p37 = scmp.eq.s32.totalorder %s36, 0
      %s39 = sadd.s32 %s38, 1
      %s40 = scalar_select %p37, %s38, %s39
      %p43 = pneg %p37
      %p44 = scmp.eq.s32.totalorder %s28, 2
      %p45 = por %p43, %p44
      %p46 = scmp.ne.s32.totalorder %s38, %s41
      %p47 = scmp.eq.s32.totalorder %s28, 0
      %p48 = por %p46, %p47
      %p49 = scmp.ne.s32.totalorder %s38, %s41
      %p50 = scmp.eq.s32.totalorder %s33, 2
      %p51 = por %p49, %p50
      %p52 = scmp.ne.s32.totalorder %s41, %s42
      %p53 = scmp.eq.s32.totalorder %s33, 0
      %p54 = por %p52, %p53
      %p55 = scmp.ne.s32.totalorder %s41, %s42
      %p56 = scmp.eq.s32.totalorder %s34, 2
      %p57 = por %p55, %p56
      %p59 = scmp.ne.s32.totalorder %s42, %s58
      %p60 = scmp.eq.s32.totalorder %s34, 0
      %p61 = por %p59, %p60
      %s62 = ssub.s32 %s28, %s35
      %p63 = scmp.eq.s32.totalorder %s62, 0
      %s65 = sadd.s32 %s64, 1
      %s66 = scalar_select %p63, %s64, %s65
      %p69 = pneg %p63
      %p70 = scmp.eq.s32.totalorder %s28, 2
      %p71 = por %p69, %p70
      %p72 = scmp.ne.s32.totalorder %s64, %s67
      %p73 = scmp.eq.s32.totalorder %s28, 0
      %p74 = por %p72, %p73
      %p75 = scmp.ne.s32.totalorder %s64, %s67
      %p76 = scmp.eq.s32.totalorder %s33, 2
      %p77 = por %p75, %p76
      %p78 = scmp.ne.s32.totalorder %s67, %s68
      %p79 = scmp.eq.s32.totalorder %s33, 0
      %p80 = por %p78, %p79
      %p81 = scmp.ne.s32.totalorder %s67, %s68
      %p82 = scmp.eq.s32.totalorder %s34, 2
      %p83 = por %p81, %p82
      %p85 = scmp.ne.s32.totalorder %s68, %s84
      %p86 = scmp.eq.s32.totalorder %s34, 0
      %p87 = por %p85, %p86
      %s88 = ssub.s32 %s28, %s35
      %p89 = scmp.eq.s32.totalorder %s88, 0
      %s91 = sadd.s32 %s90, 1
      %s92 = scalar_select %p89, %s90, %s91
      %p95 = pneg %p89
      %p96 = scmp.eq.s32.totalorder %s28, 2
      %p97 = por %p95, %p96
      %p98 = scmp.ne.s32.totalorder %s90, %s93
      %p99 = scmp.eq.s32.totalorder %s28, 0
      %p100 = por %p98, %p99
      %p101 = scmp.ne.s32.totalorder %s90, %s93
      %p102 = scmp.eq.s32.totalorder %s33, 2
      %p103 = por %p101, %p102
      %p104 = scmp.ne.s32.totalorder %s93, %s94
      %p105 = scmp.eq.s32.totalorder %s33, 0
      %p106 = por %p104, %p105
      %p107 = scmp.ne.s32.totalorder %s93, %s94
      %p108 = scmp.eq.s32.totalorder %s34, 2
      %p109 = por %p107, %p108
      %p111 = scmp.ne.s32.totalorder %s94, %s110
      %p112 = scmp.eq.s32.totalorder %s34, 0
      %p113 = por %p111, %p112
      %s114 = ssub.s32 %s28, %s35
      %p115 = scmp.eq.s32.totalorder %s114, 0
      %s117 = sadd.s32 %s116, 1
      %s118 = scalar_select %p115, %s116, %s117
      %p121 = pneg %p115
      %p122 = scmp.eq.s32.totalorder %s28, 2
      %p123 = por %p121, %p122
      %p124 = scmp.ne.s32.totalorder %s116, %s119
      %p125 = scmp.eq.s32.totalorder %s28, 0
      %p126 = por %p124, %p125
      %p127 = scmp.ne.s32.totalorder %s116, %s119
      %p128 = scmp.eq.s32.totalorder %s33, 2
      %p129 = por %p127, %p128
      %p130 = scmp.ne.s32.totalorder %s119, %s120
      %p131 = scmp.eq.s32.totalorder %s33, 0
      %p132 = por %p130, %p131
      %p133 = scmp.ne.s32.totalorder %s119, %s120
      %p134 = scmp.eq.s32.totalorder %s34, 2
      %p135 = por %p133, %p134
      %p137 = scmp.ne.s32.totalorder %s120, %s136
      %p138 = scmp.eq.s32.totalorder %s34, 0
      %p139 = por %p137, %p138
      %s140 = ssub.s32 %s28, %s35
      %p141 = scmp.eq.s32.totalorder %s140, 0
      %s143 = sadd.s32 %s142, 1
      %s144 = scalar_select %p141, %s142, %s143
      %p147 = pneg %p141
      %p148 = scmp.eq.s32.totalorder %s28, 2
      %p149 = por %p147, %p148
      %p150 = scmp.ne.s32.totalorder %s142, %s145
      %p151 = scmp.eq.s32.totalorder %s28, 0
      %p152 = por %p150, %p151
      %p153 = scmp.ne.s32.totalorder %s142, %s145
      %p154 = scmp.eq.s32.totalorder %s33, 2
      %p155 = por %p153, %p154
      %p156 = scmp.ne.s32.totalorder %s145, %s146
      %p157 = scmp.eq.s32.totalorder %s33, 0
      %p158 = por %p156, %p157
      %p159 = scmp.ne.s32.totalorder %s145, %s146
      %p160 = scmp.eq.s32.totalorder %s34, 2
      %p161 = por %p159, %p160
      %p163 = scmp.ne.s32.totalorder %s146, %s162
      %p164 = scmp.eq.s32.totalorder %s34, 0
      %p165 = por %p163, %p164
      %s166 = ssub.s32 %s28, %s35
      %p167 = scmp.eq.s32.totalorder %s166, 0
      %s169 = sadd.s32 %s168, 1
      %s170 = scalar_select %p167, %s168, %s169
      %p173 = pneg %p167
      %p174 = scmp.eq.s32.totalorder %s28, 2
      %p175 = por %p173, %p174
      %p176 = scmp.ne.s32.totalorder %s168, %s171
      %p177 = scmp.eq.s32.totalorder %s28, 0
      %p178 = por %p176, %p177
      %p179 = scmp.ne.s32.totalorder %s168, %s171
      %p180 = scmp.eq.s32.totalorder %s33, 2
      %p181 = por %p179, %p180
      %p182 = scmp.ne.s32.totalorder %s171, %s172
      %p183 = scmp.eq.s32.totalorder %s33, 0
      %p184 = por %p182, %p183
      %p185 = scmp.ne.s32.totalorder %s171, %s172
      %p186 = scmp.eq.s32.totalorder %s34, 2
      %p187 = por %p185, %p186
      %p189 = scmp.ne.s32.totalorder %s172, %s188
      %p190 = scmp.eq.s32.totalorder %s34, 0
      %p191 = por %p189, %p190
      %s192 = ssub.s32 %s28, %s35
      %p193 = scmp.eq.s32.totalorder %s192, 0
      %s195 = sadd.s32 %s194, 1
      %s196 = scalar_select %p193, %s194, %s195
      %p199 = pneg %p193
      %p200 = scmp.eq.s32.totalorder %s28, 2
      %p201 = por %p199, %p200
      %p202 = scmp.ne.s32.totalorder %s194, %s197
      %p203 = scmp.eq.s32.totalorder %s28, 0
      %p204 = por %p202, %p203
      %p205 = scmp.ne.s32.totalorder %s194, %s197
      %p206 = scmp.eq.s32.totalorder %s33, 2
      %p207 = por %p205, %p206
      %p208 = scmp.ne.s32.totalorder %s197, %s198
      %p209 = scmp.eq.s32.totalorder %s33, 0
      %p210 = por %p208, %p209
      %p211 = scmp.ne.s32.totalorder %s197, %s198
      %p212 = scmp.eq.s32.totalorder %s34, 2
      %p213 = por %p211, %p212
      %p215 = scmp.ne.s32.totalorder %s198, %s214
      %p216 = scmp.eq.s32.totalorder %s34, 0
      %p217 = por %p215, %p216
      %s218 = ssub.s32 %s28, %s35
      %p219 = scmp.eq.s32.totalorder %s218, 0
      %s221 = sadd.s32 %s220, 1
      %s222 = scalar_select %p219, %s220, %s221
      %p225 = pneg %p219
      %p226 = scmp.eq.s32.totalorder %s28, 2
      %p227 = por %p225, %p226
      %p228 = scmp.ne.s32.totalorder %s220, %s223
      %p229 = scmp.eq.s32.totalorder %s28, 0
      %p230 = por %p228, %p229
      %p231 = scmp.ne.s32.totalorder %s220, %s223
      %p232 = scmp.eq.s32.totalorder %s33, 2
      %p233 = por %p231, %p232
      %p234 = scmp.ne.s32.totalorder %s223, %s224
      %p235 = scmp.eq.s32.totalorder %s33, 0
      %p236 = por %p234, %p235
      %p237 = scmp.ne.s32.totalorder %s223, %s224
      %p238 = scmp.eq.s32.totalorder %s34, 2
      %p239 = por %p237, %p238
      %p241 = scmp.ne.s32.totalorder %s224, %s240
      %p242 = scmp.eq.s32.totalorder %s34, 0
      %p243 = por %p241, %p242
      %p244 = scmp.le.s32.totalorder 1, %s28
      %p245 = scmp.lt.s32.totalorder %s28, 4
      %p246 = pnand %p244, %p245
      %p247 = pneg %p246
      // Predicated region
      $region9: #{tpu_custom_call.1} parent=5 // pred_check
        _
      $region10: #{tpu_custom_call.1} parent=5 // pred_check_branch
        %249 = sbr.rel (%p246) target = $region12
      $region11: #{tpu_custom_call.1} parent=5 // pred_region
        %s250 = ssub.s32 %s28, 1
      $region12: #{tpu_custom_call.1} parent=5 // pred_fallthru
        _
      %p251 = scmp.lt.s32.totalorder %s28, 3
      // Predicated region
      $region13: #{tpu_custom_call.1} parent=5 // pred_check
        %p252 = pneg %p251
      $region14: #{tpu_custom_call.1} parent=5 // pred_check_branch
        %254 = sbr.rel (%p252) target = $region16
      $region15: #{tpu_custom_call.1} parent=5 // pred_region
        // Predicated region
        $region17: #{tpu_custom_call.1} parent=15 // pred_check
          %p255 = pneg %p48
        $region18: #{tpu_custom_call.1} parent=15 // pred_check_branch
          %257 = sbr.rel (%p255) target = $region20
        $region19: #{tpu_custom_call.1} parent=15 // pred_region
          %s258 = sand.u32 %s38, 1
          %s259 = scalar_lea.sflag [#allocation3], %s258
          %s260 = sand.u32 %s38, 1
          %s261 = smul.addr %s260, 16
          %s262 = scalar_lea.vmem [#allocation2], %s261
          %s264 = ssub.s32 256, 256
          %265 = vsyncadd %s259, %s264
          %s266 = smul.addr %s28, 2
          %s267 = smul.addr %s266, 128
          %s268 = scalar_lea.hbm %s0, %s267
          %s269 = sshll.u32 %s262, 4
          %s270 = int_to_ptr.vmem [resolvable:$true] %s269
          %275 = dma.hbm_to_vmem [thread:$0]  %s268, 256, %s270, %s259, 128, 128, 8
        $region20: #{tpu_custom_call.1} parent=15 // pred_fallthru
          _
        // Predicated region
        $region21: #{tpu_custom_call.1} parent=15 // pred_check
          %p276 = pneg %p74
        $region22: #{tpu_custom_call.1} parent=15 // pred_check_branch
          %278 = sbr.rel (%p276) target = $region24
        $region23: #{tpu_custom_call.1} parent=15 // pred_region
          %s279 = sand.u32 %s28, 1
          %s280 = scalar_lea.sflag [#allocation6], %s279
          %s281 = sand.u32 %s64, 1
          %s282 = smul.addr %s281, 16
          %s283 = scalar_lea.vmem [#allocation5], %s282
          %s285 = ssub.s32 256, 256
          %286 = vsyncadd %s280, %s285
          %s287 = smul.addr %s28, 2
          %s288 = smul.addr %s287, 128
          %s289 = scalar_lea.hbm %s1, %s288
          %s290 = sshll.u32 %s283, 4
          %s291 = int_to_ptr.vmem [resolvable:$true] %s290
          %296 = dma.hbm_to_vmem [thread:$0]  %s289, 256, %s291, %s280, 128, 128, 8
        $region24: #{tpu_custom_call.1} parent=15 // pred_fallthru
          _
        // Predicated region
        $region25: #{tpu_custom_call.1} parent=15 // pred_check
          %p297 = pneg %p100
        $region26: #{tpu_custom_call.1} parent=15 // pred_check_branch
          %299 = sbr.rel (%p297) target = $region28
        $region27: #{tpu_custom_call.1} parent=15 // pred_region
          %s300 = sand.u32 %s28, 1
          %s301 = scalar_lea.sflag [#allocation6], %s300
          %s302 = sand.u32 %s90, 1
          %s303 = smul.addr %s302, 16
          %s304 = scalar_lea.vmem [#allocation7], %s303
          %s306 = ssub.s32 256, 256
          %307 = vsyncadd %s301, %s306
          %s308 = smul.addr %s28, 2
          %s309 = smul.addr %s308, 128
          %s310 = scalar_lea.hbm %s2, %s309
          %s311 = sshll.u32 %s304, 4
          %s312 = int_to_ptr.vmem [resolvable:$true] %s311
          %317 = dma.hbm_to_vmem [thread:$0]  %s310, 256, %s312, %s301, 128, 128, 8
        $region28: #{tpu_custom_call.1} parent=15 // pred_fallthru
          _
        // Predicated region
        $region29: #{tpu_custom_call.1} parent=15 // pred_check
          %p318 = pneg %p126
        $region30: #{tpu_custom_call.1} parent=15 // pred_check_branch
          %320 = sbr.rel (%p318) target = $region32
        $region31: #{tpu_custom_call.1} parent=15 // pred_region
          %s321 = sand.u32 %s28, 1
          %s322 = scalar_lea.sflag [#allocation9], %s321
          %s323 = sand.u32 %s116, 1
          %s324 = smul.addr %s323, 256
          %s325 = scalar_lea.vmem [#allocation8], %s324
          %s327 = ssub.s32 4096, 4096
          %328 = vsyncadd %s322, %s327
          %s329 = smul.addr %s28, 32
          %s330 = smul.addr %s329, 128
          %s331 = scalar_lea.hbm %s3, %s330
          %s332 = sshll.u32 %s325, 4
          %s333 = int_to_ptr.vmem [resolvable:$true] %s332
          %338 = dma.hbm_to_vmem [thread:$0]  %s331, 4096, %s333, %s322, 128, 128, 8
        $region32: #{tpu_custom_call.1} parent=15 // pred_fallthru
          _
        // Predicated region
        $region33: #{tpu_custom_call.1} parent=15 // pred_check
          %p339 = pneg %p152
        $region34: #{tpu_custom_call.1} parent=15 // pred_check_branch
          %341 = sbr.rel (%p339) target = $region36
        $region35: #{tpu_custom_call.1} parent=15 // pred_region
          %s342 = sand.u32 %s28, 1
          %s343 = scalar_lea.sflag [#allocation9], %s342
          %s344 = sand.u32 %s142, 1
          %s345 = smul.addr %s344, 1152
          %s346 = scalar_lea.vmem [#allocation10], %s345
          %s348 = ssub.s32 18432, 18432
          %349 = vsyncadd %s343, %s348
          %s350 = smul.addr %s28, 144
          %s351 = smul.addr %s350, 128
          %s352 = scalar_lea.hbm %s4, %s351
          %s353 = sshll.u32 %s346, 4
          %s354 = int_to_ptr.vmem [resolvable:$true] %s353
          %359 = dma.hbm_to_vmem [thread:$0]  %s352, 18432, %s354, %s343, 384, 384, 24
        $region36: #{tpu_custom_call.1} parent=15 // pred_fallthru
          _
        // Predicated region
        $region37: #{tpu_custom_call.1} parent=15 // pred_check
          %p360 = pneg %p178
        $region38: #{tpu_custom_call.1} parent=15 // pred_check_branch
          %362 = sbr.rel (%p360) target = $region40
        $region39: #{tpu_custom_call.1} parent=15 // pred_region
          %s363 = sand.u32 %s28, 1
          %s364 = scalar_lea.sflag [#allocation12], %s363
          %s365 = sand.u32 %s168, 1
          %s366 = smul.addr %s365, 2
          %s367 = scalar_lea.vmem [#allocation11], %s366
          %s369 = ssub.s32 32, 32
          %370 = vsyncadd %s364, %s369
          %s371 = smul.addr %s28, 32
          %s372 = scalar_lea.hbm %s5, %s371
          %s374 = sshll.u32 %s367, 4
          %s375 = int_to_ptr.vmem [resolvable:$true] %s374
          %377 = dma.hbm_to_vmem [thread:$0]  %s372, 32, %s375, %s364
        $region40: #{tpu_custom_call.1} parent=15 // pred_fallthru
          _
        // Predicated region
        $region41: #{tpu_custom_call.1} parent=15 // pred_check
          %p378 = pneg %p204
        $region42: #{tpu_custom_call.1} parent=15 // pred_check_branch
          %380 = sbr.rel (%p378) target = $region44
        $region43: #{tpu_custom_call.1} parent=15 // pred_region
          %s381 = sand.u32 %s28, 1
          %s382 = scalar_lea.sflag [#allocation12], %s381
          %s383 = sand.u32 %s194, 1
          %s384 = smul.addr %s383, 6
          %s385 = scalar_lea.vmem [#allocation13], %s384
          %s387 = ssub.s32 96, 96
          %388 = vsyncadd %s382, %s387
          %s389 = smul.addr %s28, 3
          %s390 = smul.addr %s389, 32
          %s391 = scalar_lea.hbm %s6, %s390
          %s393 = sshll.u32 %s385, 4
          %s394 = int_to_ptr.vmem [resolvable:$true] %s393
          %396 = dma.hbm_to_vmem [thread:$0]  %s391, 96, %s394, %s382
        $region44: #{tpu_custom_call.1} parent=15 // pred_fallthru
          _
      $region16: #{tpu_custom_call.1} parent=5 // pred_fallthru
        _
      %p397 = scmp.le.s32.totalorder 1, %s28
      %p398 = scmp.lt.s32.totalorder %s28, 4
      %p399 = pnand %p397, %p398
      %p400 = pneg %p399
      // Predicated region
      $region45: #{tpu_custom_call.1} parent=5 // pred_check
        _
      $region46: #{tpu_custom_call.1} parent=5 // pred_check_branch
        %402 = sbr.rel (%p399) target = $region48
      $region47: #{tpu_custom_call.1} parent=5 // pred_region
        %s403 = ssub.s32 %s28, 1
        %s404 = sand.u32 %s41, 1
        %s405 = scalar_lea.sflag [#allocation3], %s404
        %s406 = sand.u32 %s41, 1
        %s407 = smul.addr %s406, 16
        %s408 = scalar_lea.vmem [#allocation2], %s407
        // Predicated region
        $region49: #{tpu_custom_call.1} parent=47 // pred_check
          %p409 = pneg %p54
        $region50: #{tpu_custom_call.1} parent=47 // pred_check_branch
          %411 = sbr.rel (%p409) target = $region52
        $region51: #{tpu_custom_call.1} parent=47 // pred_region
          %412 = dma.done %s405, 256
        $region52: #{tpu_custom_call.1} parent=47 // pred_fallthru
          _
        %s413 = sand.u32 %s33, 1
        %s414 = scalar_lea.sflag [#allocation6], %s413
        %s415 = sand.u32 %s67, 1
        %s416 = smul.addr %s415, 16
        %s417 = scalar_lea.vmem [#allocation5], %s416
        // Predicated region
        $region53: #{tpu_custom_call.1} parent=47 // pred_check
          %p418 = pneg %p80
        $region54: #{tpu_custom_call.1} parent=47 // pred_check_branch
          %420 = sbr.rel (%p418) target = $region56
        $region55: #{tpu_custom_call.1} parent=47 // pred_region
          %421 = dma.done %s414, 256
        $region56: #{tpu_custom_call.1} parent=47 // pred_fallthru
          _
        %s422 = sand.u32 %s33, 1
        %s423 = scalar_lea.sflag [#allocation6], %s422
        %s424 = sand.u32 %s93, 1
        %s425 = smul.addr %s424, 16
        %s426 = scalar_lea.vmem [#allocation7], %s425
        // Predicated region
        $region57: #{tpu_custom_call.1} parent=47 // pred_check
          %p427 = pneg %p106
        $region58: #{tpu_custom_call.1} parent=47 // pred_check_branch
          %429 = sbr.rel (%p427) target = $region60
        $region59: #{tpu_custom_call.1} parent=47 // pred_region
          %430 = dma.done %s423, 256
        $region60: #{tpu_custom_call.1} parent=47 // pred_fallthru
          _
        %s431 = sand.u32 %s33, 1
        %s432 = scalar_lea.sflag [#allocation9], %s431
        %s433 = sand.u32 %s119, 1
        %s434 = smul.addr %s433, 256
        %s435 = scalar_lea.vmem [#allocation8], %s434
        // Predicated region
        $region61: #{tpu_custom_call.1} parent=47 // pred_check
          %p436 = pneg %p132
        $region62: #{tpu_custom_call.1} parent=47 // pred_check_branch
          %438 = sbr.rel (%p436) target = $region64
        $region63: #{tpu_custom_call.1} parent=47 // pred_region
          %439 = dma.done %s432, 4096
        $region64: #{tpu_custom_call.1} parent=47 // pred_fallthru
          _
        %s440 = sand.u32 %s33, 1
        %s441 = scalar_lea.sflag [#allocation9], %s440
        %s442 = sand.u32 %s145, 1
        %s443 = smul.addr %s442, 1152
        %s444 = scalar_lea.vmem [#allocation10], %s443
        // Predicated region
        $region65: #{tpu_custom_call.1} parent=47 // pred_check
          %p445 = pneg %p158
        $region66: #{tpu_custom_call.1} parent=47 // pred_check_branch
          %447 = sbr.rel (%p445) target = $region68
        $region67: #{tpu_custom_call.1} parent=47 // pred_region
          %448 = dma.done %s441, 18432
        $region68: #{tpu_custom_call.1} parent=47 // pred_fallthru
          _
        %s449 = sand.u32 %s33, 1
        %s450 = scalar_lea.sflag [#allocation12], %s449
        %s451 = sand.u32 %s171, 1
        %s452 = smul.addr %s451, 2
        %s453 = scalar_lea.vmem [#allocation11], %s452
        // Predicated region
        $region69: #{tpu_custom_call.1} parent=47 // pred_check
          %p454 = pneg %p184
        $region70: #{tpu_custom_call.1} parent=47 // pred_check_branch
          %456 = sbr.rel (%p454) target = $region72
        $region71: #{tpu_custom_call.1} parent=47 // pred_region
          %457 = dma.done %s450, 32
        $region72: #{tpu_custom_call.1} parent=47 // pred_fallthru
          _
        %s458 = sand.u32 %s33, 1
        %s459 = scalar_lea.sflag [#allocation12], %s458
        %s460 = sand.u32 %s197, 1
        %s461 = smul.addr %s460, 6
        %s462 = scalar_lea.vmem [#allocation13], %s461
        // Predicated region
        $region73: #{tpu_custom_call.1} parent=47 // pred_check
          %p463 = pneg %p210
        $region74: #{tpu_custom_call.1} parent=47 // pred_check_branch
          %465 = sbr.rel (%p463) target = $region76
        $region75: #{tpu_custom_call.1} parent=47 // pred_region
          %466 = dma.done %s459, 96
        $region76: #{tpu_custom_call.1} parent=47 // pred_fallthru
          _
        %s467 = sand.u32 %s41, 1
        %s468 = scalar_lea.sflag [#allocation3], %s467
        %s469 = sand.u32 %s41, 1
        %s470 = smul.addr %s469, 16
        %s471 = scalar_lea.vmem [#allocation2], %s470
        %p472 = pneg %p54
        %p473 = pneg %p51
        %s474 = sand.u32 %s33, 1
        %s475 = scalar_lea.sflag [#allocation6], %s474
        %s476 = sand.u32 %s67, 1
        %s477 = smul.addr %s476, 16
        %s478 = scalar_lea.vmem [#allocation5], %s477
        %p479 = pneg %p80
        %p480 = pneg %p77
        %s481 = sand.u32 %s33, 1
        %s482 = scalar_lea.sflag [#allocation6], %s481
        %s483 = sand.u32 %s93, 1
        %s484 = smul.addr %s483, 16
        %s485 = scalar_lea.vmem [#allocation7], %s484
        %p486 = pneg %p106
        %p487 = pneg %p103
        %s488 = sand.u32 %s33, 1
        %s489 = scalar_lea.sflag [#allocation9], %s488
        %s490 = sand.u32 %s119, 1
        %s491 = smul.addr %s490, 256
        %s492 = scalar_lea.vmem [#allocation8], %s491
        %p493 = pneg %p132
        %p494 = pneg %p129
        %s495 = sand.u32 %s33, 1
        %s496 = scalar_lea.sflag [#allocation9], %s495
        %s497 = sand.u32 %s145, 1
        %s498 = smul.addr %s497, 1152
        %s499 = scalar_lea.vmem [#allocation10], %s498
        %p500 = pneg %p158
        %p501 = pneg %p155
        %s502 = sand.u32 %s33, 1
        %s503 = scalar_lea.sflag [#allocation12], %s502
        %s504 = sand.u32 %s171, 1
        %s505 = smul.addr %s504, 2
        %s506 = scalar_lea.vmem [#allocation11], %s505
        %p507 = pneg %p184
        %p508 = pneg %p181
        %s509 = sand.u32 %s33, 1
        %s510 = scalar_lea.sflag [#allocation12], %s509
        %s511 = sand.u32 %s197, 1
        %s512 = smul.addr %s511, 6
        %s513 = scalar_lea.vmem [#allocation13], %s512
        %p514 = pneg %p210
        %p515 = pneg %p207
        %p516 = pneg %p236
        %p517 = pneg %p233
        %s518 = sand.u32 %s223, 1
        %s519 = scalar_lea.sflag [#allocation4], %s518
        %s520 = sand.u32 %s223, 1
        %s521 = smul.addr %s520, 16
        %s522 = scalar_lea.vmem [#allocation14], %s521
        %v523 = vld [vmem:[%s426] sm:$0xff]
        %v524 = vld [vmem:[%s426 + $0x8] sm:$0xff]
        %v525 = vld [vmem:[%s453] sm:$0x3]
        %v526 = vld [vmem:[%s462] sm:$0x3f]
        %v527 = vld [vmem:[%s435] sm:$0xff]
        %v528 = vld [vmem:[%s435 + $0x8] sm:$0xff]
        %v529 = vld [vmem:[%s435 + $0x10] sm:$0xff]
        %v530 = vld [vmem:[%s435 + $0x18] sm:$0xff]
        %v531 = vld [vmem:[%s435 + $0x20] sm:$0xff]
        %v532 = vld [vmem:[%s435 + $0x28] sm:$0xff]
        %v533 = vld [vmem:[%s435 + $0x30] sm:$0xff]
        %v534 = vld [vmem:[%s435 + $0x38] sm:$0xff]
        %v535 = vld [vmem:[%s435 + $0x40] sm:$0xff]
        %v536 = vld [vmem:[%s435 + $0x48] sm:$0xff]
        %v537 = vld [vmem:[%s435 + $0x50] sm:$0xff]
        %v538 = vld [vmem:[%s435 + $0x58] sm:$0xff]
        %v539 = vld [vmem:[%s435 + $0x60] sm:$0xff]
        %v540 = vld [vmem:[%s435 + $0x68] sm:$0xff]
        %v541 = vld [vmem:[%s435 + $0x70] sm:$0xff]
        %v542 = vld [vmem:[%s435 + $0x78] sm:$0xff]
        %v543 = vlaneseq
        %v544 = vshrl.u32 %v543, 7
        %v545 = vsub.s32 0, %v544
        %v546 = vrot.slane %v525, %v545
        %547 = vmatprep.subr.mxu0 0.0
        %v548 = vand.u32 %v542, 4294901760
        %549 = vmatpush1.msra.mxu0 %v548
        %550 = vmatprep.subr.mxu0 0.0
        %v551 = vand.u32 %v541, 4294901760
        %552 = vmatpush1.msra.mxu0 %v551
        %553 = vmatprep.subr.mxu0 0.0
        %v554 = vand.u32 %v540, 4294901760
        %555 = vmatpush1.msra.mxu0 %v554
        %556 = vmatprep.subr.mxu0 0.0
        %v557 = vand.u32 %v539, 4294901760
        %558 = vmatpush1.msra.mxu0 %v557
        %559 = vmatprep.subr.mxu0 0.0
        %v560 = vand.u32 %v538, 4294901760
        %561 = vmatpush1.msra.mxu0 %v560
        %562 = vmatprep.subr.mxu0 0.0
        %v563 = vand.u32 %v537, 4294901760
        %564 = vmatpush1.msra.mxu0 %v563
        %565 = vmatprep.subr.mxu0 0.0
        %v566 = vand.u32 %v536, 4294901760
        %567 = vmatpush1.msra.mxu0 %v566
        %568 = vmatprep.subr.mxu0 0.0
        %v569 = vand.u32 %v535, 4294901760
        %570 = vmatpush1.msra.mxu0 %v569
        %571 = vmatprep.subr.mxu0 0.0
        %v572 = vand.u32 %v534, 4294901760
        %573 = vmatpush1.msra.mxu0 %v572
        %574 = vmatprep.subr.mxu0 0.0
        %v575 = vand.u32 %v533, 4294901760
        %576 = vmatpush1.msra.mxu0 %v575
        %577 = vmatprep.subr.mxu0 0.0
        %v578 = vand.u32 %v532, 4294901760
        %579 = vmatpush1.msra.mxu0 %v578
        %580 = vmatprep.subr.mxu0 0.0
        %v581 = vand.u32 %v531, 4294901760
        %582 = vmatpush1.msra.mxu0 %v581
        %583 = vmatprep.subr.mxu0 0.0
        %v584 = vand.u32 %v530, 4294901760
        %585 = vmatpush1.msra.mxu0 %v584
        %586 = vmatprep.subr.mxu0 0.0
        %v587 = vand.u32 %v529, 4294901760
        %588 = vmatpush1.msra.mxu0 %v587
        %589 = vmatprep.subr.mxu0 0.0
        %v590 = vand.u32 %v528, 4294901760
        %591 = vmatpush1.msra.mxu0 %v590
        %592 = vmatprep.subr.mxu0 0.0
        %v593 = vand.u32 %v527, 4294901760
        %594 = vmatpush1.msra.mxu0 %v593
        %595 = vmatprep.subr.mxu0 0.0
        %596 = vmatpush2.msra.mxu0 0.0
        %597 = vmatprep.subr.mxu0 0.0
        %598 = vmatpush2.msra.mxu0 0.0
        %599 = vmatprep.subr.mxu0 0.0
        %600 = vmatpush2.msra.mxu0 0.0
        %601 = vmatprep.subr.mxu0 0.0
        %602 = vmatpush2.msra.mxu0 0.0
        %603 = vmatprep.subr.mxu0 0.0
        %604 = vmatpush2.msra.mxu0 0.0
        %605 = vmatprep.subr.mxu0 0.0
        %606 = vmatpush2.msra.mxu0 0.0
        %607 = vmatprep.subr.mxu0 0.0
        %608 = vmatpush2.msra.mxu0 0.0
        %609 = vmatprep.subr.mxu0 0.0
        %610 = vmatpush2.msra.mxu0 0.0
        %611 = vmatprep.subr.mxu0 0.0
        %612 = vmatpush2.msra.mxu0 0.0
        %613 = vmatprep.subr.mxu0 0.0
        %614 = vmatpush2.msra.mxu0 0.0
        %615 = vmatprep.subr.mxu0 0.0
        %616 = vmatpush2.msra.mxu0 0.0
        %617 = vmatprep.subr.mxu0 0.0
        %618 = vmatpush2.msra.mxu0 0.0
        %619 = vmatprep.subr.mxu0 0.0
        %620 = vmatpush2.msra.mxu0 0.0
        %621 = vmatprep.subr.mxu0 0.0
        %622 = vmatpush2.msra.mxu0 0.0
        %623 = vmatprep.subr.mxu0 0.0
        %624 = vmatpush2.msra.mxu0 0.0
        %625 = vmatprep.subr.mxu0 0.0
        %626 = vmatpush2.msra.mxu0 0.0
        %627 = vmatprep.mubr.f32.mxu0 0.0
        %v628 = vand.u32 %v523, 4294901760
        %v629 = vsub.f32 %v523, %v628
        %v630 = vand.u32 %v629, 4294901760
        %v631 = vsub.f32 %v629, %v630
        %v632 = vand.u32 %v631, 4294901760
        %633 = vmatmul.mubr.f32.gmra.mxu0 %v632
        %v634 = vpop.f32.mrf.mxu0
        %v635 = vadd.f32 %v546, %v634
        %v636 = vpop.f32.mrf.mxu0
        %637 = vmatprep.mubr.f32.mxu0 0.0
        %v638 = vand.u32 %v524, 4294901760
        %v639 = vsub.f32 %v524, %v638
        %v640 = vand.u32 %v639, 4294901760
        %v641 = vsub.f32 %v639, %v640
        %v642 = vand.u32 %v641, 4294901760
        %643 = vmatmul.mubr.f32.gmra.mxu0 %v642
        %v644 = vpop.f32.mrf.mxu0
        %v645 = vadd.f32 %v546, %v644
        %v646 = vpop.f32.mrf.mxu0
        %647 = vdwg.mxu0
        %648 = vmatprep.subr.mxu0 0.0
        %v649 = vand.u32 %v542, 4294901760
        %v650 = vsub.f32 %v542, %v649
        %v651 = vand.u32 %v650, 4294901760
        %v652 = vsub.f32 %v650, %v651
        %v653 = vand.u32 %v652, 4294901760
        %654 = vmatpush1.msra.mxu0 %v653
        %655 = vmatprep.subr.mxu0 0.0
        %v656 = vand.u32 %v541, 4294901760
        %v657 = vsub.f32 %v541, %v656
        %v658 = vand.u32 %v657, 4294901760
        %v659 = vsub.f32 %v657, %v658
        %v660 = vand.u32 %v659, 4294901760
        %661 = vmatpush1.msra.mxu0 %v660
        %662 = vmatprep.subr.mxu0 0.0
        %v663 = vand.u32 %v540, 4294901760
        %v664 = vsub.f32 %v540, %v663
        %v665 = vand.u32 %v664, 4294901760
        %v666 = vsub.f32 %v664, %v665
        %v667 = vand.u32 %v666, 4294901760
        %668 = vmatpush1.msra.mxu0 %v667
        %669 = vmatprep.subr.mxu0 0.0
        %v670 = vand.u32 %v539, 4294901760
        %v671 = vsub.f32 %v539, %v670
        %v672 = vand.u32 %v671, 4294901760
        %v673 = vsub.f32 %v671, %v672
        %v674 = vand.u32 %v673, 4294901760
        %675 = vmatpush1.msra.mxu0 %v674
        %676 = vmatprep.subr.mxu0 0.0
        %v677 = vand.u32 %v538, 4294901760
        %v678 = vsub.f32 %v538, %v677
        %v679 = vand.u32 %v678, 4294901760
        %v680 = vsub.f32 %v678, %v679
        %v681 = vand.u32 %v680, 4294901760
        %682 = vmatpush1.msra.mxu0 %v681
        %683 = vmatprep.subr.mxu0 0.0
        %v684 = vand.u32 %v537, 4294901760
        %v685 = vsub.f32 %v537, %v684
        %v686 = vand.u32 %v685, 4294901760
        %v687 = vsub.f32 %v685, %v686
        %v688 = vand.u32 %v687, 4294901760
        %689 = vmatpush1.msra.mxu0 %v688
        %690 = vmatprep.subr.mxu0 0.0
        %v691 = vand.u32 %v536, 4294901760
        %v692 = vsub.f32 %v536, %v691
        %v693 = vand.u32 %v692, 4294901760
        %v694 = vsub.f32 %v692, %v693
        %v695 = vand.u32 %v694, 4294901760
        %696 = vmatpush1.msra.mxu0 %v695
        %697 = vmatprep.subr.mxu0 0.0
        %v698 = vand.u32 %v535, 4294901760
        %v699 = vsub.f32 %v535, %v698
        %v700 = vand.u32 %v699, 4294901760
        %v701 = vsub.f32 %v699, %v700
        %v702 = vand.u32 %v701, 4294901760
        %703 = vmatpush1.msra.mxu0 %v702
        %704 = vmatprep.subr.mxu0 0.0
        %v705 = vand.u32 %v534, 4294901760
        %v706 = vsub.f32 %v534, %v705
        %v707 = vand.u32 %v706, 4294901760
        %v708 = vsub.f32 %v706, %v707
        %v709 = vand.u32 %v708, 4294901760
        %710 = vmatpush1.msra.mxu0 %v709
        %711 = vmatprep.subr.mxu0 0.0
        %v712 = vand.u32 %v533, 4294901760
        %v713 = vsub.f32 %v533, %v712
        %v714 = vand.u32 %v713, 4294901760
        %v715 = vsub.f32 %v713, %v714
        %v716 = vand.u32 %v715, 4294901760
        %717 = vmatpush1.msra.mxu0 %v716
        %718 = vmatprep.subr.mxu0 0.0
        %v719 = vand.u32 %v532, 4294901760
        %v720 = vsub.f32 %v532, %v719
        %v721 = vand.u32 %v720, 4294901760
        %v722 = vsub.f32 %v720, %v721
        %v723 = vand.u32 %v722, 4294901760
        %724 = vmatpush1.msra.mxu0 %v723
        %725 = vmatprep.subr.mxu0 0.0
        %v726 = vand.u32 %v531, 4294901760
        %v727 = vsub.f32 %v531, %v726
        %v728 = vand.u32 %v727, 4294901760
        %v729 = vsub.f32 %v727, %v728
        %v730 = vand.u32 %v729, 4294901760
        %731 = vmatpush1.msra.mxu0 %v730
        %732 = vmatprep.subr.mxu0 0.0
        %v733 = vand.u32 %v530, 4294901760
        %v734 = vsub.f32 %v530, %v733
        %v735 = vand.u32 %v734, 4294901760
        %v736 = vsub.f32 %v734, %v735
        %v737 = vand.u32 %v736, 4294901760
        %738 = vmatpush1.msra.mxu0 %v737
        %739 = vmatprep.subr.mxu0 0.0
        %v740 = vand.u32 %v529, 4294901760
        %v741 = vsub.f32 %v529, %v740
        %v742 = vand.u32 %v741, 4294901760
        %v743 = vsub.f32 %v741, %v742
        %v744 = vand.u32 %v743, 4294901760
        %745 = vmatpush1.msra.mxu0 %v744
        %746 = vmatprep.subr.mxu0 0.0
        %v747 = vand.u32 %v528, 4294901760
        %v748 = vsub.f32 %v528, %v747
        %v749 = vand.u32 %v748, 4294901760
        %v750 = vsub.f32 %v748, %v749
        %v751 = vand.u32 %v750, 4294901760
        %752 = vmatpush1.msra.mxu0 %v751
        %753 = vmatprep.subr.mxu0 0.0
        %v754 = vand.u32 %v527, 4294901760
        %v755 = vsub.f32 %v527, %v754
        %v756 = vand.u32 %v755, 4294901760
        %v757 = vsub.f32 %v755, %v756
        %v758 = vand.u32 %v757, 4294901760
        %759 = vmatpush1.msra.mxu0 %v758
        %760 = vmatprep.subr.mxu0 0.0
        %761 = vmatpush2.msra.mxu0 0.0
        %762 = vmatprep.subr.mxu0 0.0
        %763 = vmatpush2.msra.mxu0 0.0
        %764 = vmatprep.subr.mxu0 0.0
        %765 = vmatpush2.msra.mxu0 0.0
        %766 = vmatprep.subr.mxu0 0.0
        %767 = vmatpush2.msra.mxu0 0.0
        %768 = vmatprep.subr.mxu0 0.0
        %769 = vmatpush2.msra.mxu0 0.0
        %770 = vmatprep.subr.mxu0 0.0
        %771 = vmatpush2.msra.mxu0 0.0
        %772 = vmatprep.subr.mxu0 0.0
        %773 = vmatpush2.msra.mxu0 0.0
        %774 = vmatprep.subr.mxu0 0.0
        %775 = vmatpush2.msra.mxu0 0.0
        %776 = vmatprep.subr.mxu0 0.0
        %777 = vmatpush2.msra.mxu0 0.0
        %778 = vmatprep.subr.mxu0 0.0
        %779 = vmatpush2.msra.mxu0 0.0
        %780 = vmatprep.subr.mxu0 0.0
        %781 = vmatpush2.msra.mxu0 0.0
        %782 = vmatprep.subr.mxu0 0.0
        %783 = vmatpush2.msra.mxu0 0.0
        %784 = vmatprep.subr.mxu0 0.0
        %785 = vmatpush2.msra.mxu0 0.0
        %786 = vmatprep.subr.mxu0 0.0
        %787 = vmatpush2.msra.mxu0 0.0
        %788 = vmatprep.subr.mxu0 0.0
        %789 = vmatpush2.msra.mxu0 0.0
        %790 = vmatprep.subr.mxu0 0.0
        %791 = vmatpush2.msra.mxu0 0.0
        %792 = vmatprep.mubr.f32.mxu0 0.0
        %v793 = vand.u32 %v523, 4294901760
        %794 = vmatmul.mubr.f32.gmra.mxu0 %v793
        %v795 = vpop.f32.mrf.mxu0
        %v796 = vadd.f32 %v635, %v795
        %v797 = vpop.f32.mrf.mxu0
        %798 = vmatprep.mubr.f32.mxu0 0.0
        %v799 = vand.u32 %v524, 4294901760
        %800 = vmatmul.mubr.f32.gmra.mxu0 %v799
        %v801 = vpop.f32.mrf.mxu0
        %v802 = vadd.f32 %v645, %v801
        %v803 = vpop.f32.mrf.mxu0
        %804 = vdwg.mxu0
        %805 = vmatprep.subr.mxu0 0.0
        %v806 = vand.u32 %v542, 4294901760
        %v807 = vsub.f32 %v542, %v806
        %808 = vmatpush1.msra.mxu0 %v807
        %809 = vmatprep.subr.mxu0 0.0
        %v810 = vand.u32 %v541, 4294901760
        %v811 = vsub.f32 %v541, %v810
        %812 = vmatpush1.msra.mxu0 %v811
        %813 = vmatprep.subr.mxu0 0.0
        %v814 = vand.u32 %v540, 4294901760
        %v815 = vsub.f32 %v540, %v814
        %816 = vmatpush1.msra.mxu0 %v815
        %817 = vmatprep.subr.mxu0 0.0
        %v818 = vand.u32 %v539, 4294901760
        %v819 = vsub.f32 %v539, %v818
        %820 = vmatpush1.msra.mxu0 %v819
        %821 = vmatprep.subr.mxu0 0.0
        %v822 = vand.u32 %v538, 4294901760
        %v823 = vsub.f32 %v538, %v822
        %824 = vmatpush1.msra.mxu0 %v823
        %825 = vmatprep.subr.mxu0 0.0
        %v826 = vand.u32 %v537, 4294901760
        %v827 = vsub.f32 %v537, %v826
        %828 = vmatpush1.msra.mxu0 %v827
        %829 = vmatprep.subr.mxu0 0.0
        %v830 = vand.u32 %v536, 4294901760
        %v831 = vsub.f32 %v536, %v830
        %832 = vmatpush1.msra.mxu0 %v831
        %833 = vmatprep.subr.mxu0 0.0
        %v834 = vand.u32 %v535, 4294901760
        %v835 = vsub.f32 %v535, %v834
        %836 = vmatpush1.msra.mxu0 %v835
        %837 = vmatprep.subr.mxu0 0.0
        %v838 = vand.u32 %v534, 4294901760
        %v839 = vsub.f32 %v534, %v838
        %840 = vmatpush1.msra.mxu0 %v839
        %841 = vmatprep.subr.mxu0 0.0
        %v842 = vand.u32 %v533, 4294901760
        %v843 = vsub.f32 %v533, %v842
        %844 = vmatpush1.msra.mxu0 %v843
        %845 = vmatprep.subr.mxu0 0.0
        %v846 = vand.u32 %v532, 4294901760
        %v847 = vsub.f32 %v532, %v846
        %848 = vmatpush1.msra.mxu0 %v847
        %849 = vmatprep.subr.mxu0 0.0
        %v850 = vand.u32 %v531, 4294901760
        %v851 = vsub.f32 %v531, %v850
        %852 = vmatpush1.msra.mxu0 %v851
        %853 = vmatprep.subr.mxu0 0.0
        %v854 = vand.u32 %v530, 4294901760
        %v855 = vsub.f32 %v530, %v854
        %856 = vmatpush1.msra.mxu0 %v855
        %857 = vmatprep.subr.mxu0 0.0
        %v858 = vand.u32 %v529, 4294901760
        %v859 = vsub.f32 %v529, %v858
        %860 = vmatpush1.msra.mxu0 %v859
        %861 = vmatprep.subr.mxu0 0.0
        %v862 = vand.u32 %v528, 4294901760
        %v863 = vsub.f32 %v528, %v862
        %864 = vmatpush1.msra.mxu0 %v863
        %865 = vmatprep.subr.mxu0 0.0
        %v866 = vand.u32 %v527, 4294901760
        %v867 = vsub.f32 %v527, %v866
        %868 = vmatpush1.msra.mxu0 %v867
        %869 = vmatprep.subr.mxu0 0.0
        %870 = vmatpush2.msra.mxu0 0.0
        %871 = vmatprep.subr.mxu0 0.0
        %872 = vmatpush2.msra.mxu0 0.0
        %873 = vmatprep.subr.mxu0 0.0
        %874 = vmatpush2.msra.mxu0 0.0
        %875 = vmatprep.subr.mxu0 0.0
        %876 = vmatpush2.msra.mxu0 0.0
        %877 = vmatprep.subr.mxu0 0.0
        %878 = vmatpush2.msra.mxu0 0.0
        %879 = vmatprep.subr.mxu0 0.0
        %880 = vmatpush2.msra.mxu0 0.0
        %881 = vmatprep.subr.mxu0 0.0
        %882 = vmatpush2.msra.mxu0 0.0
        %883 = vmatprep.subr.mxu0 0.0
        %884 = vmatpush2.msra.mxu0 0.0
        %885 = vmatprep.subr.mxu0 0.0
        %886 = vmatpush2.msra.mxu0 0.0
        %887 = vmatprep.subr.mxu0 0.0
        %888 = vmatpush2.msra.mxu0 0.0
        %889 = vmatprep.subr.mxu0 0.0
        %890 = vmatpush2.msra.mxu0 0.0
        %891 = vmatprep.subr.mxu0 0.0
        %892 = vmatpush2.msra.mxu0 0.0
        %893 = vmatprep.subr.mxu0 0.0
        %894 = vmatpush2.msra.mxu0 0.0
        %895 = vmatprep.subr.mxu0 0.0
        %896 = vmatpush2.msra.mxu0 0.0
        %897 = vmatprep.subr.mxu0 0.0
        %898 = vmatpush2.msra.mxu0 0.0
        %899 = vmatprep.subr.mxu0 0.0
        %900 = vmatpush2.msra.mxu0 0.0
        %901 = vmatprep.mubr.f32.mxu0 0.0
        %v902 = vand.u32 %v523, 4294901760
        %v903 = vsub.f32 %v523, %v902
        %904 = vmatmul.mubr.f32.gmra.mxu0 %v903
        %v905 = vpop.f32.mrf.mxu0
        %v906 = vadd.f32 %v796, %v905
        %v907 = vpop.f32.mrf.mxu0
        %908 = vmatprep.mubr.f32.mxu0 0.0
        %v909 = vand.u32 %v524, 4294901760
        %v910 = vsub.f32 %v524, %v909
        %911 = vmatmul.mubr.f32.gmra.mxu0 %v910
        %v912 = vpop.f32.mrf.mxu0
        %v913 = vadd.f32 %v802, %v912
        %v914 = vpop.f32.mrf.mxu0
        %915 = vdwg.mxu0
        %916 = vmatprep.subr.mxu0 0.0
        %v917 = vand.u32 %v542, 4294901760
        %918 = vmatpush1.msra.mxu0 %v917
        %919 = vmatprep.subr.mxu0 0.0
        %v920 = vand.u32 %v541, 4294901760
        %921 = vmatpush1.msra.mxu0 %v920
        %922 = vmatprep.subr.mxu0 0.0
        %v923 = vand.u32 %v540, 4294901760
        %924 = vmatpush1.msra.mxu0 %v923
        %925 = vmatprep.subr.mxu0 0.0
        %v926 = vand.u32 %v539, 4294901760
        %927 = vmatpush1.msra.mxu0 %v926
        %928 = vmatprep.subr.mxu0 0.0
        %v929 = vand.u32 %v538, 4294901760
        %930 = vmatpush1.msra.mxu0 %v929
        %931 = vmatprep.subr.mxu0 0.0
        %v932 = vand.u32 %v537, 4294901760
        %933 = vmatpush1.msra.mxu0 %v932
        %934 = vmatprep.subr.mxu0 0.0
        %v935 = vand.u32 %v536, 4294901760
        %936 = vmatpush1.msra.mxu0 %v935
        %937 = vmatprep.subr.mxu0 0.0
        %v938 = vand.u32 %v535, 4294901760
        %939 = vmatpush1.msra.mxu0 %v938
        %940 = vmatprep.subr.mxu0 0.0
        %v941 = vand.u32 %v534, 4294901760
        %942 = vmatpush1.msra.mxu0 %v941
        %943 = vmatprep.subr.mxu0 0.0
        %v944 = vand.u32 %v533, 4294901760
        %945 = vmatpush1.msra.mxu0 %v944
        %946 = vmatprep.subr.mxu0 0.0
        %v947 = vand.u32 %v532, 4294901760
        %948 = vmatpush1.msra.mxu0 %v947
        %949 = vmatprep.subr.mxu0 0.0
        %v950 = vand.u32 %v531, 4294901760
        %951 = vmatpush1.msra.mxu0 %v950
        %952 = vmatprep.subr.mxu0 0.0
        %v953 = vand.u32 %v530, 4294901760
        %954 = vmatpush1.msra.mxu0 %v953
        %955 = vmatprep.subr.mxu0 0.0
        %v956 = vand.u32 %v529, 4294901760
        %957 = vmatpush1.msra.mxu0 %v956
        %958 = vmatprep.subr.mxu0 0.0
        %v959 = vand.u32 %v528, 4294901760
        %960 = vmatpush1.msra.mxu0 %v959
        %961 = vmatprep.subr.mxu0 0.0
        %v962 = vand.u32 %v527, 4294901760
        %963 = vmatpush1.msra.mxu0 %v962
        %964 = vmatprep.subr.mxu0 0.0
        %965 = vmatpush2.msra.mxu0 0.0
        %966 = vmatprep.subr.mxu0 0.0
        %967 = vmatpush2.msra.mxu0 0.0
        %968 = vmatprep.subr.mxu0 0.0
        %969 = vmatpush2.msra.mxu0 0.0
        %970 = vmatprep.subr.mxu0 0.0
        %971 = vmatpush2.msra.mxu0 0.0
        %972 = vmatprep.subr.mxu0 0.0
        %973 = vmatpush2.msra.mxu0 0.0
        %974 = vmatprep.subr.mxu0 0.0
        %975 = vmatpush2.msra.mxu0 0.0
        %976 = vmatprep.subr.mxu0 0.0
        %977 = vmatpush2.msra.mxu0 0.0
        %978 = vmatprep.subr.mxu0 0.0
        %979 = vmatpush2.msra.mxu0 0.0
        %980 = vmatprep.subr.mxu0 0.0
        %981 = vmatpush2.msra.mxu0 0.0
        %982 = vmatprep.subr.mxu0 0.0
        %983 = vmatpush2.msra.mxu0 0.0
        %984 = vmatprep.subr.mxu0 0.0
        %985 = vmatpush2.msra.mxu0 0.0
        %986 = vmatprep.subr.mxu0 0.0
        %987 = vmatpush2.msra.mxu0 0.0
        %988 = vmatprep.subr.mxu0 0.0
        %989 = vmatpush2.msra.mxu0 0.0
        %990 = vmatprep.subr.mxu0 0.0
        %991 = vmatpush2.msra.mxu0 0.0
        %992 = vmatprep.subr.mxu0 0.0
        %993 = vmatpush2.msra.mxu0 0.0
        %994 = vmatprep.subr.mxu0 0.0
        %995 = vmatpush2.msra.mxu0 0.0
        %996 = vmatprep.mubr.f32.mxu0 0.0
        %v997 = vand.u32 %v523, 4294901760
        %v998 = vsub.f32 %v523, %v997
        %v999 = vand.u32 %v998, 4294901760
        %1000 = vmatmul.mubr.f32.gmra.mxu0 %v999
        %v1001 = vpop.f32.mrf.mxu0
        %v1002 = vadd.f32 %v906, %v1001
        %v1003 = vpop.f32.mrf.mxu0
        %1004 = vmatprep.mubr.f32.mxu0 0.0
        %v1005 = vand.u32 %v524, 4294901760
        %v1006 = vsub.f32 %v524, %v1005
        %v1007 = vand.u32 %v1006, 4294901760
        %1008 = vmatmul.mubr.f32.gmra.mxu0 %v1007
        %v1009 = vpop.f32.mrf.mxu0
        %v1010 = vadd.f32 %v913, %v1009
        %v1011 = vpop.f32.mrf.mxu0
        %1012 = vdwg.mxu0
        %1013 = vmatprep.subr.mxu0 0.0
        %v1014 = vand.u32 %v542, 4294901760
        %v1015 = vsub.f32 %v542, %v1014
        %v1016 = vand.u32 %v1015, 4294901760
        %1017 = vmatpush1.msra.mxu0 %v1016
        %1018 = vmatprep.subr.mxu0 0.0
        %v1019 = vand.u32 %v541, 4294901760
        %v1020 = vsub.f32 %v541, %v1019
        %v1021 = vand.u32 %v1020, 4294901760
        %1022 = vmatpush1.msra.mxu0 %v1021
        %1023 = vmatprep.subr.mxu0 0.0
        %v1024 = vand.u32 %v540, 4294901760
        %v1025 = vsub.f32 %v540, %v1024
        %v1026 = vand.u32 %v1025, 4294901760
        %1027 = vmatpush1.msra.mxu0 %v1026
        %1028 = vmatprep.subr.mxu0 0.0
        %v1029 = vand.u32 %v539, 4294901760
        %v1030 = vsub.f32 %v539, %v1029
        %v1031 = vand.u32 %v1030, 4294901760
        %1032 = vmatpush1.msra.mxu0 %v1031
        %1033 = vmatprep.subr.mxu0 0.0
        %v1034 = vand.u32 %v538, 4294901760
        %v1035 = vsub.f32 %v538, %v1034
        %v1036 = vand.u32 %v1035, 4294901760
        %1037 = vmatpush1.msra.mxu0 %v1036
        %1038 = vmatprep.subr.mxu0 0.0
        %v1039 = vand.u32 %v537, 4294901760
        %v1040 = vsub.f32 %v537, %v1039
        %v1041 = vand.u32 %v1040, 4294901760
        %1042 = vmatpush1.msra.mxu0 %v1041
        %1043 = vmatprep.subr.mxu0 0.0
        %v1044 = vand.u32 %v536, 4294901760
        %v1045 = vsub.f32 %v536, %v1044
        %v1046 = vand.u32 %v1045, 4294901760
        %1047 = vmatpush1.msra.mxu0 %v1046
        %1048 = vmatprep.subr.mxu0 0.0
        %v1049 = vand.u32 %v535, 4294901760
        %v1050 = vsub.f32 %v535, %v1049
        %v1051 = vand.u32 %v1050, 4294901760
        %1052 = vmatpush1.msra.mxu0 %v1051
        %1053 = vmatprep.subr.mxu0 0.0
        %v1054 = vand.u32 %v534, 4294901760
        %v1055 = vsub.f32 %v534, %v1054
        %v1056 = vand.u32 %v1055, 4294901760
        %1057 = vmatpush1.msra.mxu0 %v1056
        %1058 = vmatprep.subr.mxu0 0.0
        %v1059 = vand.u32 %v533, 4294901760
        %v1060 = vsub.f32 %v533, %v1059
        %v1061 = vand.u32 %v1060, 4294901760
        %1062 = vmatpush1.msra.mxu0 %v1061
        %1063 = vmatprep.subr.mxu0 0.0
        %v1064 = vand.u32 %v532, 4294901760
        %v1065 = vsub.f32 %v532, %v1064
        %v1066 = vand.u32 %v1065, 4294901760
        %1067 = vmatpush1.msra.mxu0 %v1066
        %1068 = vmatprep.subr.mxu0 0.0
        %v1069 = vand.u32 %v531, 4294901760
        %v1070 = vsub.f32 %v531, %v1069
        %v1071 = vand.u32 %v1070, 4294901760
        %1072 = vmatpush1.msra.mxu0 %v1071
        %1073 = vmatprep.subr.mxu0 0.0
        %v1074 = vand.u32 %v530, 4294901760
        %v1075 = vsub.f32 %v530, %v1074
        %v1076 = vand.u32 %v1075, 4294901760
        %1077 = vmatpush1.msra.mxu0 %v1076
        %1078 = vmatprep.subr.mxu0 0.0
        %v1079 = vand.u32 %v529, 4294901760
        %v1080 = vsub.f32 %v529, %v1079
        %v1081 = vand.u32 %v1080, 4294901760
        %1082 = vmatpush1.msra.mxu0 %v1081
        %1083 = vmatprep.subr.mxu0 0.0
        %v1084 = vand.u32 %v528, 4294901760
        %v1085 = vsub.f32 %v528, %v1084
        %v1086 = vand.u32 %v1085, 4294901760
        %1087 = vmatpush1.msra.mxu0 %v1086
        %1088 = vmatprep.subr.mxu0 0.0
        %v1089 = vand.u32 %v527, 4294901760
        %v1090 = vsub.f32 %v527, %v1089
        %v1091 = vand.u32 %v1090, 4294901760
        %1092 = vmatpush1.msra.mxu0 %v1091
        %1093 = vmatprep.subr.mxu0 0.0
        %1094 = vmatpush2.msra.mxu0 0.0
        %1095 = vmatprep.subr.mxu0 0.0
        %1096 = vmatpush2.msra.mxu0 0.0
        %1097 = vmatprep.subr.mxu0 0.0
        %1098 = vmatpush2.msra.mxu0 0.0
        %1099 = vmatprep.subr.mxu0 0.0
        %1100 = vmatpush2.msra.mxu0 0.0
        %1101 = vmatprep.subr.mxu0 0.0
        %1102 = vmatpush2.msra.mxu0 0.0
        %1103 = vmatprep.subr.mxu0 0.0
        %1104 = vmatpush2.msra.mxu0 0.0
        %1105 = vmatprep.subr.mxu0 0.0
        %1106 = vmatpush2.msra.mxu0 0.0
        %1107 = vmatprep.subr.mxu0 0.0
        %1108 = vmatpush2.msra.mxu0 0.0
        %1109 = vmatprep.subr.mxu0 0.0
        %1110 = vmatpush2.msra.mxu0 0.0
        %1111 = vmatprep.subr.mxu0 0.0
        %1112 = vmatpush2.msra.mxu0 0.0
        %1113 = vmatprep.subr.mxu0 0.0
        %1114 = vmatpush2.msra.mxu0 0.0
        %1115 = vmatprep.subr.mxu0 0.0
        %1116 = vmatpush2.msra.mxu0 0.0
        %1117 = vmatprep.subr.mxu0 0.0
        %1118 = vmatpush2.msra.mxu0 0.0
        %1119 = vmatprep.subr.mxu0 0.0
        %1120 = vmatpush2.msra.mxu0 0.0
        %1121 = vmatprep.subr.mxu0 0.0
        %1122 = vmatpush2.msra.mxu0 0.0
        %1123 = vmatprep.subr.mxu0 0.0
        %1124 = vmatpush2.msra.mxu0 0.0
        %1125 = vmatprep.mubr.f32.mxu0 0.0
        %v1126 = vand.u32 %v523, 4294901760
        %1127 = vmatmul.mubr.f32.gmra.mxu0 %v1126
        %v1128 = vpop.f32.mrf.mxu0
        %v1129 = vadd.f32 %v1002, %v1128
        %v1130 = vpop.f32.mrf.mxu0
        %1131 = vmatprep.mubr.f32.mxu0 0.0
        %v1132 = vand.u32 %v524, 4294901760
        %1133 = vmatmul.mubr.f32.gmra.mxu0 %v1132
        %v1134 = vpop.f32.mrf.mxu0
        %v1135 = vadd.f32 %v1010, %v1134
        %v1136 = vpop.f32.mrf.mxu0
        %1137 = vdwg.mxu0
        %1138 = vmatprep.subr.mxu0 0.0
        %v1139 = vand.u32 %v542, 4294901760
        %1140 = vmatpush1.msra.mxu0 %v1139
        %1141 = vmatprep.subr.mxu0 0.0
        %v1142 = vand.u32 %v541, 4294901760
        %1143 = vmatpush1.msra.mxu0 %v1142
        %1144 = vmatprep.subr.mxu0 0.0
        %v1145 = vand.u32 %v540, 4294901760
        %1146 = vmatpush1.msra.mxu0 %v1145
        %1147 = vmatprep.subr.mxu0 0.0
        %v1148 = vand.u32 %v539, 4294901760
        %1149 = vmatpush1.msra.mxu0 %v1148
        %1150 = vmatprep.subr.mxu0 0.0
        %v1151 = vand.u32 %v538, 4294901760
        %1152 = vmatpush1.msra.mxu0 %v1151
        %1153 = vmatprep.subr.mxu0 0.0
        %v1154 = vand.u32 %v537, 4294901760
        %1155 = vmatpush1.msra.mxu0 %v1154
        %1156 = vmatprep.subr.mxu0 0.0
        %v1157 = vand.u32 %v536, 4294901760
        %1158 = vmatpush1.msra.mxu0 %v1157
        %1159 = vmatprep.subr.mxu0 0.0
        %v1160 = vand.u32 %v535, 4294901760
        %1161 = vmatpush1.msra.mxu0 %v1160
        %1162 = vmatprep.subr.mxu0 0.0
        %v1163 = vand.u32 %v534, 4294901760
        %1164 = vmatpush1.msra.mxu0 %v1163
        %1165 = vmatprep.subr.mxu0 0.0
        %v1166 = vand.u32 %v533, 4294901760
        %1167 = vmatpush1.msra.mxu0 %v1166
        %1168 = vmatprep.subr.mxu0 0.0
        %v1169 = vand.u32 %v532, 4294901760
        %1170 = vmatpush1.msra.mxu0 %v1169
        %1171 = vmatprep.subr.mxu0 0.0
        %v1172 = vand.u32 %v531, 4294901760
        %1173 = vmatpush1.msra.mxu0 %v1172
        %1174 = vmatprep.subr.mxu0 0.0
        %v1175 = vand.u32 %v530, 4294901760
        %1176 = vmatpush1.msra.mxu0 %v1175
        %1177 = vmatprep.subr.mxu0 0.0
        %v1178 = vand.u32 %v529, 4294901760
        %1179 = vmatpush1.msra.mxu0 %v1178
        %1180 = vmatprep.subr.mxu0 0.0
        %v1181 = vand.u32 %v528, 4294901760
        %1182 = vmatpush1.msra.mxu0 %v1181
        %1183 = vmatprep.subr.mxu0 0.0
        %v1184 = vand.u32 %v527, 4294901760
        %1185 = vmatpush1.msra.mxu0 %v1184
        %1186 = vmatprep.subr.mxu0 0.0
        %1187 = vmatpush2.msra.mxu0 0.0
        %1188 = vmatprep.subr.mxu0 0.0
        %1189 = vmatpush2.msra.mxu0 0.0
        %1190 = vmatprep.subr.mxu0 0.0
        %1191 = vmatpush2.msra.mxu0 0.0
        %1192 = vmatprep.subr.mxu0 0.0
        %1193 = vmatpush2.msra.mxu0 0.0
        %1194 = vmatprep.subr.mxu0 0.0
        %1195 = vmatpush2.msra.mxu0 0.0
        %1196 = vmatprep.subr.mxu0 0.0
        %1197 = vmatpush2.msra.mxu0 0.0
        %1198 = vmatprep.subr.mxu0 0.0
        %1199 = vmatpush2.msra.mxu0 0.0
        %1200 = vmatprep.subr.mxu0 0.0
        %1201 = vmatpush2.msra.mxu0 0.0
        %1202 = vmatprep.subr.mxu0 0.0
        %1203 = vmatpush2.msra.mxu0 0.0
        %1204 = vmatprep.subr.mxu0 0.0
        %1205 = vmatpush2.msra.mxu0 0.0
        %1206 = vmatprep.subr.mxu0 0.0
        %1207 = vmatpush2.msra.mxu0 0.0
        %1208 = vmatprep.subr.mxu0 0.0
        %1209 = vmatpush2.msra.mxu0 0.0
        %1210 = vmatprep.subr.mxu0 0.0
        %1211 = vmatpush2.msra.mxu0 0.0
        %1212 = vmatprep.subr.mxu0 0.0
        %1213 = vmatpush2.msra.mxu0 0.0
        %1214 = vmatprep.subr.mxu0 0.0
        %1215 = vmatpush2.msra.mxu0 0.0
        %1216 = vmatprep.subr.mxu0 0.0
        %1217 = vmatpush2.msra.mxu0 0.0
        %1218 = vmatprep.mubr.f32.mxu0 0.0
        %v1219 = vand.u32 %v523, 4294901760
        %1220 = vmatmul.mubr.f32.gmra.mxu0 %v1219
        %v1221 = vpop.f32.mrf.mxu0
        %v1222 = vadd.f32 %v1129, %v1221
        %v1223 = vpop.f32.mrf.mxu0
        %1224 = vmatprep.mubr.f32.mxu0 0.0
        %v1225 = vand.u32 %v524, 4294901760
        %1226 = vmatmul.mubr.f32.gmra.mxu0 %v1225
        %v1227 = vpop.f32.mrf.mxu0
        %v1228 = vadd.f32 %v1135, %v1227
        %v1229 = vpop.f32.mrf.mxu0
        %1230 = vdwg.mxu0
        %s1231 = scalar_lea.vmem %s435, 128 [#allocation8]
        %v1232 = vld [vmem:[%s1231] sm:$0xff]
        %v1233 = vld [vmem:[%s1231 + $0x8] sm:$0xff]
        %v1234 = vld [vmem:[%s1231 + $0x10] sm:$0xff]
        %v1235 = vld [vmem:[%s1231 + $0x18] sm:$0xff]
        %v1236 = vld [vmem:[%s1231 + $0x20] sm:$0xff]
        %v1237 = vld [vmem:[%s1231 + $0x28] sm:$0xff]
        %v1238 = vld [vmem:[%s1231 + $0x30] sm:$0xff]
        %v1239 = vld [vmem:[%s1231 + $0x38] sm:$0xff]
        %v1240 = vld [vmem:[%s1231 + $0x40] sm:$0xff]
        %v1241 = vld [vmem:[%s1231 + $0x48] sm:$0xff]
        %v1242 = vld [vmem:[%s1231 + $0x50] sm:$0xff]
        %v1243 = vld [vmem:[%s1231 + $0x58] sm:$0xff]
        %v1244 = vld [vmem:[%s1231 + $0x60] sm:$0xff]
        %v1245 = vld [vmem:[%s1231 + $0x68] sm:$0xff]
        %v1246 = vld [vmem:[%s1231 + $0x70] sm:$0xff]
        %v1247 = vld [vmem:[%s1231 + $0x78] sm:$0xff]
        %v1248 = vlaneseq
        %v1249 = vshrl.u32 %v1248, 7
        %v1250 = vsub.s32 1, %v1249
        %v1251 = vrot.slane %v525, %v1250
        %1252 = vmatprep.subr.mxu0 0.0
        %v1253 = vand.u32 %v1247, 4294901760
        %1254 = vmatpush1.msra.mxu0 %v1253
        %1255 = vmatprep.subr.mxu0 0.0
        %v1256 = vand.u32 %v1246, 4294901760
        %1257 = vmatpush1.msra.mxu0 %v1256
        %1258 = vmatprep.subr.mxu0 0.0
        %v1259 = vand.u32 %v1245, 4294901760
        %1260 = vmatpush1.msra.mxu0 %v1259
        %1261 = vmatprep.subr.mxu0 0.0
        %v1262 = vand.u32 %v1244, 4294901760
        %1263 = vmatpush1.msra.mxu0 %v1262
        %1264 = vmatprep.subr.mxu0 0.0
        %v1265 = vand.u32 %v1243, 4294901760
        %1266 = vmatpush1.msra.mxu0 %v1265
        %1267 = vmatprep.subr.mxu0 0.0
        %v1268 = vand.u32 %v1242, 4294901760
        %1269 = vmatpush1.msra.mxu0 %v1268
        %1270 = vmatprep.subr.mxu0 0.0
        %v1271 = vand.u32 %v1241, 4294901760
        %1272 = vmatpush1.msra.mxu0 %v1271
        %1273 = vmatprep.subr.mxu0 0.0
        %v1274 = vand.u32 %v1240, 4294901760
        %1275 = vmatpush1.msra.mxu0 %v1274
        %1276 = vmatprep.subr.mxu0 0.0
        %v1277 = vand.u32 %v1239, 4294901760
        %1278 = vmatpush1.msra.mxu0 %v1277
        %1279 = vmatprep.subr.mxu0 0.0
        %v1280 = vand.u32 %v1238, 4294901760
        %1281 = vmatpush1.msra.mxu0 %v1280
        %1282 = vmatprep.subr.mxu0 0.0
        %v1283 = vand.u32 %v1237, 4294901760
        %1284 = vmatpush1.msra.mxu0 %v1283
        %1285 = vmatprep.subr.mxu0 0.0
        %v1286 = vand.u32 %v1236, 4294901760
        %1287 = vmatpush1.msra.mxu0 %v1286
        %1288 = vmatprep.subr.mxu0 0.0
        %v1289 = vand.u32 %v1235, 4294901760
        %1290 = vmatpush1.msra.mxu0 %v1289
        %1291 = vmatprep.subr.mxu0 0.0
        %v1292 = vand.u32 %v1234, 4294901760
        %1293 = vmatpush1.msra.mxu0 %v1292
        %1294 = vmatprep.subr.mxu0 0.0
        %v1295 = vand.u32 %v1233, 4294901760
        %1296 = vmatpush1.msra.mxu0 %v1295
        %1297 = vmatprep.subr.mxu0 0.0
        %v1298 = vand.u32 %v1232, 4294901760
        %1299 = vmatpush1.msra.mxu0 %v1298
        %1300 = vmatprep.subr.mxu0 0.0
        %1301 = vmatpush2.msra.mxu0 0.0
        %1302 = vmatprep.subr.mxu0 0.0
        %1303 = vmatpush2.msra.mxu0 0.0
        %1304 = vmatprep.subr.mxu0 0.0
        %1305 = vmatpush2.msra.mxu0 0.0
        %1306 = vmatprep.subr.mxu0 0.0
        %1307 = vmatpush2.msra.mxu0 0.0
        %1308 = vmatprep.subr.mxu0 0.0
        %1309 = vmatpush2.msra.mxu0 0.0
        %1310 = vmatprep.subr.mxu0 0.0
        %1311 = vmatpush2.msra.mxu0 0.0
        %1312 = vmatprep.subr.mxu0 0.0
        %1313 = vmatpush2.msra.mxu0 0.0
        %1314 = vmatprep.subr.mxu0 0.0
        %1315 = vmatpush2.msra.mxu0 0.0
        %1316 = vmatprep.subr.mxu0 0.0
        %1317 = vmatpush2.msra.mxu0 0.0
        %1318 = vmatprep.subr.mxu0 0.0
        %1319 = vmatpush2.msra.mxu0 0.0
        %1320 = vmatprep.subr.mxu0 0.0
        %1321 = vmatpush2.msra.mxu0 0.0
        %1322 = vmatprep.subr.mxu0 0.0
        %1323 = vmatpush2.msra.mxu0 0.0
        %1324 = vmatprep.subr.mxu0 0.0
        %1325 = vmatpush2.msra.mxu0 0.0
        %1326 = vmatprep.subr.mxu0 0.0
        %1327 = vmatpush2.msra.mxu0 0.0
        %1328 = vmatprep.subr.mxu0 0.0
        %1329 = vmatpush2.msra.mxu0 0.0
        %1330 = vmatprep.subr.mxu0 0.0
        %1331 = vmatpush2.msra.mxu0 0.0
        %1332 = vmatprep.mubr.f32.mxu0 0.0
        %v1333 = vand.u32 %v523, 4294901760
        %v1334 = vsub.f32 %v523, %v1333
        %v1335 = vand.u32 %v1334, 4294901760
        %v1336 = vsub.f32 %v1334, %v1335
        %v1337 = vand.u32 %v1336, 4294901760
        %1338 = vmatmul.mubr.f32.gmra.mxu0 %v1337
        %v1339 = vpop.f32.mrf.mxu0
        %v1340 = vadd.f32 %v1251, %v1339
        %v1341 = vpop.f32.mrf.mxu0
        %1342 = vmatprep.mubr.f32.mxu0 0.0
        %v1343 = vand.u32 %v524, 4294901760
        %v1344 = vsub.f32 %v524, %v1343
        %v1345 = vand.u32 %v1344, 4294901760
        %v1346 = vsub.f32 %v1344, %v1345
        %v1347 = vand.u32 %v1346, 4294901760
        %1348 = vmatmul.mubr.f32.gmra.mxu0 %v1347
        %v1349 = vpop.f32.mrf.mxu0
        %v1350 = vadd.f32 %v1251, %v1349
        %v1351 = vpop.f32.mrf.mxu0
        %1352 = vdwg.mxu0
        %1353 = vmatprep.subr.mxu0 0.0
        %v1354 = vand.u32 %v1247, 4294901760
        %v1355 = vsub.f32 %v1247, %v1354
        %v1356 = vand.u32 %v1355, 4294901760
        %v1357 = vsub.f32 %v1355, %v1356
        %v1358 = vand.u32 %v1357, 4294901760
        %1359 = vmatpush1.msra.mxu0 %v1358
        %1360 = vmatprep.subr.mxu0 0.0
        %v1361 = vand.u32 %v1246, 4294901760
        %v1362 = vsub.f32 %v1246, %v1361
        %v1363 = vand.u32 %v1362, 4294901760
        %v1364 = vsub.f32 %v1362, %v1363
        %v1365 = vand.u32 %v1364, 4294901760
        %1366 = vmatpush1.msra.mxu0 %v1365
        %1367 = vmatprep.subr.mxu0 0.0
        %v1368 = vand.u32 %v1245, 4294901760
        %v1369 = vsub.f32 %v1245, %v1368
        %v1370 = vand.u32 %v1369, 4294901760
        %v1371 = vsub.f32 %v1369, %v1370
        %v1372 = vand.u32 %v1371, 4294901760
        %1373 = vmatpush1.msra.mxu0 %v1372
        %1374 = vmatprep.subr.mxu0 0.0
        %v1375 = vand.u32 %v1244, 4294901760
        %v1376 = vsub.f32 %v1244, %v1375
        %v1377 = vand.u32 %v1376, 4294901760
        %v1378 = vsub.f32 %v1376, %v1377
        %v1379 = vand.u32 %v1378, 4294901760
        %1380 = vmatpush1.msra.mxu0 %v1379
        %1381 = vmatprep.subr.mxu0 0.0
        %v1382 = vand.u32 %v1243, 4294901760
        %v1383 = vsub.f32 %v1243, %v1382
        %v1384 = vand.u32 %v1383, 4294901760
        %v1385 = vsub.f32 %v1383, %v1384
        %v1386 = vand.u32 %v1385, 4294901760
        %1387 = vmatpush1.msra.mxu0 %v1386
        %1388 = vmatprep.subr.mxu0 0.0
        %v1389 = vand.u32 %v1242, 4294901760
        %v1390 = vsub.f32 %v1242, %v1389
        %v1391 = vand.u32 %v1390, 4294901760
        %v1392 = vsub.f32 %v1390, %v1391
        %v1393 = vand.u32 %v1392, 4294901760
        %1394 = vmatpush1.msra.mxu0 %v1393
        %1395 = vmatprep.subr.mxu0 0.0
        %v1396 = vand.u32 %v1241, 4294901760
        %v1397 = vsub.f32 %v1241, %v1396
        %v1398 = vand.u32 %v1397, 4294901760
        %v1399 = vsub.f32 %v1397, %v1398
        %v1400 = vand.u32 %v1399, 4294901760
        %1401 = vmatpush1.msra.mxu0 %v1400
        %1402 = vmatprep.subr.mxu0 0.0
        %v1403 = vand.u32 %v1240, 4294901760
        %v1404 = vsub.f32 %v1240, %v1403
        %v1405 = vand.u32 %v1404, 4294901760
        %v1406 = vsub.f32 %v1404, %v1405
        %v1407 = vand.u32 %v1406, 4294901760
        %1408 = vmatpush1.msra.mxu0 %v1407
        %1409 = vmatprep.subr.mxu0 0.0
        %v1410 = vand.u32 %v1239, 4294901760
        %v1411 = vsub.f32 %v1239, %v1410
        %v1412 = vand.u32 %v1411, 4294901760
        %v1413 = vsub.f32 %v1411, %v1412
        %v1414 = vand.u32 %v1413, 4294901760
        %1415 = vmatpush1.msra.mxu0 %v1414
        %1416 = vmatprep.subr.mxu0 0.0
        %v1417 = vand.u32 %v1238, 4294901760
        %v1418 = vsub.f32 %v1238, %v1417
        %v1419 = vand.u32 %v1418, 4294901760
        %v1420 = vsub.f32 %v1418, %v1419
        %v1421 = vand.u32 %v1420, 4294901760
        %1422 = vmatpush1.msra.mxu0 %v1421
        %1423 = vmatprep.subr.mxu0 0.0
        %v1424 = vand.u32 %v1237, 4294901760
        %v1425 = vsub.f32 %v1237, %v1424
        %v1426 = vand.u32 %v1425, 4294901760
        %v1427 = vsub.f32 %v1425, %v1426
        %v1428 = vand.u32 %v1427, 4294901760
        %1429 = vmatpush1.msra.mxu0 %v1428
        %1430 = vmatprep.subr.mxu0 0.0
        %v1431 = vand.u32 %v1236, 4294901760
        %v1432 = vsub.f32 %v1236, %v1431
        %v1433 = vand.u32 %v1432, 4294901760
        %v1434 = vsub.f32 %v1432, %v1433
        %v1435 = vand.u32 %v1434, 4294901760
        %1436 = vmatpush1.msra.mxu0 %v1435
        %1437 = vmatprep.subr.mxu0 0.0
        %v1438 = vand.u32 %v1235, 4294901760
        %v1439 = vsub.f32 %v1235, %v1438
        %v1440 = vand.u32 %v1439, 4294901760
        %v1441 = vsub.f32 %v1439, %v1440
        %v1442 = vand.u32 %v1441, 4294901760
        %1443 = vmatpush1.msra.mxu0 %v1442
        %1444 = vmatprep.subr.mxu0 0.0
        %v1445 = vand.u32 %v1234, 4294901760
        %v1446 = vsub.f32 %v1234, %v1445
        %v1447 = vand.u32 %v1446, 4294901760
        %v1448 = vsub.f32 %v1446, %v1447
        %v1449 = vand.u32 %v1448, 4294901760
        %1450 = vmatpush1.msra.mxu0 %v1449
        %1451 = vmatprep.subr.mxu0 0.0
        %v1452 = vand.u32 %v1233, 4294901760
        %v1453 = vsub.f32 %v1233, %v1452
        %v1454 = vand.u32 %v1453, 4294901760
        %v1455 = vsub.f32 %v1453, %v1454
        %v1456 = vand.u32 %v1455, 4294901760
        %1457 = vmatpush1.msra.mxu0 %v1456
        %1458 = vmatprep.subr.mxu0 0.0
        %v1459 = vand.u32 %v1232, 4294901760
        %v1460 = vsub.f32 %v1232, %v1459
        %v1461 = vand.u32 %v1460, 4294901760
        %v1462 = vsub.f32 %v1460, %v1461
        %v1463 = vand.u32 %v1462, 4294901760
        %1464 = vmatpush1.msra.mxu0 %v1463
        %1465 = vmatprep.subr.mxu0 0.0
        %1466 = vmatpush2.msra.mxu0 0.0
        %1467 = vmatprep.subr.mxu0 0.0
        %1468 = vmatpush2.msra.mxu0 0.0
        %1469 = vmatprep.subr.mxu0 0.0
        %1470 = vmatpush2.msra.mxu0 0.0
        %1471 = vmatprep.subr.mxu0 0.0
        %1472 = vmatpush2.msra.mxu0 0.0
        %1473 = vmatprep.subr.mxu0 0.0
        %1474 = vmatpush2.msra.mxu0 0.0
        %1475 = vmatprep.subr.mxu0 0.0
        %1476 = vmatpush2.msra.mxu0 0.0
        %1477 = vmatprep.subr.mxu0 0.0
        %1478 = vmatpush2.msra.mxu0 0.0
        %1479 = vmatprep.subr.mxu0 0.0
        %1480 = vmatpush2.msra.mxu0 0.0
        %1481 = vmatprep.subr.mxu0 0.0
        %1482 = vmatpush2.msra.mxu0 0.0
        %1483 = vmatprep.subr.mxu0 0.0
        %1484 = vmatpush2.msra.mxu0 0.0
        %1485 = vmatprep.subr.mxu0 0.0
        %1486 = vmatpush2.msra.mxu0 0.0
        %1487 = vmatprep.subr.mxu0 0.0
        %1488 = vmatpush2.msra.mxu0 0.0
        %1489 = vmatprep.subr.mxu0 0.0
        %1490 = vmatpush2.msra.mxu0 0.0
        %1491 = vmatprep.subr.mxu0 0.0
        %1492 = vmatpush2.msra.mxu0 0.0
        %1493 = vmatprep.subr.mxu0 0.0
        %1494 = vmatpush2.msra.mxu0 0.0
        %1495 = vmatprep.subr.mxu0 0.0
        %1496 = vmatpush2.msra.mxu0 0.0
        %1497 = vmatprep.mubr.f32.mxu0 0.0
        %v1498 = vand.u32 %v523, 4294901760
        %1499 = vmatmul.mubr.f32.gmra.mxu0 %v1498
        %v1500 = vpop.f32.mrf.mxu0
        %v1501 = vadd.f32 %v1340, %v1500
        %v1502 = vpop.f32.mrf.mxu0
        %1503 = vmatprep.mubr.f32.mxu0 0.0
        %v1504 = vand.u32 %v524, 4294901760
        %1505 = vmatmul.mubr.f32.gmra.mxu0 %v1504
        %v1506 = vpop.f32.mrf.mxu0
        %v1507 = vadd.f32 %v1350, %v1506
        %v1508 = vpop.f32.mrf.mxu0
        %1509 = vdwg.mxu0
        %1510 = vmatprep.subr.mxu0 0.0
        %v1511 = vand.u32 %v1247, 4294901760
        %v1512 = vsub.f32 %v1247, %v1511
        %1513 = vmatpush1.msra.mxu0 %v1512
        %1514 = vmatprep.subr.mxu0 0.0
        %v1515 = vand.u32 %v1246, 4294901760
        %v1516 = vsub.f32 %v1246, %v1515
        %1517 = vmatpush1.msra.mxu0 %v1516
        %1518 = vmatprep.subr.mxu0 0.0
        %v1519 = vand.u32 %v1245, 4294901760
        %v1520 = vsub.f32 %v1245, %v1519
        %1521 = vmatpush1.msra.mxu0 %v1520
        %1522 = vmatprep.subr.mxu0 0.0
        %v1523 = vand.u32 %v1244, 4294901760
        %v1524 = vsub.f32 %v1244, %v1523
        %1525 = vmatpush1.msra.mxu0 %v1524
        %1526 = vmatprep.subr.mxu0 0.0
        %v1527 = vand.u32 %v1243, 4294901760
        %v1528 = vsub.f32 %v1243, %v1527
        %1529 = vmatpush1.msra.mxu0 %v1528
        %1530 = vmatprep.subr.mxu0 0.0
        %v1531 = vand.u32 %v1242, 4294901760
        %v1532 = vsub.f32 %v1242, %v1531
        %1533 = vmatpush1.msra.mxu0 %v1532
        %1534 = vmatprep.subr.mxu0 0.0
        %v1535 = vand.u32 %v1241, 4294901760
        %v1536 = vsub.f32 %v1241, %v1535
        %1537 = vmatpush1.msra.mxu0 %v1536
        %1538 = vmatprep.subr.mxu0 0.0
        %v1539 = vand.u32 %v1240, 4294901760
        %v1540 = vsub.f32 %v1240, %v1539
        %1541 = vmatpush1.msra.mxu0 %v1540
        %1542 = vmatprep.subr.mxu0 0.0
        %v1543 = vand.u32 %v1239, 4294901760
        %v1544 = vsub.f32 %v1239, %v1543
        %1545 = vmatpush1.msra.mxu0 %v1544
        %1546 = vmatprep.subr.mxu0 0.0
        %v1547 = vand.u32 %v1238, 4294901760
        %v1548 = vsub.f32 %v1238, %v1547
        %1549 = vmatpush1.msra.mxu0 %v1548
        %1550 = vmatprep.subr.mxu0 0.0
        %v1551 = vand.u32 %v1237, 4294901760
        %v1552 = vsub.f32 %v1237, %v1551
        %1553 = vmatpush1.msra.mxu0 %v1552
        %1554 = vmatprep.subr.mxu0 0.0
        %v1555 = vand.u32 %v1236, 4294901760
        %v1556 = vsub.f32 %v1236, %v1555
        %1557 = vmatpush1.msra.mxu0 %v1556
        %1558 = vmatprep.subr.mxu0 0.0
        %v1559 = vand.u32 %v1235, 4294901760
        %v1560 = vsub.f32 %v1235, %v1559
        %1561 = vmatpush1.msra.mxu0 %v1560
        %1562 = vmatprep.subr.mxu0 0.0
        %v1563 = vand.u32 %v1234, 4294901760
        %v1564 = vsub.f32 %v1234, %v1563
        %1565 = vmatpush1.msra.mxu0 %v1564
        %1566 = vmatprep.subr.mxu0 0.0
        %v1567 = vand.u32 %v1233, 4294901760
        %v1568 = vsub.f32 %v1233, %v1567
        %1569 = vmatpush1.msra.mxu0 %v1568
        %1570 = vmatprep.subr.mxu0 0.0
        %v1571 = vand.u32 %v1232, 4294901760
        %v1572 = vsub.f32 %v1232, %v1571
        %1573 = vmatpush1.msra.mxu0 %v1572
        %1574 = vmatprep.subr.mxu0 0.0
        %1575 = vmatpush2.msra.mxu0 0.0
        %1576 = vmatprep.subr.mxu0 0.0
        %1577 = vmatpush2.msra.mxu0 0.0
        %1578 = vmatprep.subr.mxu0 0.0
        %1579 = vmatpush2.msra.mxu0 0.0
        %1580 = vmatprep.subr.mxu0 0.0
        %1581 = vmatpush2.msra.mxu0 0.0
        %1582 = vmatprep.subr.mxu0 0.0
        %1583 = vmatpush2.msra.mxu0 0.0
        %1584 = vmatprep.subr.mxu0 0.0
        %1585 = vmatpush2.msra.mxu0 0.0
        %1586 = vmatprep.subr.mxu0 0.0
        %1587 = vmatpush2.msra.mxu0 0.0
        %1588 = vmatprep.subr.mxu0 0.0
        %1589 = vmatpush2.msra.mxu0 0.0
        %1590 = vmatprep.subr.mxu0 0.0
        %1591 = vmatpush2.msra.mxu0 0.0
        %1592 = vmatprep.subr.mxu0 0.0
        %1593 = vmatpush2.msra.mxu0 0.0
        %1594 = vmatprep.subr.mxu0 0.0
        %1595 = vmatpush2.msra.mxu0 0.0
        %1596 = vmatprep.subr.mxu0 0.0
        %1597 = vmatpush2.msra.mxu0 0.0
        %1598 = vmatprep.subr.mxu0 0.0
        %1599 = vmatpush2.msra.mxu0 0.0
        %1600 = vmatprep.subr.mxu0 0.0
        %1601 = vmatpush2.msra.mxu0 0.0
        %1602 = vmatprep.subr.mxu0 0.0
        %1603 = vmatpush2.msra.mxu0 0.0
        %1604 = vmatprep.subr.mxu0 0.0
        %1605 = vmatpush2.msra.mxu0 0.0
        %1606 = vmatprep.mubr.f32.mxu0 0.0
        %v1607 = vand.u32 %v523, 4294901760
        %v1608 = vsub.f32 %v523, %v1607
        %1609 = vmatmul.mubr.f32.gmra.mxu0 %v1608
        %v1610 = vpop.f32.mrf.mxu0
        %v1611 = vadd.f32 %v1501, %v1610
        %v1612 = vpop.f32.mrf.mxu0
        %1613 = vmatprep.mubr.f32.mxu0 0.0
        %v1614 = vand.u32 %v524, 4294901760
        %v1615 = vsub.f32 %v524, %v1614
        %1616 = vmatmul.mubr.f32.gmra.mxu0 %v1615
        %v1617 = vpop.f32.mrf.mxu0
        %v1618 = vadd.f32 %v1507, %v1617
        %v1619 = vpop.f32.mrf.mxu0
        %1620 = vdwg.mxu0
        %1621 = vmatprep.subr.mxu0 0.0
        %v1622 = vand.u32 %v1247, 4294901760
        %1623 = vmatpush1.msra.mxu0 %v1622
        %1624 = vmatprep.subr.mxu0 0.0
        %v1625 = vand.u32 %v1246, 4294901760
        %1626 = vmatpush1.msra.mxu0 %v1625
        %1627 = vmatprep.subr.mxu0 0.0
        %v1628 = vand.u32 %v1245, 4294901760
        %1629 = vmatpush1.msra.mxu0 %v1628
        %1630 = vmatprep.subr.mxu0 0.0
        %v1631 = vand.u32 %v1244, 4294901760
        %1632 = vmatpush1.msra.mxu0 %v1631
        %1633 = vmatprep.subr.mxu0 0.0
        %v1634 = vand.u32 %v1243, 4294901760
        %1635 = vmatpush1.msra.mxu0 %v1634
        %1636 = vmatprep.subr.mxu0 0.0
        %v1637 = vand.u32 %v1242, 4294901760
        %1638 = vmatpush1.msra.mxu0 %v1637
        %1639 = vmatprep.subr.mxu0 0.0
        %v1640 = vand.u32 %v1241, 4294901760
        %1641 = vmatpush1.msra.mxu0 %v1640
        %1642 = vmatprep.subr.mxu0 0.0
        %v1643 = vand.u32 %v1240, 4294901760
        %1644 = vmatpush1.msra.mxu0 %v1643
        %1645 = vmatprep.subr.mxu0 0.0
        %v1646 = vand.u32 %v1239, 4294901760
        %1647 = vmatpush1.msra.mxu0 %v1646
        %1648 = vmatprep.subr.mxu0 0.0
        %v1649 = vand.u32 %v1238, 4294901760
        %1650 = vmatpush1.msra.mxu0 %v1649
        %1651 = vmatprep.subr.mxu0 0.0
        %v1652 = vand.u32 %v1237, 4294901760
        %1653 = vmatpush1.msra.mxu0 %v1652
        %1654 = vmatprep.subr.mxu0 0.0
        %v1655 = vand.u32 %v1236, 4294901760
        %1656 = vmatpush1.msra.mxu0 %v1655
        %1657 = vmatprep.subr.mxu0 0.0
        %v1658 = vand.u32 %v1235, 4294901760
        %1659 = vmatpush1.msra.mxu0 %v1658
        %1660 = vmatprep.subr.mxu0 0.0
        %v1661 = vand.u32 %v1234, 4294901760
        %1662 = vmatpush1.msra.mxu0 %v1661
        %1663 = vmatprep.subr.mxu0 0.0
        %v1664 = vand.u32 %v1233, 4294901760
        %1665 = vmatpush1.msra.mxu0 %v1664
        %1666 = vmatprep.subr.mxu0 0.0
        %v1667 = vand.u32 %v1232, 4294901760
        %1668 = vmatpush1.msra.mxu0 %v1667
        %1669 = vmatprep.subr.mxu0 0.0
        %1670 = vmatpush2.msra.mxu0 0.0
        %1671 = vmatprep.subr.mxu0 0.0
        %1672 = vmatpush2.msra.mxu0 0.0
        %1673 = vmatprep.subr.mxu0 0.0
        %1674 = vmatpush2.msra.mxu0 0.0
        %1675 = vmatprep.subr.mxu0 0.0
        %1676 = vmatpush2.msra.mxu0 0.0
        %1677 = vmatprep.subr.mxu0 0.0
        %1678 = vmatpush2.msra.mxu0 0.0
        %1679 = vmatprep.subr.mxu0 0.0
        %1680 = vmatpush2.msra.mxu0 0.0
        %1681 = vmatprep.subr.mxu0 0.0
        %1682 = vmatpush2.msra.mxu0 0.0
        %1683 = vmatprep.subr.mxu0 0.0
        %1684 = vmatpush2.msra.mxu0 0.0
        %1685 = vmatprep.subr.mxu0 0.0
        %1686 = vmatpush2.msra.mxu0 0.0
        %1687 = vmatprep.subr.mxu0 0.0
        %1688 = vmatpush2.msra.mxu0 0.0
        %1689 = vmatprep.subr.mxu0 0.0
        %1690 = vmatpush2.msra.mxu0 0.0
        %1691 = vmatprep.subr.mxu0 0.0
        %1692 = vmatpush2.msra.mxu0 0.0
        %1693 = vmatprep.subr.mxu0 0.0
        %1694 = vmatpush2.msra.mxu0 0.0
        %1695 = vmatprep.subr.mxu0 0.0
        %1696 = vmatpush2.msra.mxu0 0.0
        %1697 = vmatprep.subr.mxu0 0.0
        %1698 = vmatpush2.msra.mxu0 0.0
        %1699 = vmatprep.subr.mxu0 0.0
        %1700 = vmatpush2.msra.mxu0 0.0
        %1701 = vmatprep.mubr.f32.mxu0 0.0
        %v1702 = vand.u32 %v523, 4294901760
        %v1703 = vsub.f32 %v523, %v1702
        %v1704 = vand.u32 %v1703, 4294901760
        %1705 = vmatmul.mubr.f32.gmra.mxu0 %v1704
        %v1706 = vpop.f32.mrf.mxu0
        %v1707 = vadd.f32 %v1611, %v1706
        %v1708 = vpop.f32.mrf.mxu0
        %1709 = vmatprep.mubr.f32.mxu0 0.0
        %v1710 = vand.u32 %v524, 4294901760
        %v1711 = vsub.f32 %v524, %v1710
        %v1712 = vand.u32 %v1711, 4294901760
        %1713 = vmatmul.mubr.f32.gmra.mxu0 %v1712
        %v1714 = vpop.f32.mrf.mxu0
        %v1715 = vadd.f32 %v1618, %v1714
        %v1716 = vpop.f32.mrf.mxu0
        %1717 = vdwg.mxu0
        %1718 = vmatprep.subr.mxu0 0.0
        %v1719 = vand.u32 %v1247, 4294901760
        %v1720 = vsub.f32 %v1247, %v1719
        %v1721 = vand.u32 %v1720, 4294901760
        %1722 = vmatpush1.msra.mxu0 %v1721
        %1723 = vmatprep.subr.mxu0 0.0
        %v1724 = vand.u32 %v1246, 4294901760
        %v1725 = vsub.f32 %v1246, %v1724
        %v1726 = vand.u32 %v1725, 4294901760
        %1727 = vmatpush1.msra.mxu0 %v1726
        %1728 = vmatprep.subr.mxu0 0.0
        %v1729 = vand.u32 %v1245, 4294901760
        %v1730 = vsub.f32 %v1245, %v1729
        %v1731 = vand.u32 %v1730, 4294901760
        %1732 = vmatpush1.msra.mxu0 %v1731
        %1733 = vmatprep.subr.mxu0 0.0
        %v1734 = vand.u32 %v1244, 4294901760
        %v1735 = vsub.f32 %v1244, %v1734
        %v1736 = vand.u32 %v1735, 4294901760
        %1737 = vmatpush1.msra.mxu0 %v1736
        %1738 = vmatprep.subr.mxu0 0.0
        %v1739 = vand.u32 %v1243, 4294901760
        %v1740 = vsub.f32 %v1243, %v1739
        %v1741 = vand.u32 %v1740, 4294901760
        %1742 = vmatpush1.msra.mxu0 %v1741
        %1743 = vmatprep.subr.mxu0 0.0
        %v1744 = vand.u32 %v1242, 4294901760
        %v1745 = vsub.f32 %v1242, %v1744
        %v1746 = vand.u32 %v1745, 4294901760
        %1747 = vmatpush1.msra.mxu0 %v1746
        %1748 = vmatprep.subr.mxu0 0.0
        %v1749 = vand.u32 %v1241, 4294901760
        %v1750 = vsub.f32 %v1241, %v1749
        %v1751 = vand.u32 %v1750, 4294901760
        %1752 = vmatpush1.msra.mxu0 %v1751
        %1753 = vmatprep.subr.mxu0 0.0
        %v1754 = vand.u32 %v1240, 4294901760
        %v1755 = vsub.f32 %v1240, %v1754
        %v1756 = vand.u32 %v1755, 4294901760
        %1757 = vmatpush1.msra.mxu0 %v1756
        %1758 = vmatprep.subr.mxu0 0.0
        %v1759 = vand.u32 %v1239, 4294901760
        %v1760 = vsub.f32 %v1239, %v1759
        %v1761 = vand.u32 %v1760, 4294901760
        %1762 = vmatpush1.msra.mxu0 %v1761
        %1763 = vmatprep.subr.mxu0 0.0
        %v1764 = vand.u32 %v1238, 4294901760
        %v1765 = vsub.f32 %v1238, %v1764
        %v1766 = vand.u32 %v1765, 4294901760
        %1767 = vmatpush1.msra.mxu0 %v1766
        %1768 = vmatprep.subr.mxu0 0.0
        %v1769 = vand.u32 %v1237, 4294901760
        %v1770 = vsub.f32 %v1237, %v1769
        %v1771 = vand.u32 %v1770, 4294901760
        %1772 = vmatpush1.msra.mxu0 %v1771
        %1773 = vmatprep.subr.mxu0 0.0
        %v1774 = vand.u32 %v1236, 4294901760
        %v1775 = vsub.f32 %v1236, %v1774
        %v1776 = vand.u32 %v1775, 4294901760
        %1777 = vmatpush1.msra.mxu0 %v1776
        %1778 = vmatprep.subr.mxu0 0.0
        %v1779 = vand.u32 %v1235, 4294901760
        %v1780 = vsub.f32 %v1235, %v1779
        %v1781 = vand.u32 %v1780, 4294901760
        %1782 = vmatpush1.msra.mxu0 %v1781
        %1783 = vmatprep.subr.mxu0 0.0
        %v1784 = vand.u32 %v1234, 4294901760
        %v1785 = vsub.f32 %v1234, %v1784
        %v1786 = vand.u32 %v1785, 4294901760
        %1787 = vmatpush1.msra.mxu0 %v1786
        %1788 = vmatprep.subr.mxu0 0.0
        %v1789 = vand.u32 %v1233, 4294901760
        %v1790 = vsub.f32 %v1233, %v1789
        %v1791 = vand.u32 %v1790, 4294901760
        %1792 = vmatpush1.msra.mxu0 %v1791
        %1793 = vmatprep.subr.mxu0 0.0
        %v1794 = vand.u32 %v1232, 4294901760
        %v1795 = vsub.f32 %v1232, %v1794
        %v1796 = vand.u32 %v1795, 4294901760
        %1797 = vmatpush1.msra.mxu0 %v1796
        %1798 = vmatprep.subr.mxu0 0.0
        %1799 = vmatpush2.msra.mxu0 0.0
        %1800 = vmatprep.subr.mxu0 0.0
        %1801 = vmatpush2.msra.mxu0 0.0
        %1802 = vmatprep.subr.mxu0 0.0
        %1803 = vmatpush2.msra.mxu0 0.0
        %1804 = vmatprep.subr.mxu0 0.0
        %1805 = vmatpush2.msra.mxu0 0.0
        %1806 = vmatprep.subr.mxu0 0.0
        %1807 = vmatpush2.msra.mxu0 0.0
        %1808 = vmatprep.subr.mxu0 0.0
        %1809 = vmatpush2.msra.mxu0 0.0
        %1810 = vmatprep.subr.mxu0 0.0
        %1811 = vmatpush2.msra.mxu0 0.0
        %1812 = vmatprep.subr.mxu0 0.0
        %1813 = vmatpush2.msra.mxu0 0.0
        %1814 = vmatprep.subr.mxu0 0.0
        %1815 = vmatpush2.msra.mxu0 0.0
        %1816 = vmatprep.subr.mxu0 0.0
        %1817 = vmatpush2.msra.mxu0 0.0
        %1818 = vmatprep.subr.mxu0 0.0
        %1819 = vmatpush2.msra.mxu0 0.0
        %1820 = vmatprep.subr.mxu0 0.0
        %1821 = vmatpush2.msra.mxu0 0.0
        %1822 = vmatprep.subr.mxu0 0.0
        %1823 = vmatpush2.msra.mxu0 0.0
        %1824 = vmatprep.subr.mxu0 0.0
        %1825 = vmatpush2.msra.mxu0 0.0
        %1826 = vmatprep.subr.mxu0 0.0
        %1827 = vmatpush2.msra.mxu0 0.0
        %1828 = vmatprep.subr.mxu0 0.0
        %1829 = vmatpush2.msra.mxu0 0.0
        %1830 = vmatprep.mubr.f32.mxu0 0.0
        %v1831 = vand.u32 %v523, 4294901760
        %1832 = vmatmul.mubr.f32.gmra.mxu0 %v1831
        %v1833 = vpop.f32.mrf.mxu0
        %v1834 = vadd.f32 %v1707, %v1833
        %v1835 = vpop.f32.mrf.mxu0
        %1836 = vmatprep.mubr.f32.mxu0 0.0
        %v1837 = vand.u32 %v524, 4294901760
        %1838 = vmatmul.mubr.f32.gmra.mxu0 %v1837
        %v1839 = vpop.f32.mrf.mxu0
        %v1840 = vadd.f32 %v1715, %v1839
        %v1841 = vpop.f32.mrf.mxu0
        %1842 = vdwg.mxu0
        %1843 = vmatprep.subr.mxu0 0.0
        %v1844 = vand.u32 %v1247, 4294901760
        %1845 = vmatpush1.msra.mxu0 %v1844
        %1846 = vmatprep.subr.mxu0 0.0
        %v1847 = vand.u32 %v1246, 4294901760
        %1848 = vmatpush1.msra.mxu0 %v1847
        %1849 = vmatprep.subr.mxu0 0.0
        %v1850 = vand.u32 %v1245, 4294901760
        %1851 = vmatpush1.msra.mxu0 %v1850
        %1852 = vmatprep.subr.mxu0 0.0
        %v1853 = vand.u32 %v1244, 4294901760
        %1854 = vmatpush1.msra.mxu0 %v1853
        %1855 = vmatprep.subr.mxu0 0.0
        %v1856 = vand.u32 %v1243, 4294901760
        %1857 = vmatpush1.msra.mxu0 %v1856
        %1858 = vmatprep.subr.mxu0 0.0
        %v1859 = vand.u32 %v1242, 4294901760
        %1860 = vmatpush1.msra.mxu0 %v1859
        %1861 = vmatprep.subr.mxu0 0.0
        %v1862 = vand.u32 %v1241, 4294901760
        %1863 = vmatpush1.msra.mxu0 %v1862
        %1864 = vmatprep.subr.mxu0 0.0
        %v1865 = vand.u32 %v1240, 4294901760
        %1866 = vmatpush1.msra.mxu0 %v1865
        %1867 = vmatprep.subr.mxu0 0.0
        %v1868 = vand.u32 %v1239, 4294901760
        %1869 = vmatpush1.msra.mxu0 %v1868
        %1870 = vmatprep.subr.mxu0 0.0
        %v1871 = vand.u32 %v1238, 4294901760
        %1872 = vmatpush1.msra.mxu0 %v1871
        %1873 = vmatprep.subr.mxu0 0.0
        %v1874 = vand.u32 %v1237, 4294901760
        %1875 = vmatpush1.msra.mxu0 %v1874
        %1876 = vmatprep.subr.mxu0 0.0
        %v1877 = vand.u32 %v1236, 4294901760
        %1878 = vmatpush1.msra.mxu0 %v1877
        %1879 = vmatprep.subr.mxu0 0.0
        %v1880 = vand.u32 %v1235, 4294901760
        %1881 = vmatpush1.msra.mxu0 %v1880
        %1882 = vmatprep.subr.mxu0 0.0
        %v1883 = vand.u32 %v1234, 4294901760
        %1884 = vmatpush1.msra.mxu0 %v1883
        %1885 = vmatprep.subr.mxu0 0.0
        %v1886 = vand.u32 %v1233, 4294901760
        %1887 = vmatpush1.msra.mxu0 %v1886
        %1888 = vmatprep.subr.mxu0 0.0
        %v1889 = vand.u32 %v1232, 4294901760
        %1890 = vmatpush1.msra.mxu0 %v1889
        %1891 = vmatprep.subr.mxu0 0.0
        %1892 = vmatpush2.msra.mxu0 0.0
        %1893 = vmatprep.subr.mxu0 0.0
        %1894 = vmatpush2.msra.mxu0 0.0
        %1895 = vmatprep.subr.mxu0 0.0
        %1896 = vmatpush2.msra.mxu0 0.0
        %1897 = vmatprep.subr.mxu0 0.0
        %1898 = vmatpush2.msra.mxu0 0.0
        %1899 = vmatprep.subr.mxu0 0.0
        %1900 = vmatpush2.msra.mxu0 0.0
        %1901 = vmatprep.subr.mxu0 0.0
        %1902 = vmatpush2.msra.mxu0 0.0
        %1903 = vmatprep.subr.mxu0 0.0
        %1904 = vmatpush2.msra.mxu0 0.0
        %1905 = vmatprep.subr.mxu0 0.0
        %1906 = vmatpush2.msra.mxu0 0.0
        %1907 = vmatprep.subr.mxu0 0.0
        %1908 = vmatpush2.msra.mxu0 0.0
        %1909 = vmatprep.subr.mxu0 0.0
        %1910 = vmatpush2.msra.mxu0 0.0
        %1911 = vmatprep.subr.mxu0 0.0
        %1912 = vmatpush2.msra.mxu0 0.0
        %1913 = vmatprep.subr.mxu0 0.0
        %1914 = vmatpush2.msra.mxu0 0.0
        %1915 = vmatprep.subr.mxu0 0.0
        %1916 = vmatpush2.msra.mxu0 0.0
        %1917 = vmatprep.subr.mxu0 0.0
        %1918 = vmatpush2.msra.mxu0 0.0
        %1919 = vmatprep.subr.mxu0 0.0
        %1920 = vmatpush2.msra.mxu0 0.0
        %1921 = vmatprep.subr.mxu0 0.0
        %1922 = vmatpush2.msra.mxu0 0.0
        %1923 = vmatprep.mubr.f32.mxu0 0.0
        %v1924 = vand.u32 %v523, 4294901760
        %1925 = vmatmul.mubr.f32.gmra.mxu0 %v1924
        %v1926 = vpop.f32.mrf.mxu0
        %v1927 = vadd.f32 %v1834, %v1926
        %v1928 = vpop.f32.mrf.mxu0
        %1929 = vmatprep.mubr.f32.mxu0 0.0
        %v1930 = vand.u32 %v524, 4294901760
        %1931 = vmatmul.mubr.f32.gmra.mxu0 %v1930
        %v1932 = vpop.f32.mrf.mxu0
        %v1933 = vadd.f32 %v1840, %v1932
        %v1934 = vpop.f32.mrf.mxu0
        %1935 = vdwg.mxu0
        %v1936 = vld [vmem:[%s408] sm:$0xff]
        %v1937 = vld [vmem:[%s408 + $0x8] sm:$0xff]
        %vm1938 = vcmask 130048
        %v1940 = vsel %vm1938, %v1936, 0
        %v1943 = vsel %vm1938, %v1937, 0
        %1945 = vmatprep.subr.mxu0 0.0
        %1946 = vmatpush1.msra.mxu0 0.0
        %1947 = vmatprep.subr.mxu0 0.0
        %1948 = vmatpush1.msra.mxu0 0.0
        %1949 = vmatprep.subr.mxu0 0.0
        %1950 = vmatpush1.msra.mxu0 0.0
        %1951 = vmatprep.subr.mxu0 0.0
        %1952 = vmatpush1.msra.mxu0 0.0
        %1953 = vmatprep.subr.mxu0 0.0
        %1954 = vmatpush1.msra.mxu0 0.0
        %1955 = vmatprep.subr.mxu0 0.0
        %1956 = vmatpush1.msra.mxu0 0.0
        %1957 = vmatprep.subr.mxu0 0.0
        %1958 = vmatpush1.msra.mxu0 0.0
        %1959 = vmatprep.subr.mxu0 0.0
        %1960 = vmatpush1.msra.mxu0 0.0
        %1961 = vmatprep.subr.mxu0 0.0
        %1962 = vmatpush1.msra.mxu0 0.0
        %1963 = vmatprep.subr.mxu0 0.0
        %1964 = vmatpush1.msra.mxu0 0.0
        %1965 = vmatprep.subr.mxu0 0.0
        %1966 = vmatpush1.msra.mxu0 0.0
        %1967 = vmatprep.subr.mxu0 0.0
        %1968 = vmatpush1.msra.mxu0 0.0
        %1969 = vmatprep.subr.mxu0 0.0
        %1970 = vmatpush1.msra.mxu0 0.0
        %1971 = vmatprep.subr.mxu0 0.0
        %1972 = vmatpush1.msra.mxu0 0.0
        %1973 = vmatprep.subr.mxu0 0.0
        %v1974 = vand.u32 %v1228, 4294901760
        %1975 = vmatpush1.msra.mxu0 %v1974
        %1976 = vmatprep.subr.mxu0 0.0
        %v1977 = vand.u32 %v1222, 4294901760
        %1978 = vmatpush1.msra.mxu0 %v1977
        %1979 = vmatprep.subr.mxu0 0.0
        %1980 = vmatpush2.msra.mxu0 0.0
        %1981 = vmatprep.subr.mxu0 0.0
        %1982 = vmatpush2.msra.mxu0 0.0
        %1983 = vmatprep.subr.mxu0 0.0
        %1984 = vmatpush2.msra.mxu0 0.0
        %1985 = vmatprep.subr.mxu0 0.0
        %1986 = vmatpush2.msra.mxu0 0.0
        %1987 = vmatprep.subr.mxu0 0.0
        %1988 = vmatpush2.msra.mxu0 0.0
        %1989 = vmatprep.subr.mxu0 0.0
        %1990 = vmatpush2.msra.mxu0 0.0
        %1991 = vmatprep.subr.mxu0 0.0
        %1992 = vmatpush2.msra.mxu0 0.0
        %1993 = vmatprep.subr.mxu0 0.0
        %1994 = vmatpush2.msra.mxu0 0.0
        %1995 = vmatprep.subr.mxu0 0.0
        %1996 = vmatpush2.msra.mxu0 0.0
        %1997 = vmatprep.subr.mxu0 0.0
        %1998 = vmatpush2.msra.mxu0 0.0
        %1999 = vmatprep.subr.mxu0 0.0
        %2000 = vmatpush2.msra.mxu0 0.0
        %2001 = vmatprep.subr.mxu0 0.0
        %2002 = vmatpush2.msra.mxu0 0.0
        %2003 = vmatprep.subr.mxu0 0.0
        %2004 = vmatpush2.msra.mxu0 0.0
        %2005 = vmatprep.subr.mxu0 0.0
        %2006 = vmatpush2.msra.mxu0 0.0
        %2007 = vmatprep.subr.mxu0 0.0
        %2008 = vmatpush2.msra.mxu0 0.0
        %2009 = vmatprep.subr.mxu0 0.0
        %2010 = vmatpush2.msra.mxu0 0.0
        %2011 = vmatprep.mubr.f32.mxu0 0.0
        %v2012 = vand.u32 %v1940, 4294901760
        %v2013 = vsub.f32 %v1940, %v2012
        %v2014 = vand.u32 %v2013, 4294901760
        %v2015 = vsub.f32 %v2013, %v2014
        %v2016 = vand.u32 %v2015, 4294901760
        %2017 = vmatmul.mubr.f32.gmra.mxu0 %v2016
        %v2018 = vpop.f32.mrf.mxu0
        %v2019 = vadd.f32 0.0, %v2018
        %v2020 = vpop.f32.mrf.mxu0
        %2021 = vmatprep.mubr.f32.mxu0 0.0
        %v2022 = vand.u32 %v1943, 4294901760
        %v2023 = vsub.f32 %v1943, %v2022
        %v2024 = vand.u32 %v2023, 4294901760
        %v2025 = vsub.f32 %v2023, %v2024
        %v2026 = vand.u32 %v2025, 4294901760
        %2027 = vmatmul.mubr.f32.gmra.mxu0 %v2026
        %v2028 = vpop.f32.mrf.mxu0
        %v2029 = vadd.f32 0.0, %v2028
        %v2030 = vpop.f32.mrf.mxu0
        %2031 = vdwg.mxu0
        %2032 = vmatprep.subr.mxu0 0.0
        %2033 = vmatpush1.msra.mxu0 0.0
        %2034 = vmatprep.subr.mxu0 0.0
        %2035 = vmatpush1.msra.mxu0 0.0
        %2036 = vmatprep.subr.mxu0 0.0
        %2037 = vmatpush1.msra.mxu0 0.0
        %2038 = vmatprep.subr.mxu0 0.0
        %2039 = vmatpush1.msra.mxu0 0.0
        %2040 = vmatprep.subr.mxu0 0.0
        %2041 = vmatpush1.msra.mxu0 0.0
        %2042 = vmatprep.subr.mxu0 0.0
        %2043 = vmatpush1.msra.mxu0 0.0
        %2044 = vmatprep.subr.mxu0 0.0
        %2045 = vmatpush1.msra.mxu0 0.0
        %2046 = vmatprep.subr.mxu0 0.0
        %2047 = vmatpush1.msra.mxu0 0.0
        %2048 = vmatprep.subr.mxu0 0.0
        %2049 = vmatpush1.msra.mxu0 0.0
        %2050 = vmatprep.subr.mxu0 0.0
        %2051 = vmatpush1.msra.mxu0 0.0
        %2052 = vmatprep.subr.mxu0 0.0
        %2053 = vmatpush1.msra.mxu0 0.0
        %2054 = vmatprep.subr.mxu0 0.0
        %2055 = vmatpush1.msra.mxu0 0.0
        %2056 = vmatprep.subr.mxu0 0.0
        %2057 = vmatpush1.msra.mxu0 0.0
        %2058 = vmatprep.subr.mxu0 0.0
        %2059 = vmatpush1.msra.mxu0 0.0
        %2060 = vmatprep.subr.mxu0 0.0
        %v2061 = vand.u32 %v1228, 4294901760
        %v2062 = vsub.f32 %v1228, %v2061
        %v2063 = vand.u32 %v2062, 4294901760
        %v2064 = vsub.f32 %v2062, %v2063
        %v2065 = vand.u32 %v2064, 4294901760
        %2066 = vmatpush1.msra.mxu0 %v2065
        %2067 = vmatprep.subr.mxu0 0.0
        %v2068 = vand.u32 %v1222, 4294901760
        %v2069 = vsub.f32 %v1222, %v2068
        %v2070 = vand.u32 %v2069, 4294901760
        %v2071 = vsub.f32 %v2069, %v2070
        %v2072 = vand.u32 %v2071, 4294901760
        %2073 = vmatpush1.msra.mxu0 %v2072
        %2074 = vmatprep.subr.mxu0 0.0
        %2075 = vmatpush2.msra.mxu0 0.0
        %2076 = vmatprep.subr.mxu0 0.0
        %2077 = vmatpush2.msra.mxu0 0.0
        %2078 = vmatprep.subr.mxu0 0.0
        %2079 = vmatpush2.msra.mxu0 0.0
        %2080 = vmatprep.subr.mxu0 0.0
        %2081 = vmatpush2.msra.mxu0 0.0
        %2082 = vmatprep.subr.mxu0 0.0
        %2083 = vmatpush2.msra.mxu0 0.0
        %2084 = vmatprep.subr.mxu0 0.0
        %2085 = vmatpush2.msra.mxu0 0.0
        %2086 = vmatprep.subr.mxu0 0.0
        %2087 = vmatpush2.msra.mxu0 0.0
        %2088 = vmatprep.subr.mxu0 0.0
        %2089 = vmatpush2.msra.mxu0 0.0
        %2090 = vmatprep.subr.mxu0 0.0
        %2091 = vmatpush2.msra.mxu0 0.0
        %2092 = vmatprep.subr.mxu0 0.0
        %2093 = vmatpush2.msra.mxu0 0.0
        %2094 = vmatprep.subr.mxu0 0.0
        %2095 = vmatpush2.msra.mxu0 0.0
        %2096 = vmatprep.subr.mxu0 0.0
        %2097 = vmatpush2.msra.mxu0 0.0
        %2098 = vmatprep.subr.mxu0 0.0
        %2099 = vmatpush2.msra.mxu0 0.0
        %2100 = vmatprep.subr.mxu0 0.0
        %2101 = vmatpush2.msra.mxu0 0.0
        %2102 = vmatprep.subr.mxu0 0.0
        %2103 = vmatpush2.msra.mxu0 0.0
        %2104 = vmatprep.subr.mxu0 0.0
        %2105 = vmatpush2.msra.mxu0 0.0
        %2106 = vmatprep.mubr.f32.mxu0 0.0
        %v2107 = vand.u32 %v1940, 4294901760
        %2108 = vmatmul.mubr.f32.gmra.mxu0 %v2107
        %v2109 = vpop.f32.mrf.mxu0
        %v2110 = vadd.f32 %v2019, %v2109
        %v2111 = vpop.f32.mrf.mxu0
        %2112 = vmatprep.mubr.f32.mxu0 0.0
        %v2113 = vand.u32 %v1943, 4294901760
        %2114 = vmatmul.mubr.f32.gmra.mxu0 %v2113
        %v2115 = vpop.f32.mrf.mxu0
        %v2116 = vadd.f32 %v2029, %v2115
        %v2117 = vpop.f32.mrf.mxu0
        %2118 = vdwg.mxu0
        %2119 = vmatprep.subr.mxu0 0.0
        %2120 = vmatpush1.msra.mxu0 0.0
        %2121 = vmatprep.subr.mxu0 0.0
        %2122 = vmatpush1.msra.mxu0 0.0
        %2123 = vmatprep.subr.mxu0 0.0
        %2124 = vmatpush1.msra.mxu0 0.0
        %2125 = vmatprep.subr.mxu0 0.0
        %2126 = vmatpush1.msra.mxu0 0.0
        %2127 = vmatprep.subr.mxu0 0.0
        %2128 = vmatpush1.msra.mxu0 0.0
        %2129 = vmatprep.subr.mxu0 0.0
        %2130 = vmatpush1.msra.mxu0 0.0
        %2131 = vmatprep.subr.mxu0 0.0
        %2132 = vmatpush1.msra.mxu0 0.0
        %2133 = vmatprep.subr.mxu0 0.0
        %2134 = vmatpush1.msra.mxu0 0.0
        %2135 = vmatprep.subr.mxu0 0.0
        %2136 = vmatpush1.msra.mxu0 0.0
        %2137 = vmatprep.subr.mxu0 0.0
        %2138 = vmatpush1.msra.mxu0 0.0
        %2139 = vmatprep.subr.mxu0 0.0
        %2140 = vmatpush1.msra.mxu0 0.0
        %2141 = vmatprep.subr.mxu0 0.0
        %2142 = vmatpush1.msra.mxu0 0.0
        %2143 = vmatprep.subr.mxu0 0.0
        %2144 = vmatpush1.msra.mxu0 0.0
        %2145 = vmatprep.subr.mxu0 0.0
        %2146 = vmatpush1.msra.mxu0 0.0
        %2147 = vmatprep.subr.mxu0 0.0
        %v2148 = vand.u32 %v1228, 4294901760
        %v2149 = vsub.f32 %v1228, %v2148
        %2150 = vmatpush1.msra.mxu0 %v2149
        %2151 = vmatprep.subr.mxu0 0.0
        %v2152 = vand.u32 %v1222, 4294901760
        %v2153 = vsub.f32 %v1222, %v2152
        %2154 = vmatpush1.msra.mxu0 %v2153
        %2155 = vmatprep.subr.mxu0 0.0
        %2156 = vmatpush2.msra.mxu0 0.0
        %2157 = vmatprep.subr.mxu0 0.0
        %2158 = vmatpush2.msra.mxu0 0.0
        %2159 = vmatprep.subr.mxu0 0.0
        %2160 = vmatpush2.msra.mxu0 0.0
        %2161 = vmatprep.subr.mxu0 0.0
        %2162 = vmatpush2.msra.mxu0 0.0
        %2163 = vmatprep.subr.mxu0 0.0
        %2164 = vmatpush2.msra.mxu0 0.0
        %2165 = vmatprep.subr.mxu0 0.0
        %2166 = vmatpush2.msra.mxu0 0.0
        %2167 = vmatprep.subr.mxu0 0.0
        %2168 = vmatpush2.msra.mxu0 0.0
        %2169 = vmatprep.subr.mxu0 0.0
        %2170 = vmatpush2.msra.mxu0 0.0
        %2171 = vmatprep.subr.mxu0 0.0
        %2172 = vmatpush2.msra.mxu0 0.0
        %2173 = vmatprep.subr.mxu0 0.0
        %2174 = vmatpush2.msra.mxu0 0.0
        %2175 = vmatprep.subr.mxu0 0.0
        %2176 = vmatpush2.msra.mxu0 0.0
        %2177 = vmatprep.subr.mxu0 0.0
        %2178 = vmatpush2.msra.mxu0 0.0
        %2179 = vmatprep.subr.mxu0 0.0
        %2180 = vmatpush2.msra.mxu0 0.0
        %2181 = vmatprep.subr.mxu0 0.0
        %2182 = vmatpush2.msra.mxu0 0.0
        %2183 = vmatprep.subr.mxu0 0.0
        %2184 = vmatpush2.msra.mxu0 0.0
        %2185 = vmatprep.subr.mxu0 0.0
        %2186 = vmatpush2.msra.mxu0 0.0
        %2187 = vmatprep.mubr.f32.mxu0 0.0
        %v2188 = vand.u32 %v1940, 4294901760
        %v2189 = vsub.f32 %v1940, %v2188
        %2190 = vmatmul.mubr.f32.gmra.mxu0 %v2189
        %v2191 = vpop.f32.mrf.mxu0
        %v2192 = vadd.f32 %v2110, %v2191
        %v2193 = vpop.f32.mrf.mxu0
        %2194 = vmatprep.mubr.f32.mxu0 0.0
        %v2195 = vand.u32 %v1943, 4294901760
        %v2196 = vsub.f32 %v1943, %v2195
        %2197 = vmatmul.mubr.f32.gmra.mxu0 %v2196
        %v2198 = vpop.f32.mrf.mxu0
        %v2199 = vadd.f32 %v2116, %v2198
        %v2200 = vpop.f32.mrf.mxu0
        %2201 = vdwg.mxu0
        %2202 = vmatprep.subr.mxu0 0.0
        %2203 = vmatpush1.msra.mxu0 0.0
        %2204 = vmatprep.subr.mxu0 0.0
        %2205 = vmatpush1.msra.mxu0 0.0
        %2206 = vmatprep.subr.mxu0 0.0
        %2207 = vmatpush1.msra.mxu0 0.0
        %2208 = vmatprep.subr.mxu0 0.0
        %2209 = vmatpush1.msra.mxu0 0.0
        %2210 = vmatprep.subr.mxu0 0.0
        %2211 = vmatpush1.msra.mxu0 0.0
        %2212 = vmatprep.subr.mxu0 0.0
        %2213 = vmatpush1.msra.mxu0 0.0
        %2214 = vmatprep.subr.mxu0 0.0
        %2215 = vmatpush1.msra.mxu0 0.0
        %2216 = vmatprep.subr.mxu0 0.0
        %2217 = vmatpush1.msra.mxu0 0.0
        %2218 = vmatprep.subr.mxu0 0.0
        %2219 = vmatpush1.msra.mxu0 0.0
        %2220 = vmatprep.subr.mxu0 0.0
        %2221 = vmatpush1.msra.mxu0 0.0
        %2222 = vmatprep.subr.mxu0 0.0
        %2223 = vmatpush1.msra.mxu0 0.0
        %2224 = vmatprep.subr.mxu0 0.0
        %2225 = vmatpush1.msra.mxu0 0.0
        %2226 = vmatprep.subr.mxu0 0.0
        %2227 = vmatpush1.msra.mxu0 0.0
        %2228 = vmatprep.subr.mxu0 0.0
        %2229 = vmatpush1.msra.mxu0 0.0
        %2230 = vmatprep.subr.mxu0 0.0
        %v2231 = vand.u32 %v1228, 4294901760
        %2232 = vmatpush1.msra.mxu0 %v2231
        %2233 = vmatprep.subr.mxu0 0.0
        %v2234 = vand.u32 %v1222, 4294901760
        %2235 = vmatpush1.msra.mxu0 %v2234
        %2236 = vmatprep.subr.mxu0 0.0
        %2237 = vmatpush2.msra.mxu0 0.0
        %2238 = vmatprep.subr.mxu0 0.0
        %2239 = vmatpush2.msra.mxu0 0.0
        %2240 = vmatprep.subr.mxu0 0.0
        %2241 = vmatpush2.msra.mxu0 0.0
        %2242 = vmatprep.subr.mxu0 0.0
        %2243 = vmatpush2.msra.mxu0 0.0
        %2244 = vmatprep.subr.mxu0 0.0
        %2245 = vmatpush2.msra.mxu0 0.0
        %2246 = vmatprep.subr.mxu0 0.0
        %2247 = vmatpush2.msra.mxu0 0.0
        %2248 = vmatprep.subr.mxu0 0.0
        %2249 = vmatpush2.msra.mxu0 0.0
        %2250 = vmatprep.subr.mxu0 0.0
        %2251 = vmatpush2.msra.mxu0 0.0
        %2252 = vmatprep.subr.mxu0 0.0
        %2253 = vmatpush2.msra.mxu0 0.0
        %2254 = vmatprep.subr.mxu0 0.0
        %2255 = vmatpush2.msra.mxu0 0.0
        %2256 = vmatprep.subr.mxu0 0.0
        %2257 = vmatpush2.msra.mxu0 0.0
        %2258 = vmatprep.subr.mxu0 0.0
        %2259 = vmatpush2.msra.mxu0 0.0
        %2260 = vmatprep.subr.mxu0 0.0
        %2261 = vmatpush2.msra.mxu0 0.0
        %2262 = vmatprep.subr.mxu0 0.0
        %2263 = vmatpush2.msra.mxu0 0.0
        %2264 = vmatprep.subr.mxu0 0.0
        %2265 = vmatpush2.msra.mxu0 0.0
        %2266 = vmatprep.subr.mxu0 0.0
        %2267 = vmatpush2.msra.mxu0 0.0
        %2268 = vmatprep.mubr.f32.mxu0 0.0
        %v2269 = vand.u32 %v1940, 4294901760
        %v2270 = vsub.f32 %v1940, %v2269
        %v2271 = vand.u32 %v2270, 4294901760
        %2272 = vmatmul.mubr.f32.gmra.mxu0 %v2271
        %v2273 = vpop.f32.mrf.mxu0
        %v2274 = vadd.f32 %v2192, %v2273
        %v2275 = vpop.f32.mrf.mxu0
        %2276 = vmatprep.mubr.f32.mxu0 0.0
        %v2277 = vand.u32 %v1943, 4294901760
        %v2278 = vsub.f32 %v1943, %v2277
        %v2279 = vand.u32 %v2278, 4294901760
        %2280 = vmatmul.mubr.f32.gmra.mxu0 %v2279
        %v2281 = vpop.f32.mrf.mxu0
        %v2282 = vadd.f32 %v2199, %v2281
        %v2283 = vpop.f32.mrf.mxu0
        %2284 = vdwg.mxu0
        %2285 = vmatprep.subr.mxu0 0.0
        %2286 = vmatpush1.msra.mxu0 0.0
        %2287 = vmatprep.subr.mxu0 0.0
        %2288 = vmatpush1.msra.mxu0 0.0
        %2289 = vmatprep.subr.mxu0 0.0
        %2290 = vmatpush1.msra.mxu0 0.0
        %2291 = vmatprep.subr.mxu0 0.0
        %2292 = vmatpush1.msra.mxu0 0.0
        %2293 = vmatprep.subr.mxu0 0.0
        %2294 = vmatpush1.msra.mxu0 0.0
        %2295 = vmatprep.subr.mxu0 0.0
        %2296 = vmatpush1.msra.mxu0 0.0
        %2297 = vmatprep.subr.mxu0 0.0
        %2298 = vmatpush1.msra.mxu0 0.0
        %2299 = vmatprep.subr.mxu0 0.0
        %2300 = vmatpush1.msra.mxu0 0.0
        %2301 = vmatprep.subr.mxu0 0.0
        %2302 = vmatpush1.msra.mxu0 0.0
        %2303 = vmatprep.subr.mxu0 0.0
        %2304 = vmatpush1.msra.mxu0 0.0
        %2305 = vmatprep.subr.mxu0 0.0
        %2306 = vmatpush1.msra.mxu0 0.0
        %2307 = vmatprep.subr.mxu0 0.0
        %2308 = vmatpush1.msra.mxu0 0.0
        %2309 = vmatprep.subr.mxu0 0.0
        %2310 = vmatpush1.msra.mxu0 0.0
        %2311 = vmatprep.subr.mxu0 0.0
        %2312 = vmatpush1.msra.mxu0 0.0
        %2313 = vmatprep.subr.mxu0 0.0
        %v2314 = vand.u32 %v1228, 4294901760
        %v2315 = vsub.f32 %v1228, %v2314
        %v2316 = vand.u32 %v2315, 4294901760
        %2317 = vmatpush1.msra.mxu0 %v2316
        %2318 = vmatprep.subr.mxu0 0.0
        %v2319 = vand.u32 %v1222, 4294901760
        %v2320 = vsub.f32 %v1222, %v2319
        %v2321 = vand.u32 %v2320, 4294901760
        %2322 = vmatpush1.msra.mxu0 %v2321
        %2323 = vmatprep.subr.mxu0 0.0
        %2324 = vmatpush2.msra.mxu0 0.0
        %2325 = vmatprep.subr.mxu0 0.0
        %2326 = vmatpush2.msra.mxu0 0.0
        %2327 = vmatprep.subr.mxu0 0.0
        %2328 = vmatpush2.msra.mxu0 0.0
        %2329 = vmatprep.subr.mxu0 0.0
        %2330 = vmatpush2.msra.mxu0 0.0
        %2331 = vmatprep.subr.mxu0 0.0
        %2332 = vmatpush2.msra.mxu0 0.0
        %2333 = vmatprep.subr.mxu0 0.0
        %2334 = vmatpush2.msra.mxu0 0.0
        %2335 = vmatprep.subr.mxu0 0.0
        %2336 = vmatpush2.msra.mxu0 0.0
        %2337 = vmatprep.subr.mxu0 0.0
        %2338 = vmatpush2.msra.mxu0 0.0
        %2339 = vmatprep.subr.mxu0 0.0
        %2340 = vmatpush2.msra.mxu0 0.0
        %2341 = vmatprep.subr.mxu0 0.0
        %2342 = vmatpush2.msra.mxu0 0.0
        %2343 = vmatprep.subr.mxu0 0.0
        %2344 = vmatpush2.msra.mxu0 0.0
        %2345 = vmatprep.subr.mxu0 0.0
        %2346 = vmatpush2.msra.mxu0 0.0
        %2347 = vmatprep.subr.mxu0 0.0
        %2348 = vmatpush2.msra.mxu0 0.0
        %2349 = vmatprep.subr.mxu0 0.0
        %2350 = vmatpush2.msra.mxu0 0.0
        %2351 = vmatprep.subr.mxu0 0.0
        %2352 = vmatpush2.msra.mxu0 0.0
        %2353 = vmatprep.subr.mxu0 0.0
        %2354 = vmatpush2.msra.mxu0 0.0
        %2355 = vmatprep.mubr.f32.mxu0 0.0
        %v2356 = vand.u32 %v1940, 4294901760
        %2357 = vmatmul.mubr.f32.gmra.mxu0 %v2356
        %v2358 = vpop.f32.mrf.mxu0
        %v2359 = vadd.f32 %v2274, %v2358
        %v2360 = vpop.f32.mrf.mxu0
        %2361 = vmatprep.mubr.f32.mxu0 0.0
        %v2362 = vand.u32 %v1943, 4294901760
        %2363 = vmatmul.mubr.f32.gmra.mxu0 %v2362
        %v2364 = vpop.f32.mrf.mxu0
        %v2365 = vadd.f32 %v2282, %v2364
        %v2366 = vpop.f32.mrf.mxu0
        %2367 = vdwg.mxu0
        %2368 = vmatprep.subr.mxu0 0.0
        %2369 = vmatpush1.msra.mxu0 0.0
        %2370 = vmatprep.subr.mxu0 0.0
        %2371 = vmatpush1.msra.mxu0 0.0
        %2372 = vmatprep.subr.mxu0 0.0
        %2373 = vmatpush1.msra.mxu0 0.0
        %2374 = vmatprep.subr.mxu0 0.0
        %2375 = vmatpush1.msra.mxu0 0.0
        %2376 = vmatprep.subr.mxu0 0.0
        %2377 = vmatpush1.msra.mxu0 0.0
        %2378 = vmatprep.subr.mxu0 0.0
        %2379 = vmatpush1.msra.mxu0 0.0
        %2380 = vmatprep.subr.mxu0 0.0
        %2381 = vmatpush1.msra.mxu0 0.0
        %2382 = vmatprep.subr.mxu0 0.0
        %2383 = vmatpush1.msra.mxu0 0.0
        %2384 = vmatprep.subr.mxu0 0.0
        %2385 = vmatpush1.msra.mxu0 0.0
        %2386 = vmatprep.subr.mxu0 0.0
        %2387 = vmatpush1.msra.mxu0 0.0
        %2388 = vmatprep.subr.mxu0 0.0
        %2389 = vmatpush1.msra.mxu0 0.0
        %2390 = vmatprep.subr.mxu0 0.0
        %2391 = vmatpush1.msra.mxu0 0.0
        %2392 = vmatprep.subr.mxu0 0.0
        %2393 = vmatpush1.msra.mxu0 0.0
        %2394 = vmatprep.subr.mxu0 0.0
        %2395 = vmatpush1.msra.mxu0 0.0
        %2396 = vmatprep.subr.mxu0 0.0
        %v2397 = vand.u32 %v1228, 4294901760
        %2398 = vmatpush1.msra.mxu0 %v2397
        %2399 = vmatprep.subr.mxu0 0.0
        %v2400 = vand.u32 %v1222, 4294901760
        %2401 = vmatpush1.msra.mxu0 %v2400
        %2402 = vmatprep.subr.mxu0 0.0
        %2403 = vmatpush2.msra.mxu0 0.0
        %2404 = vmatprep.subr.mxu0 0.0
        %2405 = vmatpush2.msra.mxu0 0.0
        %2406 = vmatprep.subr.mxu0 0.0
        %2407 = vmatpush2.msra.mxu0 0.0
        %2408 = vmatprep.subr.mxu0 0.0
        %2409 = vmatpush2.msra.mxu0 0.0
        %2410 = vmatprep.subr.mxu0 0.0
        %2411 = vmatpush2.msra.mxu0 0.0
        %2412 = vmatprep.subr.mxu0 0.0
        %2413 = vmatpush2.msra.mxu0 0.0
        %2414 = vmatprep.subr.mxu0 0.0
        %2415 = vmatpush2.msra.mxu0 0.0
        %2416 = vmatprep.subr.mxu0 0.0
        %2417 = vmatpush2.msra.mxu0 0.0
        %2418 = vmatprep.subr.mxu0 0.0
        %2419 = vmatpush2.msra.mxu0 0.0
        %2420 = vmatprep.subr.mxu0 0.0
        %2421 = vmatpush2.msra.mxu0 0.0
        %2422 = vmatprep.subr.mxu0 0.0
        %2423 = vmatpush2.msra.mxu0 0.0
        %2424 = vmatprep.subr.mxu0 0.0
        %2425 = vmatpush2.msra.mxu0 0.0
        %2426 = vmatprep.subr.mxu0 0.0
        %2427 = vmatpush2.msra.mxu0 0.0
        %2428 = vmatprep.subr.mxu0 0.0
        %2429 = vmatpush2.msra.mxu0 0.0
        %2430 = vmatprep.subr.mxu0 0.0
        %2431 = vmatpush2.msra.mxu0 0.0
        %2432 = vmatprep.subr.mxu0 0.0
        %2433 = vmatpush2.msra.mxu0 0.0
        %2434 = vmatprep.mubr.f32.mxu0 0.0
        %v2435 = vand.u32 %v1940, 4294901760
        %2436 = vmatmul.mubr.f32.gmra.mxu0 %v2435
        %v2437 = vpop.f32.mrf.mxu0
        %v2438 = vadd.f32 %v2359, %v2437
        %v2439 = vpop.f32.mrf.mxu0
        %2440 = vmatprep.mubr.f32.mxu0 0.0
        %v2441 = vand.u32 %v1943, 4294901760
        %2442 = vmatmul.mubr.f32.gmra.mxu0 %v2441
        %v2443 = vpop.f32.mrf.mxu0
        %v2444 = vadd.f32 %v2365, %v2443
        %v2445 = vpop.f32.mrf.mxu0
        %2446 = vdwg.mxu0
        %v2447 = vld [vmem:[%s417] sm:$0xff]
        %v2448 = vld [vmem:[%s417 + $0x8] sm:$0xff]
        %v2450 = vsel %vm1938, %v2447, 0
        %v2453 = vsel %vm1938, %v2448, 0
        %2455 = vmatprep.subr.mxu0 0.0
        %2456 = vmatpush1.msra.mxu0 0.0
        %2457 = vmatprep.subr.mxu0 0.0
        %2458 = vmatpush1.msra.mxu0 0.0
        %2459 = vmatprep.subr.mxu0 0.0
        %2460 = vmatpush1.msra.mxu0 0.0
        %2461 = vmatprep.subr.mxu0 0.0
        %2462 = vmatpush1.msra.mxu0 0.0
        %2463 = vmatprep.subr.mxu0 0.0
        %2464 = vmatpush1.msra.mxu0 0.0
        %2465 = vmatprep.subr.mxu0 0.0
        %2466 = vmatpush1.msra.mxu0 0.0
        %2467 = vmatprep.subr.mxu0 0.0
        %2468 = vmatpush1.msra.mxu0 0.0
        %2469 = vmatprep.subr.mxu0 0.0
        %2470 = vmatpush1.msra.mxu0 0.0
        %2471 = vmatprep.subr.mxu0 0.0
        %2472 = vmatpush1.msra.mxu0 0.0
        %2473 = vmatprep.subr.mxu0 0.0
        %2474 = vmatpush1.msra.mxu0 0.0
        %2475 = vmatprep.subr.mxu0 0.0
        %2476 = vmatpush1.msra.mxu0 0.0
        %2477 = vmatprep.subr.mxu0 0.0
        %2478 = vmatpush1.msra.mxu0 0.0
        %2479 = vmatprep.subr.mxu0 0.0
        %2480 = vmatpush1.msra.mxu0 0.0
        %2481 = vmatprep.subr.mxu0 0.0
        %2482 = vmatpush1.msra.mxu0 0.0
        %2483 = vmatprep.subr.mxu0 0.0
        %v2484 = vand.u32 %v1933, 4294901760
        %2485 = vmatpush1.msra.mxu0 %v2484
        %2486 = vmatprep.subr.mxu0 0.0
        %v2487 = vand.u32 %v1927, 4294901760
        %2488 = vmatpush1.msra.mxu0 %v2487
        %2489 = vmatprep.subr.mxu0 0.0
        %2490 = vmatpush2.msra.mxu0 0.0
        %2491 = vmatprep.subr.mxu0 0.0
        %2492 = vmatpush2.msra.mxu0 0.0
        %2493 = vmatprep.subr.mxu0 0.0
        %2494 = vmatpush2.msra.mxu0 0.0
        %2495 = vmatprep.subr.mxu0 0.0
        %2496 = vmatpush2.msra.mxu0 0.0
        %2497 = vmatprep.subr.mxu0 0.0
        %2498 = vmatpush2.msra.mxu0 0.0
        %2499 = vmatprep.subr.mxu0 0.0
        %2500 = vmatpush2.msra.mxu0 0.0
        %2501 = vmatprep.subr.mxu0 0.0
        %2502 = vmatpush2.msra.mxu0 0.0
        %2503 = vmatprep.subr.mxu0 0.0
        %2504 = vmatpush2.msra.mxu0 0.0
        %2505 = vmatprep.subr.mxu0 0.0
        %2506 = vmatpush2.msra.mxu0 0.0
        %2507 = vmatprep.subr.mxu0 0.0
        %2508 = vmatpush2.msra.mxu0 0.0
        %2509 = vmatprep.subr.mxu0 0.0
        %2510 = vmatpush2.msra.mxu0 0.0
        %2511 = vmatprep.subr.mxu0 0.0
        %2512 = vmatpush2.msra.mxu0 0.0
        %2513 = vmatprep.subr.mxu0 0.0
        %2514 = vmatpush2.msra.mxu0 0.0
        %2515 = vmatprep.subr.mxu0 0.0
        %2516 = vmatpush2.msra.mxu0 0.0
        %2517 = vmatprep.subr.mxu0 0.0
        %2518 = vmatpush2.msra.mxu0 0.0
        %2519 = vmatprep.subr.mxu0 0.0
        %2520 = vmatpush2.msra.mxu0 0.0
        %2521 = vmatprep.mubr.f32.mxu0 0.0
        %v2522 = vand.u32 %v2450, 4294901760
        %v2523 = vsub.f32 %v2450, %v2522
        %v2524 = vand.u32 %v2523, 4294901760
        %v2525 = vsub.f32 %v2523, %v2524
        %v2526 = vand.u32 %v2525, 4294901760
        %2527 = vmatmul.mubr.f32.gmra.mxu0 %v2526
        %v2528 = vpop.f32.mrf.mxu0
        %v2529 = vadd.f32 0.0, %v2528
        %v2530 = vpop.f32.mrf.mxu0
        %2531 = vmatprep.mubr.f32.mxu0 0.0
        %v2532 = vand.u32 %v2453, 4294901760
        %v2533 = vsub.f32 %v2453, %v2532
        %v2534 = vand.u32 %v2533, 4294901760
        %v2535 = vsub.f32 %v2533, %v2534
        %v2536 = vand.u32 %v2535, 4294901760
        %2537 = vmatmul.mubr.f32.gmra.mxu0 %v2536
        %v2538 = vpop.f32.mrf.mxu0
        %v2539 = vadd.f32 0.0, %v2538
        %v2540 = vpop.f32.mrf.mxu0
        %2541 = vdwg.mxu0
        %2542 = vmatprep.subr.mxu0 0.0
        %2543 = vmatpush1.msra.mxu0 0.0
        %2544 = vmatprep.subr.mxu0 0.0
        %2545 = vmatpush1.msra.mxu0 0.0
        %2546 = vmatprep.subr.mxu0 0.0
        %2547 = vmatpush1.msra.mxu0 0.0
        %2548 = vmatprep.subr.mxu0 0.0
        %2549 = vmatpush1.msra.mxu0 0.0
        %2550 = vmatprep.subr.mxu0 0.0
        %2551 = vmatpush1.msra.mxu0 0.0
        %2552 = vmatprep.subr.mxu0 0.0
        %2553 = vmatpush1.msra.mxu0 0.0
        %2554 = vmatprep.subr.mxu0 0.0
        %2555 = vmatpush1.msra.mxu0 0.0
        %2556 = vmatprep.subr.mxu0 0.0
        %2557 = vmatpush1.msra.mxu0 0.0
        %2558 = vmatprep.subr.mxu0 0.0
        %2559 = vmatpush1.msra.mxu0 0.0
        %2560 = vmatprep.subr.mxu0 0.0
        %2561 = vmatpush1.msra.mxu0 0.0
        %2562 = vmatprep.subr.mxu0 0.0
        %2563 = vmatpush1.msra.mxu0 0.0
        %2564 = vmatprep.subr.mxu0 0.0
        %2565 = vmatpush1.msra.mxu0 0.0
        %2566 = vmatprep.subr.mxu0 0.0
        %2567 = vmatpush1.msra.mxu0 0.0
        %2568 = vmatprep.subr.mxu0 0.0
        %2569 = vmatpush1.msra.mxu0 0.0
        %2570 = vmatprep.subr.mxu0 0.0
        %v2571 = vand.u32 %v1933, 4294901760
        %v2572 = vsub.f32 %v1933, %v2571
        %v2573 = vand.u32 %v2572, 4294901760
        %v2574 = vsub.f32 %v2572, %v2573
        %v2575 = vand.u32 %v2574, 4294901760
        %2576 = vmatpush1.msra.mxu0 %v2575
        %2577 = vmatprep.subr.mxu0 0.0
        %v2578 = vand.u32 %v1927, 4294901760
        %v2579 = vsub.f32 %v1927, %v2578
        %v2580 = vand.u32 %v2579, 4294901760
        %v2581 = vsub.f32 %v2579, %v2580
        %v2582 = vand.u32 %v2581, 4294901760
        %2583 = vmatpush1.msra.mxu0 %v2582
        %2584 = vmatprep.subr.mxu0 0.0
        %2585 = vmatpush2.msra.mxu0 0.0
        %2586 = vmatprep.subr.mxu0 0.0
        %2587 = vmatpush2.msra.mxu0 0.0
        %2588 = vmatprep.subr.mxu0 0.0
        %2589 = vmatpush2.msra.mxu0 0.0
        %2590 = vmatprep.subr.mxu0 0.0
        %2591 = vmatpush2.msra.mxu0 0.0
        %2592 = vmatprep.subr.mxu0 0.0
        %2593 = vmatpush2.msra.mxu0 0.0
        %2594 = vmatprep.subr.mxu0 0.0
        %2595 = vmatpush2.msra.mxu0 0.0
        %2596 = vmatprep.subr.mxu0 0.0
        %2597 = vmatpush2.msra.mxu0 0.0
        %2598 = vmatprep.subr.mxu0 0.0
        %2599 = vmatpush2.msra.mxu0 0.0
        %2600 = vmatprep.subr.mxu0 0.0
        %2601 = vmatpush2.msra.mxu0 0.0
        %2602 = vmatprep.subr.mxu0 0.0
        %2603 = vmatpush2.msra.mxu0 0.0
        %2604 = vmatprep.subr.mxu0 0.0
        %2605 = vmatpush2.msra.mxu0 0.0
        %2606 = vmatprep.subr.mxu0 0.0
        %2607 = vmatpush2.msra.mxu0 0.0
        %2608 = vmatprep.subr.mxu0 0.0
        %2609 = vmatpush2.msra.mxu0 0.0
        %2610 = vmatprep.subr.mxu0 0.0
        %2611 = vmatpush2.msra.mxu0 0.0
        %2612 = vmatprep.subr.mxu0 0.0
        %2613 = vmatpush2.msra.mxu0 0.0
        %2614 = vmatprep.subr.mxu0 0.0
        %2615 = vmatpush2.msra.mxu0 0.0
        %2616 = vmatprep.mubr.f32.mxu0 0.0
        %v2617 = vand.u32 %v2450, 4294901760
        %2618 = vmatmul.mubr.f32.gmra.mxu0 %v2617
        %v2619 = vpop.f32.mrf.mxu0
        %v2620 = vadd.f32 %v2529, %v2619
        %v2621 = vpop.f32.mrf.mxu0
        %2622 = vmatprep.mubr.f32.mxu0 0.0
        %v2623 = vand.u32 %v2453, 4294901760
        %2624 = vmatmul.mubr.f32.gmra.mxu0 %v2623
        %v2625 = vpop.f32.mrf.mxu0
        %v2626 = vadd.f32 %v2539, %v2625
        %v2627 = vpop.f32.mrf.mxu0
        %2628 = vdwg.mxu0
        %2629 = vmatprep.subr.mxu0 0.0
        %2630 = vmatpush1.msra.mxu0 0.0
        %2631 = vmatprep.subr.mxu0 0.0
        %2632 = vmatpush1.msra.mxu0 0.0
        %2633 = vmatprep.subr.mxu0 0.0
        %2634 = vmatpush1.msra.mxu0 0.0
        %2635 = vmatprep.subr.mxu0 0.0
        %2636 = vmatpush1.msra.mxu0 0.0
        %2637 = vmatprep.subr.mxu0 0.0
        %2638 = vmatpush1.msra.mxu0 0.0
        %2639 = vmatprep.subr.mxu0 0.0
        %2640 = vmatpush1.msra.mxu0 0.0
        %2641 = vmatprep.subr.mxu0 0.0
        %2642 = vmatpush1.msra.mxu0 0.0
        %2643 = vmatprep.subr.mxu0 0.0
        %2644 = vmatpush1.msra.mxu0 0.0
        %2645 = vmatprep.subr.mxu0 0.0
        %2646 = vmatpush1.msra.mxu0 0.0
        %2647 = vmatprep.subr.mxu0 0.0
        %2648 = vmatpush1.msra.mxu0 0.0
        %2649 = vmatprep.subr.mxu0 0.0
        %2650 = vmatpush1.msra.mxu0 0.0
        %2651 = vmatprep.subr.mxu0 0.0
        %2652 = vmatpush1.msra.mxu0 0.0
        %2653 = vmatprep.subr.mxu0 0.0
        %2654 = vmatpush1.msra.mxu0 0.0
        %2655 = vmatprep.subr.mxu0 0.0
        %2656 = vmatpush1.msra.mxu0 0.0
        %2657 = vmatprep.subr.mxu0 0.0
        %v2658 = vand.u32 %v1933, 4294901760
        %v2659 = vsub.f32 %v1933, %v2658
        %2660 = vmatpush1.msra.mxu0 %v2659
        %2661 = vmatprep.subr.mxu0 0.0
        %v2662 = vand.u32 %v1927, 4294901760
        %v2663 = vsub.f32 %v1927, %v2662
        %2664 = vmatpush1.msra.mxu0 %v2663
        %2665 = vmatprep.subr.mxu0 0.0
        %2666 = vmatpush2.msra.mxu0 0.0
        %2667 = vmatprep.subr.mxu0 0.0
        %2668 = vmatpush2.msra.mxu0 0.0
        %2669 = vmatprep.subr.mxu0 0.0
        %2670 = vmatpush2.msra.mxu0 0.0
        %2671 = vmatprep.subr.mxu0 0.0
        %2672 = vmatpush2.msra.mxu0 0.0
        %2673 = vmatprep.subr.mxu0 0.0
        %2674 = vmatpush2.msra.mxu0 0.0
        %2675 = vmatprep.subr.mxu0 0.0
        %2676 = vmatpush2.msra.mxu0 0.0
        %2677 = vmatprep.subr.mxu0 0.0
        %2678 = vmatpush2.msra.mxu0 0.0
        %2679 = vmatprep.subr.mxu0 0.0
        %2680 = vmatpush2.msra.mxu0 0.0
        %2681 = vmatprep.subr.mxu0 0.0
        %2682 = vmatpush2.msra.mxu0 0.0
        %2683 = vmatprep.subr.mxu0 0.0
        %2684 = vmatpush2.msra.mxu0 0.0
        %2685 = vmatprep.subr.mxu0 0.0
        %2686 = vmatpush2.msra.mxu0 0.0
        %2687 = vmatprep.subr.mxu0 0.0
        %2688 = vmatpush2.msra.mxu0 0.0
        %2689 = vmatprep.subr.mxu0 0.0
        %2690 = vmatpush2.msra.mxu0 0.0
        %2691 = vmatprep.subr.mxu0 0.0
        %2692 = vmatpush2.msra.mxu0 0.0
        %2693 = vmatprep.subr.mxu0 0.0
        %2694 = vmatpush2.msra.mxu0 0.0
        %2695 = vmatprep.subr.mxu0 0.0
        %2696 = vmatpush2.msra.mxu0 0.0
        %2697 = vmatprep.mubr.f32.mxu0 0.0
        %v2698 = vand.u32 %v2450, 4294901760
        %v2699 = vsub.f32 %v2450, %v2698
        %2700 = vmatmul.mubr.f32.gmra.mxu0 %v2699
        %v2701 = vpop.f32.mrf.mxu0
        %v2702 = vadd.f32 %v2620, %v2701
        %v2703 = vpop.f32.mrf.mxu0
        %2704 = vmatprep.mubr.f32.mxu0 0.0
        %v2705 = vand.u32 %v2453, 4294901760
        %v2706 = vsub.f32 %v2453, %v2705
        %2707 = vmatmul.mubr.f32.gmra.mxu0 %v2706
        %v2708 = vpop.f32.mrf.mxu0
        %v2709 = vadd.f32 %v2626, %v2708
        %v2710 = vpop.f32.mrf.mxu0
        %2711 = vdwg.mxu0
        %2712 = vmatprep.subr.mxu0 0.0
        %2713 = vmatpush1.msra.mxu0 0.0
        %2714 = vmatprep.subr.mxu0 0.0
        %2715 = vmatpush1.msra.mxu0 0.0
        %2716 = vmatprep.subr.mxu0 0.0
        %2717 = vmatpush1.msra.mxu0 0.0
        %2718 = vmatprep.subr.mxu0 0.0
        %2719 = vmatpush1.msra.mxu0 0.0
        %2720 = vmatprep.subr.mxu0 0.0
        %2721 = vmatpush1.msra.mxu0 0.0
        %2722 = vmatprep.subr.mxu0 0.0
        %2723 = vmatpush1.msra.mxu0 0.0
        %2724 = vmatprep.subr.mxu0 0.0
        %2725 = vmatpush1.msra.mxu0 0.0
        %2726 = vmatprep.subr.mxu0 0.0
        %2727 = vmatpush1.msra.mxu0 0.0
        %2728 = vmatprep.subr.mxu0 0.0
        %2729 = vmatpush1.msra.mxu0 0.0
        %2730 = vmatprep.subr.mxu0 0.0
        %2731 = vmatpush1.msra.mxu0 0.0
        %2732 = vmatprep.subr.mxu0 0.0
        %2733 = vmatpush1.msra.mxu0 0.0
        %2734 = vmatprep.subr.mxu0 0.0
        %2735 = vmatpush1.msra.mxu0 0.0
        %2736 = vmatprep.subr.mxu0 0.0
        %2737 = vmatpush1.msra.mxu0 0.0
        %2738 = vmatprep.subr.mxu0 0.0
        %2739 = vmatpush1.msra.mxu0 0.0
        %2740 = vmatprep.subr.mxu0 0.0
        %v2741 = vand.u32 %v1933, 4294901760
        %2742 = vmatpush1.msra.mxu0 %v2741
        %2743 = vmatprep.subr.mxu0 0.0
        %v2744 = vand.u32 %v1927, 4294901760
        %2745 = vmatpush1.msra.mxu0 %v2744
        %2746 = vmatprep.subr.mxu0 0.0
        %2747 = vmatpush2.msra.mxu0 0.0
        %2748 = vmatprep.subr.mxu0 0.0
        %2749 = vmatpush2.msra.mxu0 0.0
        %2750 = vmatprep.subr.mxu0 0.0
        %2751 = vmatpush2.msra.mxu0 0.0
        %2752 = vmatprep.subr.mxu0 0.0
        %2753 = vmatpush2.msra.mxu0 0.0
        %2754 = vmatprep.subr.mxu0 0.0
        %2755 = vmatpush2.msra.mxu0 0.0
        %2756 = vmatprep.subr.mxu0 0.0
        %2757 = vmatpush2.msra.mxu0 0.0
        %2758 = vmatprep.subr.mxu0 0.0
        %2759 = vmatpush2.msra.mxu0 0.0
        %2760 = vmatprep.subr.mxu0 0.0
        %2761 = vmatpush2.msra.mxu0 0.0
        %2762 = vmatprep.subr.mxu0 0.0
        %2763 = vmatpush2.msra.mxu0 0.0
        %2764 = vmatprep.subr.mxu0 0.0
        %2765 = vmatpush2.msra.mxu0 0.0
        %2766 = vmatprep.subr.mxu0 0.0
        %2767 = vmatpush2.msra.mxu0 0.0
        %2768 = vmatprep.subr.mxu0 0.0
        %2769 = vmatpush2.msra.mxu0 0.0
        %2770 = vmatprep.subr.mxu0 0.0
        %2771 = vmatpush2.msra.mxu0 0.0
        %2772 = vmatprep.subr.mxu0 0.0
        %2773 = vmatpush2.msra.mxu0 0.0
        %2774 = vmatprep.subr.mxu0 0.0
        %2775 = vmatpush2.msra.mxu0 0.0
        %2776 = vmatprep.subr.mxu0 0.0
        %2777 = vmatpush2.msra.mxu0 0.0
        %2778 = vmatprep.mubr.f32.mxu0 0.0
        %v2779 = vand.u32 %v2450, 4294901760
        %v2780 = vsub.f32 %v2450, %v2779
        %v2781 = vand.u32 %v2780, 4294901760
        %2782 = vmatmul.mubr.f32.gmra.mxu0 %v2781
        %v2783 = vpop.f32.mrf.mxu0
        %v2784 = vadd.f32 %v2702, %v2783
        %v2785 = vpop.f32.mrf.mxu0
        %2786 = vmatprep.mubr.f32.mxu0 0.0
        %v2787 = vand.u32 %v2453, 4294901760
        %v2788 = vsub.f32 %v2453, %v2787
        %v2789 = vand.u32 %v2788, 4294901760
        %2790 = vmatmul.mubr.f32.gmra.mxu0 %v2789
        %v2791 = vpop.f32.mrf.mxu0
        %v2792 = vadd.f32 %v2709, %v2791
        %v2793 = vpop.f32.mrf.mxu0
        %2794 = vdwg.mxu0
        %2795 = vmatprep.subr.mxu0 0.0
        %2796 = vmatpush1.msra.mxu0 0.0
        %2797 = vmatprep.subr.mxu0 0.0
        %2798 = vmatpush1.msra.mxu0 0.0
        %2799 = vmatprep.subr.mxu0 0.0
        %2800 = vmatpush1.msra.mxu0 0.0
        %2801 = vmatprep.subr.mxu0 0.0
        %2802 = vmatpush1.msra.mxu0 0.0
        %2803 = vmatprep.subr.mxu0 0.0
        %2804 = vmatpush1.msra.mxu0 0.0
        %2805 = vmatprep.subr.mxu0 0.0
        %2806 = vmatpush1.msra.mxu0 0.0
        %2807 = vmatprep.subr.mxu0 0.0
        %2808 = vmatpush1.msra.mxu0 0.0
        %2809 = vmatprep.subr.mxu0 0.0
        %2810 = vmatpush1.msra.mxu0 0.0
        %2811 = vmatprep.subr.mxu0 0.0
        %2812 = vmatpush1.msra.mxu0 0.0
        %2813 = vmatprep.subr.mxu0 0.0
        %2814 = vmatpush1.msra.mxu0 0.0
        %2815 = vmatprep.subr.mxu0 0.0
        %2816 = vmatpush1.msra.mxu0 0.0
        %2817 = vmatprep.subr.mxu0 0.0
        %2818 = vmatpush1.msra.mxu0 0.0
        %2819 = vmatprep.subr.mxu0 0.0
        %2820 = vmatpush1.msra.mxu0 0.0
        %2821 = vmatprep.subr.mxu0 0.0
        %2822 = vmatpush1.msra.mxu0 0.0
        %2823 = vmatprep.subr.mxu0 0.0
        %v2824 = vand.u32 %v1933, 4294901760
        %v2825 = vsub.f32 %v1933, %v2824
        %v2826 = vand.u32 %v2825, 4294901760
        %2827 = vmatpush1.msra.mxu0 %v2826
        %2828 = vmatprep.subr.mxu0 0.0
        %v2829 = vand.u32 %v1927, 4294901760
        %v2830 = vsub.f32 %v1927, %v2829
        %v2831 = vand.u32 %v2830, 4294901760
        %2832 = vmatpush1.msra.mxu0 %v2831
        %2833 = vmatprep.subr.mxu0 0.0
        %2834 = vmatpush2.msra.mxu0 0.0
        %2835 = vmatprep.subr.mxu0 0.0
        %2836 = vmatpush2.msra.mxu0 0.0
        %2837 = vmatprep.subr.mxu0 0.0
        %2838 = vmatpush2.msra.mxu0 0.0
        %2839 = vmatprep.subr.mxu0 0.0
        %2840 = vmatpush2.msra.mxu0 0.0
        %2841 = vmatprep.subr.mxu0 0.0
        %2842 = vmatpush2.msra.mxu0 0.0
        %2843 = vmatprep.subr.mxu0 0.0
        %2844 = vmatpush2.msra.mxu0 0.0
        %2845 = vmatprep.subr.mxu0 0.0
        %2846 = vmatpush2.msra.mxu0 0.0
        %2847 = vmatprep.subr.mxu0 0.0
        %2848 = vmatpush2.msra.mxu0 0.0
        %2849 = vmatprep.subr.mxu0 0.0
        %2850 = vmatpush2.msra.mxu0 0.0
        %2851 = vmatprep.subr.mxu0 0.0
        %2852 = vmatpush2.msra.mxu0 0.0
        %2853 = vmatprep.subr.mxu0 0.0
        %2854 = vmatpush2.msra.mxu0 0.0
        %2855 = vmatprep.subr.mxu0 0.0
        %2856 = vmatpush2.msra.mxu0 0.0
        %2857 = vmatprep.subr.mxu0 0.0
        %2858 = vmatpush2.msra.mxu0 0.0
        %2859 = vmatprep.subr.mxu0 0.0
        %2860 = vmatpush2.msra.mxu0 0.0
        %2861 = vmatprep.subr.mxu0 0.0
        %2862 = vmatpush2.msra.mxu0 0.0
        %2863 = vmatprep.subr.mxu0 0.0
        %2864 = vmatpush2.msra.mxu0 0.0
        %2865 = vmatprep.mubr.f32.mxu0 0.0
        %v2866 = vand.u32 %v2450, 4294901760
        %2867 = vmatmul.mubr.f32.gmra.mxu0 %v2866
        %v2868 = vpop.f32.mrf.mxu0
        %v2869 = vadd.f32 %v2784, %v2868
        %v2870 = vpop.f32.mrf.mxu0
        %2871 = vmatprep.mubr.f32.mxu0 0.0
        %v2872 = vand.u32 %v2453, 4294901760
        %2873 = vmatmul.mubr.f32.gmra.mxu0 %v2872
        %v2874 = vpop.f32.mrf.mxu0
        %v2875 = vadd.f32 %v2792, %v2874
        %v2876 = vpop.f32.mrf.mxu0
        %2877 = vdwg.mxu0
        %2878 = vmatprep.subr.mxu0 0.0
        %2879 = vmatpush1.msra.mxu0 0.0
        %2880 = vmatprep.subr.mxu0 0.0
        %2881 = vmatpush1.msra.mxu0 0.0
        %2882 = vmatprep.subr.mxu0 0.0
        %2883 = vmatpush1.msra.mxu0 0.0
        %2884 = vmatprep.subr.mxu0 0.0
        %2885 = vmatpush1.msra.mxu0 0.0
        %2886 = vmatprep.subr.mxu0 0.0
        %2887 = vmatpush1.msra.mxu0 0.0
        %2888 = vmatprep.subr.mxu0 0.0
        %2889 = vmatpush1.msra.mxu0 0.0
        %2890 = vmatprep.subr.mxu0 0.0
        %2891 = vmatpush1.msra.mxu0 0.0
        %2892 = vmatprep.subr.mxu0 0.0
        %2893 = vmatpush1.msra.mxu0 0.0
        %2894 = vmatprep.subr.mxu0 0.0
        %2895 = vmatpush1.msra.mxu0 0.0
        %2896 = vmatprep.subr.mxu0 0.0
        %2897 = vmatpush1.msra.mxu0 0.0
        %2898 = vmatprep.subr.mxu0 0.0
        %2899 = vmatpush1.msra.mxu0 0.0
        %2900 = vmatprep.subr.mxu0 0.0
        %2901 = vmatpush1.msra.mxu0 0.0
        %2902 = vmatprep.subr.mxu0 0.0
        %2903 = vmatpush1.msra.mxu0 0.0
        %2904 = vmatprep.subr.mxu0 0.0
        %2905 = vmatpush1.msra.mxu0 0.0
        %2906 = vmatprep.subr.mxu0 0.0
        %v2907 = vand.u32 %v1933, 4294901760
        %2908 = vmatpush1.msra.mxu0 %v2907
        %2909 = vmatprep.subr.mxu0 0.0
        %v2910 = vand.u32 %v1927, 4294901760
        %2911 = vmatpush1.msra.mxu0 %v2910
        %2912 = vmatprep.subr.mxu0 0.0
        %2913 = vmatpush2.msra.mxu0 0.0
        %2914 = vmatprep.subr.mxu0 0.0
        %2915 = vmatpush2.msra.mxu0 0.0
        %2916 = vmatprep.subr.mxu0 0.0
        %2917 = vmatpush2.msra.mxu0 0.0
        %2918 = vmatprep.subr.mxu0 0.0
        %2919 = vmatpush2.msra.mxu0 0.0
        %2920 = vmatprep.subr.mxu0 0.0
        %2921 = vmatpush2.msra.mxu0 0.0
        %2922 = vmatprep.subr.mxu0 0.0
        %2923 = vmatpush2.msra.mxu0 0.0
        %2924 = vmatprep.subr.mxu0 0.0
        %2925 = vmatpush2.msra.mxu0 0.0
        %2926 = vmatprep.subr.mxu0 0.0
        %2927 = vmatpush2.msra.mxu0 0.0
        %2928 = vmatprep.subr.mxu0 0.0
        %2929 = vmatpush2.msra.mxu0 0.0
        %2930 = vmatprep.subr.mxu0 0.0
        %2931 = vmatpush2.msra.mxu0 0.0
        %2932 = vmatprep.subr.mxu0 0.0
        %2933 = vmatpush2.msra.mxu0 0.0
        %2934 = vmatprep.subr.mxu0 0.0
        %2935 = vmatpush2.msra.mxu0 0.0
        %2936 = vmatprep.subr.mxu0 0.0
        %2937 = vmatpush2.msra.mxu0 0.0
        %2938 = vmatprep.subr.mxu0 0.0
        %2939 = vmatpush2.msra.mxu0 0.0
        %2940 = vmatprep.subr.mxu0 0.0
        %2941 = vmatpush2.msra.mxu0 0.0
        %2942 = vmatprep.subr.mxu0 0.0
        %2943 = vmatpush2.msra.mxu0 0.0
        %2944 = vmatprep.mubr.f32.mxu0 0.0
        %v2945 = vand.u32 %v2450, 4294901760
        %2946 = vmatmul.mubr.f32.gmra.mxu0 %v2945
        %v2947 = vpop.f32.mrf.mxu0
        %v2948 = vadd.f32 %v2869, %v2947
        %v2949 = vpop.f32.mrf.mxu0
        %2950 = vmatprep.mubr.f32.mxu0 0.0
        %v2951 = vand.u32 %v2453, 4294901760
        %2952 = vmatmul.mubr.f32.gmra.mxu0 %v2951
        %v2953 = vpop.f32.mrf.mxu0
        %v2954 = vadd.f32 %v2875, %v2953
        %v2955 = vpop.f32.mrf.mxu0
        %2956 = vdwg.mxu0
        %v2957 = vld [vmem:[%s444] sm:$0xff]
        %v2958 = vld [vmem:[%s444 + $0x8] sm:$0xff]
        %v2959 = vld [vmem:[%s444 + $0x10] sm:$0xff]
        %v2960 = vld [vmem:[%s444 + $0x18] sm:$0xff]
        %v2961 = vld [vmem:[%s444 + $0x20] sm:$0xff]
        %v2962 = vld [vmem:[%s444 + $0x28] sm:$0xff]
        %v2963 = vld [vmem:[%s444 + $0x30] sm:$0xff]
        %v2964 = vld [vmem:[%s444 + $0x38] sm:$0xff]
        %v2965 = vld [vmem:[%s444 + $0x40] sm:$0xff]
        %v2966 = vld [vmem:[%s444 + $0x48] sm:$0xff]
        %v2967 = vld [vmem:[%s444 + $0x50] sm:$0xff]
        %v2968 = vld [vmem:[%s444 + $0x58] sm:$0xff]
        %v2969 = vld [vmem:[%s444 + $0x60] sm:$0xff]
        %v2970 = vld [vmem:[%s444 + $0x68] sm:$0xff]
        %v2971 = vld [vmem:[%s444 + $0x70] sm:$0xff]
        %v2972 = vld [vmem:[%s444 + $0x78] sm:$0xff]
        %v2973 = vld [vmem:[%s444 + $0x80] sm:$0xff]
        %v2974 = vld [vmem:[%s444 + $0x88] sm:$0xff]
        %v2975 = vld [vmem:[%s444 + $0x90] sm:$0xff]
        %v2976 = vld [vmem:[%s444 + $0x98] sm:$0xff]
        %v2977 = vld [vmem:[%s444 + $0xa0] sm:$0xff]
        %v2978 = vld [vmem:[%s444 + $0xa8] sm:$0xff]
        %v2979 = vld [vmem:[%s444 + $0xb0] sm:$0xff]
        %v2980 = vld [vmem:[%s444 + $0xb8] sm:$0xff]
        %v2981 = vld [vmem:[%s444 + $0xc0] sm:$0xff]
        %v2982 = vld [vmem:[%s444 + $0xc8] sm:$0xff]
        %v2983 = vld [vmem:[%s444 + $0xd0] sm:$0xff]
        %v2984 = vld [vmem:[%s444 + $0xd8] sm:$0xff]
        %v2985 = vld [vmem:[%s444 + $0xe0] sm:$0xff]
        %v2986 = vld [vmem:[%s444 + $0xe8] sm:$0xff]
        %v2987 = vld [vmem:[%s444 + $0xf0] sm:$0xff]
        %v2988 = vld [vmem:[%s444 + $0xf8] sm:$0xff]
        %v2989 = vld [vmem:[%s444 + $0x100] sm:$0xff]
        %v2990 = vld [vmem:[%s444 + $0x108] sm:$0xff]
        %v2991 = vld [vmem:[%s444 + $0x110] sm:$0xff]
        %v2992 = vld [vmem:[%s444 + $0x118] sm:$0xff]
        %v2993 = vld [vmem:[%s444 + $0x120] sm:$0xff]
        %v2994 = vld [vmem:[%s444 + $0x128] sm:$0xff]
        %v2995 = vld [vmem:[%s444 + $0x130] sm:$0xff]
        %v2996 = vld [vmem:[%s444 + $0x138] sm:$0xff]
        %v2997 = vld [vmem:[%s444 + $0x140] sm:$0xff]
        %v2998 = vld [vmem:[%s444 + $0x148] sm:$0xff]
        %v2999 = vld [vmem:[%s444 + $0x150] sm:$0xff]
        %v3000 = vld [vmem:[%s444 + $0x158] sm:$0xff]
        %v3001 = vld [vmem:[%s444 + $0x160] sm:$0xff]
        %v3002 = vld [vmem:[%s444 + $0x168] sm:$0xff]
        %v3003 = vld [vmem:[%s444 + $0x170] sm:$0xff]
        %v3004 = vld [vmem:[%s444 + $0x178] sm:$0xff]
        %s3005 = scalar_lea.vmem %s444, 384 [#allocation10]
        %v3006 = vld [vmem:[%s3005] sm:$0xff]
        %v3007 = vld [vmem:[%s3005 + $0x8] sm:$0xff]
        %v3008 = vld [vmem:[%s3005 + $0x10] sm:$0xff]
        %v3009 = vld [vmem:[%s3005 + $0x18] sm:$0xff]
        %v3010 = vld [vmem:[%s3005 + $0x20] sm:$0xff]
        %v3011 = vld [vmem:[%s3005 + $0x28] sm:$0xff]
        %v3012 = vld [vmem:[%s3005 + $0x30] sm:$0xff]
        %v3013 = vld [vmem:[%s3005 + $0x38] sm:$0xff]
        %v3014 = vld [vmem:[%s3005 + $0x40] sm:$0xff]
        %v3015 = vld [vmem:[%s3005 + $0x48] sm:$0xff]
        %v3016 = vld [vmem:[%s3005 + $0x50] sm:$0xff]
        %v3017 = vld [vmem:[%s3005 + $0x58] sm:$0xff]
        %v3018 = vld [vmem:[%s3005 + $0x60] sm:$0xff]
        %v3019 = vld [vmem:[%s3005 + $0x68] sm:$0xff]
        %v3020 = vld [vmem:[%s3005 + $0x70] sm:$0xff]
        %v3021 = vld [vmem:[%s3005 + $0x78] sm:$0xff]
        %v3022 = vld [vmem:[%s3005 + $0x80] sm:$0xff]
        %v3023 = vld [vmem:[%s3005 + $0x88] sm:$0xff]
        %v3024 = vld [vmem:[%s3005 + $0x90] sm:$0xff]
        %v3025 = vld [vmem:[%s3005 + $0x98] sm:$0xff]
        %v3026 = vld [vmem:[%s3005 + $0xa0] sm:$0xff]
        %v3027 = vld [vmem:[%s3005 + $0xa8] sm:$0xff]
        %v3028 = vld [vmem:[%s3005 + $0xb0] sm:$0xff]
        %v3029 = vld [vmem:[%s3005 + $0xb8] sm:$0xff]
        %v3030 = vld [vmem:[%s3005 + $0xc0] sm:$0xff]
        %v3031 = vld [vmem:[%s3005 + $0xc8] sm:$0xff]
        %v3032 = vld [vmem:[%s3005 + $0xd0] sm:$0xff]
        %v3033 = vld [vmem:[%s3005 + $0xd8] sm:$0xff]
        %v3034 = vld [vmem:[%s3005 + $0xe0] sm:$0xff]
        %v3035 = vld [vmem:[%s3005 + $0xe8] sm:$0xff]
        %v3036 = vld [vmem:[%s3005 + $0xf0] sm:$0xff]
        %v3037 = vld [vmem:[%s3005 + $0xf8] sm:$0xff]
        %v3038 = vld [vmem:[%s3005 + $0x100] sm:$0xff]
        %v3039 = vld [vmem:[%s3005 + $0x108] sm:$0xff]
        %v3040 = vld [vmem:[%s3005 + $0x110] sm:$0xff]
        %v3041 = vld [vmem:[%s3005 + $0x118] sm:$0xff]
        %v3042 = vld [vmem:[%s3005 + $0x120] sm:$0xff]
        %v3043 = vld [vmem:[%s3005 + $0x128] sm:$0xff]
        %v3044 = vld [vmem:[%s3005 + $0x130] sm:$0xff]
        %v3045 = vld [vmem:[%s3005 + $0x138] sm:$0xff]
        %v3046 = vld [vmem:[%s3005 + $0x140] sm:$0xff]
        %v3047 = vld [vmem:[%s3005 + $0x148] sm:$0xff]
        %v3048 = vld [vmem:[%s3005 + $0x150] sm:$0xff]
        %v3049 = vld [vmem:[%s3005 + $0x158] sm:$0xff]
        %v3050 = vld [vmem:[%s3005 + $0x160] sm:$0xff]
        %v3051 = vld [vmem:[%s3005 + $0x168] sm:$0xff]
        %v3052 = vld [vmem:[%s3005 + $0x170] sm:$0xff]
        %v3053 = vld [vmem:[%s3005 + $0x178] sm:$0xff]
        %v3054 = vand.u32 %v3052, 4294901760
        %3055 = vmatprep.subr.mxu0 %v3054
        %v3056 = vand.u32 %v3051, 4294901760
        %3057 = vmatpush1.msra.mxu0 %v3056
        %v3058 = vand.u32 %v3049, 4294901760
        %3059 = vmatprep.subr.mxu0 %v3058
        %v3060 = vand.u32 %v3048, 4294901760
        %3061 = vmatpush1.msra.mxu0 %v3060
        %v3062 = vand.u32 %v3046, 4294901760
        %3063 = vmatprep.subr.mxu0 %v3062
        %v3064 = vand.u32 %v3045, 4294901760
        %3065 = vmatpush1.msra.mxu0 %v3064
        %v3066 = vand.u32 %v3043, 4294901760
        %3067 = vmatprep.subr.mxu0 %v3066
        %v3068 = vand.u32 %v3042, 4294901760
        %3069 = vmatpush1.msra.mxu0 %v3068
        %v3070 = vand.u32 %v3040, 4294901760
        %3071 = vmatprep.subr.mxu0 %v3070
        %v3072 = vand.u32 %v3039, 4294901760
        %3073 = vmatpush1.msra.mxu0 %v3072
        %v3074 = vand.u32 %v3037, 4294901760
        %3075 = vmatprep.subr.mxu0 %v3074
        %v3076 = vand.u32 %v3036, 4294901760
        %3077 = vmatpush1.msra.mxu0 %v3076
        %v3078 = vand.u32 %v3034, 4294901760
        %3079 = vmatprep.subr.mxu0 %v3078
        %v3080 = vand.u32 %v3033, 4294901760
        %3081 = vmatpush1.msra.mxu0 %v3080
        %v3082 = vand.u32 %v3031, 4294901760
        %3083 = vmatprep.subr.mxu0 %v3082
        %v3084 = vand.u32 %v3030, 4294901760
        %3085 = vmatpush1.msra.mxu0 %v3084
        %v3086 = vand.u32 %v3028, 4294901760
        %3087 = vmatprep.subr.mxu0 %v3086
        %v3088 = vand.u32 %v3027, 4294901760
        %3089 = vmatpush1.msra.mxu0 %v3088
        %v3090 = vand.u32 %v3025, 4294901760
        %3091 = vmatprep.subr.mxu0 %v3090
        %v3092 = vand.u32 %v3024, 4294901760
        %3093 = vmatpush1.msra.mxu0 %v3092
        %v3094 = vand.u32 %v3022, 4294901760
        %3095 = vmatprep.subr.mxu0 %v3094
        %v3096 = vand.u32 %v3021, 4294901760
        %3097 = vmatpush1.msra.mxu0 %v3096
        %v3098 = vand.u32 %v3019, 4294901760
        %3099 = vmatprep.subr.mxu0 %v3098
        %v3100 = vand.u32 %v3018, 4294901760
        %3101 = vmatpush1.msra.mxu0 %v3100
        %v3102 = vand.u32 %v3016, 4294901760
        %3103 = vmatprep.subr.mxu0 %v3102
        %v3104 = vand.u32 %v3015, 4294901760
        %3105 = vmatpush1.msra.mxu0 %v3104
        %v3106 = vand.u32 %v3013, 4294901760
        %3107 = vmatprep.subr.mxu0 %v3106
        %v3108 = vand.u32 %v3012, 4294901760
        %3109 = vmatpush1.msra.mxu0 %v3108
        %v3110 = vand.u32 %v3010, 4294901760
        %3111 = vmatprep.subr.mxu0 %v3110
        %v3112 = vand.u32 %v3009, 4294901760
        %3113 = vmatpush1.msra.mxu0 %v3112
        %v3114 = vand.u32 %v3007, 4294901760
        %3115 = vmatprep.subr.mxu0 %v3114
        %v3116 = vand.u32 %v3006, 4294901760
        %3117 = vmatpush1.msra.mxu0 %v3116
        %3118 = vmatprep.subr.mxu0 0.0
        %3119 = vmatpush2.msra.mxu0 0.0
        %3120 = vmatprep.subr.mxu0 0.0
        %3121 = vmatpush2.msra.mxu0 0.0
        %3122 = vmatprep.subr.mxu0 0.0
        %3123 = vmatpush2.msra.mxu0 0.0
        %3124 = vmatprep.subr.mxu0 0.0
        %3125 = vmatpush2.msra.mxu0 0.0
        %3126 = vmatprep.subr.mxu0 0.0
        %3127 = vmatpush2.msra.mxu0 0.0
        %3128 = vmatprep.subr.mxu0 0.0
        %3129 = vmatpush2.msra.mxu0 0.0
        %3130 = vmatprep.subr.mxu0 0.0
        %3131 = vmatpush2.msra.mxu0 0.0
        %3132 = vmatprep.subr.mxu0 0.0
        %3133 = vmatpush2.msra.mxu0 0.0
        %3134 = vmatprep.subr.mxu0 0.0
        %3135 = vmatpush2.msra.mxu0 0.0
        %3136 = vmatprep.subr.mxu0 0.0
        %3137 = vmatpush2.msra.mxu0 0.0
        %3138 = vmatprep.subr.mxu0 0.0
        %3139 = vmatpush2.msra.mxu0 0.0
        %3140 = vmatprep.subr.mxu0 0.0
        %3141 = vmatpush2.msra.mxu0 0.0
        %3142 = vmatprep.subr.mxu0 0.0
        %3143 = vmatpush2.msra.mxu0 0.0
        %3144 = vmatprep.subr.mxu0 0.0
        %3145 = vmatpush2.msra.mxu0 0.0
        %3146 = vmatprep.subr.mxu0 0.0
        %3147 = vmatpush2.msra.mxu0 0.0
        %3148 = vmatprep.subr.mxu0 0.0
        %3149 = vmatpush2.msra.mxu0 0.0
        %3150 = vmatprep.mubr.f32.mxu0 0.0
        %v3151 = vand.u32 %v2948, 4294901760
        %v3152 = vsub.f32 %v2948, %v3151
        %v3153 = vand.u32 %v3152, 4294901760
        %v3154 = vsub.f32 %v3152, %v3153
        %v3155 = vand.u32 %v3154, 4294901760
        %3156 = vmatmul.mubr.f32.gmra.mxu0 %v3155
        %v3157 = vpop.f32.mrf.mxu0
        %v3158 = vadd.f32 0.0, %v3157
        %v3159 = vpop.f32.mrf.mxu0
        %v3160 = vadd.f32 0.0, %v3159
        %3161 = vmatprep.mubr.f32.mxu0 0.0
        %v3162 = vand.u32 %v2954, 4294901760
        %v3163 = vsub.f32 %v2954, %v3162
        %v3164 = vand.u32 %v3163, 4294901760
        %v3165 = vsub.f32 %v3163, %v3164
        %v3166 = vand.u32 %v3165, 4294901760
        %3167 = vmatmul.mubr.f32.gmra.mxu0 %v3166
        %v3168 = vpop.f32.mrf.mxu0
        %v3169 = vadd.f32 0.0, %v3168
        %v3170 = vpop.f32.mrf.mxu0
        %v3171 = vadd.f32 0.0, %v3170
        %3172 = vdwg.mxu0
        %v3173 = vand.u32 %v3052, 4294901760
        %v3174 = vsub.f32 %v3052, %v3173
        %v3175 = vand.u32 %v3174, 4294901760
        %v3176 = vsub.f32 %v3174, %v3175
        %v3177 = vand.u32 %v3176, 4294901760
        %3178 = vmatprep.subr.mxu0 %v3177
        %v3179 = vand.u32 %v3051, 4294901760
        %v3180 = vsub.f32 %v3051, %v3179
        %v3181 = vand.u32 %v3180, 4294901760
        %v3182 = vsub.f32 %v3180, %v3181
        %v3183 = vand.u32 %v3182, 4294901760
        %3184 = vmatpush1.msra.mxu0 %v3183
        %v3185 = vand.u32 %v3049, 4294901760
        %v3186 = vsub.f32 %v3049, %v3185
        %v3187 = vand.u32 %v3186, 4294901760
        %v3188 = vsub.f32 %v3186, %v3187
        %v3189 = vand.u32 %v3188, 4294901760
        %3190 = vmatprep.subr.mxu0 %v3189
        %v3191 = vand.u32 %v3048, 4294901760
        %v3192 = vsub.f32 %v3048, %v3191
        %v3193 = vand.u32 %v3192, 4294901760
        %v3194 = vsub.f32 %v3192, %v3193
        %v3195 = vand.u32 %v3194, 4294901760
        %3196 = vmatpush1.msra.mxu0 %v3195
        %v3197 = vand.u32 %v3046, 4294901760
        %v3198 = vsub.f32 %v3046, %v3197
        %v3199 = vand.u32 %v3198, 4294901760
        %v3200 = vsub.f32 %v3198, %v3199
        %v3201 = vand.u32 %v3200, 4294901760
        %3202 = vmatprep.subr.mxu0 %v3201
        %v3203 = vand.u32 %v3045, 4294901760
        %v3204 = vsub.f32 %v3045, %v3203
        %v3205 = vand.u32 %v3204, 4294901760
        %v3206 = vsub.f32 %v3204, %v3205
        %v3207 = vand.u32 %v3206, 4294901760
        %3208 = vmatpush1.msra.mxu0 %v3207
        %v3209 = vand.u32 %v3043, 4294901760
        %v3210 = vsub.f32 %v3043, %v3209
        %v3211 = vand.u32 %v3210, 4294901760
        %v3212 = vsub.f32 %v3210, %v3211
        %v3213 = vand.u32 %v3212, 4294901760
        %3214 = vmatprep.subr.mxu0 %v3213
        %v3215 = vand.u32 %v3042, 4294901760
        %v3216 = vsub.f32 %v3042, %v3215
        %v3217 = vand.u32 %v3216, 4294901760
        %v3218 = vsub.f32 %v3216, %v3217
        %v3219 = vand.u32 %v3218, 4294901760
        %3220 = vmatpush1.msra.mxu0 %v3219
        %v3221 = vand.u32 %v3040, 4294901760
        %v3222 = vsub.f32 %v3040, %v3221
        %v3223 = vand.u32 %v3222, 4294901760
        %v3224 = vsub.f32 %v3222, %v3223
        %v3225 = vand.u32 %v3224, 4294901760
        %3226 = vmatprep.subr.mxu0 %v3225
        %v3227 = vand.u32 %v3039, 4294901760
        %v3228 = vsub.f32 %v3039, %v3227
        %v3229 = vand.u32 %v3228, 4294901760
        %v3230 = vsub.f32 %v3228, %v3229
        %v3231 = vand.u32 %v3230, 4294901760
        %3232 = vmatpush1.msra.mxu0 %v3231
        %v3233 = vand.u32 %v3037, 4294901760
        %v3234 = vsub.f32 %v3037, %v3233
        %v3235 = vand.u32 %v3234, 4294901760
        %v3236 = vsub.f32 %v3234, %v3235
        %v3237 = vand.u32 %v3236, 4294901760
        %3238 = vmatprep.subr.mxu0 %v3237
        %v3239 = vand.u32 %v3036, 4294901760
        %v3240 = vsub.f32 %v3036, %v3239
        %v3241 = vand.u32 %v3240, 4294901760
        %v3242 = vsub.f32 %v3240, %v3241
        %v3243 = vand.u32 %v3242, 4294901760
        %3244 = vmatpush1.msra.mxu0 %v3243
        %v3245 = vand.u32 %v3034, 4294901760
        %v3246 = vsub.f32 %v3034, %v3245
        %v3247 = vand.u32 %v3246, 4294901760
        %v3248 = vsub.f32 %v3246, %v3247
        %v3249 = vand.u32 %v3248, 4294901760
        %3250 = vmatprep.subr.mxu0 %v3249
        %v3251 = vand.u32 %v3033, 4294901760
        %v3252 = vsub.f32 %v3033, %v3251
        %v3253 = vand.u32 %v3252, 4294901760
        %v3254 = vsub.f32 %v3252, %v3253
        %v3255 = vand.u32 %v3254, 4294901760
        %3256 = vmatpush1.msra.mxu0 %v3255
        %v3257 = vand.u32 %v3031, 4294901760
        %v3258 = vsub.f32 %v3031, %v3257
        %v3259 = vand.u32 %v3258, 4294901760
        %v3260 = vsub.f32 %v3258, %v3259
        %v3261 = vand.u32 %v3260, 4294901760
        %3262 = vmatprep.subr.mxu0 %v3261
        %v3263 = vand.u32 %v3030, 4294901760
        %v3264 = vsub.f32 %v3030, %v3263
        %v3265 = vand.u32 %v3264, 4294901760
        %v3266 = vsub.f32 %v3264, %v3265
        %v3267 = vand.u32 %v3266, 4294901760
        %3268 = vmatpush1.msra.mxu0 %v3267
        %v3269 = vand.u32 %v3028, 4294901760
        %v3270 = vsub.f32 %v3028, %v3269
        %v3271 = vand.u32 %v3270, 4294901760
        %v3272 = vsub.f32 %v3270, %v3271
        %v3273 = vand.u32 %v3272, 4294901760
        %3274 = vmatprep.subr.mxu0 %v3273
        %v3275 = vand.u32 %v3027, 4294901760
        %v3276 = vsub.f32 %v3027, %v3275
        %v3277 = vand.u32 %v3276, 4294901760
        %v3278 = vsub.f32 %v3276, %v3277
        %v3279 = vand.u32 %v3278, 4294901760
        %3280 = vmatpush1.msra.mxu0 %v3279
        %v3281 = vand.u32 %v3025, 4294901760
        %v3282 = vsub.f32 %v3025, %v3281
        %v3283 = vand.u32 %v3282, 4294901760
        %v3284 = vsub.f32 %v3282, %v3283
        %v3285 = vand.u32 %v3284, 4294901760
        %3286 = vmatprep.subr.mxu0 %v3285
        %v3287 = vand.u32 %v3024, 4294901760
        %v3288 = vsub.f32 %v3024, %v3287
        %v3289 = vand.u32 %v3288, 4294901760
        %v3290 = vsub.f32 %v3288, %v3289
        %v3291 = vand.u32 %v3290, 4294901760
        %3292 = vmatpush1.msra.mxu0 %v3291
        %v3293 = vand.u32 %v3022, 4294901760
        %v3294 = vsub.f32 %v3022, %v3293
        %v3295 = vand.u32 %v3294, 4294901760
        %v3296 = vsub.f32 %v3294, %v3295
        %v3297 = vand.u32 %v3296, 4294901760
        %3298 = vmatprep.subr.mxu0 %v3297
        %v3299 = vand.u32 %v3021, 4294901760
        %v3300 = vsub.f32 %v3021, %v3299
        %v3301 = vand.u32 %v3300, 4294901760
        %v3302 = vsub.f32 %v3300, %v3301
        %v3303 = vand.u32 %v3302, 4294901760
        %3304 = vmatpush1.msra.mxu0 %v3303
        %v3305 = vand.u32 %v3019, 4294901760
        %v3306 = vsub.f32 %v3019, %v3305
        %v3307 = vand.u32 %v3306, 4294901760
        %v3308 = vsub.f32 %v3306, %v3307
        %v3309 = vand.u32 %v3308, 4294901760
        %3310 = vmatprep.subr.mxu0 %v3309
        %v3311 = vand.u32 %v3018, 4294901760
        %v3312 = vsub.f32 %v3018, %v3311
        %v3313 = vand.u32 %v3312, 4294901760
        %v3314 = vsub.f32 %v3312, %v3313
        %v3315 = vand.u32 %v3314, 4294901760
        %3316 = vmatpush1.msra.mxu0 %v3315
        %v3317 = vand.u32 %v3016, 4294901760
        %v3318 = vsub.f32 %v3016, %v3317
        %v3319 = vand.u32 %v3318, 4294901760
        %v3320 = vsub.f32 %v3318, %v3319
        %v3321 = vand.u32 %v3320, 4294901760
        %3322 = vmatprep.subr.mxu0 %v3321
        %v3323 = vand.u32 %v3015, 4294901760
        %v3324 = vsub.f32 %v3015, %v3323
        %v3325 = vand.u32 %v3324, 4294901760
        %v3326 = vsub.f32 %v3324, %v3325
        %v3327 = vand.u32 %v3326, 4294901760
        %3328 = vmatpush1.msra.mxu0 %v3327
        %v3329 = vand.u32 %v3013, 4294901760
        %v3330 = vsub.f32 %v3013, %v3329
        %v3331 = vand.u32 %v3330, 4294901760
        %v3332 = vsub.f32 %v3330, %v3331
        %v3333 = vand.u32 %v3332, 4294901760
        %3334 = vmatprep.subr.mxu0 %v3333
        %v3335 = vand.u32 %v3012, 4294901760
        %v3336 = vsub.f32 %v3012, %v3335
        %v3337 = vand.u32 %v3336, 4294901760
        %v3338 = vsub.f32 %v3336, %v3337
        %v3339 = vand.u32 %v3338, 4294901760
        %3340 = vmatpush1.msra.mxu0 %v3339
        %v3341 = vand.u32 %v3010, 4294901760
        %v3342 = vsub.f32 %v3010, %v3341
        %v3343 = vand.u32 %v3342, 4294901760
        %v3344 = vsub.f32 %v3342, %v3343
        %v3345 = vand.u32 %v3344, 4294901760
        %3346 = vmatprep.subr.mxu0 %v3345
        %v3347 = vand.u32 %v3009, 4294901760
        %v3348 = vsub.f32 %v3009, %v3347
        %v3349 = vand.u32 %v3348, 4294901760
        %v3350 = vsub.f32 %v3348, %v3349
        %v3351 = vand.u32 %v3350, 4294901760
        %3352 = vmatpush1.msra.mxu0 %v3351
        %v3353 = vand.u32 %v3007, 4294901760
        %v3354 = vsub.f32 %v3007, %v3353
        %v3355 = vand.u32 %v3354, 4294901760
        %v3356 = vsub.f32 %v3354, %v3355
        %v3357 = vand.u32 %v3356, 4294901760
        %3358 = vmatprep.subr.mxu0 %v3357
        %v3359 = vand.u32 %v3006, 4294901760
        %v3360 = vsub.f32 %v3006, %v3359
        %v3361 = vand.u32 %v3360, 4294901760
        %v3362 = vsub.f32 %v3360, %v3361
        %v3363 = vand.u32 %v3362, 4294901760
        %3364 = vmatpush1.msra.mxu0 %v3363
        %3365 = vmatprep.subr.mxu0 0.0
        %3366 = vmatpush2.msra.mxu0 0.0
        %3367 = vmatprep.subr.mxu0 0.0
        %3368 = vmatpush2.msra.mxu0 0.0
        %3369 = vmatprep.subr.mxu0 0.0
        %3370 = vmatpush2.msra.mxu0 0.0
        %3371 = vmatprep.subr.mxu0 0.0
        %3372 = vmatpush2.msra.mxu0 0.0
        %3373 = vmatprep.subr.mxu0 0.0
        %3374 = vmatpush2.msra.mxu0 0.0
        %3375 = vmatprep.subr.mxu0 0.0
        %3376 = vmatpush2.msra.mxu0 0.0
        %3377 = vmatprep.subr.mxu0 0.0
        %3378 = vmatpush2.msra.mxu0 0.0
        %3379 = vmatprep.subr.mxu0 0.0
        %3380 = vmatpush2.msra.mxu0 0.0
        %3381 = vmatprep.subr.mxu0 0.0
        %3382 = vmatpush2.msra.mxu0 0.0
        %3383 = vmatprep.subr.mxu0 0.0
        %3384 = vmatpush2.msra.mxu0 0.0
        %3385 = vmatprep.subr.mxu0 0.0
        %3386 = vmatpush2.msra.mxu0 0.0
        %3387 = vmatprep.subr.mxu0 0.0
        %3388 = vmatpush2.msra.mxu0 0.0
        %3389 = vmatprep.subr.mxu0 0.0
        %3390 = vmatpush2.msra.mxu0 0.0
        %3391 = vmatprep.subr.mxu0 0.0
        %3392 = vmatpush2.msra.mxu0 0.0
        %3393 = vmatprep.subr.mxu0 0.0
        %3394 = vmatpush2.msra.mxu0 0.0
        %3395 = vmatprep.subr.mxu0 0.0
        %3396 = vmatpush2.msra.mxu0 0.0
        %3397 = vmatprep.mubr.f32.mxu0 0.0
        %v3398 = vand.u32 %v2948, 4294901760
        %3399 = vmatmul.mubr.f32.gmra.mxu0 %v3398
        %v3400 = vpop.f32.mrf.mxu0
        %v3401 = vadd.f32 %v3158, %v3400
        %v3402 = vpop.f32.mrf.mxu0
        %v3403 = vadd.f32 %v3160, %v3402
        %3404 = vmatprep.mubr.f32.mxu0 0.0
        %v3405 = vand.u32 %v2954, 4294901760
        %3406 = vmatmul.mubr.f32.gmra.mxu0 %v3405
        %v3407 = vpop.f32.mrf.mxu0
        %v3408 = vadd.f32 %v3169, %v3407
        %v3409 = vpop.f32.mrf.mxu0
        %v3410 = vadd.f32 %v3171, %v3409
        %3411 = vdwg.mxu0
        %v3412 = vand.u32 %v3052, 4294901760
        %v3413 = vsub.f32 %v3052, %v3412
        %3414 = vmatprep.subr.mxu0 %v3413
        %v3415 = vand.u32 %v3051, 4294901760
        %v3416 = vsub.f32 %v3051, %v3415
        %3417 = vmatpush1.msra.mxu0 %v3416
        %v3418 = vand.u32 %v3049, 4294901760
        %v3419 = vsub.f32 %v3049, %v3418
        %3420 = vmatprep.subr.mxu0 %v3419
        %v3421 = vand.u32 %v3048, 4294901760
        %v3422 = vsub.f32 %v3048, %v3421
        %3423 = vmatpush1.msra.mxu0 %v3422
        %v3424 = vand.u32 %v3046, 4294901760
        %v3425 = vsub.f32 %v3046, %v3424
        %3426 = vmatprep.subr.mxu0 %v3425
        %v3427 = vand.u32 %v3045, 4294901760
        %v3428 = vsub.f32 %v3045, %v3427
        %3429 = vmatpush1.msra.mxu0 %v3428
        %v3430 = vand.u32 %v3043, 4294901760
        %v3431 = vsub.f32 %v3043, %v3430
        %3432 = vmatprep.subr.mxu0 %v3431
        %v3433 = vand.u32 %v3042, 4294901760
        %v3434 = vsub.f32 %v3042, %v3433
        %3435 = vmatpush1.msra.mxu0 %v3434
        %v3436 = vand.u32 %v3040, 4294901760
        %v3437 = vsub.f32 %v3040, %v3436
        %3438 = vmatprep.subr.mxu0 %v3437
        %v3439 = vand.u32 %v3039, 4294901760
        %v3440 = vsub.f32 %v3039, %v3439
        %3441 = vmatpush1.msra.mxu0 %v3440
        %v3442 = vand.u32 %v3037, 4294901760
        %v3443 = vsub.f32 %v3037, %v3442
        %3444 = vmatprep.subr.mxu0 %v3443
        %v3445 = vand.u32 %v3036, 4294901760
        %v3446 = vsub.f32 %v3036, %v3445
        %3447 = vmatpush1.msra.mxu0 %v3446
        %v3448 = vand.u32 %v3034, 4294901760
        %v3449 = vsub.f32 %v3034, %v3448
        %3450 = vmatprep.subr.mxu0 %v3449
        %v3451 = vand.u32 %v3033, 4294901760
        %v3452 = vsub.f32 %v3033, %v3451
        %3453 = vmatpush1.msra.mxu0 %v3452
        %v3454 = vand.u32 %v3031, 4294901760
        %v3455 = vsub.f32 %v3031, %v3454
        %3456 = vmatprep.subr.mxu0 %v3455
        %v3457 = vand.u32 %v3030, 4294901760
        %v3458 = vsub.f32 %v3030, %v3457
        %3459 = vmatpush1.msra.mxu0 %v3458
        %v3460 = vand.u32 %v3028, 4294901760
        %v3461 = vsub.f32 %v3028, %v3460
        %3462 = vmatprep.subr.mxu0 %v3461
        %v3463 = vand.u32 %v3027, 4294901760
        %v3464 = vsub.f32 %v3027, %v3463
        %3465 = vmatpush1.msra.mxu0 %v3464
        %v3466 = vand.u32 %v3025, 4294901760
        %v3467 = vsub.f32 %v3025, %v3466
        %3468 = vmatprep.subr.mxu0 %v3467
        %v3469 = vand.u32 %v3024, 4294901760
        %v3470 = vsub.f32 %v3024, %v3469
        %3471 = vmatpush1.msra.mxu0 %v3470
        %v3472 = vand.u32 %v3022, 4294901760
        %v3473 = vsub.f32 %v3022, %v3472
        %3474 = vmatprep.subr.mxu0 %v3473
        %v3475 = vand.u32 %v3021, 4294901760
        %v3476 = vsub.f32 %v3021, %v3475
        %3477 = vmatpush1.msra.mxu0 %v3476
        %v3478 = vand.u32 %v3019, 4294901760
        %v3479 = vsub.f32 %v3019, %v3478
        %3480 = vmatprep.subr.mxu0 %v3479
        %v3481 = vand.u32 %v3018, 4294901760
        %v3482 = vsub.f32 %v3018, %v3481
        %3483 = vmatpush1.msra.mxu0 %v3482
        %v3484 = vand.u32 %v3016, 4294901760
        %v3485 = vsub.f32 %v3016, %v3484
        %3486 = vmatprep.subr.mxu0 %v3485
        %v3487 = vand.u32 %v3015, 4294901760
        %v3488 = vsub.f32 %v3015, %v3487
        %3489 = vmatpush1.msra.mxu0 %v3488
        %v3490 = vand.u32 %v3013, 4294901760
        %v3491 = vsub.f32 %v3013, %v3490
        %3492 = vmatprep.subr.mxu0 %v3491
        %v3493 = vand.u32 %v3012, 4294901760
        %v3494 = vsub.f32 %v3012, %v3493
        %3495 = vmatpush1.msra.mxu0 %v3494
        %v3496 = vand.u32 %v3010, 4294901760
        %v3497 = vsub.f32 %v3010, %v3496
        %3498 = vmatprep.subr.mxu0 %v3497
        %v3499 = vand.u32 %v3009, 4294901760
        %v3500 = vsub.f32 %v3009, %v3499
        %3501 = vmatpush1.msra.mxu0 %v3500
        %v3502 = vand.u32 %v3007, 4294901760
        %v3503 = vsub.f32 %v3007, %v3502
        %3504 = vmatprep.subr.mxu0 %v3503
        %v3505 = vand.u32 %v3006, 4294901760
        %v3506 = vsub.f32 %v3006, %v3505
        %3507 = vmatpush1.msra.mxu0 %v3506
        %3508 = vmatprep.subr.mxu0 0.0
        %3509 = vmatpush2.msra.mxu0 0.0
        %3510 = vmatprep.subr.mxu0 0.0
        %3511 = vmatpush2.msra.mxu0 0.0
        %3512 = vmatprep.subr.mxu0 0.0
        %3513 = vmatpush2.msra.mxu0 0.0
        %3514 = vmatprep.subr.mxu0 0.0
        %3515 = vmatpush2.msra.mxu0 0.0
        %3516 = vmatprep.subr.mxu0 0.0
        %3517 = vmatpush2.msra.mxu0 0.0
        %3518 = vmatprep.subr.mxu0 0.0
        %3519 = vmatpush2.msra.mxu0 0.0
        %3520 = vmatprep.subr.mxu0 0.0
        %3521 = vmatpush2.msra.mxu0 0.0
        %3522 = vmatprep.subr.mxu0 0.0
        %3523 = vmatpush2.msra.mxu0 0.0
        %3524 = vmatprep.subr.mxu0 0.0
        %3525 = vmatpush2.msra.mxu0 0.0
        %3526 = vmatprep.subr.mxu0 0.0
        %3527 = vmatpush2.msra.mxu0 0.0
        %3528 = vmatprep.subr.mxu0 0.0
        %3529 = vmatpush2.msra.mxu0 0.0
        %3530 = vmatprep.subr.mxu0 0.0
        %3531 = vmatpush2.msra.mxu0 0.0
        %3532 = vmatprep.subr.mxu0 0.0
        %3533 = vmatpush2.msra.mxu0 0.0
        %3534 = vmatprep.subr.mxu0 0.0
        %3535 = vmatpush2.msra.mxu0 0.0
        %3536 = vmatprep.subr.mxu0 0.0
        %3537 = vmatpush2.msra.mxu0 0.0
        %3538 = vmatprep.subr.mxu0 0.0
        %3539 = vmatpush2.msra.mxu0 0.0
        %3540 = vmatprep.mubr.f32.mxu0 0.0
        %v3541 = vand.u32 %v2948, 4294901760
        %v3542 = vsub.f32 %v2948, %v3541
        %3543 = vmatmul.mubr.f32.gmra.mxu0 %v3542
        %v3544 = vpop.f32.mrf.mxu0
        %v3545 = vadd.f32 %v3401, %v3544
        %v3546 = vpop.f32.mrf.mxu0
        %v3547 = vadd.f32 %v3403, %v3546
        %3548 = vmatprep.mubr.f32.mxu0 0.0
        %v3549 = vand.u32 %v2954, 4294901760
        %v3550 = vsub.f32 %v2954, %v3549
        %3551 = vmatmul.mubr.f32.gmra.mxu0 %v3550
        %v3552 = vpop.f32.mrf.mxu0
        %v3553 = vadd.f32 %v3408, %v3552
        %v3554 = vpop.f32.mrf.mxu0
        %v3555 = vadd.f32 %v3410, %v3554
        %3556 = vdwg.mxu0
        %v3557 = vand.u32 %v3052, 4294901760
        %3558 = vmatprep.subr.mxu0 %v3557
        %v3559 = vand.u32 %v3051, 4294901760
        %3560 = vmatpush1.msra.mxu0 %v3559
        %v3561 = vand.u32 %v3049, 4294901760
        %3562 = vmatprep.subr.mxu0 %v3561
        %v3563 = vand.u32 %v3048, 4294901760
        %3564 = vmatpush1.msra.mxu0 %v3563
        %v3565 = vand.u32 %v3046, 4294901760
        %3566 = vmatprep.subr.mxu0 %v3565
        %v3567 = vand.u32 %v3045, 4294901760
        %3568 = vmatpush1.msra.mxu0 %v3567
        %v3569 = vand.u32 %v3043, 4294901760
        %3570 = vmatprep.subr.mxu0 %v3569
        %v3571 = vand.u32 %v3042, 4294901760
        %3572 = vmatpush1.msra.mxu0 %v3571
        %v3573 = vand.u32 %v3040, 4294901760
        %3574 = vmatprep.subr.mxu0 %v3573
        %v3575 = vand.u32 %v3039, 4294901760
        %3576 = vmatpush1.msra.mxu0 %v3575
        %v3577 = vand.u32 %v3037, 4294901760
        %3578 = vmatprep.subr.mxu0 %v3577
        %v3579 = vand.u32 %v3036, 4294901760
        %3580 = vmatpush1.msra.mxu0 %v3579
        %v3581 = vand.u32 %v3034, 4294901760
        %3582 = vmatprep.subr.mxu0 %v3581
        %v3583 = vand.u32 %v3033, 4294901760
        %3584 = vmatpush1.msra.mxu0 %v3583
        %v3585 = vand.u32 %v3031, 4294901760
        %3586 = vmatprep.subr.mxu0 %v3585
        %v3587 = vand.u32 %v3030, 4294901760
        %3588 = vmatpush1.msra.mxu0 %v3587
        %v3589 = vand.u32 %v3028, 4294901760
        %3590 = vmatprep.subr.mxu0 %v3589
        %v3591 = vand.u32 %v3027, 4294901760
        %3592 = vmatpush1.msra.mxu0 %v3591
        %v3593 = vand.u32 %v3025, 4294901760
        %3594 = vmatprep.subr.mxu0 %v3593
        %v3595 = vand.u32 %v3024, 4294901760
        %3596 = vmatpush1.msra.mxu0 %v3595
        %v3597 = vand.u32 %v3022, 4294901760
        %3598 = vmatprep.subr.mxu0 %v3597
        %v3599 = vand.u32 %v3021, 4294901760
        %3600 = vmatpush1.msra.mxu0 %v3599
        %v3601 = vand.u32 %v3019, 4294901760
        %3602 = vmatprep.subr.mxu0 %v3601
        %v3603 = vand.u32 %v3018, 4294901760
        %3604 = vmatpush1.msra.mxu0 %v3603
        %v3605 = vand.u32 %v3016, 4294901760
        %3606 = vmatprep.subr.mxu0 %v3605
        %v3607 = vand.u32 %v3015, 4294901760
        %3608 = vmatpush1.msra.mxu0 %v3607
        %v3609 = vand.u32 %v3013, 4294901760
        %3610 = vmatprep.subr.mxu0 %v3609
        %v3611 = vand.u32 %v3012, 4294901760
        %3612 = vmatpush1.msra.mxu0 %v3611
        %v3613 = vand.u32 %v3010, 4294901760
        %3614 = vmatprep.subr.mxu0 %v3613
        %v3615 = vand.u32 %v3009, 4294901760
        %3616 = vmatpush1.msra.mxu0 %v3615
        %v3617 = vand.u32 %v3007, 4294901760
        %3618 = vmatprep.subr.mxu0 %v3617
        %v3619 = vand.u32 %v3006, 4294901760
        %3620 = vmatpush1.msra.mxu0 %v3619
        %3621 = vmatprep.subr.mxu0 0.0
        %3622 = vmatpush2.msra.mxu0 0.0
        %3623 = vmatprep.subr.mxu0 0.0
        %3624 = vmatpush2.msra.mxu0 0.0
        %3625 = vmatprep.subr.mxu0 0.0
        %3626 = vmatpush2.msra.mxu0 0.0
        %3627 = vmatprep.subr.mxu0 0.0
        %3628 = vmatpush2.msra.mxu0 0.0
        %3629 = vmatprep.subr.mxu0 0.0
        %3630 = vmatpush2.msra.mxu0 0.0
        %3631 = vmatprep.subr.mxu0 0.0
        %3632 = vmatpush2.msra.mxu0 0.0
        %3633 = vmatprep.subr.mxu0 0.0
        %3634 = vmatpush2.msra.mxu0 0.0
        %3635 = vmatprep.subr.mxu0 0.0
        %3636 = vmatpush2.msra.mxu0 0.0
        %3637 = vmatprep.subr.mxu0 0.0
        %3638 = vmatpush2.msra.mxu0 0.0
        %3639 = vmatprep.subr.mxu0 0.0
        %3640 = vmatpush2.msra.mxu0 0.0
        %3641 = vmatprep.subr.mxu0 0.0
        %3642 = vmatpush2.msra.mxu0 0.0
        %3643 = vmatprep.subr.mxu0 0.0
        %3644 = vmatpush2.msra.mxu0 0.0
        %3645 = vmatprep.subr.mxu0 0.0
        %3646 = vmatpush2.msra.mxu0 0.0
        %3647 = vmatprep.subr.mxu0 0.0
        %3648 = vmatpush2.msra.mxu0 0.0
        %3649 = vmatprep.subr.mxu0 0.0
        %3650 = vmatpush2.msra.mxu0 0.0
        %3651 = vmatprep.subr.mxu0 0.0
        %3652 = vmatpush2.msra.mxu0 0.0
        %3653 = vmatprep.mubr.f32.mxu0 0.0
        %v3654 = vand.u32 %v2948, 4294901760
        %v3655 = vsub.f32 %v2948, %v3654
        %v3656 = vand.u32 %v3655, 4294901760
        %3657 = vmatmul.mubr.f32.gmra.mxu0 %v3656
        %v3658 = vpop.f32.mrf.mxu0
        %v3659 = vadd.f32 %v3545, %v3658
        %v3660 = vpop.f32.mrf.mxu0
        %v3661 = vadd.f32 %v3547, %v3660
        %3662 = vmatprep.mubr.f32.mxu0 0.0
        %v3663 = vand.u32 %v2954, 4294901760
        %v3664 = vsub.f32 %v2954, %v3663
        %v3665 = vand.u32 %v3664, 4294901760
        %3666 = vmatmul.mubr.f32.gmra.mxu0 %v3665
        %v3667 = vpop.f32.mrf.mxu0
        %v3668 = vadd.f32 %v3553, %v3667
        %v3669 = vpop.f32.mrf.mxu0
        %v3670 = vadd.f32 %v3555, %v3669
        %3671 = vdwg.mxu0
        %v3672 = vand.u32 %v3052, 4294901760
        %v3673 = vsub.f32 %v3052, %v3672
        %v3674 = vand.u32 %v3673, 4294901760
        %3675 = vmatprep.subr.mxu0 %v3674
        %v3676 = vand.u32 %v3051, 4294901760
        %v3677 = vsub.f32 %v3051, %v3676
        %v3678 = vand.u32 %v3677, 4294901760
        %3679 = vmatpush1.msra.mxu0 %v3678
        %v3680 = vand.u32 %v3049, 4294901760
        %v3681 = vsub.f32 %v3049, %v3680
        %v3682 = vand.u32 %v3681, 4294901760
        %3683 = vmatprep.subr.mxu0 %v3682
        %v3684 = vand.u32 %v3048, 4294901760
        %v3685 = vsub.f32 %v3048, %v3684
        %v3686 = vand.u32 %v3685, 4294901760
        %3687 = vmatpush1.msra.mxu0 %v3686
        %v3688 = vand.u32 %v3046, 4294901760
        %v3689 = vsub.f32 %v3046, %v3688
        %v3690 = vand.u32 %v3689, 4294901760
        %3691 = vmatprep.subr.mxu0 %v3690
        %v3692 = vand.u32 %v3045, 4294901760
        %v3693 = vsub.f32 %v3045, %v3692
        %v3694 = vand.u32 %v3693, 4294901760
        %3695 = vmatpush1.msra.mxu0 %v3694
        %v3696 = vand.u32 %v3043, 4294901760
        %v3697 = vsub.f32 %v3043, %v3696
        %v3698 = vand.u32 %v3697, 4294901760
        %3699 = vmatprep.subr.mxu0 %v3698
        %v3700 = vand.u32 %v3042, 4294901760
        %v3701 = vsub.f32 %v3042, %v3700
        %v3702 = vand.u32 %v3701, 4294901760
        %3703 = vmatpush1.msra.mxu0 %v3702
        %v3704 = vand.u32 %v3040, 4294901760
        %v3705 = vsub.f32 %v3040, %v3704
        %v3706 = vand.u32 %v3705, 4294901760
        %3707 = vmatprep.subr.mxu0 %v3706
        %v3708 = vand.u32 %v3039, 4294901760
        %v3709 = vsub.f32 %v3039, %v3708
        %v3710 = vand.u32 %v3709, 4294901760
        %3711 = vmatpush1.msra.mxu0 %v3710
        %v3712 = vand.u32 %v3037, 4294901760
        %v3713 = vsub.f32 %v3037, %v3712
        %v3714 = vand.u32 %v3713, 4294901760
        %3715 = vmatprep.subr.mxu0 %v3714
        %v3716 = vand.u32 %v3036, 4294901760
        %v3717 = vsub.f32 %v3036, %v3716
        %v3718 = vand.u32 %v3717, 4294901760
        %3719 = vmatpush1.msra.mxu0 %v3718
        %v3720 = vand.u32 %v3034, 4294901760
        %v3721 = vsub.f32 %v3034, %v3720
        %v3722 = vand.u32 %v3721, 4294901760
        %3723 = vmatprep.subr.mxu0 %v3722
        %v3724 = vand.u32 %v3033, 4294901760
        %v3725 = vsub.f32 %v3033, %v3724
        %v3726 = vand.u32 %v3725, 4294901760
        %3727 = vmatpush1.msra.mxu0 %v3726
        %v3728 = vand.u32 %v3031, 4294901760
        %v3729 = vsub.f32 %v3031, %v3728
        %v3730 = vand.u32 %v3729, 4294901760
        %3731 = vmatprep.subr.mxu0 %v3730
        %v3732 = vand.u32 %v3030, 4294901760
        %v3733 = vsub.f32 %v3030, %v3732
        %v3734 = vand.u32 %v3733, 4294901760
        %3735 = vmatpush1.msra.mxu0 %v3734
        %v3736 = vand.u32 %v3028, 4294901760
        %v3737 = vsub.f32 %v3028, %v3736
        %v3738 = vand.u32 %v3737, 4294901760
        %3739 = vmatprep.subr.mxu0 %v3738
        %v3740 = vand.u32 %v3027, 4294901760
        %v3741 = vsub.f32 %v3027, %v3740
        %v3742 = vand.u32 %v3741, 4294901760
        %3743 = vmatpush1.msra.mxu0 %v3742
        %v3744 = vand.u32 %v3025, 4294901760
        %v3745 = vsub.f32 %v3025, %v3744
        %v3746 = vand.u32 %v3745, 4294901760
        %3747 = vmatprep.subr.mxu0 %v3746
        %v3748 = vand.u32 %v3024, 4294901760
        %v3749 = vsub.f32 %v3024, %v3748
        %v3750 = vand.u32 %v3749, 4294901760
        %3751 = vmatpush1.msra.mxu0 %v3750
        %v3752 = vand.u32 %v3022, 4294901760
        %v3753 = vsub.f32 %v3022, %v3752
        %v3754 = vand.u32 %v3753, 4294901760
        %3755 = vmatprep.subr.mxu0 %v3754
        %v3756 = vand.u32 %v3021, 4294901760
        %v3757 = vsub.f32 %v3021, %v3756
        %v3758 = vand.u32 %v3757, 4294901760
        %3759 = vmatpush1.msra.mxu0 %v3758
        %v3760 = vand.u32 %v3019, 4294901760
        %v3761 = vsub.f32 %v3019, %v3760
        %v3762 = vand.u32 %v3761, 4294901760
        %3763 = vmatprep.subr.mxu0 %v3762
        %v3764 = vand.u32 %v3018, 4294901760
        %v3765 = vsub.f32 %v3018, %v3764
        %v3766 = vand.u32 %v3765, 4294901760
        %3767 = vmatpush1.msra.mxu0 %v3766
        %v3768 = vand.u32 %v3016, 4294901760
        %v3769 = vsub.f32 %v3016, %v3768
        %v3770 = vand.u32 %v3769, 4294901760
        %3771 = vmatprep.subr.mxu0 %v3770
        %v3772 = vand.u32 %v3015, 4294901760
        %v3773 = vsub.f32 %v3015, %v3772
        %v3774 = vand.u32 %v3773, 4294901760
        %3775 = vmatpush1.msra.mxu0 %v3774
        %v3776 = vand.u32 %v3013, 4294901760
        %v3777 = vsub.f32 %v3013, %v3776
        %v3778 = vand.u32 %v3777, 4294901760
        %3779 = vmatprep.subr.mxu0 %v3778
        %v3780 = vand.u32 %v3012, 4294901760
        %v3781 = vsub.f32 %v3012, %v3780
        %v3782 = vand.u32 %v3781, 4294901760
        %3783 = vmatpush1.msra.mxu0 %v3782
        %v3784 = vand.u32 %v3010, 4294901760
        %v3785 = vsub.f32 %v3010, %v3784
        %v3786 = vand.u32 %v3785, 4294901760
        %3787 = vmatprep.subr.mxu0 %v3786
        %v3788 = vand.u32 %v3009, 4294901760
        %v3789 = vsub.f32 %v3009, %v3788
        %v3790 = vand.u32 %v3789, 4294901760
        %3791 = vmatpush1.msra.mxu0 %v3790
        %v3792 = vand.u32 %v3007, 4294901760
        %v3793 = vsub.f32 %v3007, %v3792
        %v3794 = vand.u32 %v3793, 4294901760
        %3795 = vmatprep.subr.mxu0 %v3794
        %v3796 = vand.u32 %v3006, 4294901760
        %v3797 = vsub.f32 %v3006, %v3796
        %v3798 = vand.u32 %v3797, 4294901760
        %3799 = vmatpush1.msra.mxu0 %v3798
        %3800 = vmatprep.subr.mxu0 0.0
        %3801 = vmatpush2.msra.mxu0 0.0
        %3802 = vmatprep.subr.mxu0 0.0
        %3803 = vmatpush2.msra.mxu0 0.0
        %3804 = vmatprep.subr.mxu0 0.0
        %3805 = vmatpush2.msra.mxu0 0.0
        %3806 = vmatprep.subr.mxu0 0.0
        %3807 = vmatpush2.msra.mxu0 0.0
        %3808 = vmatprep.subr.mxu0 0.0
        %3809 = vmatpush2.msra.mxu0 0.0
        %3810 = vmatprep.subr.mxu0 0.0
        %3811 = vmatpush2.msra.mxu0 0.0
        %3812 = vmatprep.subr.mxu0 0.0
        %3813 = vmatpush2.msra.mxu0 0.0
        %3814 = vmatprep.subr.mxu0 0.0
        %3815 = vmatpush2.msra.mxu0 0.0
        %3816 = vmatprep.subr.mxu0 0.0
        %3817 = vmatpush2.msra.mxu0 0.0
        %3818 = vmatprep.subr.mxu0 0.0
        %3819 = vmatpush2.msra.mxu0 0.0
        %3820 = vmatprep.subr.mxu0 0.0
        %3821 = vmatpush2.msra.mxu0 0.0
        %3822 = vmatprep.subr.mxu0 0.0
        %3823 = vmatpush2.msra.mxu0 0.0
        %3824 = vmatprep.subr.mxu0 0.0
        %3825 = vmatpush2.msra.mxu0 0.0
        %3826 = vmatprep.subr.mxu0 0.0
        %3827 = vmatpush2.msra.mxu0 0.0
        %3828 = vmatprep.subr.mxu0 0.0
        %3829 = vmatpush2.msra.mxu0 0.0
        %3830 = vmatprep.subr.mxu0 0.0
        %3831 = vmatpush2.msra.mxu0 0.0
        %3832 = vmatprep.mubr.f32.mxu0 0.0
        %v3833 = vand.u32 %v2948, 4294901760
        %3834 = vmatmul.mubr.f32.gmra.mxu0 %v3833
        %v3835 = vpop.f32.mrf.mxu0
        %v3836 = vadd.f32 %v3659, %v3835
        %v3837 = vpop.f32.mrf.mxu0
        %v3838 = vadd.f32 %v3661, %v3837
        %3839 = vmatprep.mubr.f32.mxu0 0.0
        %v3840 = vand.u32 %v2954, 4294901760
        %3841 = vmatmul.mubr.f32.gmra.mxu0 %v3840
        %v3842 = vpop.f32.mrf.mxu0
        %v3843 = vadd.f32 %v3668, %v3842
        %v3844 = vpop.f32.mrf.mxu0
        %v3845 = vadd.f32 %v3670, %v3844
        %3846 = vdwg.mxu0
        %v3847 = vand.u32 %v3052, 4294901760
        %3848 = vmatprep.subr.mxu0 %v3847
        %v3849 = vand.u32 %v3051, 4294901760
        %3850 = vmatpush1.msra.mxu0 %v3849
        %v3851 = vand.u32 %v3049, 4294901760
        %3852 = vmatprep.subr.mxu0 %v3851
        %v3853 = vand.u32 %v3048, 4294901760
        %3854 = vmatpush1.msra.mxu0 %v3853
        %v3855 = vand.u32 %v3046, 4294901760
        %3856 = vmatprep.subr.mxu0 %v3855
        %v3857 = vand.u32 %v3045, 4294901760
        %3858 = vmatpush1.msra.mxu0 %v3857
        %v3859 = vand.u32 %v3043, 4294901760
        %3860 = vmatprep.subr.mxu0 %v3859
        %v3861 = vand.u32 %v3042, 4294901760
        %3862 = vmatpush1.msra.mxu0 %v3861
        %v3863 = vand.u32 %v3040, 4294901760
        %3864 = vmatprep.subr.mxu0 %v3863
        %v3865 = vand.u32 %v3039, 4294901760
        %3866 = vmatpush1.msra.mxu0 %v3865
        %v3867 = vand.u32 %v3037, 4294901760
        %3868 = vmatprep.subr.mxu0 %v3867
        %v3869 = vand.u32 %v3036, 4294901760
        %3870 = vmatpush1.msra.mxu0 %v3869
        %v3871 = vand.u32 %v3034, 4294901760
        %3872 = vmatprep.subr.mxu0 %v3871
        %v3873 = vand.u32 %v3033, 4294901760
        %3874 = vmatpush1.msra.mxu0 %v3873
        %v3875 = vand.u32 %v3031, 4294901760
        %3876 = vmatprep.subr.mxu0 %v3875
        %v3877 = vand.u32 %v3030, 4294901760
        %3878 = vmatpush1.msra.mxu0 %v3877
        %v3879 = vand.u32 %v3028, 4294901760
        %3880 = vmatprep.subr.mxu0 %v3879
        %v3881 = vand.u32 %v3027, 4294901760
        %3882 = vmatpush1.msra.mxu0 %v3881
        %v3883 = vand.u32 %v3025, 4294901760
        %3884 = vmatprep.subr.mxu0 %v3883
        %v3885 = vand.u32 %v3024, 4294901760
        %3886 = vmatpush1.msra.mxu0 %v3885
        %v3887 = vand.u32 %v3022, 4294901760
        %3888 = vmatprep.subr.mxu0 %v3887
        %v3889 = vand.u32 %v3021, 4294901760
        %3890 = vmatpush1.msra.mxu0 %v3889
        %v3891 = vand.u32 %v3019, 4294901760
        %3892 = vmatprep.subr.mxu0 %v3891
        %v3893 = vand.u32 %v3018, 4294901760
        %3894 = vmatpush1.msra.mxu0 %v3893
        %v3895 = vand.u32 %v3016, 4294901760
        %3896 = vmatprep.subr.mxu0 %v3895
        %v3897 = vand.u32 %v3015, 4294901760
        %3898 = vmatpush1.msra.mxu0 %v3897
        %v3899 = vand.u32 %v3013, 4294901760
        %3900 = vmatprep.subr.mxu0 %v3899
        %v3901 = vand.u32 %v3012, 4294901760
        %3902 = vmatpush1.msra.mxu0 %v3901
        %v3903 = vand.u32 %v3010, 4294901760
        %3904 = vmatprep.subr.mxu0 %v3903
        %v3905 = vand.u32 %v3009, 4294901760
        %3906 = vmatpush1.msra.mxu0 %v3905
        %v3907 = vand.u32 %v3007, 4294901760
        %3908 = vmatprep.subr.mxu0 %v3907
        %v3909 = vand.u32 %v3006, 4294901760
        %3910 = vmatpush1.msra.mxu0 %v3909
        %3911 = vmatprep.subr.mxu0 0.0
        %3912 = vmatpush2.msra.mxu0 0.0
        %3913 = vmatprep.subr.mxu0 0.0
        %3914 = vmatpush2.msra.mxu0 0.0
        %3915 = vmatprep.subr.mxu0 0.0
        %3916 = vmatpush2.msra.mxu0 0.0
        %3917 = vmatprep.subr.mxu0 0.0
        %3918 = vmatpush2.msra.mxu0 0.0
        %3919 = vmatprep.subr.mxu0 0.0
        %3920 = vmatpush2.msra.mxu0 0.0
        %3921 = vmatprep.subr.mxu0 0.0
        %3922 = vmatpush2.msra.mxu0 0.0
        %3923 = vmatprep.subr.mxu0 0.0
        %3924 = vmatpush2.msra.mxu0 0.0
        %3925 = vmatprep.subr.mxu0 0.0
        %3926 = vmatpush2.msra.mxu0 0.0
        %3927 = vmatprep.subr.mxu0 0.0
        %3928 = vmatpush2.msra.mxu0 0.0
        %3929 = vmatprep.subr.mxu0 0.0
        %3930 = vmatpush2.msra.mxu0 0.0
        %3931 = vmatprep.subr.mxu0 0.0
        %3932 = vmatpush2.msra.mxu0 0.0
        %3933 = vmatprep.subr.mxu0 0.0
        %3934 = vmatpush2.msra.mxu0 0.0
        %3935 = vmatprep.subr.mxu0 0.0
        %3936 = vmatpush2.msra.mxu0 0.0
        %3937 = vmatprep.subr.mxu0 0.0
        %3938 = vmatpush2.msra.mxu0 0.0
        %3939 = vmatprep.subr.mxu0 0.0
        %3940 = vmatpush2.msra.mxu0 0.0
        %3941 = vmatprep.subr.mxu0 0.0
        %3942 = vmatpush2.msra.mxu0 0.0
        %3943 = vmatprep.mubr.f32.mxu0 0.0
        %v3944 = vand.u32 %v2948, 4294901760
        %3945 = vmatmul.mubr.f32.gmra.mxu0 %v3944
        %v3946 = vpop.f32.mrf.mxu0
        %v3947 = vadd.f32 %v3836, %v3946
        %v3948 = vpop.f32.mrf.mxu0
        %v3949 = vadd.f32 %v3838, %v3948
        %3950 = vmatprep.mubr.f32.mxu0 0.0
        %v3951 = vand.u32 %v2954, 4294901760
        %3952 = vmatmul.mubr.f32.gmra.mxu0 %v3951
        %v3953 = vpop.f32.mrf.mxu0
        %v3954 = vadd.f32 %v3843, %v3953
        %v3955 = vpop.f32.mrf.mxu0
        %v3956 = vadd.f32 %v3845, %v3955
        %3957 = vdwg.mxu0
        %3958 = vmatprep.subr.mxu0 0.0
        %v3959 = vand.u32 %v3053, 4294901760
        %3960 = vmatpush1.msra.mxu0 %v3959
        %3961 = vmatprep.subr.mxu0 0.0
        %v3962 = vand.u32 %v3050, 4294901760
        %3963 = vmatpush1.msra.mxu0 %v3962
        %3964 = vmatprep.subr.mxu0 0.0
        %v3965 = vand.u32 %v3047, 4294901760
        %3966 = vmatpush1.msra.mxu0 %v3965
        %3967 = vmatprep.subr.mxu0 0.0
        %v3968 = vand.u32 %v3044, 4294901760
        %3969 = vmatpush1.msra.mxu0 %v3968
        %3970 = vmatprep.subr.mxu0 0.0
        %v3971 = vand.u32 %v3041, 4294901760
        %3972 = vmatpush1.msra.mxu0 %v3971
        %3973 = vmatprep.subr.mxu0 0.0
        %v3974 = vand.u32 %v3038, 4294901760
        %3975 = vmatpush1.msra.mxu0 %v3974
        %3976 = vmatprep.subr.mxu0 0.0
        %v3977 = vand.u32 %v3035, 4294901760
        %3978 = vmatpush1.msra.mxu0 %v3977
        %3979 = vmatprep.subr.mxu0 0.0
        %v3980 = vand.u32 %v3032, 4294901760
        %3981 = vmatpush1.msra.mxu0 %v3980
        %3982 = vmatprep.subr.mxu0 0.0
        %v3983 = vand.u32 %v3029, 4294901760
        %3984 = vmatpush1.msra.mxu0 %v3983
        %3985 = vmatprep.subr.mxu0 0.0
        %v3986 = vand.u32 %v3026, 4294901760
        %3987 = vmatpush1.msra.mxu0 %v3986
        %3988 = vmatprep.subr.mxu0 0.0
        %v3989 = vand.u32 %v3023, 4294901760
        %3990 = vmatpush1.msra.mxu0 %v3989
        %3991 = vmatprep.subr.mxu0 0.0
        %v3992 = vand.u32 %v3020, 4294901760
        %3993 = vmatpush1.msra.mxu0 %v3992
        %3994 = vmatprep.subr.mxu0 0.0
        %v3995 = vand.u32 %v3017, 4294901760
        %3996 = vmatpush1.msra.mxu0 %v3995
        %3997 = vmatprep.subr.mxu0 0.0
        %v3998 = vand.u32 %v3014, 4294901760
        %3999 = vmatpush1.msra.mxu0 %v3998
        %4000 = vmatprep.subr.mxu0 0.0
        %v4001 = vand.u32 %v3011, 4294901760
        %4002 = vmatpush1.msra.mxu0 %v4001
        %4003 = vmatprep.subr.mxu0 0.0
        %v4004 = vand.u32 %v3008, 4294901760
        %4005 = vmatpush1.msra.mxu0 %v4004
        %4006 = vmatprep.subr.mxu0 0.0
        %4007 = vmatpush2.msra.mxu0 0.0
        %4008 = vmatprep.subr.mxu0 0.0
        %4009 = vmatpush2.msra.mxu0 0.0
        %4010 = vmatprep.subr.mxu0 0.0
        %4011 = vmatpush2.msra.mxu0 0.0
        %4012 = vmatprep.subr.mxu0 0.0
        %4013 = vmatpush2.msra.mxu0 0.0
        %4014 = vmatprep.subr.mxu0 0.0
        %4015 = vmatpush2.msra.mxu0 0.0
        %4016 = vmatprep.subr.mxu0 0.0
        %4017 = vmatpush2.msra.mxu0 0.0
        %4018 = vmatprep.subr.mxu0 0.0
        %4019 = vmatpush2.msra.mxu0 0.0
        %4020 = vmatprep.subr.mxu0 0.0
        %4021 = vmatpush2.msra.mxu0 0.0
        %4022 = vmatprep.subr.mxu0 0.0
        %4023 = vmatpush2.msra.mxu0 0.0
        %4024 = vmatprep.subr.mxu0 0.0
        %4025 = vmatpush2.msra.mxu0 0.0
        %4026 = vmatprep.subr.mxu0 0.0
        %4027 = vmatpush2.msra.mxu0 0.0
        %4028 = vmatprep.subr.mxu0 0.0
        %4029 = vmatpush2.msra.mxu0 0.0
        %4030 = vmatprep.subr.mxu0 0.0
        %4031 = vmatpush2.msra.mxu0 0.0
        %4032 = vmatprep.subr.mxu0 0.0
        %4033 = vmatpush2.msra.mxu0 0.0
        %4034 = vmatprep.subr.mxu0 0.0
        %4035 = vmatpush2.msra.mxu0 0.0
        %4036 = vmatprep.subr.mxu0 0.0
        %4037 = vmatpush2.msra.mxu0 0.0
        %4038 = vmatprep.mubr.f32.mxu0 0.0
        %v4039 = vand.u32 %v2948, 4294901760
        %v4040 = vsub.f32 %v2948, %v4039
        %v4041 = vand.u32 %v4040, 4294901760
        %v4042 = vsub.f32 %v4040, %v4041
        %v4043 = vand.u32 %v4042, 4294901760
        %4044 = vmatmul.mubr.f32.gmra.mxu0 %v4043
        %v4045 = vpop.f32.mrf.mxu0
        %v4046 = vadd.f32 0.0, %v4045
        %v4047 = vpop.f32.mrf.mxu0
        %4048 = vmatprep.mubr.f32.mxu0 0.0
        %v4049 = vand.u32 %v2954, 4294901760
        %v4050 = vsub.f32 %v2954, %v4049
        %v4051 = vand.u32 %v4050, 4294901760
        %v4052 = vsub.f32 %v4050, %v4051
        %v4053 = vand.u32 %v4052, 4294901760
        %4054 = vmatmul.mubr.f32.gmra.mxu0 %v4053
        %v4055 = vpop.f32.mrf.mxu0
        %v4056 = vadd.f32 0.0, %v4055
        %v4057 = vpop.f32.mrf.mxu0
        %4058 = vdwg.mxu0
        %4059 = vmatprep.subr.mxu0 0.0
        %v4060 = vand.u32 %v3053, 4294901760
        %v4061 = vsub.f32 %v3053, %v4060
        %v4062 = vand.u32 %v4061, 4294901760
        %v4063 = vsub.f32 %v4061, %v4062
        %v4064 = vand.u32 %v4063, 4294901760
        %4065 = vmatpush1.msra.mxu0 %v4064
        %4066 = vmatprep.subr.mxu0 0.0
        %v4067 = vand.u32 %v3050, 4294901760
        %v4068 = vsub.f32 %v3050, %v4067
        %v4069 = vand.u32 %v4068, 4294901760
        %v4070 = vsub.f32 %v4068, %v4069
        %v4071 = vand.u32 %v4070, 4294901760
        %4072 = vmatpush1.msra.mxu0 %v4071
        %4073 = vmatprep.subr.mxu0 0.0
        %v4074 = vand.u32 %v3047, 4294901760
        %v4075 = vsub.f32 %v3047, %v4074
        %v4076 = vand.u32 %v4075, 4294901760
        %v4077 = vsub.f32 %v4075, %v4076
        %v4078 = vand.u32 %v4077, 4294901760
        %4079 = vmatpush1.msra.mxu0 %v4078
        %4080 = vmatprep.subr.mxu0 0.0
        %v4081 = vand.u32 %v3044, 4294901760
        %v4082 = vsub.f32 %v3044, %v4081
        %v4083 = vand.u32 %v4082, 4294901760
        %v4084 = vsub.f32 %v4082, %v4083
        %v4085 = vand.u32 %v4084, 4294901760
        %4086 = vmatpush1.msra.mxu0 %v4085
        %4087 = vmatprep.subr.mxu0 0.0
        %v4088 = vand.u32 %v3041, 4294901760
        %v4089 = vsub.f32 %v3041, %v4088
        %v4090 = vand.u32 %v4089, 4294901760
        %v4091 = vsub.f32 %v4089, %v4090
        %v4092 = vand.u32 %v4091, 4294901760
        %4093 = vmatpush1.msra.mxu0 %v4092
        %4094 = vmatprep.subr.mxu0 0.0
        %v4095 = vand.u32 %v3038, 4294901760
        %v4096 = vsub.f32 %v3038, %v4095
        %v4097 = vand.u32 %v4096, 4294901760
        %v4098 = vsub.f32 %v4096, %v4097
        %v4099 = vand.u32 %v4098, 4294901760
        %4100 = vmatpush1.msra.mxu0 %v4099
        %4101 = vmatprep.subr.mxu0 0.0
        %v4102 = vand.u32 %v3035, 4294901760
        %v4103 = vsub.f32 %v3035, %v4102
        %v4104 = vand.u32 %v4103, 4294901760
        %v4105 = vsub.f32 %v4103, %v4104
        %v4106 = vand.u32 %v4105, 4294901760
        %4107 = vmatpush1.msra.mxu0 %v4106
        %4108 = vmatprep.subr.mxu0 0.0
        %v4109 = vand.u32 %v3032, 4294901760
        %v4110 = vsub.f32 %v3032, %v4109
        %v4111 = vand.u32 %v4110, 4294901760
        %v4112 = vsub.f32 %v4110, %v4111
        %v4113 = vand.u32 %v4112, 4294901760
        %4114 = vmatpush1.msra.mxu0 %v4113
        %4115 = vmatprep.subr.mxu0 0.0
        %v4116 = vand.u32 %v3029, 4294901760
        %v4117 = vsub.f32 %v3029, %v4116
        %v4118 = vand.u32 %v4117, 4294901760
        %v4119 = vsub.f32 %v4117, %v4118
        %v4120 = vand.u32 %v4119, 4294901760
        %4121 = vmatpush1.msra.mxu0 %v4120
        %4122 = vmatprep.subr.mxu0 0.0
        %v4123 = vand.u32 %v3026, 4294901760
        %v4124 = vsub.f32 %v3026, %v4123
        %v4125 = vand.u32 %v4124, 4294901760
        %v4126 = vsub.f32 %v4124, %v4125
        %v4127 = vand.u32 %v4126, 4294901760
        %4128 = vmatpush1.msra.mxu0 %v4127
        %4129 = vmatprep.subr.mxu0 0.0
        %v4130 = vand.u32 %v3023, 4294901760
        %v4131 = vsub.f32 %v3023, %v4130
        %v4132 = vand.u32 %v4131, 4294901760
        %v4133 = vsub.f32 %v4131, %v4132
        %v4134 = vand.u32 %v4133, 4294901760
        %4135 = vmatpush1.msra.mxu0 %v4134
        %4136 = vmatprep.subr.mxu0 0.0
        %v4137 = vand.u32 %v3020, 4294901760
        %v4138 = vsub.f32 %v3020, %v4137
        %v4139 = vand.u32 %v4138, 4294901760
        %v4140 = vsub.f32 %v4138, %v4139
        %v4141 = vand.u32 %v4140, 4294901760
        %4142 = vmatpush1.msra.mxu0 %v4141
        %4143 = vmatprep.subr.mxu0 0.0
        %v4144 = vand.u32 %v3017, 4294901760
        %v4145 = vsub.f32 %v3017, %v4144
        %v4146 = vand.u32 %v4145, 4294901760
        %v4147 = vsub.f32 %v4145, %v4146
        %v4148 = vand.u32 %v4147, 4294901760
        %4149 = vmatpush1.msra.mxu0 %v4148
        %4150 = vmatprep.subr.mxu0 0.0
        %v4151 = vand.u32 %v3014, 4294901760
        %v4152 = vsub.f32 %v3014, %v4151
        %v4153 = vand.u32 %v4152, 4294901760
        %v4154 = vsub.f32 %v4152, %v4153
        %v4155 = vand.u32 %v4154, 4294901760
        %4156 = vmatpush1.msra.mxu0 %v4155
        %4157 = vmatprep.subr.mxu0 0.0
        %v4158 = vand.u32 %v3011, 4294901760
        %v4159 = vsub.f32 %v3011, %v4158
        %v4160 = vand.u32 %v4159, 4294901760
        %v4161 = vsub.f32 %v4159, %v4160
        %v4162 = vand.u32 %v4161, 4294901760
        %4163 = vmatpush1.msra.mxu0 %v4162
        %4164 = vmatprep.subr.mxu0 0.0
        %v4165 = vand.u32 %v3008, 4294901760
        %v4166 = vsub.f32 %v3008, %v4165
        %v4167 = vand.u32 %v4166, 4294901760
        %v4168 = vsub.f32 %v4166, %v4167
        %v4169 = vand.u32 %v4168, 4294901760
        %4170 = vmatpush1.msra.mxu0 %v4169
        %4171 = vmatprep.subr.mxu0 0.0
        %4172 = vmatpush2.msra.mxu0 0.0
        %4173 = vmatprep.subr.mxu0 0.0
        %4174 = vmatpush2.msra.mxu0 0.0
        %4175 = vmatprep.subr.mxu0 0.0
        %4176 = vmatpush2.msra.mxu0 0.0
        %4177 = vmatprep.subr.mxu0 0.0
        %4178 = vmatpush2.msra.mxu0 0.0
        %4179 = vmatprep.subr.mxu0 0.0
        %4180 = vmatpush2.msra.mxu0 0.0
        %4181 = vmatprep.subr.mxu0 0.0
        %4182 = vmatpush2.msra.mxu0 0.0
        %4183 = vmatprep.subr.mxu0 0.0
        %4184 = vmatpush2.msra.mxu0 0.0
        %4185 = vmatprep.subr.mxu0 0.0
        %4186 = vmatpush2.msra.mxu0 0.0
        %4187 = vmatprep.subr.mxu0 0.0
        %4188 = vmatpush2.msra.mxu0 0.0
        %4189 = vmatprep.subr.mxu0 0.0
        %4190 = vmatpush2.msra.mxu0 0.0
        %4191 = vmatprep.subr.mxu0 0.0
        %4192 = vmatpush2.msra.mxu0 0.0
        %4193 = vmatprep.subr.mxu0 0.0
        %4194 = vmatpush2.msra.mxu0 0.0
        %4195 = vmatprep.subr.mxu0 0.0
        %4196 = vmatpush2.msra.mxu0 0.0
        %4197 = vmatprep.subr.mxu0 0.0
        %4198 = vmatpush2.msra.mxu0 0.0
        %4199 = vmatprep.subr.mxu0 0.0
        %4200 = vmatpush2.msra.mxu0 0.0
        %4201 = vmatprep.subr.mxu0 0.0
        %4202 = vmatpush2.msra.mxu0 0.0
        %4203 = vmatprep.mubr.f32.mxu0 0.0
        %v4204 = vand.u32 %v2948, 4294901760
        %4205 = vmatmul.mubr.f32.gmra.mxu0 %v4204
        %v4206 = vpop.f32.mrf.mxu0
        %v4207 = vadd.f32 %v4046, %v4206
        %v4208 = vpop.f32.mrf.mxu0
        %4209 = vmatprep.mubr.f32.mxu0 0.0
        %v4210 = vand.u32 %v2954, 4294901760
        %4211 = vmatmul.mubr.f32.gmra.mxu0 %v4210
        %v4212 = vpop.f32.mrf.mxu0
        %v4213 = vadd.f32 %v4056, %v4212
        %v4214 = vpop.f32.mrf.mxu0
        %4215 = vdwg.mxu0
        %4216 = vmatprep.subr.mxu0 0.0
        %v4217 = vand.u32 %v3053, 4294901760
        %v4218 = vsub.f32 %v3053, %v4217
        %4219 = vmatpush1.msra.mxu0 %v4218
        %4220 = vmatprep.subr.mxu0 0.0
        %v4221 = vand.u32 %v3050, 4294901760
        %v4222 = vsub.f32 %v3050, %v4221
        %4223 = vmatpush1.msra.mxu0 %v4222
        %4224 = vmatprep.subr.mxu0 0.0
        %v4225 = vand.u32 %v3047, 4294901760
        %v4226 = vsub.f32 %v3047, %v4225
        %4227 = vmatpush1.msra.mxu0 %v4226
        %4228 = vmatprep.subr.mxu0 0.0
        %v4229 = vand.u32 %v3044, 4294901760
        %v4230 = vsub.f32 %v3044, %v4229
        %4231 = vmatpush1.msra.mxu0 %v4230
        %4232 = vmatprep.subr.mxu0 0.0
        %v4233 = vand.u32 %v3041, 4294901760
        %v4234 = vsub.f32 %v3041, %v4233
        %4235 = vmatpush1.msra.mxu0 %v4234
        %4236 = vmatprep.subr.mxu0 0.0
        %v4237 = vand.u32 %v3038, 4294901760
        %v4238 = vsub.f32 %v3038, %v4237
        %4239 = vmatpush1.msra.mxu0 %v4238
        %4240 = vmatprep.subr.mxu0 0.0
        %v4241 = vand.u32 %v3035, 4294901760
        %v4242 = vsub.f32 %v3035, %v4241
        %4243 = vmatpush1.msra.mxu0 %v4242
        %4244 = vmatprep.subr.mxu0 0.0
        %v4245 = vand.u32 %v3032, 4294901760
        %v4246 = vsub.f32 %v3032, %v4245
        %4247 = vmatpush1.msra.mxu0 %v4246
        %4248 = vmatprep.subr.mxu0 0.0
        %v4249 = vand.u32 %v3029, 4294901760
        %v4250 = vsub.f32 %v3029, %v4249
        %4251 = vmatpush1.msra.mxu0 %v4250
        %4252 = vmatprep.subr.mxu0 0.0
        %v4253 = vand.u32 %v3026, 4294901760
        %v4254 = vsub.f32 %v3026, %v4253
        %4255 = vmatpush1.msra.mxu0 %v4254
        %4256 = vmatprep.subr.mxu0 0.0
        %v4257 = vand.u32 %v3023, 4294901760
        %v4258 = vsub.f32 %v3023, %v4257
        %4259 = vmatpush1.msra.mxu0 %v4258
        %4260 = vmatprep.subr.mxu0 0.0
        %v4261 = vand.u32 %v3020, 4294901760
        %v4262 = vsub.f32 %v3020, %v4261
        %4263 = vmatpush1.msra.mxu0 %v4262
        %4264 = vmatprep.subr.mxu0 0.0
        %v4265 = vand.u32 %v3017, 4294901760
        %v4266 = vsub.f32 %v3017, %v4265
        %4267 = vmatpush1.msra.mxu0 %v4266
        %4268 = vmatprep.subr.mxu0 0.0
        %v4269 = vand.u32 %v3014, 4294901760
        %v4270 = vsub.f32 %v3014, %v4269
        %4271 = vmatpush1.msra.mxu0 %v4270
        %4272 = vmatprep.subr.mxu0 0.0
        %v4273 = vand.u32 %v3011, 4294901760
        %v4274 = vsub.f32 %v3011, %v4273
        %4275 = vmatpush1.msra.mxu0 %v4274
        %4276 = vmatprep.subr.mxu0 0.0
        %v4277 = vand.u32 %v3008, 4294901760
        %v4278 = vsub.f32 %v3008, %v4277
        %4279 = vmatpush1.msra.mxu0 %v4278
        %4280 = vmatprep.subr.mxu0 0.0
        %4281 = vmatpush2.msra.mxu0 0.0
        %4282 = vmatprep.subr.mxu0 0.0
        %4283 = vmatpush2.msra.mxu0 0.0
        %4284 = vmatprep.subr.mxu0 0.0
        %4285 = vmatpush2.msra.mxu0 0.0
        %4286 = vmatprep.subr.mxu0 0.0
        %4287 = vmatpush2.msra.mxu0 0.0
        %4288 = vmatprep.subr.mxu0 0.0
        %4289 = vmatpush2.msra.mxu0 0.0
        %4290 = vmatprep.subr.mxu0 0.0
        %4291 = vmatpush2.msra.mxu0 0.0
        %4292 = vmatprep.subr.mxu0 0.0
        %4293 = vmatpush2.msra.mxu0 0.0
        %4294 = vmatprep.subr.mxu0 0.0
        %4295 = vmatpush2.msra.mxu0 0.0
        %4296 = vmatprep.subr.mxu0 0.0
        %4297 = vmatpush2.msra.mxu0 0.0
        %4298 = vmatprep.subr.mxu0 0.0
        %4299 = vmatpush2.msra.mxu0 0.0
        %4300 = vmatprep.subr.mxu0 0.0
        %4301 = vmatpush2.msra.mxu0 0.0
        %4302 = vmatprep.subr.mxu0 0.0
        %4303 = vmatpush2.msra.mxu0 0.0
        %4304 = vmatprep.subr.mxu0 0.0
        %4305 = vmatpush2.msra.mxu0 0.0
        %4306 = vmatprep.subr.mxu0 0.0
        %4307 = vmatpush2.msra.mxu0 0.0
        %4308 = vmatprep.subr.mxu0 0.0
        %4309 = vmatpush2.msra.mxu0 0.0
        %4310 = vmatprep.subr.mxu0 0.0
        %4311 = vmatpush2.msra.mxu0 0.0
        %4312 = vmatprep.mubr.f32.mxu0 0.0
        %v4313 = vand.u32 %v2948, 4294901760
        %v4314 = vsub.f32 %v2948, %v4313
        %4315 = vmatmul.mubr.f32.gmra.mxu0 %v4314
        %v4316 = vpop.f32.mrf.mxu0
        %v4317 = vadd.f32 %v4207, %v4316
        %v4318 = vpop.f32.mrf.mxu0
        %4319 = vmatprep.mubr.f32.mxu0 0.0
        %v4320 = vand.u32 %v2954, 4294901760
        %v4321 = vsub.f32 %v2954, %v4320
        %4322 = vmatmul.mubr.f32.gmra.mxu0 %v4321
        %v4323 = vpop.f32.mrf.mxu0
        %v4324 = vadd.f32 %v4213, %v4323
        %v4325 = vpop.f32.mrf.mxu0
        %4326 = vdwg.mxu0
        %4327 = vmatprep.subr.mxu0 0.0
        %v4328 = vand.u32 %v3053, 4294901760
        %4329 = vmatpush1.msra.mxu0 %v4328
        %4330 = vmatprep.subr.mxu0 0.0
        %v4331 = vand.u32 %v3050, 4294901760
        %4332 = vmatpush1.msra.mxu0 %v4331
        %4333 = vmatprep.subr.mxu0 0.0
        %v4334 = vand.u32 %v3047, 4294901760
        %4335 = vmatpush1.msra.mxu0 %v4334
        %4336 = vmatprep.subr.mxu0 0.0
        %v4337 = vand.u32 %v3044, 4294901760
        %4338 = vmatpush1.msra.mxu0 %v4337
        %4339 = vmatprep.subr.mxu0 0.0
        %v4340 = vand.u32 %v3041, 4294901760
        %4341 = vmatpush1.msra.mxu0 %v4340
        %4342 = vmatprep.subr.mxu0 0.0
        %v4343 = vand.u32 %v3038, 4294901760
        %4344 = vmatpush1.msra.mxu0 %v4343
        %4345 = vmatprep.subr.mxu0 0.0
        %v4346 = vand.u32 %v3035, 4294901760
        %4347 = vmatpush1.msra.mxu0 %v4346
        %4348 = vmatprep.subr.mxu0 0.0
        %v4349 = vand.u32 %v3032, 4294901760
        %4350 = vmatpush1.msra.mxu0 %v4349
        %4351 = vmatprep.subr.mxu0 0.0
        %v4352 = vand.u32 %v3029, 4294901760
        %4353 = vmatpush1.msra.mxu0 %v4352
        %4354 = vmatprep.subr.mxu0 0.0
        %v4355 = vand.u32 %v3026, 4294901760
        %4356 = vmatpush1.msra.mxu0 %v4355
        %4357 = vmatprep.subr.mxu0 0.0
        %v4358 = vand.u32 %v3023, 4294901760
        %4359 = vmatpush1.msra.mxu0 %v4358
        %4360 = vmatprep.subr.mxu0 0.0
        %v4361 = vand.u32 %v3020, 4294901760
        %4362 = vmatpush1.msra.mxu0 %v4361
        %4363 = vmatprep.subr.mxu0 0.0
        %v4364 = vand.u32 %v3017, 4294901760
        %4365 = vmatpush1.msra.mxu0 %v4364
        %4366 = vmatprep.subr.mxu0 0.0
        %v4367 = vand.u32 %v3014, 4294901760
        %4368 = vmatpush1.msra.mxu0 %v4367
        %4369 = vmatprep.subr.mxu0 0.0
        %v4370 = vand.u32 %v3011, 4294901760
        %4371 = vmatpush1.msra.mxu0 %v4370
        %4372 = vmatprep.subr.mxu0 0.0
        %v4373 = vand.u32 %v3008, 4294901760
        %4374 = vmatpush1.msra.mxu0 %v4373
        %4375 = vmatprep.subr.mxu0 0.0
        %4376 = vmatpush2.msra.mxu0 0.0
        %4377 = vmatprep.subr.mxu0 0.0
        %4378 = vmatpush2.msra.mxu0 0.0
        %4379 = vmatprep.subr.mxu0 0.0
        %4380 = vmatpush2.msra.mxu0 0.0
        %4381 = vmatprep.subr.mxu0 0.0
        %4382 = vmatpush2.msra.mxu0 0.0
        %4383 = vmatprep.subr.mxu0 0.0
        %4384 = vmatpush2.msra.mxu0 0.0
        %4385 = vmatprep.subr.mxu0 0.0
        %4386 = vmatpush2.msra.mxu0 0.0
        %4387 = vmatprep.subr.mxu0 0.0
        %4388 = vmatpush2.msra.mxu0 0.0
        %4389 = vmatprep.subr.mxu0 0.0
        %4390 = vmatpush2.msra.mxu0 0.0
        %4391 = vmatprep.subr.mxu0 0.0
        %4392 = vmatpush2.msra.mxu0 0.0
        %4393 = vmatprep.subr.mxu0 0.0
        %4394 = vmatpush2.msra.mxu0 0.0
        %4395 = vmatprep.subr.mxu0 0.0
        %4396 = vmatpush2.msra.mxu0 0.0
        %4397 = vmatprep.subr.mxu0 0.0
        %4398 = vmatpush2.msra.mxu0 0.0
        %4399 = vmatprep.subr.mxu0 0.0
        %4400 = vmatpush2.msra.mxu0 0.0
        %4401 = vmatprep.subr.mxu0 0.0
        %4402 = vmatpush2.msra.mxu0 0.0
        %4403 = vmatprep.subr.mxu0 0.0
        %4404 = vmatpush2.msra.mxu0 0.0
        %4405 = vmatprep.subr.mxu0 0.0
        %4406 = vmatpush2.msra.mxu0 0.0
        %4407 = vmatprep.mubr.f32.mxu0 0.0
        %v4408 = vand.u32 %v2948, 4294901760
        %v4409 = vsub.f32 %v2948, %v4408
        %v4410 = vand.u32 %v4409, 4294901760
        %4411 = vmatmul.mubr.f32.gmra.mxu0 %v4410
        %v4412 = vpop.f32.mrf.mxu0
        %v4413 = vadd.f32 %v4317, %v4412
        %v4414 = vpop.f32.mrf.mxu0
        %4415 = vmatprep.mubr.f32.mxu0 0.0
        %v4416 = vand.u32 %v2954, 4294901760
        %v4417 = vsub.f32 %v2954, %v4416
        %v4418 = vand.u32 %v4417, 4294901760
        %4419 = vmatmul.mubr.f32.gmra.mxu0 %v4418
        %v4420 = vpop.f32.mrf.mxu0
        %v4421 = vadd.f32 %v4324, %v4420
        %v4422 = vpop.f32.mrf.mxu0
        %4423 = vdwg.mxu0
        %4424 = vmatprep.subr.mxu0 0.0
        %v4425 = vand.u32 %v3053, 4294901760
        %v4426 = vsub.f32 %v3053, %v4425
        %v4427 = vand.u32 %v4426, 4294901760
        %4428 = vmatpush1.msra.mxu0 %v4427
        %4429 = vmatprep.subr.mxu0 0.0
        %v4430 = vand.u32 %v3050, 4294901760
        %v4431 = vsub.f32 %v3050, %v4430
        %v4432 = vand.u32 %v4431, 4294901760
        %4433 = vmatpush1.msra.mxu0 %v4432
        %4434 = vmatprep.subr.mxu0 0.0
        %v4435 = vand.u32 %v3047, 4294901760
        %v4436 = vsub.f32 %v3047, %v4435
        %v4437 = vand.u32 %v4436, 4294901760
        %4438 = vmatpush1.msra.mxu0 %v4437
        %4439 = vmatprep.subr.mxu0 0.0
        %v4440 = vand.u32 %v3044, 4294901760
        %v4441 = vsub.f32 %v3044, %v4440
        %v4442 = vand.u32 %v4441, 4294901760
        %4443 = vmatpush1.msra.mxu0 %v4442
        %4444 = vmatprep.subr.mxu0 0.0
        %v4445 = vand.u32 %v3041, 4294901760
        %v4446 = vsub.f32 %v3041, %v4445
        %v4447 = vand.u32 %v4446, 4294901760
        %4448 = vmatpush1.msra.mxu0 %v4447
        %4449 = vmatprep.subr.mxu0 0.0
        %v4450 = vand.u32 %v3038, 4294901760
        %v4451 = vsub.f32 %v3038, %v4450
        %v4452 = vand.u32 %v4451, 4294901760
        %4453 = vmatpush1.msra.mxu0 %v4452
        %4454 = vmatprep.subr.mxu0 0.0
        %v4455 = vand.u32 %v3035, 4294901760
        %v4456 = vsub.f32 %v3035, %v4455
        %v4457 = vand.u32 %v4456, 4294901760
        %4458 = vmatpush1.msra.mxu0 %v4457
        %4459 = vmatprep.subr.mxu0 0.0
        %v4460 = vand.u32 %v3032, 4294901760
        %v4461 = vsub.f32 %v3032, %v4460
        %v4462 = vand.u32 %v4461, 4294901760
        %4463 = vmatpush1.msra.mxu0 %v4462
        %4464 = vmatprep.subr.mxu0 0.0
        %v4465 = vand.u32 %v3029, 4294901760
        %v4466 = vsub.f32 %v3029, %v4465
        %v4467 = vand.u32 %v4466, 4294901760
        %4468 = vmatpush1.msra.mxu0 %v4467
        %4469 = vmatprep.subr.mxu0 0.0
        %v4470 = vand.u32 %v3026, 4294901760
        %v4471 = vsub.f32 %v3026, %v4470
        %v4472 = vand.u32 %v4471, 4294901760
        %4473 = vmatpush1.msra.mxu0 %v4472
        %4474 = vmatprep.subr.mxu0 0.0
        %v4475 = vand.u32 %v3023, 4294901760
        %v4476 = vsub.f32 %v3023, %v4475
        %v4477 = vand.u32 %v4476, 4294901760
        %4478 = vmatpush1.msra.mxu0 %v4477
        %4479 = vmatprep.subr.mxu0 0.0
        %v4480 = vand.u32 %v3020, 4294901760
        %v4481 = vsub.f32 %v3020, %v4480
        %v4482 = vand.u32 %v4481, 4294901760
        %4483 = vmatpush1.msra.mxu0 %v4482
        %4484 = vmatprep.subr.mxu0 0.0
        %v4485 = vand.u32 %v3017, 4294901760
        %v4486 = vsub.f32 %v3017, %v4485
        %v4487 = vand.u32 %v4486, 4294901760
        %4488 = vmatpush1.msra.mxu0 %v4487
        %4489 = vmatprep.subr.mxu0 0.0
        %v4490 = vand.u32 %v3014, 4294901760
        %v4491 = vsub.f32 %v3014, %v4490
        %v4492 = vand.u32 %v4491, 4294901760
        %4493 = vmatpush1.msra.mxu0 %v4492
        %4494 = vmatprep.subr.mxu0 0.0
        %v4495 = vand.u32 %v3011, 4294901760
        %v4496 = vsub.f32 %v3011, %v4495
        %v4497 = vand.u32 %v4496, 4294901760
        %4498 = vmatpush1.msra.mxu0 %v4497
        %4499 = vmatprep.subr.mxu0 0.0
        %v4500 = vand.u32 %v3008, 4294901760
        %v4501 = vsub.f32 %v3008, %v4500
        %v4502 = vand.u32 %v4501, 4294901760
        %4503 = vmatpush1.msra.mxu0 %v4502
        %4504 = vmatprep.subr.mxu0 0.0
        %4505 = vmatpush2.msra.mxu0 0.0
        %4506 = vmatprep.subr.mxu0 0.0
        %4507 = vmatpush2.msra.mxu0 0.0
        %4508 = vmatprep.subr.mxu0 0.0
        %4509 = vmatpush2.msra.mxu0 0.0
        %4510 = vmatprep.subr.mxu0 0.0
        %4511 = vmatpush2.msra.mxu0 0.0
        %4512 = vmatprep.subr.mxu0 0.0
        %4513 = vmatpush2.msra.mxu0 0.0
        %4514 = vmatprep.subr.mxu0 0.0
        %4515 = vmatpush2.msra.mxu0 0.0
        %4516 = vmatprep.subr.mxu0 0.0
        %4517 = vmatpush2.msra.mxu0 0.0
        %4518 = vmatprep.subr.mxu0 0.0
        %4519 = vmatpush2.msra.mxu0 0.0
        %4520 = vmatprep.subr.mxu0 0.0
        %4521 = vmatpush2.msra.mxu0 0.0
        %4522 = vmatprep.subr.mxu0 0.0
        %4523 = vmatpush2.msra.mxu0 0.0
        %4524 = vmatprep.subr.mxu0 0.0
        %4525 = vmatpush2.msra.mxu0 0.0
        %4526 = vmatprep.subr.mxu0 0.0
        %4527 = vmatpush2.msra.mxu0 0.0
        %4528 = vmatprep.subr.mxu0 0.0
        %4529 = vmatpush2.msra.mxu0 0.0
        %4530 = vmatprep.subr.mxu0 0.0
        %4531 = vmatpush2.msra.mxu0 0.0
        %4532 = vmatprep.subr.mxu0 0.0
        %4533 = vmatpush2.msra.mxu0 0.0
        %4534 = vmatprep.subr.mxu0 0.0
        %4535 = vmatpush2.msra.mxu0 0.0
        %4536 = vmatprep.mubr.f32.mxu0 0.0
        %v4537 = vand.u32 %v2948, 4294901760
        %4538 = vmatmul.mubr.f32.gmra.mxu0 %v4537
        %v4539 = vpop.f32.mrf.mxu0
        %v4540 = vadd.f32 %v4413, %v4539
        %v4541 = vpop.f32.mrf.mxu0
        %4542 = vmatprep.mubr.f32.mxu0 0.0
        %v4543 = vand.u32 %v2954, 4294901760
        %4544 = vmatmul.mubr.f32.gmra.mxu0 %v4543
        %v4545 = vpop.f32.mrf.mxu0
        %v4546 = vadd.f32 %v4421, %v4545
        %v4547 = vpop.f32.mrf.mxu0
        %4548 = vdwg.mxu0
        %4549 = vmatprep.subr.mxu0 0.0
        %v4550 = vand.u32 %v3053, 4294901760
        %4551 = vmatpush1.msra.mxu0 %v4550
        %4552 = vmatprep.subr.mxu0 0.0
        %v4553 = vand.u32 %v3050, 4294901760
        %4554 = vmatpush1.msra.mxu0 %v4553
        %4555 = vmatprep.subr.mxu0 0.0
        %v4556 = vand.u32 %v3047, 4294901760
        %4557 = vmatpush1.msra.mxu0 %v4556
        %4558 = vmatprep.subr.mxu0 0.0
        %v4559 = vand.u32 %v3044, 4294901760
        %4560 = vmatpush1.msra.mxu0 %v4559
        %4561 = vmatprep.subr.mxu0 0.0
        %v4562 = vand.u32 %v3041, 4294901760
        %4563 = vmatpush1.msra.mxu0 %v4562
        %4564 = vmatprep.subr.mxu0 0.0
        %v4565 = vand.u32 %v3038, 4294901760
        %4566 = vmatpush1.msra.mxu0 %v4565
        %4567 = vmatprep.subr.mxu0 0.0
        %v4568 = vand.u32 %v3035, 4294901760
        %4569 = vmatpush1.msra.mxu0 %v4568
        %4570 = vmatprep.subr.mxu0 0.0
        %v4571 = vand.u32 %v3032, 4294901760
        %4572 = vmatpush1.msra.mxu0 %v4571
        %4573 = vmatprep.subr.mxu0 0.0
        %v4574 = vand.u32 %v3029, 4294901760
        %4575 = vmatpush1.msra.mxu0 %v4574
        %4576 = vmatprep.subr.mxu0 0.0
        %v4577 = vand.u32 %v3026, 4294901760
        %4578 = vmatpush1.msra.mxu0 %v4577
        %4579 = vmatprep.subr.mxu0 0.0
        %v4580 = vand.u32 %v3023, 4294901760
        %4581 = vmatpush1.msra.mxu0 %v4580
        %4582 = vmatprep.subr.mxu0 0.0
        %v4583 = vand.u32 %v3020, 4294901760
        %4584 = vmatpush1.msra.mxu0 %v4583
        %4585 = vmatprep.subr.mxu0 0.0
        %v4586 = vand.u32 %v3017, 4294901760
        %4587 = vmatpush1.msra.mxu0 %v4586
        %4588 = vmatprep.subr.mxu0 0.0
        %v4589 = vand.u32 %v3014, 4294901760
        %4590 = vmatpush1.msra.mxu0 %v4589
        %4591 = vmatprep.subr.mxu0 0.0
        %v4592 = vand.u32 %v3011, 4294901760
        %4593 = vmatpush1.msra.mxu0 %v4592
        %4594 = vmatprep.subr.mxu0 0.0
        %v4595 = vand.u32 %v3008, 4294901760
        %4596 = vmatpush1.msra.mxu0 %v4595
        %4597 = vmatprep.subr.mxu0 0.0
        %4598 = vmatpush2.msra.mxu0 0.0
        %4599 = vmatprep.subr.mxu0 0.0
        %4600 = vmatpush2.msra.mxu0 0.0
        %4601 = vmatprep.subr.mxu0 0.0
        %4602 = vmatpush2.msra.mxu0 0.0
        %4603 = vmatprep.subr.mxu0 0.0
        %4604 = vmatpush2.msra.mxu0 0.0
        %4605 = vmatprep.subr.mxu0 0.0
        %4606 = vmatpush2.msra.mxu0 0.0
        %4607 = vmatprep.subr.mxu0 0.0
        %4608 = vmatpush2.msra.mxu0 0.0
        %4609 = vmatprep.subr.mxu0 0.0
        %4610 = vmatpush2.msra.mxu0 0.0
        %4611 = vmatprep.subr.mxu0 0.0
        %4612 = vmatpush2.msra.mxu0 0.0
        %4613 = vmatprep.subr.mxu0 0.0
        %4614 = vmatpush2.msra.mxu0 0.0
        %4615 = vmatprep.subr.mxu0 0.0
        %4616 = vmatpush2.msra.mxu0 0.0
        %4617 = vmatprep.subr.mxu0 0.0
        %4618 = vmatpush2.msra.mxu0 0.0
        %4619 = vmatprep.subr.mxu0 0.0
        %4620 = vmatpush2.msra.mxu0 0.0
        %4621 = vmatprep.subr.mxu0 0.0
        %4622 = vmatpush2.msra.mxu0 0.0
        %4623 = vmatprep.subr.mxu0 0.0
        %4624 = vmatpush2.msra.mxu0 0.0
        %4625 = vmatprep.subr.mxu0 0.0
        %4626 = vmatpush2.msra.mxu0 0.0
        %4627 = vmatprep.subr.mxu0 0.0
        %4628 = vmatpush2.msra.mxu0 0.0
        %4629 = vmatprep.mubr.f32.mxu0 0.0
        %v4630 = vand.u32 %v2948, 4294901760
        %4631 = vmatmul.mubr.f32.gmra.mxu0 %v4630
        %v4632 = vpop.f32.mrf.mxu0
        %v4633 = vadd.f32 %v4540, %v4632
        %v4634 = vpop.f32.mrf.mxu0
        %4635 = vmatprep.mubr.f32.mxu0 0.0
        %v4636 = vand.u32 %v2954, 4294901760
        %4637 = vmatmul.mubr.f32.gmra.mxu0 %v4636
        %v4638 = vpop.f32.mrf.mxu0
        %v4639 = vadd.f32 %v4546, %v4638
        %v4640 = vpop.f32.mrf.mxu0
        %4641 = vdwg.mxu0
        %v4642 = vand.u32 %v3003, 4294901760
        %4643 = vmatprep.subr.mxu0 %v4642
        %v4644 = vand.u32 %v3002, 4294901760
        %4645 = vmatpush1.msra.mxu0 %v4644
        %v4646 = vand.u32 %v3000, 4294901760
        %4647 = vmatprep.subr.mxu0 %v4646
        %v4648 = vand.u32 %v2999, 4294901760
        %4649 = vmatpush1.msra.mxu0 %v4648
        %v4650 = vand.u32 %v2997, 4294901760
        %4651 = vmatprep.subr.mxu0 %v4650
        %v4652 = vand.u32 %v2996, 4294901760
        %4653 = vmatpush1.msra.mxu0 %v4652
        %v4654 = vand.u32 %v2994, 4294901760
        %4655 = vmatprep.subr.mxu0 %v4654
        %v4656 = vand.u32 %v2993, 4294901760
        %4657 = vmatpush1.msra.mxu0 %v4656
        %v4658 = vand.u32 %v2991, 4294901760
        %4659 = vmatprep.subr.mxu0 %v4658
        %v4660 = vand.u32 %v2990, 4294901760
        %4661 = vmatpush1.msra.mxu0 %v4660
        %v4662 = vand.u32 %v2988, 4294901760
        %4663 = vmatprep.subr.mxu0 %v4662
        %v4664 = vand.u32 %v2987, 4294901760
        %4665 = vmatpush1.msra.mxu0 %v4664
        %v4666 = vand.u32 %v2985, 4294901760
        %4667 = vmatprep.subr.mxu0 %v4666
        %v4668 = vand.u32 %v2984, 4294901760
        %4669 = vmatpush1.msra.mxu0 %v4668
        %v4670 = vand.u32 %v2982, 4294901760
        %4671 = vmatprep.subr.mxu0 %v4670
        %v4672 = vand.u32 %v2981, 4294901760
        %4673 = vmatpush1.msra.mxu0 %v4672
        %v4674 = vand.u32 %v2979, 4294901760
        %4675 = vmatprep.subr.mxu0 %v4674
        %v4676 = vand.u32 %v2978, 4294901760
        %4677 = vmatpush1.msra.mxu0 %v4676
        %v4678 = vand.u32 %v2976, 4294901760
        %4679 = vmatprep.subr.mxu0 %v4678
        %v4680 = vand.u32 %v2975, 4294901760
        %4681 = vmatpush1.msra.mxu0 %v4680
        %v4682 = vand.u32 %v2973, 4294901760
        %4683 = vmatprep.subr.mxu0 %v4682
        %v4684 = vand.u32 %v2972, 4294901760
        %4685 = vmatpush1.msra.mxu0 %v4684
        %v4686 = vand.u32 %v2970, 4294901760
        %4687 = vmatprep.subr.mxu0 %v4686
        %v4688 = vand.u32 %v2969, 4294901760
        %4689 = vmatpush1.msra.mxu0 %v4688
        %v4690 = vand.u32 %v2967, 4294901760
        %4691 = vmatprep.subr.mxu0 %v4690
        %v4692 = vand.u32 %v2966, 4294901760
        %4693 = vmatpush1.msra.mxu0 %v4692
        %v4694 = vand.u32 %v2964, 4294901760
        %4695 = vmatprep.subr.mxu0 %v4694
        %v4696 = vand.u32 %v2963, 4294901760
        %4697 = vmatpush1.msra.mxu0 %v4696
        %v4698 = vand.u32 %v2961, 4294901760
        %4699 = vmatprep.subr.mxu0 %v4698
        %v4700 = vand.u32 %v2960, 4294901760
        %4701 = vmatpush1.msra.mxu0 %v4700
        %v4702 = vand.u32 %v2958, 4294901760
        %4703 = vmatprep.subr.mxu0 %v4702
        %v4704 = vand.u32 %v2957, 4294901760
        %4705 = vmatpush1.msra.mxu0 %v4704
        %4706 = vmatprep.subr.mxu0 0.0
        %4707 = vmatpush2.msra.mxu0 0.0
        %4708 = vmatprep.subr.mxu0 0.0
        %4709 = vmatpush2.msra.mxu0 0.0
        %4710 = vmatprep.subr.mxu0 0.0
        %4711 = vmatpush2.msra.mxu0 0.0
        %4712 = vmatprep.subr.mxu0 0.0
        %4713 = vmatpush2.msra.mxu0 0.0
        %4714 = vmatprep.subr.mxu0 0.0
        %4715 = vmatpush2.msra.mxu0 0.0
        %4716 = vmatprep.subr.mxu0 0.0
        %4717 = vmatpush2.msra.mxu0 0.0
        %4718 = vmatprep.subr.mxu0 0.0
        %4719 = vmatpush2.msra.mxu0 0.0
        %4720 = vmatprep.subr.mxu0 0.0
        %4721 = vmatpush2.msra.mxu0 0.0
        %4722 = vmatprep.subr.mxu0 0.0
        %4723 = vmatpush2.msra.mxu0 0.0
        %4724 = vmatprep.subr.mxu0 0.0
        %4725 = vmatpush2.msra.mxu0 0.0
        %4726 = vmatprep.subr.mxu0 0.0
        %4727 = vmatpush2.msra.mxu0 0.0
        %4728 = vmatprep.subr.mxu0 0.0
        %4729 = vmatpush2.msra.mxu0 0.0
        %4730 = vmatprep.subr.mxu0 0.0
        %4731 = vmatpush2.msra.mxu0 0.0
        %4732 = vmatprep.subr.mxu0 0.0
        %4733 = vmatpush2.msra.mxu0 0.0
        %4734 = vmatprep.subr.mxu0 0.0
        %4735 = vmatpush2.msra.mxu0 0.0
        %4736 = vmatprep.subr.mxu0 0.0
        %4737 = vmatpush2.msra.mxu0 0.0
        %4738 = vmatprep.mubr.f32.mxu0 0.0
        %v4739 = vand.u32 %v2438, 4294901760
        %v4740 = vsub.f32 %v2438, %v4739
        %v4741 = vand.u32 %v4740, 4294901760
        %v4742 = vsub.f32 %v4740, %v4741
        %v4743 = vand.u32 %v4742, 4294901760
        %4744 = vmatmul.mubr.f32.gmra.mxu0 %v4743
        %v4745 = vpop.f32.mrf.mxu0
        %v4746 = vadd.f32 %v3947, %v4745
        %v4747 = vpop.f32.mrf.mxu0
        %v4748 = vadd.f32 %v3949, %v4747
        %4749 = vmatprep.mubr.f32.mxu0 0.0
        %v4750 = vand.u32 %v2444, 4294901760
        %v4751 = vsub.f32 %v2444, %v4750
        %v4752 = vand.u32 %v4751, 4294901760
        %v4753 = vsub.f32 %v4751, %v4752
        %v4754 = vand.u32 %v4753, 4294901760
        %4755 = vmatmul.mubr.f32.gmra.mxu0 %v4754
        %v4756 = vpop.f32.mrf.mxu0
        %v4757 = vadd.f32 %v3954, %v4756
        %v4758 = vpop.f32.mrf.mxu0
        %v4759 = vadd.f32 %v3956, %v4758
        %4760 = vdwg.mxu0
        %v4761 = vand.u32 %v3003, 4294901760
        %v4762 = vsub.f32 %v3003, %v4761
        %v4763 = vand.u32 %v4762, 4294901760
        %v4764 = vsub.f32 %v4762, %v4763
        %v4765 = vand.u32 %v4764, 4294901760
        %4766 = vmatprep.subr.mxu0 %v4765
        %v4767 = vand.u32 %v3002, 4294901760
        %v4768 = vsub.f32 %v3002, %v4767
        %v4769 = vand.u32 %v4768, 4294901760
        %v4770 = vsub.f32 %v4768, %v4769
        %v4771 = vand.u32 %v4770, 4294901760
        %4772 = vmatpush1.msra.mxu0 %v4771
        %v4773 = vand.u32 %v3000, 4294901760
        %v4774 = vsub.f32 %v3000, %v4773
        %v4775 = vand.u32 %v4774, 4294901760
        %v4776 = vsub.f32 %v4774, %v4775
        %v4777 = vand.u32 %v4776, 4294901760
        %4778 = vmatprep.subr.mxu0 %v4777
        %v4779 = vand.u32 %v2999, 4294901760
        %v4780 = vsub.f32 %v2999, %v4779
        %v4781 = vand.u32 %v4780, 4294901760
        %v4782 = vsub.f32 %v4780, %v4781
        %v4783 = vand.u32 %v4782, 4294901760
        %4784 = vmatpush1.msra.mxu0 %v4783
        %v4785 = vand.u32 %v2997, 4294901760
        %v4786 = vsub.f32 %v2997, %v4785
        %v4787 = vand.u32 %v4786, 4294901760
        %v4788 = vsub.f32 %v4786, %v4787
        %v4789 = vand.u32 %v4788, 4294901760
        %4790 = vmatprep.subr.mxu0 %v4789
        %v4791 = vand.u32 %v2996, 4294901760
        %v4792 = vsub.f32 %v2996, %v4791
        %v4793 = vand.u32 %v4792, 4294901760
        %v4794 = vsub.f32 %v4792, %v4793
        %v4795 = vand.u32 %v4794, 4294901760
        %4796 = vmatpush1.msra.mxu0 %v4795
        %v4797 = vand.u32 %v2994, 4294901760
        %v4798 = vsub.f32 %v2994, %v4797
        %v4799 = vand.u32 %v4798, 4294901760
        %v4800 = vsub.f32 %v4798, %v4799
        %v4801 = vand.u32 %v4800, 4294901760
        %4802 = vmatprep.subr.mxu0 %v4801
        %v4803 = vand.u32 %v2993, 4294901760
        %v4804 = vsub.f32 %v2993, %v4803
        %v4805 = vand.u32 %v4804, 4294901760
        %v4806 = vsub.f32 %v4804, %v4805
        %v4807 = vand.u32 %v4806, 4294901760
        %4808 = vmatpush1.msra.mxu0 %v4807
        %v4809 = vand.u32 %v2991, 4294901760
        %v4810 = vsub.f32 %v2991, %v4809
        %v4811 = vand.u32 %v4810, 4294901760
        %v4812 = vsub.f32 %v4810, %v4811
        %v4813 = vand.u32 %v4812, 4294901760
        %4814 = vmatprep.subr.mxu0 %v4813
        %v4815 = vand.u32 %v2990, 4294901760
        %v4816 = vsub.f32 %v2990, %v4815
        %v4817 = vand.u32 %v4816, 4294901760
        %v4818 = vsub.f32 %v4816, %v4817
        %v4819 = vand.u32 %v4818, 4294901760
        %4820 = vmatpush1.msra.mxu0 %v4819
        %v4821 = vand.u32 %v2988, 4294901760
        %v4822 = vsub.f32 %v2988, %v4821
        %v4823 = vand.u32 %v4822, 4294901760
        %v4824 = vsub.f32 %v4822, %v4823
        %v4825 = vand.u32 %v4824, 4294901760
        %4826 = vmatprep.subr.mxu0 %v4825
        %v4827 = vand.u32 %v2987, 4294901760
        %v4828 = vsub.f32 %v2987, %v4827
        %v4829 = vand.u32 %v4828, 4294901760
        %v4830 = vsub.f32 %v4828, %v4829
        %v4831 = vand.u32 %v4830, 4294901760
        %4832 = vmatpush1.msra.mxu0 %v4831
        %v4833 = vand.u32 %v2985, 4294901760
        %v4834 = vsub.f32 %v2985, %v4833
        %v4835 = vand.u32 %v4834, 4294901760
        %v4836 = vsub.f32 %v4834, %v4835
        %v4837 = vand.u32 %v4836, 4294901760
        %4838 = vmatprep.subr.mxu0 %v4837
        %v4839 = vand.u32 %v2984, 4294901760
        %v4840 = vsub.f32 %v2984, %v4839
        %v4841 = vand.u32 %v4840, 4294901760
        %v4842 = vsub.f32 %v4840, %v4841
        %v4843 = vand.u32 %v4842, 4294901760
        %4844 = vmatpush1.msra.mxu0 %v4843
        %v4845 = vand.u32 %v2982, 4294901760
        %v4846 = vsub.f32 %v2982, %v4845
        %v4847 = vand.u32 %v4846, 4294901760
        %v4848 = vsub.f32 %v4846, %v4847
        %v4849 = vand.u32 %v4848, 4294901760
        %4850 = vmatprep.subr.mxu0 %v4849
        %v4851 = vand.u32 %v2981, 4294901760
        %v4852 = vsub.f32 %v2981, %v4851
        %v4853 = vand.u32 %v4852, 4294901760
        %v4854 = vsub.f32 %v4852, %v4853
        %v4855 = vand.u32 %v4854, 4294901760
        %4856 = vmatpush1.msra.mxu0 %v4855
        %v4857 = vand.u32 %v2979, 4294901760
        %v4858 = vsub.f32 %v2979, %v4857
        %v4859 = vand.u32 %v4858, 4294901760
        %v4860 = vsub.f32 %v4858, %v4859
        %v4861 = vand.u32 %v4860, 4294901760
        %4862 = vmatprep.subr.mxu0 %v4861
        %v4863 = vand.u32 %v2978, 4294901760
        %v4864 = vsub.f32 %v2978, %v4863
        %v4865 = vand.u32 %v4864, 4294901760
        %v4866 = vsub.f32 %v4864, %v4865
        %v4867 = vand.u32 %v4866, 4294901760
        %4868 = vmatpush1.msra.mxu0 %v4867
        %v4869 = vand.u32 %v2976, 4294901760
        %v4870 = vsub.f32 %v2976, %v4869
        %v4871 = vand.u32 %v4870, 4294901760
        %v4872 = vsub.f32 %v4870, %v4871
        %v4873 = vand.u32 %v4872, 4294901760
        %4874 = vmatprep.subr.mxu0 %v4873
        %v4875 = vand.u32 %v2975, 4294901760
        %v4876 = vsub.f32 %v2975, %v4875
        %v4877 = vand.u32 %v4876, 4294901760
        %v4878 = vsub.f32 %v4876, %v4877
        %v4879 = vand.u32 %v4878, 4294901760
        %4880 = vmatpush1.msra.mxu0 %v4879
        %v4881 = vand.u32 %v2973, 4294901760
        %v4882 = vsub.f32 %v2973, %v4881
        %v4883 = vand.u32 %v4882, 4294901760
        %v4884 = vsub.f32 %v4882, %v4883
        %v4885 = vand.u32 %v4884, 4294901760
        %4886 = vmatprep.subr.mxu0 %v4885
        %v4887 = vand.u32 %v2972, 4294901760
        %v4888 = vsub.f32 %v2972, %v4887
        %v4889 = vand.u32 %v4888, 4294901760
        %v4890 = vsub.f32 %v4888, %v4889
        %v4891 = vand.u32 %v4890, 4294901760
        %4892 = vmatpush1.msra.mxu0 %v4891
        %v4893 = vand.u32 %v2970, 4294901760
        %v4894 = vsub.f32 %v2970, %v4893
        %v4895 = vand.u32 %v4894, 4294901760
        %v4896 = vsub.f32 %v4894, %v4895
        %v4897 = vand.u32 %v4896, 4294901760
        %4898 = vmatprep.subr.mxu0 %v4897
        %v4899 = vand.u32 %v2969, 4294901760
        %v4900 = vsub.f32 %v2969, %v4899
        %v4901 = vand.u32 %v4900, 4294901760
        %v4902 = vsub.f32 %v4900, %v4901
        %v4903 = vand.u32 %v4902, 4294901760
        %4904 = vmatpush1.msra.mxu0 %v4903
        %v4905 = vand.u32 %v2967, 4294901760
        %v4906 = vsub.f32 %v2967, %v4905
        %v4907 = vand.u32 %v4906, 4294901760
        %v4908 = vsub.f32 %v4906, %v4907
        %v4909 = vand.u32 %v4908, 4294901760
        %4910 = vmatprep.subr.mxu0 %v4909
        %v4911 = vand.u32 %v2966, 4294901760
        %v4912 = vsub.f32 %v2966, %v4911
        %v4913 = vand.u32 %v4912, 4294901760
        %v4914 = vsub.f32 %v4912, %v4913
        %v4915 = vand.u32 %v4914, 4294901760
        %4916 = vmatpush1.msra.mxu0 %v4915
        %v4917 = vand.u32 %v2964, 4294901760
        %v4918 = vsub.f32 %v2964, %v4917
        %v4919 = vand.u32 %v4918, 4294901760
        %v4920 = vsub.f32 %v4918, %v4919
        %v4921 = vand.u32 %v4920, 4294901760
        %4922 = vmatprep.subr.mxu0 %v4921
        %v4923 = vand.u32 %v2963, 4294901760
        %v4924 = vsub.f32 %v2963, %v4923
        %v4925 = vand.u32 %v4924, 4294901760
        %v4926 = vsub.f32 %v4924, %v4925
        %v4927 = vand.u32 %v4926, 4294901760
        %4928 = vmatpush1.msra.mxu0 %v4927
        %v4929 = vand.u32 %v2961, 4294901760
        %v4930 = vsub.f32 %v2961, %v4929
        %v4931 = vand.u32 %v4930, 4294901760
        %v4932 = vsub.f32 %v4930, %v4931
        %v4933 = vand.u32 %v4932, 4294901760
        %4934 = vmatprep.subr.mxu0 %v4933
        %v4935 = vand.u32 %v2960, 4294901760
        %v4936 = vsub.f32 %v2960, %v4935
        %v4937 = vand.u32 %v4936, 4294901760
        %v4938 = vsub.f32 %v4936, %v4937
        %v4939 = vand.u32 %v4938, 4294901760
        %4940 = vmatpush1.msra.mxu0 %v4939
        %v4941 = vand.u32 %v2958, 4294901760
        %v4942 = vsub.f32 %v2958, %v4941
        %v4943 = vand.u32 %v4942, 4294901760
        %v4944 = vsub.f32 %v4942, %v4943
        %v4945 = vand.u32 %v4944, 4294901760
        %4946 = vmatprep.subr.mxu0 %v4945
        %v4947 = vand.u32 %v2957, 4294901760
        %v4948 = vsub.f32 %v2957, %v4947
        %v4949 = vand.u32 %v4948, 4294901760
        %v4950 = vsub.f32 %v4948, %v4949
        %v4951 = vand.u32 %v4950, 4294901760
        %4952 = vmatpush1.msra.mxu0 %v4951
        %4953 = vmatprep.subr.mxu0 0.0
        %4954 = vmatpush2.msra.mxu0 0.0
        %4955 = vmatprep.subr.mxu0 0.0
        %4956 = vmatpush2.msra.mxu0 0.0
        %4957 = vmatprep.subr.mxu0 0.0
        %4958 = vmatpush2.msra.mxu0 0.0
        %4959 = vmatprep.subr.mxu0 0.0
        %4960 = vmatpush2.msra.mxu0 0.0
        %4961 = vmatprep.subr.mxu0 0.0
        %4962 = vmatpush2.msra.mxu0 0.0
        %4963 = vmatprep.subr.mxu0 0.0
        %4964 = vmatpush2.msra.mxu0 0.0
        %4965 = vmatprep.subr.mxu0 0.0
        %4966 = vmatpush2.msra.mxu0 0.0
        %4967 = vmatprep.subr.mxu0 0.0
        %4968 = vmatpush2.msra.mxu0 0.0
        %4969 = vmatprep.subr.mxu0 0.0
        %4970 = vmatpush2.msra.mxu0 0.0
        %4971 = vmatprep.subr.mxu0 0.0
        %4972 = vmatpush2.msra.mxu0 0.0
        %4973 = vmatprep.subr.mxu0 0.0
        %4974 = vmatpush2.msra.mxu0 0.0
        %4975 = vmatprep.subr.mxu0 0.0
        %4976 = vmatpush2.msra.mxu0 0.0
        %4977 = vmatprep.subr.mxu0 0.0
        %4978 = vmatpush2.msra.mxu0 0.0
        %4979 = vmatprep.subr.mxu0 0.0
        %4980 = vmatpush2.msra.mxu0 0.0
        %4981 = vmatprep.subr.mxu0 0.0
        %4982 = vmatpush2.msra.mxu0 0.0
        %4983 = vmatprep.subr.mxu0 0.0
        %4984 = vmatpush2.msra.mxu0 0.0
        %4985 = vmatprep.mubr.f32.mxu0 0.0
        %v4986 = vand.u32 %v2438, 4294901760
        %4987 = vmatmul.mubr.f32.gmra.mxu0 %v4986
        %v4988 = vpop.f32.mrf.mxu0
        %v4989 = vadd.f32 %v4746, %v4988
        %v4990 = vpop.f32.mrf.mxu0
        %v4991 = vadd.f32 %v4748, %v4990
        %4992 = vmatprep.mubr.f32.mxu0 0.0
        %v4993 = vand.u32 %v2444, 4294901760
        %4994 = vmatmul.mubr.f32.gmra.mxu0 %v4993
        %v4995 = vpop.f32.mrf.mxu0
        %v4996 = vadd.f32 %v4757, %v4995
        %v4997 = vpop.f32.mrf.mxu0
        %v4998 = vadd.f32 %v4759, %v4997
        %4999 = vdwg.mxu0
        %v5000 = vand.u32 %v3003, 4294901760
        %v5001 = vsub.f32 %v3003, %v5000
        %5002 = vmatprep.subr.mxu0 %v5001
        %v5003 = vand.u32 %v3002, 4294901760
        %v5004 = vsub.f32 %v3002, %v5003
        %5005 = vmatpush1.msra.mxu0 %v5004
        %v5006 = vand.u32 %v3000, 4294901760
        %v5007 = vsub.f32 %v3000, %v5006
        %5008 = vmatprep.subr.mxu0 %v5007
        %v5009 = vand.u32 %v2999, 4294901760
        %v5010 = vsub.f32 %v2999, %v5009
        %5011 = vmatpush1.msra.mxu0 %v5010
        %v5012 = vand.u32 %v2997, 4294901760
        %v5013 = vsub.f32 %v2997, %v5012
        %5014 = vmatprep.subr.mxu0 %v5013
        %v5015 = vand.u32 %v2996, 4294901760
        %v5016 = vsub.f32 %v2996, %v5015
        %5017 = vmatpush1.msra.mxu0 %v5016
        %v5018 = vand.u32 %v2994, 4294901760
        %v5019 = vsub.f32 %v2994, %v5018
        %5020 = vmatprep.subr.mxu0 %v5019
        %v5021 = vand.u32 %v2993, 4294901760
        %v5022 = vsub.f32 %v2993, %v5021
        %5023 = vmatpush1.msra.mxu0 %v5022
        %v5024 = vand.u32 %v2991, 4294901760
        %v5025 = vsub.f32 %v2991, %v5024
        %5026 = vmatprep.subr.mxu0 %v5025
        %v5027 = vand.u32 %v2990, 4294901760
        %v5028 = vsub.f32 %v2990, %v5027
        %5029 = vmatpush1.msra.mxu0 %v5028
        %v5030 = vand.u32 %v2988, 4294901760
        %v5031 = vsub.f32 %v2988, %v5030
        %5032 = vmatprep.subr.mxu0 %v5031
        %v5033 = vand.u32 %v2987, 4294901760
        %v5034 = vsub.f32 %v2987, %v5033
        %5035 = vmatpush1.msra.mxu0 %v5034
        %v5036 = vand.u32 %v2985, 4294901760
        %v5037 = vsub.f32 %v2985, %v5036
        %5038 = vmatprep.subr.mxu0 %v5037
        %v5039 = vand.u32 %v2984, 4294901760
        %v5040 = vsub.f32 %v2984, %v5039
        %5041 = vmatpush1.msra.mxu0 %v5040
        %v5042 = vand.u32 %v2982, 4294901760
        %v5043 = vsub.f32 %v2982, %v5042
        %5044 = vmatprep.subr.mxu0 %v5043
        %v5045 = vand.u32 %v2981, 4294901760
        %v5046 = vsub.f32 %v2981, %v5045
        %5047 = vmatpush1.msra.mxu0 %v5046
        %v5048 = vand.u32 %v2979, 4294901760
        %v5049 = vsub.f32 %v2979, %v5048
        %5050 = vmatprep.subr.mxu0 %v5049
        %v5051 = vand.u32 %v2978, 4294901760
        %v5052 = vsub.f32 %v2978, %v5051
        %5053 = vmatpush1.msra.mxu0 %v5052
        %v5054 = vand.u32 %v2976, 4294901760
        %v5055 = vsub.f32 %v2976, %v5054
        %5056 = vmatprep.subr.mxu0 %v5055
        %v5057 = vand.u32 %v2975, 4294901760
        %v5058 = vsub.f32 %v2975, %v5057
        %5059 = vmatpush1.msra.mxu0 %v5058
        %v5060 = vand.u32 %v2973, 4294901760
        %v5061 = vsub.f32 %v2973, %v5060
        %5062 = vmatprep.subr.mxu0 %v5061
        %v5063 = vand.u32 %v2972, 4294901760
        %v5064 = vsub.f32 %v2972, %v5063
        %5065 = vmatpush1.msra.mxu0 %v5064
        %v5066 = vand.u32 %v2970, 4294901760
        %v5067 = vsub.f32 %v2970, %v5066
        %5068 = vmatprep.subr.mxu0 %v5067
        %v5069 = vand.u32 %v2969, 4294901760
        %v5070 = vsub.f32 %v2969, %v5069
        %5071 = vmatpush1.msra.mxu0 %v5070
        %v5072 = vand.u32 %v2967, 4294901760
        %v5073 = vsub.f32 %v2967, %v5072
        %5074 = vmatprep.subr.mxu0 %v5073
        %v5075 = vand.u32 %v2966, 4294901760
        %v5076 = vsub.f32 %v2966, %v5075
        %5077 = vmatpush1.msra.mxu0 %v5076
        %v5078 = vand.u32 %v2964, 4294901760
        %v5079 = vsub.f32 %v2964, %v5078
        %5080 = vmatprep.subr.mxu0 %v5079
        %v5081 = vand.u32 %v2963, 4294901760
        %v5082 = vsub.f32 %v2963, %v5081
        %5083 = vmatpush1.msra.mxu0 %v5082
        %v5084 = vand.u32 %v2961, 4294901760
        %v5085 = vsub.f32 %v2961, %v5084
        %5086 = vmatprep.subr.mxu0 %v5085
        %v5087 = vand.u32 %v2960, 4294901760
        %v5088 = vsub.f32 %v2960, %v5087
        %5089 = vmatpush1.msra.mxu0 %v5088
        %v5090 = vand.u32 %v2958, 4294901760
        %v5091 = vsub.f32 %v2958, %v5090
        %5092 = vmatprep.subr.mxu0 %v5091
        %v5093 = vand.u32 %v2957, 4294901760
        %v5094 = vsub.f32 %v2957, %v5093
        %5095 = vmatpush1.msra.mxu0 %v5094
        %5096 = vmatprep.subr.mxu0 0.0
        %5097 = vmatpush2.msra.mxu0 0.0
        %5098 = vmatprep.subr.mxu0 0.0
        %5099 = vmatpush2.msra.mxu0 0.0
        %5100 = vmatprep.subr.mxu0 0.0
        %5101 = vmatpush2.msra.mxu0 0.0
        %5102 = vmatprep.subr.mxu0 0.0
        %5103 = vmatpush2.msra.mxu0 0.0
        %5104 = vmatprep.subr.mxu0 0.0
        %5105 = vmatpush2.msra.mxu0 0.0
        %5106 = vmatprep.subr.mxu0 0.0
        %5107 = vmatpush2.msra.mxu0 0.0
        %5108 = vmatprep.subr.mxu0 0.0
        %5109 = vmatpush2.msra.mxu0 0.0
        %5110 = vmatprep.subr.mxu0 0.0
        %5111 = vmatpush2.msra.mxu0 0.0
        %5112 = vmatprep.subr.mxu0 0.0
        %5113 = vmatpush2.msra.mxu0 0.0
        %5114 = vmatprep.subr.mxu0 0.0
        %5115 = vmatpush2.msra.mxu0 0.0
        %5116 = vmatprep.subr.mxu0 0.0
        %5117 = vmatpush2.msra.mxu0 0.0
        %5118 = vmatprep.subr.mxu0 0.0
        %5119 = vmatpush2.msra.mxu0 0.0
        %5120 = vmatprep.subr.mxu0 0.0
        %5121 = vmatpush2.msra.mxu0 0.0
        %5122 = vmatprep.subr.mxu0 0.0
        %5123 = vmatpush2.msra.mxu0 0.0
        %5124 = vmatprep.subr.mxu0 0.0
        %5125 = vmatpush2.msra.mxu0 0.0
        %5126 = vmatprep.subr.mxu0 0.0
        %5127 = vmatpush2.msra.mxu0 0.0
        %5128 = vmatprep.mubr.f32.mxu0 0.0
        %v5129 = vand.u32 %v2438, 4294901760
        %v5130 = vsub.f32 %v2438, %v5129
        %5131 = vmatmul.mubr.f32.gmra.mxu0 %v5130
        %v5132 = vpop.f32.mrf.mxu0
        %v5133 = vadd.f32 %v4989, %v5132
        %v5134 = vpop.f32.mrf.mxu0
        %v5135 = vadd.f32 %v4991, %v5134
        %5136 = vmatprep.mubr.f32.mxu0 0.0
        %v5137 = vand.u32 %v2444, 4294901760
        %v5138 = vsub.f32 %v2444, %v5137
        %5139 = vmatmul.mubr.f32.gmra.mxu0 %v5138
        %v5140 = vpop.f32.mrf.mxu0
        %v5141 = vadd.f32 %v4996, %v5140
        %v5142 = vpop.f32.mrf.mxu0
        %v5143 = vadd.f32 %v4998, %v5142
        %5144 = vdwg.mxu0
        %v5145 = vand.u32 %v3003, 4294901760
        %5146 = vmatprep.subr.mxu0 %v5145
        %v5147 = vand.u32 %v3002, 4294901760
        %5148 = vmatpush1.msra.mxu0 %v5147
        %v5149 = vand.u32 %v3000, 4294901760
        %5150 = vmatprep.subr.mxu0 %v5149
        %v5151 = vand.u32 %v2999, 4294901760
        %5152 = vmatpush1.msra.mxu0 %v5151
        %v5153 = vand.u32 %v2997, 4294901760
        %5154 = vmatprep.subr.mxu0 %v5153
        %v5155 = vand.u32 %v2996, 4294901760
        %5156 = vmatpush1.msra.mxu0 %v5155
        %v5157 = vand.u32 %v2994, 4294901760
        %5158 = vmatprep.subr.mxu0 %v5157
        %v5159 = vand.u32 %v2993, 4294901760
        %5160 = vmatpush1.msra.mxu0 %v5159
        %v5161 = vand.u32 %v2991, 4294901760
        %5162 = vmatprep.subr.mxu0 %v5161
        %v5163 = vand.u32 %v2990, 4294901760
        %5164 = vmatpush1.msra.mxu0 %v5163
        %v5165 = vand.u32 %v2988, 4294901760
        %5166 = vmatprep.subr.mxu0 %v5165
        %v5167 = vand.u32 %v2987, 4294901760
        %5168 = vmatpush1.msra.mxu0 %v5167
        %v5169 = vand.u32 %v2985, 4294901760
        %5170 = vmatprep.subr.mxu0 %v5169
        %v5171 = vand.u32 %v2984, 4294901760
        %5172 = vmatpush1.msra.mxu0 %v5171
        %v5173 = vand.u32 %v2982, 4294901760
        %5174 = vmatprep.subr.mxu0 %v5173
        %v5175 = vand.u32 %v2981, 4294901760
        %5176 = vmatpush1.msra.mxu0 %v5175
        %v5177 = vand.u32 %v2979, 4294901760
        %5178 = vmatprep.subr.mxu0 %v5177
        %v5179 = vand.u32 %v2978, 4294901760
        %5180 = vmatpush1.msra.mxu0 %v5179
        %v5181 = vand.u32 %v2976, 4294901760
        %5182 = vmatprep.subr.mxu0 %v5181
        %v5183 = vand.u32 %v2975, 4294901760
        %5184 = vmatpush1.msra.mxu0 %v5183
        %v5185 = vand.u32 %v2973, 4294901760
        %5186 = vmatprep.subr.mxu0 %v5185
        %v5187 = vand.u32 %v2972, 4294901760
        %5188 = vmatpush1.msra.mxu0 %v5187
        %v5189 = vand.u32 %v2970, 4294901760
        %5190 = vmatprep.subr.mxu0 %v5189
        %v5191 = vand.u32 %v2969, 4294901760
        %5192 = vmatpush1.msra.mxu0 %v5191
        %v5193 = vand.u32 %v2967, 4294901760
        %5194 = vmatprep.subr.mxu0 %v5193
        %v5195 = vand.u32 %v2966, 4294901760
        %5196 = vmatpush1.msra.mxu0 %v5195
        %v5197 = vand.u32 %v2964, 4294901760
        %5198 = vmatprep.subr.mxu0 %v5197
        %v5199 = vand.u32 %v2963, 4294901760
        %5200 = vmatpush1.msra.mxu0 %v5199
        %v5201 = vand.u32 %v2961, 4294901760
        %5202 = vmatprep.subr.mxu0 %v5201
        %v5203 = vand.u32 %v2960, 4294901760
        %5204 = vmatpush1.msra.mxu0 %v5203
        %v5205 = vand.u32 %v2958, 4294901760
        %5206 = vmatprep.subr.mxu0 %v5205
        %v5207 = vand.u32 %v2957, 4294901760
        %5208 = vmatpush1.msra.mxu0 %v5207
        %5209 = vmatprep.subr.mxu0 0.0
        %5210 = vmatpush2.msra.mxu0 0.0
        %5211 = vmatprep.subr.mxu0 0.0
        %5212 = vmatpush2.msra.mxu0 0.0
        %5213 = vmatprep.subr.mxu0 0.0
        %5214 = vmatpush2.msra.mxu0 0.0
        %5215 = vmatprep.subr.mxu0 0.0
        %5216 = vmatpush2.msra.mxu0 0.0
        %5217 = vmatprep.subr.mxu0 0.0
        %5218 = vmatpush2.msra.mxu0 0.0
        %5219 = vmatprep.subr.mxu0 0.0
        %5220 = vmatpush2.msra.mxu0 0.0
        %5221 = vmatprep.subr.mxu0 0.0
        %5222 = vmatpush2.msra.mxu0 0.0
        %5223 = vmatprep.subr.mxu0 0.0
        %5224 = vmatpush2.msra.mxu0 0.0
        %5225 = vmatprep.subr.mxu0 0.0
        %5226 = vmatpush2.msra.mxu0 0.0
        %5227 = vmatprep.subr.mxu0 0.0
        %5228 = vmatpush2.msra.mxu0 0.0
        %5229 = vmatprep.subr.mxu0 0.0
        %5230 = vmatpush2.msra.mxu0 0.0
        %5231 = vmatprep.subr.mxu0 0.0
        %5232 = vmatpush2.msra.mxu0 0.0
        %5233 = vmatprep.subr.mxu0 0.0
        %5234 = vmatpush2.msra.mxu0 0.0
        %5235 = vmatprep.subr.mxu0 0.0
        %5236 = vmatpush2.msra.mxu0 0.0
        %5237 = vmatprep.subr.mxu0 0.0
        %5238 = vmatpush2.msra.mxu0 0.0
        %5239 = vmatprep.subr.mxu0 0.0
        %5240 = vmatpush2.msra.mxu0 0.0
        %5241 = vmatprep.mubr.f32.mxu0 0.0
        %v5242 = vand.u32 %v2438, 4294901760
        %v5243 = vsub.f32 %v2438, %v5242
        %v5244 = vand.u32 %v5243, 4294901760
        %5245 = vmatmul.mubr.f32.gmra.mxu0 %v5244
        %v5246 = vpop.f32.mrf.mxu0
        %v5247 = vadd.f32 %v5133, %v5246
        %v5248 = vpop.f32.mrf.mxu0
        %v5249 = vadd.f32 %v5135, %v5248
        %5250 = vmatprep.mubr.f32.mxu0 0.0
        %v5251 = vand.u32 %v2444, 4294901760
        %v5252 = vsub.f32 %v2444, %v5251
        %v5253 = vand.u32 %v5252, 4294901760
        %5254 = vmatmul.mubr.f32.gmra.mxu0 %v5253
        %v5255 = vpop.f32.mrf.mxu0
        %v5256 = vadd.f32 %v5141, %v5255
        %v5257 = vpop.f32.mrf.mxu0
        %v5258 = vadd.f32 %v5143, %v5257
        %5259 = vdwg.mxu0
        %v5260 = vand.u32 %v3003, 4294901760
        %v5261 = vsub.f32 %v3003, %v5260
        %v5262 = vand.u32 %v5261, 4294901760
        %5263 = vmatprep.subr.mxu0 %v5262
        %v5264 = vand.u32 %v3002, 4294901760
        %v5265 = vsub.f32 %v3002, %v5264
        %v5266 = vand.u32 %v5265, 4294901760
        %5267 = vmatpush1.msra.mxu0 %v5266
        %v5268 = vand.u32 %v3000, 4294901760
        %v5269 = vsub.f32 %v3000, %v5268
        %v5270 = vand.u32 %v5269, 4294901760
        %5271 = vmatprep.subr.mxu0 %v5270
        %v5272 = vand.u32 %v2999, 4294901760
        %v5273 = vsub.f32 %v2999, %v5272
        %v5274 = vand.u32 %v5273, 4294901760
        %5275 = vmatpush1.msra.mxu0 %v5274
        %v5276 = vand.u32 %v2997, 4294901760
        %v5277 = vsub.f32 %v2997, %v5276
        %v5278 = vand.u32 %v5277, 4294901760
        %5279 = vmatprep.subr.mxu0 %v5278
        %v5280 = vand.u32 %v2996, 4294901760
        %v5281 = vsub.f32 %v2996, %v5280
        %v5282 = vand.u32 %v5281, 4294901760
        %5283 = vmatpush1.msra.mxu0 %v5282
        %v5284 = vand.u32 %v2994, 4294901760
        %v5285 = vsub.f32 %v2994, %v5284
        %v5286 = vand.u32 %v5285, 4294901760
        %5287 = vmatprep.subr.mxu0 %v5286
        %v5288 = vand.u32 %v2993, 4294901760
        %v5289 = vsub.f32 %v2993, %v5288
        %v5290 = vand.u32 %v5289, 4294901760
        %5291 = vmatpush1.msra.mxu0 %v5290
        %v5292 = vand.u32 %v2991, 4294901760
        %v5293 = vsub.f32 %v2991, %v5292
        %v5294 = vand.u32 %v5293, 4294901760
        %5295 = vmatprep.subr.mxu0 %v5294
        %v5296 = vand.u32 %v2990, 4294901760
        %v5297 = vsub.f32 %v2990, %v5296
        %v5298 = vand.u32 %v5297, 4294901760
        %5299 = vmatpush1.msra.mxu0 %v5298
        %v5300 = vand.u32 %v2988, 4294901760
        %v5301 = vsub.f32 %v2988, %v5300
        %v5302 = vand.u32 %v5301, 4294901760
        %5303 = vmatprep.subr.mxu0 %v5302
        %v5304 = vand.u32 %v2987, 4294901760
        %v5305 = vsub.f32 %v2987, %v5304
        %v5306 = vand.u32 %v5305, 4294901760
        %5307 = vmatpush1.msra.mxu0 %v5306
        %v5308 = vand.u32 %v2985, 4294901760
        %v5309 = vsub.f32 %v2985, %v5308
        %v5310 = vand.u32 %v5309, 4294901760
        %5311 = vmatprep.subr.mxu0 %v5310
        %v5312 = vand.u32 %v2984, 4294901760
        %v5313 = vsub.f32 %v2984, %v5312
        %v5314 = vand.u32 %v5313, 4294901760
        %5315 = vmatpush1.msra.mxu0 %v5314
        %v5316 = vand.u32 %v2982, 4294901760
        %v5317 = vsub.f32 %v2982, %v5316
        %v5318 = vand.u32 %v5317, 4294901760
        %5319 = vmatprep.subr.mxu0 %v5318
        %v5320 = vand.u32 %v2981, 4294901760
        %v5321 = vsub.f32 %v2981, %v5320
        %v5322 = vand.u32 %v5321, 4294901760
        %5323 = vmatpush1.msra.mxu0 %v5322
        %v5324 = vand.u32 %v2979, 4294901760
        %v5325 = vsub.f32 %v2979, %v5324
        %v5326 = vand.u32 %v5325, 4294901760
        %5327 = vmatprep.subr.mxu0 %v5326
        %v5328 = vand.u32 %v2978, 4294901760
        %v5329 = vsub.f32 %v2978, %v5328
        %v5330 = vand.u32 %v5329, 4294901760
        %5331 = vmatpush1.msra.mxu0 %v5330
        %v5332 = vand.u32 %v2976, 4294901760
        %v5333 = vsub.f32 %v2976, %v5332
        %v5334 = vand.u32 %v5333, 4294901760
        %5335 = vmatprep.subr.mxu0 %v5334
        %v5336 = vand.u32 %v2975, 4294901760
        %v5337 = vsub.f32 %v2975, %v5336
        %v5338 = vand.u32 %v5337, 4294901760
        %5339 = vmatpush1.msra.mxu0 %v5338
        %v5340 = vand.u32 %v2973, 4294901760
        %v5341 = vsub.f32 %v2973, %v5340
        %v5342 = vand.u32 %v5341, 4294901760
        %5343 = vmatprep.subr.mxu0 %v5342
        %v5344 = vand.u32 %v2972, 4294901760
        %v5345 = vsub.f32 %v2972, %v5344
        %v5346 = vand.u32 %v5345, 4294901760
        %5347 = vmatpush1.msra.mxu0 %v5346
        %v5348 = vand.u32 %v2970, 4294901760
        %v5349 = vsub.f32 %v2970, %v5348
        %v5350 = vand.u32 %v5349, 4294901760
        %5351 = vmatprep.subr.mxu0 %v5350
        %v5352 = vand.u32 %v2969, 4294901760
        %v5353 = vsub.f32 %v2969, %v5352
        %v5354 = vand.u32 %v5353, 4294901760
        %5355 = vmatpush1.msra.mxu0 %v5354
        %v5356 = vand.u32 %v2967, 4294901760
        %v5357 = vsub.f32 %v2967, %v5356
        %v5358 = vand.u32 %v5357, 4294901760
        %5359 = vmatprep.subr.mxu0 %v5358
        %v5360 = vand.u32 %v2966, 4294901760
        %v5361 = vsub.f32 %v2966, %v5360
        %v5362 = vand.u32 %v5361, 4294901760
        %5363 = vmatpush1.msra.mxu0 %v5362
        %v5364 = vand.u32 %v2964, 4294901760
        %v5365 = vsub.f32 %v2964, %v5364
        %v5366 = vand.u32 %v5365, 4294901760
        %5367 = vmatprep.subr.mxu0 %v5366
        %v5368 = vand.u32 %v2963, 4294901760
        %v5369 = vsub.f32 %v2963, %v5368
        %v5370 = vand.u32 %v5369, 4294901760
        %5371 = vmatpush1.msra.mxu0 %v5370
        %v5372 = vand.u32 %v2961, 4294901760
        %v5373 = vsub.f32 %v2961, %v5372
        %v5374 = vand.u32 %v5373, 4294901760
        %5375 = vmatprep.subr.mxu0 %v5374
        %v5376 = vand.u32 %v2960, 4294901760
        %v5377 = vsub.f32 %v2960, %v5376
        %v5378 = vand.u32 %v5377, 4294901760
        %5379 = vmatpush1.msra.mxu0 %v5378
        %v5380 = vand.u32 %v2958, 4294901760
        %v5381 = vsub.f32 %v2958, %v5380
        %v5382 = vand.u32 %v5381, 4294901760
        %5383 = vmatprep.subr.mxu0 %v5382
        %v5384 = vand.u32 %v2957, 4294901760
        %v5385 = vsub.f32 %v2957, %v5384
        %v5386 = vand.u32 %v5385, 4294901760
        %5387 = vmatpush1.msra.mxu0 %v5386
        %5388 = vmatprep.subr.mxu0 0.0
        %5389 = vmatpush2.msra.mxu0 0.0
        %5390 = vmatprep.subr.mxu0 0.0
        %5391 = vmatpush2.msra.mxu0 0.0
        %5392 = vmatprep.subr.mxu0 0.0
        %5393 = vmatpush2.msra.mxu0 0.0
        %5394 = vmatprep.subr.mxu0 0.0
        %5395 = vmatpush2.msra.mxu0 0.0
        %5396 = vmatprep.subr.mxu0 0.0
        %5397 = vmatpush2.msra.mxu0 0.0
        %5398 = vmatprep.subr.mxu0 0.0
        %5399 = vmatpush2.msra.mxu0 0.0
        %5400 = vmatprep.subr.mxu0 0.0
        %5401 = vmatpush2.msra.mxu0 0.0
        %5402 = vmatprep.subr.mxu0 0.0
        %5403 = vmatpush2.msra.mxu0 0.0
        %5404 = vmatprep.subr.mxu0 0.0
        %5405 = vmatpush2.msra.mxu0 0.0
        %5406 = vmatprep.subr.mxu0 0.0
        %5407 = vmatpush2.msra.mxu0 0.0
        %5408 = vmatprep.subr.mxu0 0.0
        %5409 = vmatpush2.msra.mxu0 0.0
        %5410 = vmatprep.subr.mxu0 0.0
        %5411 = vmatpush2.msra.mxu0 0.0
        %5412 = vmatprep.subr.mxu0 0.0
        %5413 = vmatpush2.msra.mxu0 0.0
        %5414 = vmatprep.subr.mxu0 0.0
        %5415 = vmatpush2.msra.mxu0 0.0
        %5416 = vmatprep.subr.mxu0 0.0
        %5417 = vmatpush2.msra.mxu0 0.0
        %5418 = vmatprep.subr.mxu0 0.0
        %5419 = vmatpush2.msra.mxu0 0.0
        %5420 = vmatprep.mubr.f32.mxu0 0.0
        %v5421 = vand.u32 %v2438, 4294901760
        %5422 = vmatmul.mubr.f32.gmra.mxu0 %v5421
        %v5423 = vpop.f32.mrf.mxu0
        %v5424 = vadd.f32 %v5247, %v5423
        %v5425 = vpop.f32.mrf.mxu0
        %v5426 = vadd.f32 %v5249, %v5425
        %5427 = vmatprep.mubr.f32.mxu0 0.0
        %v5428 = vand.u32 %v2444, 4294901760
        %5429 = vmatmul.mubr.f32.gmra.mxu0 %v5428
        %v5430 = vpop.f32.mrf.mxu0
        %v5431 = vadd.f32 %v5256, %v5430
        %v5432 = vpop.f32.mrf.mxu0
        %v5433 = vadd.f32 %v5258, %v5432
        %5434 = vdwg.mxu0
        %v5435 = vand.u32 %v3003, 4294901760
        %5436 = vmatprep.subr.mxu0 %v5435
        %v5437 = vand.u32 %v3002, 4294901760
        %5438 = vmatpush1.msra.mxu0 %v5437
        %v5439 = vand.u32 %v3000, 4294901760
        %5440 = vmatprep.subr.mxu0 %v5439
        %v5441 = vand.u32 %v2999, 4294901760
        %5442 = vmatpush1.msra.mxu0 %v5441
        %v5443 = vand.u32 %v2997, 4294901760
        %5444 = vmatprep.subr.mxu0 %v5443
        %v5445 = vand.u32 %v2996, 4294901760
        %5446 = vmatpush1.msra.mxu0 %v5445
        %v5447 = vand.u32 %v2994, 4294901760
        %5448 = vmatprep.subr.mxu0 %v5447
        %v5449 = vand.u32 %v2993, 4294901760
        %5450 = vmatpush1.msra.mxu0 %v5449
        %v5451 = vand.u32 %v2991, 4294901760
        %5452 = vmatprep.subr.mxu0 %v5451
        %v5453 = vand.u32 %v2990, 4294901760
        %5454 = vmatpush1.msra.mxu0 %v5453
        %v5455 = vand.u32 %v2988, 4294901760
        %5456 = vmatprep.subr.mxu0 %v5455
        %v5457 = vand.u32 %v2987, 4294901760
        %5458 = vmatpush1.msra.mxu0 %v5457
        %v5459 = vand.u32 %v2985, 4294901760
        %5460 = vmatprep.subr.mxu0 %v5459
        %v5461 = vand.u32 %v2984, 4294901760
        %5462 = vmatpush1.msra.mxu0 %v5461
        %v5463 = vand.u32 %v2982, 4294901760
        %5464 = vmatprep.subr.mxu0 %v5463
        %v5465 = vand.u32 %v2981, 4294901760
        %5466 = vmatpush1.msra.mxu0 %v5465
        %v5467 = vand.u32 %v2979, 4294901760
        %5468 = vmatprep.subr.mxu0 %v5467
        %v5469 = vand.u32 %v2978, 4294901760
        %5470 = vmatpush1.msra.mxu0 %v5469
        %v5471 = vand.u32 %v2976, 4294901760
        %5472 = vmatprep.subr.mxu0 %v5471
        %v5473 = vand.u32 %v2975, 4294901760
        %5474 = vmatpush1.msra.mxu0 %v5473
        %v5475 = vand.u32 %v2973, 4294901760
        %5476 = vmatprep.subr.mxu0 %v5475
        %v5477 = vand.u32 %v2972, 4294901760
        %5478 = vmatpush1.msra.mxu0 %v5477
        %v5479 = vand.u32 %v2970, 4294901760
        %5480 = vmatprep.subr.mxu0 %v5479
        %v5481 = vand.u32 %v2969, 4294901760
        %5482 = vmatpush1.msra.mxu0 %v5481
        %v5483 = vand.u32 %v2967, 4294901760
        %5484 = vmatprep.subr.mxu0 %v5483
        %v5485 = vand.u32 %v2966, 4294901760
        %5486 = vmatpush1.msra.mxu0 %v5485
        %v5487 = vand.u32 %v2964, 4294901760
        %5488 = vmatprep.subr.mxu0 %v5487
        %v5489 = vand.u32 %v2963, 4294901760
        %5490 = vmatpush1.msra.mxu0 %v5489
        %v5491 = vand.u32 %v2961, 4294901760
        %5492 = vmatprep.subr.mxu0 %v5491
        %v5493 = vand.u32 %v2960, 4294901760
        %5494 = vmatpush1.msra.mxu0 %v5493
        %v5495 = vand.u32 %v2958, 4294901760
        %5496 = vmatprep.subr.mxu0 %v5495
        %v5497 = vand.u32 %v2957, 4294901760
        %5498 = vmatpush1.msra.mxu0 %v5497
        %5499 = vmatprep.subr.mxu0 0.0
        %5500 = vmatpush2.msra.mxu0 0.0
        %5501 = vmatprep.subr.mxu0 0.0
        %5502 = vmatpush2.msra.mxu0 0.0
        %5503 = vmatprep.subr.mxu0 0.0
        %5504 = vmatpush2.msra.mxu0 0.0
        %5505 = vmatprep.subr.mxu0 0.0
        %5506 = vmatpush2.msra.mxu0 0.0
        %5507 = vmatprep.subr.mxu0 0.0
        %5508 = vmatpush2.msra.mxu0 0.0
        %5509 = vmatprep.subr.mxu0 0.0
        %5510 = vmatpush2.msra.mxu0 0.0
        %5511 = vmatprep.subr.mxu0 0.0
        %5512 = vmatpush2.msra.mxu0 0.0
        %5513 = vmatprep.subr.mxu0 0.0
        %5514 = vmatpush2.msra.mxu0 0.0
        %5515 = vmatprep.subr.mxu0 0.0
        %5516 = vmatpush2.msra.mxu0 0.0
        %5517 = vmatprep.subr.mxu0 0.0
        %5518 = vmatpush2.msra.mxu0 0.0
        %5519 = vmatprep.subr.mxu0 0.0
        %5520 = vmatpush2.msra.mxu0 0.0
        %5521 = vmatprep.subr.mxu0 0.0
        %5522 = vmatpush2.msra.mxu0 0.0
        %5523 = vmatprep.subr.mxu0 0.0
        %5524 = vmatpush2.msra.mxu0 0.0
        %5525 = vmatprep.subr.mxu0 0.0
        %5526 = vmatpush2.msra.mxu0 0.0
        %5527 = vmatprep.subr.mxu0 0.0
        %5528 = vmatpush2.msra.mxu0 0.0
        %5529 = vmatprep.subr.mxu0 0.0
        %5530 = vmatpush2.msra.mxu0 0.0
        %5531 = vmatprep.mubr.f32.mxu0 0.0
        %v5532 = vand.u32 %v2438, 4294901760
        %5533 = vmatmul.mubr.f32.gmra.mxu0 %v5532
        %v5534 = vpop.f32.mrf.mxu0
        %v5535 = vadd.f32 %v5424, %v5534
        %v5536 = vpop.f32.mrf.mxu0
        %v5537 = vadd.f32 %v5426, %v5536
        %5538 = vmatprep.mubr.f32.mxu0 0.0
        %v5539 = vand.u32 %v2444, 4294901760
        %5540 = vmatmul.mubr.f32.gmra.mxu0 %v5539
        %v5541 = vpop.f32.mrf.mxu0
        %v5542 = vadd.f32 %v5431, %v5541
        %v5543 = vpop.f32.mrf.mxu0
        %v5544 = vadd.f32 %v5433, %v5543
        %5545 = vdwg.mxu0
        %5546 = vmatprep.subr.mxu0 0.0
        %v5547 = vand.u32 %v3004, 4294901760
        %5548 = vmatpush1.msra.mxu0 %v5547
        %5549 = vmatprep.subr.mxu0 0.0
        %v5550 = vand.u32 %v3001, 4294901760
        %5551 = vmatpush1.msra.mxu0 %v5550
        %5552 = vmatprep.subr.mxu0 0.0
        %v5553 = vand.u32 %v2998, 4294901760
        %5554 = vmatpush1.msra.mxu0 %v5553
        %5555 = vmatprep.subr.mxu0 0.0
        %v5556 = vand.u32 %v2995, 4294901760
        %5557 = vmatpush1.msra.mxu0 %v5556
        %5558 = vmatprep.subr.mxu0 0.0
        %v5559 = vand.u32 %v2992, 4294901760
        %5560 = vmatpush1.msra.mxu0 %v5559
        %5561 = vmatprep.subr.mxu0 0.0
        %v5562 = vand.u32 %v2989, 4294901760
        %5563 = vmatpush1.msra.mxu0 %v5562
        %5564 = vmatprep.subr.mxu0 0.0
        %v5565 = vand.u32 %v2986, 4294901760
        %5566 = vmatpush1.msra.mxu0 %v5565
        %5567 = vmatprep.subr.mxu0 0.0
        %v5568 = vand.u32 %v2983, 4294901760
        %5569 = vmatpush1.msra.mxu0 %v5568
        %5570 = vmatprep.subr.mxu0 0.0
        %v5571 = vand.u32 %v2980, 4294901760
        %5572 = vmatpush1.msra.mxu0 %v5571
        %5573 = vmatprep.subr.mxu0 0.0
        %v5574 = vand.u32 %v2977, 4294901760
        %5575 = vmatpush1.msra.mxu0 %v5574
        %5576 = vmatprep.subr.mxu0 0.0
        %v5577 = vand.u32 %v2974, 4294901760
        %5578 = vmatpush1.msra.mxu0 %v5577
        %5579 = vmatprep.subr.mxu0 0.0
        %v5580 = vand.u32 %v2971, 4294901760
        %5581 = vmatpush1.msra.mxu0 %v5580
        %5582 = vmatprep.subr.mxu0 0.0
        %v5583 = vand.u32 %v2968, 4294901760
        %5584 = vmatpush1.msra.mxu0 %v5583
        %5585 = vmatprep.subr.mxu0 0.0
        %v5586 = vand.u32 %v2965, 4294901760
        %5587 = vmatpush1.msra.mxu0 %v5586
        %5588 = vmatprep.subr.mxu0 0.0
        %v5589 = vand.u32 %v2962, 4294901760
        %5590 = vmatpush1.msra.mxu0 %v5589
        %5591 = vmatprep.subr.mxu0 0.0
        %v5592 = vand.u32 %v2959, 4294901760
        %5593 = vmatpush1.msra.mxu0 %v5592
        %5594 = vmatprep.subr.mxu0 0.0
        %5595 = vmatpush2.msra.mxu0 0.0
        %5596 = vmatprep.subr.mxu0 0.0
        %5597 = vmatpush2.msra.mxu0 0.0
        %5598 = vmatprep.subr.mxu0 0.0
        %5599 = vmatpush2.msra.mxu0 0.0
        %5600 = vmatprep.subr.mxu0 0.0
        %5601 = vmatpush2.msra.mxu0 0.0
        %5602 = vmatprep.subr.mxu0 0.0
        %5603 = vmatpush2.msra.mxu0 0.0
        %5604 = vmatprep.subr.mxu0 0.0
        %5605 = vmatpush2.msra.mxu0 0.0
        %5606 = vmatprep.subr.mxu0 0.0
        %5607 = vmatpush2.msra.mxu0 0.0
        %5608 = vmatprep.subr.mxu0 0.0
        %5609 = vmatpush2.msra.mxu0 0.0
        %5610 = vmatprep.subr.mxu0 0.0
        %5611 = vmatpush2.msra.mxu0 0.0
        %5612 = vmatprep.subr.mxu0 0.0
        %5613 = vmatpush2.msra.mxu0 0.0
        %5614 = vmatprep.subr.mxu0 0.0
        %5615 = vmatpush2.msra.mxu0 0.0
        %5616 = vmatprep.subr.mxu0 0.0
        %5617 = vmatpush2.msra.mxu0 0.0
        %5618 = vmatprep.subr.mxu0 0.0
        %5619 = vmatpush2.msra.mxu0 0.0
        %5620 = vmatprep.subr.mxu0 0.0
        %5621 = vmatpush2.msra.mxu0 0.0
        %5622 = vmatprep.subr.mxu0 0.0
        %5623 = vmatpush2.msra.mxu0 0.0
        %5624 = vmatprep.subr.mxu0 0.0
        %5625 = vmatpush2.msra.mxu0 0.0
        %5626 = vmatprep.mubr.f32.mxu0 0.0
        %v5627 = vand.u32 %v2438, 4294901760
        %v5628 = vsub.f32 %v2438, %v5627
        %v5629 = vand.u32 %v5628, 4294901760
        %v5630 = vsub.f32 %v5628, %v5629
        %v5631 = vand.u32 %v5630, 4294901760
        %5632 = vmatmul.mubr.f32.gmra.mxu0 %v5631
        %v5633 = vpop.f32.mrf.mxu0
        %v5634 = vadd.f32 %v4633, %v5633
        %v5635 = vpop.f32.mrf.mxu0
        %5636 = vmatprep.mubr.f32.mxu0 0.0
        %v5637 = vand.u32 %v2444, 4294901760
        %v5638 = vsub.f32 %v2444, %v5637
        %v5639 = vand.u32 %v5638, 4294901760
        %v5640 = vsub.f32 %v5638, %v5639
        %v5641 = vand.u32 %v5640, 4294901760
        %5642 = vmatmul.mubr.f32.gmra.mxu0 %v5641
        %v5643 = vpop.f32.mrf.mxu0
        %v5644 = vadd.f32 %v4639, %v5643
        %v5645 = vpop.f32.mrf.mxu0
        %5646 = vdwg.mxu0
        %5647 = vmatprep.subr.mxu0 0.0
        %v5648 = vand.u32 %v3004, 4294901760
        %v5649 = vsub.f32 %v3004, %v5648
        %v5650 = vand.u32 %v5649, 4294901760
        %v5651 = vsub.f32 %v5649, %v5650
        %v5652 = vand.u32 %v5651, 4294901760
        %5653 = vmatpush1.msra.mxu0 %v5652
        %5654 = vmatprep.subr.mxu0 0.0
        %v5655 = vand.u32 %v3001, 4294901760
        %v5656 = vsub.f32 %v3001, %v5655
        %v5657 = vand.u32 %v5656, 4294901760
        %v5658 = vsub.f32 %v5656, %v5657
        %v5659 = vand.u32 %v5658, 4294901760
        %5660 = vmatpush1.msra.mxu0 %v5659
        %5661 = vmatprep.subr.mxu0 0.0
        %v5662 = vand.u32 %v2998, 4294901760
        %v5663 = vsub.f32 %v2998, %v5662
        %v5664 = vand.u32 %v5663, 4294901760
        %v5665 = vsub.f32 %v5663, %v5664
        %v5666 = vand.u32 %v5665, 4294901760
        %5667 = vmatpush1.msra.mxu0 %v5666
        %5668 = vmatprep.subr.mxu0 0.0
        %v5669 = vand.u32 %v2995, 4294901760
        %v5670 = vsub.f32 %v2995, %v5669
        %v5671 = vand.u32 %v5670, 4294901760
        %v5672 = vsub.f32 %v5670, %v5671
        %v5673 = vand.u32 %v5672, 4294901760
        %5674 = vmatpush1.msra.mxu0 %v5673
        %5675 = vmatprep.subr.mxu0 0.0
        %v5676 = vand.u32 %v2992, 4294901760
        %v5677 = vsub.f32 %v2992, %v5676
        %v5678 = vand.u32 %v5677, 4294901760
        %v5679 = vsub.f32 %v5677, %v5678
        %v5680 = vand.u32 %v5679, 4294901760
        %5681 = vmatpush1.msra.mxu0 %v5680
        %5682 = vmatprep.subr.mxu0 0.0
        %v5683 = vand.u32 %v2989, 4294901760
        %v5684 = vsub.f32 %v2989, %v5683
        %v5685 = vand.u32 %v5684, 4294901760
        %v5686 = vsub.f32 %v5684, %v5685
        %v5687 = vand.u32 %v5686, 4294901760
        %5688 = vmatpush1.msra.mxu0 %v5687
        %5689 = vmatprep.subr.mxu0 0.0
        %v5690 = vand.u32 %v2986, 4294901760
        %v5691 = vsub.f32 %v2986, %v5690
        %v5692 = vand.u32 %v5691, 4294901760
        %v5693 = vsub.f32 %v5691, %v5692
        %v5694 = vand.u32 %v5693, 4294901760
        %5695 = vmatpush1.msra.mxu0 %v5694
        %5696 = vmatprep.subr.mxu0 0.0
        %v5697 = vand.u32 %v2983, 4294901760
        %v5698 = vsub.f32 %v2983, %v5697
        %v5699 = vand.u32 %v5698, 4294901760
        %v5700 = vsub.f32 %v5698, %v5699
        %v5701 = vand.u32 %v5700, 4294901760
        %5702 = vmatpush1.msra.mxu0 %v5701
        %5703 = vmatprep.subr.mxu0 0.0
        %v5704 = vand.u32 %v2980, 4294901760
        %v5705 = vsub.f32 %v2980, %v5704
        %v5706 = vand.u32 %v5705, 4294901760
        %v5707 = vsub.f32 %v5705, %v5706
        %v5708 = vand.u32 %v5707, 4294901760
        %5709 = vmatpush1.msra.mxu0 %v5708
        %5710 = vmatprep.subr.mxu0 0.0
        %v5711 = vand.u32 %v2977, 4294901760
        %v5712 = vsub.f32 %v2977, %v5711
        %v5713 = vand.u32 %v5712, 4294901760
        %v5714 = vsub.f32 %v5712, %v5713
        %v5715 = vand.u32 %v5714, 4294901760
        %5716 = vmatpush1.msra.mxu0 %v5715
        %5717 = vmatprep.subr.mxu0 0.0
        %v5718 = vand.u32 %v2974, 4294901760
        %v5719 = vsub.f32 %v2974, %v5718
        %v5720 = vand.u32 %v5719, 4294901760
        %v5721 = vsub.f32 %v5719, %v5720
        %v5722 = vand.u32 %v5721, 4294901760
        %5723 = vmatpush1.msra.mxu0 %v5722
        %5724 = vmatprep.subr.mxu0 0.0
        %v5725 = vand.u32 %v2971, 4294901760
        %v5726 = vsub.f32 %v2971, %v5725
        %v5727 = vand.u32 %v5726, 4294901760
        %v5728 = vsub.f32 %v5726, %v5727
        %v5729 = vand.u32 %v5728, 4294901760
        %5730 = vmatpush1.msra.mxu0 %v5729
        %5731 = vmatprep.subr.mxu0 0.0
        %v5732 = vand.u32 %v2968, 4294901760
        %v5733 = vsub.f32 %v2968, %v5732
        %v5734 = vand.u32 %v5733, 4294901760
        %v5735 = vsub.f32 %v5733, %v5734
        %v5736 = vand.u32 %v5735, 4294901760
        %5737 = vmatpush1.msra.mxu0 %v5736
        %5738 = vmatprep.subr.mxu0 0.0
        %v5739 = vand.u32 %v2965, 4294901760
        %v5740 = vsub.f32 %v2965, %v5739
        %v5741 = vand.u32 %v5740, 4294901760
        %v5742 = vsub.f32 %v5740, %v5741
        %v5743 = vand.u32 %v5742, 4294901760
        %5744 = vmatpush1.msra.mxu0 %v5743
        %5745 = vmatprep.subr.mxu0 0.0
        %v5746 = vand.u32 %v2962, 4294901760
        %v5747 = vsub.f32 %v2962, %v5746
        %v5748 = vand.u32 %v5747, 4294901760
        %v5749 = vsub.f32 %v5747, %v5748
        %v5750 = vand.u32 %v5749, 4294901760
        %5751 = vmatpush1.msra.mxu0 %v5750
        %5752 = vmatprep.subr.mxu0 0.0
        %v5753 = vand.u32 %v2959, 4294901760
        %v5754 = vsub.f32 %v2959, %v5753
        %v5755 = vand.u32 %v5754, 4294901760
        %v5756 = vsub.f32 %v5754, %v5755
        %v5757 = vand.u32 %v5756, 4294901760
        %5758 = vmatpush1.msra.mxu0 %v5757
        %5759 = vmatprep.subr.mxu0 0.0
        %5760 = vmatpush2.msra.mxu0 0.0
        %5761 = vmatprep.subr.mxu0 0.0
        %5762 = vmatpush2.msra.mxu0 0.0
        %5763 = vmatprep.subr.mxu0 0.0
        %5764 = vmatpush2.msra.mxu0 0.0
        %5765 = vmatprep.subr.mxu0 0.0
        %5766 = vmatpush2.msra.mxu0 0.0
        %5767 = vmatprep.subr.mxu0 0.0
        %5768 = vmatpush2.msra.mxu0 0.0
        %5769 = vmatprep.subr.mxu0 0.0
        %5770 = vmatpush2.msra.mxu0 0.0
        %5771 = vmatprep.subr.mxu0 0.0
        %5772 = vmatpush2.msra.mxu0 0.0
        %5773 = vmatprep.subr.mxu0 0.0
        %5774 = vmatpush2.msra.mxu0 0.0
        %5775 = vmatprep.subr.mxu0 0.0
        %5776 = vmatpush2.msra.mxu0 0.0
        %5777 = vmatprep.subr.mxu0 0.0
        %5778 = vmatpush2.msra.mxu0 0.0
        %5779 = vmatprep.subr.mxu0 0.0
        %5780 = vmatpush2.msra.mxu0 0.0
        %5781 = vmatprep.subr.mxu0 0.0
        %5782 = vmatpush2.msra.mxu0 0.0
        %5783 = vmatprep.subr.mxu0 0.0
        %5784 = vmatpush2.msra.mxu0 0.0
        %5785 = vmatprep.subr.mxu0 0.0
        %5786 = vmatpush2.msra.mxu0 0.0
        %5787 = vmatprep.subr.mxu0 0.0
        %5788 = vmatpush2.msra.mxu0 0.0
        %5789 = vmatprep.subr.mxu0 0.0
        %5790 = vmatpush2.msra.mxu0 0.0
        %5791 = vmatprep.mubr.f32.mxu0 0.0
        %v5792 = vand.u32 %v2438, 4294901760
        %5793 = vmatmul.mubr.f32.gmra.mxu0 %v5792
        %v5794 = vpop.f32.mrf.mxu0
        %v5795 = vadd.f32 %v5634, %v5794
        %v5796 = vpop.f32.mrf.mxu0
        %5797 = vmatprep.mubr.f32.mxu0 0.0
        %v5798 = vand.u32 %v2444, 4294901760
        %5799 = vmatmul.mubr.f32.gmra.mxu0 %v5798
        %v5800 = vpop.f32.mrf.mxu0
        %v5801 = vadd.f32 %v5644, %v5800
        %v5802 = vpop.f32.mrf.mxu0
        %5803 = vdwg.mxu0
        %5804 = vmatprep.subr.mxu0 0.0
        %v5805 = vand.u32 %v3004, 4294901760
        %v5806 = vsub.f32 %v3004, %v5805
        %5807 = vmatpush1.msra.mxu0 %v5806
        %5808 = vmatprep.subr.mxu0 0.0
        %v5809 = vand.u32 %v3001, 4294901760
        %v5810 = vsub.f32 %v3001, %v5809
        %5811 = vmatpush1.msra.mxu0 %v5810
        %5812 = vmatprep.subr.mxu0 0.0
        %v5813 = vand.u32 %v2998, 4294901760
        %v5814 = vsub.f32 %v2998, %v5813
        %5815 = vmatpush1.msra.mxu0 %v5814
        %5816 = vmatprep.subr.mxu0 0.0
        %v5817 = vand.u32 %v2995, 4294901760
        %v5818 = vsub.f32 %v2995, %v5817
        %5819 = vmatpush1.msra.mxu0 %v5818
        %5820 = vmatprep.subr.mxu0 0.0
        %v5821 = vand.u32 %v2992, 4294901760
        %v5822 = vsub.f32 %v2992, %v5821
        %5823 = vmatpush1.msra.mxu0 %v5822
        %5824 = vmatprep.subr.mxu0 0.0
        %v5825 = vand.u32 %v2989, 4294901760
        %v5826 = vsub.f32 %v2989, %v5825
        %5827 = vmatpush1.msra.mxu0 %v5826
        %5828 = vmatprep.subr.mxu0 0.0
        %v5829 = vand.u32 %v2986, 4294901760
        %v5830 = vsub.f32 %v2986, %v5829
        %5831 = vmatpush1.msra.mxu0 %v5830
        %5832 = vmatprep.subr.mxu0 0.0
        %v5833 = vand.u32 %v2983, 4294901760
        %v5834 = vsub.f32 %v2983, %v5833
        %5835 = vmatpush1.msra.mxu0 %v5834
        %5836 = vmatprep.subr.mxu0 0.0
        %v5837 = vand.u32 %v2980, 4294901760
        %v5838 = vsub.f32 %v2980, %v5837
        %5839 = vmatpush1.msra.mxu0 %v5838
        %5840 = vmatprep.subr.mxu0 0.0
        %v5841 = vand.u32 %v2977, 4294901760
        %v5842 = vsub.f32 %v2977, %v5841
        %5843 = vmatpush1.msra.mxu0 %v5842
        %5844 = vmatprep.subr.mxu0 0.0
        %v5845 = vand.u32 %v2974, 4294901760
        %v5846 = vsub.f32 %v2974, %v5845
        %5847 = vmatpush1.msra.mxu0 %v5846
        %5848 = vmatprep.subr.mxu0 0.0
        %v5849 = vand.u32 %v2971, 4294901760
        %v5850 = vsub.f32 %v2971, %v5849
        %5851 = vmatpush1.msra.mxu0 %v5850
        %5852 = vmatprep.subr.mxu0 0.0
        %v5853 = vand.u32 %v2968, 4294901760
        %v5854 = vsub.f32 %v2968, %v5853
        %5855 = vmatpush1.msra.mxu0 %v5854
        %5856 = vmatprep.subr.mxu0 0.0
        %v5857 = vand.u32 %v2965, 4294901760
        %v5858 = vsub.f32 %v2965, %v5857
        %5859 = vmatpush1.msra.mxu0 %v5858
        %5860 = vmatprep.subr.mxu0 0.0
        %v5861 = vand.u32 %v2962, 4294901760
        %v5862 = vsub.f32 %v2962, %v5861
        %5863 = vmatpush1.msra.mxu0 %v5862
        %5864 = vmatprep.subr.mxu0 0.0
        %v5865 = vand.u32 %v2959, 4294901760
        %v5866 = vsub.f32 %v2959, %v5865
        %5867 = vmatpush1.msra.mxu0 %v5866
        %5868 = vmatprep.subr.mxu0 0.0
        %5869 = vmatpush2.msra.mxu0 0.0
        %5870 = vmatprep.subr.mxu0 0.0
        %5871 = vmatpush2.msra.mxu0 0.0
        %5872 = vmatprep.subr.mxu0 0.0
        %5873 = vmatpush2.msra.mxu0 0.0
        %5874 = vmatprep.subr.mxu0 0.0
        %5875 = vmatpush2.msra.mxu0 0.0
        %5876 = vmatprep.subr.mxu0 0.0
        %5877 = vmatpush2.msra.mxu0 0.0
        %5878 = vmatprep.subr.mxu0 0.0
        %5879 = vmatpush2.msra.mxu0 0.0
        %5880 = vmatprep.subr.mxu0 0.0
        %5881 = vmatpush2.msra.mxu0 0.0
        %5882 = vmatprep.subr.mxu0 0.0
        %5883 = vmatpush2.msra.mxu0 0.0
        %5884 = vmatprep.subr.mxu0 0.0
        %5885 = vmatpush2.msra.mxu0 0.0
        %5886 = vmatprep.subr.mxu0 0.0
        %5887 = vmatpush2.msra.mxu0 0.0
        %5888 = vmatprep.subr.mxu0 0.0
        %5889 = vmatpush2.msra.mxu0 0.0
        %5890 = vmatprep.subr.mxu0 0.0
        %5891 = vmatpush2.msra.mxu0 0.0
        %5892 = vmatprep.subr.mxu0 0.0
        %5893 = vmatpush2.msra.mxu0 0.0
        %5894 = vmatprep.subr.mxu0 0.0
        %5895 = vmatpush2.msra.mxu0 0.0
        %5896 = vmatprep.subr.mxu0 0.0
        %5897 = vmatpush2.msra.mxu0 0.0
        %5898 = vmatprep.subr.mxu0 0.0
        %5899 = vmatpush2.msra.mxu0 0.0
        %5900 = vmatprep.mubr.f32.mxu0 0.0
        %v5901 = vand.u32 %v2438, 4294901760
        %v5902 = vsub.f32 %v2438, %v5901
        %5903 = vmatmul.mubr.f32.gmra.mxu0 %v5902
        %v5904 = vpop.f32.mrf.mxu0
        %v5905 = vadd.f32 %v5795, %v5904
        %v5906 = vpop.f32.mrf.mxu0
        %5907 = vmatprep.mubr.f32.mxu0 0.0
        %v5908 = vand.u32 %v2444, 4294901760
        %v5909 = vsub.f32 %v2444, %v5908
        %5910 = vmatmul.mubr.f32.gmra.mxu0 %v5909
        %v5911 = vpop.f32.mrf.mxu0
        %v5912 = vadd.f32 %v5801, %v5911
        %v5913 = vpop.f32.mrf.mxu0
        %5914 = vdwg.mxu0
        %5915 = vmatprep.subr.mxu0 0.0
        %v5916 = vand.u32 %v3004, 4294901760
        %5917 = vmatpush1.msra.mxu0 %v5916
        %5918 = vmatprep.subr.mxu0 0.0
        %v5919 = vand.u32 %v3001, 4294901760
        %5920 = vmatpush1.msra.mxu0 %v5919
        %5921 = vmatprep.subr.mxu0 0.0
        %v5922 = vand.u32 %v2998, 4294901760
        %5923 = vmatpush1.msra.mxu0 %v5922
        %5924 = vmatprep.subr.mxu0 0.0
        %v5925 = vand.u32 %v2995, 4294901760
        %5926 = vmatpush1.msra.mxu0 %v5925
        %5927 = vmatprep.subr.mxu0 0.0
        %v5928 = vand.u32 %v2992, 4294901760
        %5929 = vmatpush1.msra.mxu0 %v5928
        %5930 = vmatprep.subr.mxu0 0.0
        %v5931 = vand.u32 %v2989, 4294901760
        %5932 = vmatpush1.msra.mxu0 %v5931
        %5933 = vmatprep.subr.mxu0 0.0
        %v5934 = vand.u32 %v2986, 4294901760
        %5935 = vmatpush1.msra.mxu0 %v5934
        %5936 = vmatprep.subr.mxu0 0.0
        %v5937 = vand.u32 %v2983, 4294901760
        %5938 = vmatpush1.msra.mxu0 %v5937
        %5939 = vmatprep.subr.mxu0 0.0
        %v5940 = vand.u32 %v2980, 4294901760
        %5941 = vmatpush1.msra.mxu0 %v5940
        %5942 = vmatprep.subr.mxu0 0.0
        %v5943 = vand.u32 %v2977, 4294901760
        %5944 = vmatpush1.msra.mxu0 %v5943
        %5945 = vmatprep.subr.mxu0 0.0
        %v5946 = vand.u32 %v2974, 4294901760
        %5947 = vmatpush1.msra.mxu0 %v5946
        %5948 = vmatprep.subr.mxu0 0.0
        %v5949 = vand.u32 %v2971, 4294901760
        %5950 = vmatpush1.msra.mxu0 %v5949
        %5951 = vmatprep.subr.mxu0 0.0
        %v5952 = vand.u32 %v2968, 4294901760
        %5953 = vmatpush1.msra.mxu0 %v5952
        %5954 = vmatprep.subr.mxu0 0.0
        %v5955 = vand.u32 %v2965, 4294901760
        %5956 = vmatpush1.msra.mxu0 %v5955
        %5957 = vmatprep.subr.mxu0 0.0
        %v5958 = vand.u32 %v2962, 4294901760
        %5959 = vmatpush1.msra.mxu0 %v5958
        %5960 = vmatprep.subr.mxu0 0.0
        %v5961 = vand.u32 %v2959, 4294901760
        %5962 = vmatpush1.msra.mxu0 %v5961
        %5963 = vmatprep.subr.mxu0 0.0
        %5964 = vmatpush2.msra.mxu0 0.0
        %5965 = vmatprep.subr.mxu0 0.0
        %5966 = vmatpush2.msra.mxu0 0.0
        %5967 = vmatprep.subr.mxu0 0.0
        %5968 = vmatpush2.msra.mxu0 0.0
        %5969 = vmatprep.subr.mxu0 0.0
        %5970 = vmatpush2.msra.mxu0 0.0
        %5971 = vmatprep.subr.mxu0 0.0
        %5972 = vmatpush2.msra.mxu0 0.0
        %5973 = vmatprep.subr.mxu0 0.0
        %5974 = vmatpush2.msra.mxu0 0.0
        %5975 = vmatprep.subr.mxu0 0.0
        %5976 = vmatpush2.msra.mxu0 0.0
        %5977 = vmatprep.subr.mxu0 0.0
        %5978 = vmatpush2.msra.mxu0 0.0
        %5979 = vmatprep.subr.mxu0 0.0
        %5980 = vmatpush2.msra.mxu0 0.0
        %5981 = vmatprep.subr.mxu0 0.0
        %5982 = vmatpush2.msra.mxu0 0.0
        %5983 = vmatprep.subr.mxu0 0.0
        %5984 = vmatpush2.msra.mxu0 0.0
        %5985 = vmatprep.subr.mxu0 0.0
        %5986 = vmatpush2.msra.mxu0 0.0
        %5987 = vmatprep.subr.mxu0 0.0
        %5988 = vmatpush2.msra.mxu0 0.0
        %5989 = vmatprep.subr.mxu0 0.0
        %5990 = vmatpush2.msra.mxu0 0.0
        %5991 = vmatprep.subr.mxu0 0.0
        %5992 = vmatpush2.msra.mxu0 0.0
        %5993 = vmatprep.subr.mxu0 0.0
        %5994 = vmatpush2.msra.mxu0 0.0
        %5995 = vmatprep.mubr.f32.mxu0 0.0
        %v5996 = vand.u32 %v2438, 4294901760
        %v5997 = vsub.f32 %v2438, %v5996
        %v5998 = vand.u32 %v5997, 4294901760
        %5999 = vmatmul.mubr.f32.gmra.mxu0 %v5998
        %v6000 = vpop.f32.mrf.mxu0
        %v6001 = vadd.f32 %v5905, %v6000
        %v6002 = vpop.f32.mrf.mxu0
        %6003 = vmatprep.mubr.f32.mxu0 0.0
        %v6004 = vand.u32 %v2444, 4294901760
        %v6005 = vsub.f32 %v2444, %v6004
        %v6006 = vand.u32 %v6005, 4294901760
        %6007 = vmatmul.mubr.f32.gmra.mxu0 %v6006
        %v6008 = vpop.f32.mrf.mxu0
        %v6009 = vadd.f32 %v5912, %v6008
        %v6010 = vpop.f32.mrf.mxu0
        %6011 = vdwg.mxu0
        %6012 = vmatprep.subr.mxu0 0.0
        %v6013 = vand.u32 %v3004, 4294901760
        %v6014 = vsub.f32 %v3004, %v6013
        %v6015 = vand.u32 %v6014, 4294901760
        %6016 = vmatpush1.msra.mxu0 %v6015
        %6017 = vmatprep.subr.mxu0 0.0
        %v6018 = vand.u32 %v3001, 4294901760
        %v6019 = vsub.f32 %v3001, %v6018
        %v6020 = vand.u32 %v6019, 4294901760
        %6021 = vmatpush1.msra.mxu0 %v6020
        %6022 = vmatprep.subr.mxu0 0.0
        %v6023 = vand.u32 %v2998, 4294901760
        %v6024 = vsub.f32 %v2998, %v6023
        %v6025 = vand.u32 %v6024, 4294901760
        %6026 = vmatpush1.msra.mxu0 %v6025
        %6027 = vmatprep.subr.mxu0 0.0
        %v6028 = vand.u32 %v2995, 4294901760
        %v6029 = vsub.f32 %v2995, %v6028
        %v6030 = vand.u32 %v6029, 4294901760
        %6031 = vmatpush1.msra.mxu0 %v6030
        %6032 = vmatprep.subr.mxu0 0.0
        %v6033 = vand.u32 %v2992, 4294901760
        %v6034 = vsub.f32 %v2992, %v6033
        %v6035 = vand.u32 %v6034, 4294901760
        %6036 = vmatpush1.msra.mxu0 %v6035
        %6037 = vmatprep.subr.mxu0 0.0
        %v6038 = vand.u32 %v2989, 4294901760
        %v6039 = vsub.f32 %v2989, %v6038
        %v6040 = vand.u32 %v6039, 4294901760
        %6041 = vmatpush1.msra.mxu0 %v6040
        %6042 = vmatprep.subr.mxu0 0.0
        %v6043 = vand.u32 %v2986, 4294901760
        %v6044 = vsub.f32 %v2986, %v6043
        %v6045 = vand.u32 %v6044, 4294901760
        %6046 = vmatpush1.msra.mxu0 %v6045
        %6047 = vmatprep.subr.mxu0 0.0
        %v6048 = vand.u32 %v2983, 4294901760
        %v6049 = vsub.f32 %v2983, %v6048
        %v6050 = vand.u32 %v6049, 4294901760
        %6051 = vmatpush1.msra.mxu0 %v6050
        %6052 = vmatprep.subr.mxu0 0.0
        %v6053 = vand.u32 %v2980, 4294901760
        %v6054 = vsub.f32 %v2980, %v6053
        %v6055 = vand.u32 %v6054, 4294901760
        %6056 = vmatpush1.msra.mxu0 %v6055
        %6057 = vmatprep.subr.mxu0 0.0
        %v6058 = vand.u32 %v2977, 4294901760
        %v6059 = vsub.f32 %v2977, %v6058
        %v6060 = vand.u32 %v6059, 4294901760
        %6061 = vmatpush1.msra.mxu0 %v6060
        %6062 = vmatprep.subr.mxu0 0.0
        %v6063 = vand.u32 %v2974, 4294901760
        %v6064 = vsub.f32 %v2974, %v6063
        %v6065 = vand.u32 %v6064, 4294901760
        %6066 = vmatpush1.msra.mxu0 %v6065
        %6067 = vmatprep.subr.mxu0 0.0
        %v6068 = vand.u32 %v2971, 4294901760
        %v6069 = vsub.f32 %v2971, %v6068
        %v6070 = vand.u32 %v6069, 4294901760
        %6071 = vmatpush1.msra.mxu0 %v6070
        %6072 = vmatprep.subr.mxu0 0.0
        %v6073 = vand.u32 %v2968, 4294901760
        %v6074 = vsub.f32 %v2968, %v6073
        %v6075 = vand.u32 %v6074, 4294901760
        %6076 = vmatpush1.msra.mxu0 %v6075
        %6077 = vmatprep.subr.mxu0 0.0
        %v6078 = vand.u32 %v2965, 4294901760
        %v6079 = vsub.f32 %v2965, %v6078
        %v6080 = vand.u32 %v6079, 4294901760
        %6081 = vmatpush1.msra.mxu0 %v6080
        %6082 = vmatprep.subr.mxu0 0.0
        %v6083 = vand.u32 %v2962, 4294901760
        %v6084 = vsub.f32 %v2962, %v6083
        %v6085 = vand.u32 %v6084, 4294901760
        %6086 = vmatpush1.msra.mxu0 %v6085
        %6087 = vmatprep.subr.mxu0 0.0
        %v6088 = vand.u32 %v2959, 4294901760
        %v6089 = vsub.f32 %v2959, %v6088
        %v6090 = vand.u32 %v6089, 4294901760
        %6091 = vmatpush1.msra.mxu0 %v6090
        %6092 = vmatprep.subr.mxu0 0.0
        %6093 = vmatpush2.msra.mxu0 0.0
        %6094 = vmatprep.subr.mxu0 0.0
        %6095 = vmatpush2.msra.mxu0 0.0
        %6096 = vmatprep.subr.mxu0 0.0
        %6097 = vmatpush2.msra.mxu0 0.0
        %6098 = vmatprep.subr.mxu0 0.0
        %6099 = vmatpush2.msra.mxu0 0.0
        %6100 = vmatprep.subr.mxu0 0.0
        %6101 = vmatpush2.msra.mxu0 0.0
        %6102 = vmatprep.subr.mxu0 0.0
        %6103 = vmatpush2.msra.mxu0 0.0
        %6104 = vmatprep.subr.mxu0 0.0
        %6105 = vmatpush2.msra.mxu0 0.0
        %6106 = vmatprep.subr.mxu0 0.0
        %6107 = vmatpush2.msra.mxu0 0.0
        %6108 = vmatprep.subr.mxu0 0.0
        %6109 = vmatpush2.msra.mxu0 0.0
        %6110 = vmatprep.subr.mxu0 0.0
        %6111 = vmatpush2.msra.mxu0 0.0
        %6112 = vmatprep.subr.mxu0 0.0
        %6113 = vmatpush2.msra.mxu0 0.0
        %6114 = vmatprep.subr.mxu0 0.0
        %6115 = vmatpush2.msra.mxu0 0.0
        %6116 = vmatprep.subr.mxu0 0.0
        %6117 = vmatpush2.msra.mxu0 0.0
        %6118 = vmatprep.subr.mxu0 0.0
        %6119 = vmatpush2.msra.mxu0 0.0
        %6120 = vmatprep.subr.mxu0 0.0
        %6121 = vmatpush2.msra.mxu0 0.0
        %6122 = vmatprep.subr.mxu0 0.0
        %6123 = vmatpush2.msra.mxu0 0.0
        %6124 = vmatprep.mubr.f32.mxu0 0.0
        %v6125 = vand.u32 %v2438, 4294901760
        %6126 = vmatmul.mubr.f32.gmra.mxu0 %v6125
        %v6127 = vpop.f32.mrf.mxu0
        %v6128 = vadd.f32 %v6001, %v6127
        %v6129 = vpop.f32.mrf.mxu0
        %6130 = vmatprep.mubr.f32.mxu0 0.0
        %v6131 = vand.u32 %v2444, 4294901760
        %6132 = vmatmul.mubr.f32.gmra.mxu0 %v6131
        %v6133 = vpop.f32.mrf.mxu0
        %v6134 = vadd.f32 %v6009, %v6133
        %v6135 = vpop.f32.mrf.mxu0
        %6136 = vdwg.mxu0
        %6137 = vmatprep.subr.mxu0 0.0
        %v6138 = vand.u32 %v3004, 4294901760
        %6139 = vmatpush1.msra.mxu0 %v6138
        %6140 = vmatprep.subr.mxu0 0.0
        %v6141 = vand.u32 %v3001, 4294901760
        %6142 = vmatpush1.msra.mxu0 %v6141
        %6143 = vmatprep.subr.mxu0 0.0
        %v6144 = vand.u32 %v2998, 4294901760
        %6145 = vmatpush1.msra.mxu0 %v6144
        %6146 = vmatprep.subr.mxu0 0.0
        %v6147 = vand.u32 %v2995, 4294901760
        %6148 = vmatpush1.msra.mxu0 %v6147
        %6149 = vmatprep.subr.mxu0 0.0
        %v6150 = vand.u32 %v2992, 4294901760
        %6151 = vmatpush1.msra.mxu0 %v6150
        %6152 = vmatprep.subr.mxu0 0.0
        %v6153 = vand.u32 %v2989, 4294901760
        %6154 = vmatpush1.msra.mxu0 %v6153
        %6155 = vmatprep.subr.mxu0 0.0
        %v6156 = vand.u32 %v2986, 4294901760
        %6157 = vmatpush1.msra.mxu0 %v6156
        %6158 = vmatprep.subr.mxu0 0.0
        %v6159 = vand.u32 %v2983, 4294901760
        %6160 = vmatpush1.msra.mxu0 %v6159
        %6161 = vmatprep.subr.mxu0 0.0
        %v6162 = vand.u32 %v2980, 4294901760
        %6163 = vmatpush1.msra.mxu0 %v6162
        %6164 = vmatprep.subr.mxu0 0.0
        %v6165 = vand.u32 %v2977, 4294901760
        %6166 = vmatpush1.msra.mxu0 %v6165
        %6167 = vmatprep.subr.mxu0 0.0
        %v6168 = vand.u32 %v2974, 4294901760
        %6169 = vmatpush1.msra.mxu0 %v6168
        %6170 = vmatprep.subr.mxu0 0.0
        %v6171 = vand.u32 %v2971, 4294901760
        %6172 = vmatpush1.msra.mxu0 %v6171
        %6173 = vmatprep.subr.mxu0 0.0
        %v6174 = vand.u32 %v2968, 4294901760
        %6175 = vmatpush1.msra.mxu0 %v6174
        %6176 = vmatprep.subr.mxu0 0.0
        %v6177 = vand.u32 %v2965, 4294901760
        %6178 = vmatpush1.msra.mxu0 %v6177
        %6179 = vmatprep.subr.mxu0 0.0
        %v6180 = vand.u32 %v2962, 4294901760
        %6181 = vmatpush1.msra.mxu0 %v6180
        %6182 = vmatprep.subr.mxu0 0.0
        %v6183 = vand.u32 %v2959, 4294901760
        %6184 = vmatpush1.msra.mxu0 %v6183
        %6185 = vmatprep.subr.mxu0 0.0
        %6186 = vmatpush2.msra.mxu0 0.0
        %6187 = vmatprep.subr.mxu0 0.0
        %6188 = vmatpush2.msra.mxu0 0.0
        %6189 = vmatprep.subr.mxu0 0.0
        %6190 = vmatpush2.msra.mxu0 0.0
        %6191 = vmatprep.subr.mxu0 0.0
        %6192 = vmatpush2.msra.mxu0 0.0
        %6193 = vmatprep.subr.mxu0 0.0
        %6194 = vmatpush2.msra.mxu0 0.0
        %6195 = vmatprep.subr.mxu0 0.0
        %6196 = vmatpush2.msra.mxu0 0.0
        %6197 = vmatprep.subr.mxu0 0.0
        %6198 = vmatpush2.msra.mxu0 0.0
        %6199 = vmatprep.subr.mxu0 0.0
        %6200 = vmatpush2.msra.mxu0 0.0
        %6201 = vmatprep.subr.mxu0 0.0
        %6202 = vmatpush2.msra.mxu0 0.0
        %6203 = vmatprep.subr.mxu0 0.0
        %6204 = vmatpush2.msra.mxu0 0.0
        %6205 = vmatprep.subr.mxu0 0.0
        %6206 = vmatpush2.msra.mxu0 0.0
        %6207 = vmatprep.subr.mxu0 0.0
        %6208 = vmatpush2.msra.mxu0 0.0
        %6209 = vmatprep.subr.mxu0 0.0
        %6210 = vmatpush2.msra.mxu0 0.0
        %6211 = vmatprep.subr.mxu0 0.0
        %6212 = vmatpush2.msra.mxu0 0.0
        %6213 = vmatprep.subr.mxu0 0.0
        %6214 = vmatpush2.msra.mxu0 0.0
        %6215 = vmatprep.subr.mxu0 0.0
        %6216 = vmatpush2.msra.mxu0 0.0
        %6217 = vmatprep.mubr.f32.mxu0 0.0
        %v6218 = vand.u32 %v2438, 4294901760
        %6219 = vmatmul.mubr.f32.gmra.mxu0 %v6218
        %v6220 = vpop.f32.mrf.mxu0
        %v6221 = vadd.f32 %v6128, %v6220
        %v6222 = vpop.f32.mrf.mxu0
        %6223 = vmatprep.mubr.f32.mxu0 0.0
        %v6224 = vand.u32 %v2444, 4294901760
        %6225 = vmatmul.mubr.f32.gmra.mxu0 %v6224
        %v6226 = vpop.f32.mrf.mxu0
        %v6227 = vadd.f32 %v6134, %v6226
        %v6228 = vpop.f32.mrf.mxu0
        %6229 = vdwg.mxu0
        %v6231 = vlaneseq
        %v6232 = vshrl.u32 %v6231, 7
        %v6233 = vsub.s32 0, %v6232
        %v6234 = vrot.slane %v526, %v6233
        %v6235 = vlaneseq
        %v6236 = vshrl.u32 %v6235, 7
        %v6237 = vsub.s32 2, %v6236
        %v6238 = vrot.slane %v526, %v6237
        %v6239 = vlaneseq
        %v6240 = vshrl.u32 %v6239, 7
        %v6241 = vsub.s32 4, %v6240
        %v6242 = vrot.slane %v526, %v6241
        %v6246 = vlaneseq
        %v6247 = vshrl.u32 %v6246, 7
        %v6248 = vsub.s32 0, %v6247
        %v6249 = vrot.slane %v6234, %v6248
        %v6250 = vlaneseq
        %v6251 = vshrl.u32 %v6250, 7
        %v6252 = vsub.s32 0, %v6251
        %v6253 = vrot.slane %v6238, %v6252
        %v6254 = vlaneseq
        %v6255 = vshrl.u32 %v6254, 7
        %v6256 = vsub.s32 0, %v6255
        %v6257 = vrot.slane %v6242, %v6256
        %v6258 = vadd.f32 %v5535, %v6249
        %v6259 = vadd.f32 %v5537, %v6253
        %v6260 = vadd.f32 %v6221, %v6257
        %v6261 = vadd.f32 %v5542, %v6249
        %v6262 = vadd.f32 %v5544, %v6253
        %v6263 = vadd.f32 %v6227, %v6257
        %s6264 = scalar_lea.vmem %s444, 768 [#allocation10]
        %v6265 = vld [vmem:[%s6264] sm:$0xff]
        %v6266 = vld [vmem:[%s6264 + $0x8] sm:$0xff]
        %v6267 = vld [vmem:[%s6264 + $0x10] sm:$0xff]
        %v6268 = vld [vmem:[%s6264 + $0x18] sm:$0xff]
        %v6269 = vld [vmem:[%s6264 + $0x20] sm:$0xff]
        %v6270 = vld [vmem:[%s6264 + $0x28] sm:$0xff]
        %v6271 = vld [vmem:[%s6264 + $0x30] sm:$0xff]
        %v6272 = vld [vmem:[%s6264 + $0x38] sm:$0xff]
        %v6273 = vld [vmem:[%s6264 + $0x40] sm:$0xff]
        %v6274 = vld [vmem:[%s6264 + $0x48] sm:$0xff]
        %v6275 = vld [vmem:[%s6264 + $0x50] sm:$0xff]
        %v6276 = vld [vmem:[%s6264 + $0x58] sm:$0xff]
        %v6277 = vld [vmem:[%s6264 + $0x60] sm:$0xff]
        %v6278 = vld [vmem:[%s6264 + $0x68] sm:$0xff]
        %v6279 = vld [vmem:[%s6264 + $0x70] sm:$0xff]
        %v6280 = vld [vmem:[%s6264 + $0x78] sm:$0xff]
        %v6281 = vld [vmem:[%s6264 + $0x80] sm:$0xff]
        %v6282 = vld [vmem:[%s6264 + $0x88] sm:$0xff]
        %v6283 = vld [vmem:[%s6264 + $0x90] sm:$0xff]
        %v6284 = vld [vmem:[%s6264 + $0x98] sm:$0xff]
        %v6285 = vld [vmem:[%s6264 + $0xa0] sm:$0xff]
        %v6286 = vld [vmem:[%s6264 + $0xa8] sm:$0xff]
        %v6287 = vld [vmem:[%s6264 + $0xb0] sm:$0xff]
        %v6288 = vld [vmem:[%s6264 + $0xb8] sm:$0xff]
        %v6289 = vld [vmem:[%s6264 + $0xc0] sm:$0xff]
        %v6290 = vld [vmem:[%s6264 + $0xc8] sm:$0xff]
        %v6291 = vld [vmem:[%s6264 + $0xd0] sm:$0xff]
        %v6292 = vld [vmem:[%s6264 + $0xd8] sm:$0xff]
        %v6293 = vld [vmem:[%s6264 + $0xe0] sm:$0xff]
        %v6294 = vld [vmem:[%s6264 + $0xe8] sm:$0xff]
        %v6295 = vld [vmem:[%s6264 + $0xf0] sm:$0xff]
        %v6296 = vld [vmem:[%s6264 + $0xf8] sm:$0xff]
        %v6297 = vld [vmem:[%s6264 + $0x100] sm:$0xff]
        %v6298 = vld [vmem:[%s6264 + $0x108] sm:$0xff]
        %v6299 = vld [vmem:[%s6264 + $0x110] sm:$0xff]
        %v6300 = vld [vmem:[%s6264 + $0x118] sm:$0xff]
        %v6301 = vld [vmem:[%s6264 + $0x120] sm:$0xff]
        %v6302 = vld [vmem:[%s6264 + $0x128] sm:$0xff]
        %v6303 = vld [vmem:[%s6264 + $0x130] sm:$0xff]
        %v6304 = vld [vmem:[%s6264 + $0x138] sm:$0xff]
        %v6305 = vld [vmem:[%s6264 + $0x140] sm:$0xff]
        %v6306 = vld [vmem:[%s6264 + $0x148] sm:$0xff]
        %v6307 = vld [vmem:[%s6264 + $0x150] sm:$0xff]
        %v6308 = vld [vmem:[%s6264 + $0x158] sm:$0xff]
        %v6309 = vld [vmem:[%s6264 + $0x160] sm:$0xff]
        %v6310 = vld [vmem:[%s6264 + $0x168] sm:$0xff]
        %v6311 = vld [vmem:[%s6264 + $0x170] sm:$0xff]
        %v6312 = vld [vmem:[%s6264 + $0x178] sm:$0xff]
        %v6313 = vlaneseq
        %v6314 = vshrl.u32 %v6313, 7
        %v6315 = vsub.s32 1, %v6314
        %v6316 = vrot.slane %v526, %v6315
        %v6317 = vlaneseq
        %v6318 = vshrl.u32 %v6317, 7
        %v6319 = vsub.s32 3, %v6318
        %v6320 = vrot.slane %v526, %v6319
        %v6321 = vlaneseq
        %v6322 = vshrl.u32 %v6321, 7
        %v6323 = vsub.s32 5, %v6322
        %v6324 = vrot.slane %v526, %v6323
        %v6328 = vlaneseq
        %v6329 = vshrl.u32 %v6328, 7
        %v6330 = vsub.s32 1, %v6329
        %v6331 = vrot.slane %v6316, %v6330
        %v6332 = vlaneseq
        %v6333 = vshrl.u32 %v6332, 7
        %v6334 = vsub.s32 1, %v6333
        %v6335 = vrot.slane %v6320, %v6334
        %v6336 = vlaneseq
        %v6337 = vshrl.u32 %v6336, 7
        %v6338 = vsub.s32 1, %v6337
        %v6339 = vrot.slane %v6324, %v6338
        %v6340 = vand.u32 %v6311, 4294901760
        %6341 = vmatprep.subr.mxu0 %v6340
        %v6342 = vand.u32 %v6310, 4294901760
        %6343 = vmatpush1.msra.mxu0 %v6342
        %v6344 = vand.u32 %v6308, 4294901760
        %6345 = vmatprep.subr.mxu0 %v6344
        %v6346 = vand.u32 %v6307, 4294901760
        %6347 = vmatpush1.msra.mxu0 %v6346
        %v6348 = vand.u32 %v6305, 4294901760
        %6349 = vmatprep.subr.mxu0 %v6348
        %v6350 = vand.u32 %v6304, 4294901760
        %6351 = vmatpush1.msra.mxu0 %v6350
        %v6352 = vand.u32 %v6302, 4294901760
        %6353 = vmatprep.subr.mxu0 %v6352
        %v6354 = vand.u32 %v6301, 4294901760
        %6355 = vmatpush1.msra.mxu0 %v6354
        %v6356 = vand.u32 %v6299, 4294901760
        %6357 = vmatprep.subr.mxu0 %v6356
        %v6358 = vand.u32 %v6298, 4294901760
        %6359 = vmatpush1.msra.mxu0 %v6358
        %v6360 = vand.u32 %v6296, 4294901760
        %6361 = vmatprep.subr.mxu0 %v6360
        %v6362 = vand.u32 %v6295, 4294901760
        %6363 = vmatpush1.msra.mxu0 %v6362
        %v6364 = vand.u32 %v6293, 4294901760
        %6365 = vmatprep.subr.mxu0 %v6364
        %v6366 = vand.u32 %v6292, 4294901760
        %6367 = vmatpush1.msra.mxu0 %v6366
        %v6368 = vand.u32 %v6290, 4294901760
        %6369 = vmatprep.subr.mxu0 %v6368
        %v6370 = vand.u32 %v6289, 4294901760
        %6371 = vmatpush1.msra.mxu0 %v6370
        %v6372 = vand.u32 %v6287, 4294901760
        %6373 = vmatprep.subr.mxu0 %v6372
        %v6374 = vand.u32 %v6286, 4294901760
        %6375 = vmatpush1.msra.mxu0 %v6374
        %v6376 = vand.u32 %v6284, 4294901760
        %6377 = vmatprep.subr.mxu0 %v6376
        %v6378 = vand.u32 %v6283, 4294901760
        %6379 = vmatpush1.msra.mxu0 %v6378
        %v6380 = vand.u32 %v6281, 4294901760
        %6381 = vmatprep.subr.mxu0 %v6380
        %v6382 = vand.u32 %v6280, 4294901760
        %6383 = vmatpush1.msra.mxu0 %v6382
        %v6384 = vand.u32 %v6278, 4294901760
        %6385 = vmatprep.subr.mxu0 %v6384
        %v6386 = vand.u32 %v6277, 4294901760
        %6387 = vmatpush1.msra.mxu0 %v6386
        %v6388 = vand.u32 %v6275, 4294901760
        %6389 = vmatprep.subr.mxu0 %v6388
        %v6390 = vand.u32 %v6274, 4294901760
        %6391 = vmatpush1.msra.mxu0 %v6390
        %v6392 = vand.u32 %v6272, 4294901760
        %6393 = vmatprep.subr.mxu0 %v6392
        %v6394 = vand.u32 %v6271, 4294901760
        %6395 = vmatpush1.msra.mxu0 %v6394
        %v6396 = vand.u32 %v6269, 4294901760
        %6397 = vmatprep.subr.mxu0 %v6396
        %v6398 = vand.u32 %v6268, 4294901760
        %6399 = vmatpush1.msra.mxu0 %v6398
        %v6400 = vand.u32 %v6266, 4294901760
        %6401 = vmatprep.subr.mxu0 %v6400
        %v6402 = vand.u32 %v6265, 4294901760
        %6403 = vmatpush1.msra.mxu0 %v6402
        %6404 = vmatprep.subr.mxu0 0.0
        %6405 = vmatpush2.msra.mxu0 0.0
        %6406 = vmatprep.subr.mxu0 0.0
        %6407 = vmatpush2.msra.mxu0 0.0
        %6408 = vmatprep.subr.mxu0 0.0
        %6409 = vmatpush2.msra.mxu0 0.0
        %6410 = vmatprep.subr.mxu0 0.0
        %6411 = vmatpush2.msra.mxu0 0.0
        %6412 = vmatprep.subr.mxu0 0.0
        %6413 = vmatpush2.msra.mxu0 0.0
        %6414 = vmatprep.subr.mxu0 0.0
        %6415 = vmatpush2.msra.mxu0 0.0
        %6416 = vmatprep.subr.mxu0 0.0
        %6417 = vmatpush2.msra.mxu0 0.0
        %6418 = vmatprep.subr.mxu0 0.0
        %6419 = vmatpush2.msra.mxu0 0.0
        %6420 = vmatprep.subr.mxu0 0.0
        %6421 = vmatpush2.msra.mxu0 0.0
        %6422 = vmatprep.subr.mxu0 0.0
        %6423 = vmatpush2.msra.mxu0 0.0
        %6424 = vmatprep.subr.mxu0 0.0
        %6425 = vmatpush2.msra.mxu0 0.0
        %6426 = vmatprep.subr.mxu0 0.0
        %6427 = vmatpush2.msra.mxu0 0.0
        %6428 = vmatprep.subr.mxu0 0.0
        %6429 = vmatpush2.msra.mxu0 0.0
        %6430 = vmatprep.subr.mxu0 0.0
        %6431 = vmatpush2.msra.mxu0 0.0
        %6432 = vmatprep.subr.mxu0 0.0
        %6433 = vmatpush2.msra.mxu0 0.0
        %6434 = vmatprep.subr.mxu0 0.0
        %6435 = vmatpush2.msra.mxu0 0.0
        %6436 = vmatprep.mubr.f32.mxu0 0.0
        %v6437 = vand.u32 %v523, 4294901760
        %v6438 = vsub.f32 %v523, %v6437
        %v6439 = vand.u32 %v6438, 4294901760
        %v6440 = vsub.f32 %v6438, %v6439
        %v6441 = vand.u32 %v6440, 4294901760
        %6442 = vmatmul.mubr.f32.gmra.mxu0 %v6441
        %v6443 = vpop.f32.mrf.mxu0
        %v6444 = vadd.f32 %v6331, %v6443
        %v6445 = vpop.f32.mrf.mxu0
        %v6446 = vadd.f32 %v6335, %v6445
        %6447 = vmatprep.mubr.f32.mxu0 0.0
        %v6448 = vand.u32 %v524, 4294901760
        %v6449 = vsub.f32 %v524, %v6448
        %v6450 = vand.u32 %v6449, 4294901760
        %v6451 = vsub.f32 %v6449, %v6450
        %v6452 = vand.u32 %v6451, 4294901760
        %6453 = vmatmul.mubr.f32.gmra.mxu0 %v6452
        %v6454 = vpop.f32.mrf.mxu0
        %v6455 = vadd.f32 %v6331, %v6454
        %v6456 = vpop.f32.mrf.mxu0
        %v6457 = vadd.f32 %v6335, %v6456
        %6458 = vdwg.mxu0
        %v6459 = vand.u32 %v6311, 4294901760
        %v6460 = vsub.f32 %v6311, %v6459
        %v6461 = vand.u32 %v6460, 4294901760
        %v6462 = vsub.f32 %v6460, %v6461
        %v6463 = vand.u32 %v6462, 4294901760
        %6464 = vmatprep.subr.mxu0 %v6463
        %v6465 = vand.u32 %v6310, 4294901760
        %v6466 = vsub.f32 %v6310, %v6465
        %v6467 = vand.u32 %v6466, 4294901760
        %v6468 = vsub.f32 %v6466, %v6467
        %v6469 = vand.u32 %v6468, 4294901760
        %6470 = vmatpush1.msra.mxu0 %v6469
        %v6471 = vand.u32 %v6308, 4294901760
        %v6472 = vsub.f32 %v6308, %v6471
        %v6473 = vand.u32 %v6472, 4294901760
        %v6474 = vsub.f32 %v6472, %v6473
        %v6475 = vand.u32 %v6474, 4294901760
        %6476 = vmatprep.subr.mxu0 %v6475
        %v6477 = vand.u32 %v6307, 4294901760
        %v6478 = vsub.f32 %v6307, %v6477
        %v6479 = vand.u32 %v6478, 4294901760
        %v6480 = vsub.f32 %v6478, %v6479
        %v6481 = vand.u32 %v6480, 4294901760
        %6482 = vmatpush1.msra.mxu0 %v6481
        %v6483 = vand.u32 %v6305, 4294901760
        %v6484 = vsub.f32 %v6305, %v6483
        %v6485 = vand.u32 %v6484, 4294901760
        %v6486 = vsub.f32 %v6484, %v6485
        %v6487 = vand.u32 %v6486, 4294901760
        %6488 = vmatprep.subr.mxu0 %v6487
        %v6489 = vand.u32 %v6304, 4294901760
        %v6490 = vsub.f32 %v6304, %v6489
        %v6491 = vand.u32 %v6490, 4294901760
        %v6492 = vsub.f32 %v6490, %v6491
        %v6493 = vand.u32 %v6492, 4294901760
        %6494 = vmatpush1.msra.mxu0 %v6493
        %v6495 = vand.u32 %v6302, 4294901760
        %v6496 = vsub.f32 %v6302, %v6495
        %v6497 = vand.u32 %v6496, 4294901760
        %v6498 = vsub.f32 %v6496, %v6497
        %v6499 = vand.u32 %v6498, 4294901760
        %6500 = vmatprep.subr.mxu0 %v6499
        %v6501 = vand.u32 %v6301, 4294901760
        %v6502 = vsub.f32 %v6301, %v6501
        %v6503 = vand.u32 %v6502, 4294901760
        %v6504 = vsub.f32 %v6502, %v6503
        %v6505 = vand.u32 %v6504, 4294901760
        %6506 = vmatpush1.msra.mxu0 %v6505
        %v6507 = vand.u32 %v6299, 4294901760
        %v6508 = vsub.f32 %v6299, %v6507
        %v6509 = vand.u32 %v6508, 4294901760
        %v6510 = vsub.f32 %v6508, %v6509
        %v6511 = vand.u32 %v6510, 4294901760
        %6512 = vmatprep.subr.mxu0 %v6511
        %v6513 = vand.u32 %v6298, 4294901760
        %v6514 = vsub.f32 %v6298, %v6513
        %v6515 = vand.u32 %v6514, 4294901760
        %v6516 = vsub.f32 %v6514, %v6515
        %v6517 = vand.u32 %v6516, 4294901760
        %6518 = vmatpush1.msra.mxu0 %v6517
        %v6519 = vand.u32 %v6296, 4294901760
        %v6520 = vsub.f32 %v6296, %v6519
        %v6521 = vand.u32 %v6520, 4294901760
        %v6522 = vsub.f32 %v6520, %v6521
        %v6523 = vand.u32 %v6522, 4294901760
        %6524 = vmatprep.subr.mxu0 %v6523
        %v6525 = vand.u32 %v6295, 4294901760
        %v6526 = vsub.f32 %v6295, %v6525
        %v6527 = vand.u32 %v6526, 4294901760
        %v6528 = vsub.f32 %v6526, %v6527
        %v6529 = vand.u32 %v6528, 4294901760
        %6530 = vmatpush1.msra.mxu0 %v6529
        %v6531 = vand.u32 %v6293, 4294901760
        %v6532 = vsub.f32 %v6293, %v6531
        %v6533 = vand.u32 %v6532, 4294901760
        %v6534 = vsub.f32 %v6532, %v6533
        %v6535 = vand.u32 %v6534, 4294901760
        %6536 = vmatprep.subr.mxu0 %v6535
        %v6537 = vand.u32 %v6292, 4294901760
        %v6538 = vsub.f32 %v6292, %v6537
        %v6539 = vand.u32 %v6538, 4294901760
        %v6540 = vsub.f32 %v6538, %v6539
        %v6541 = vand.u32 %v6540, 4294901760
        %6542 = vmatpush1.msra.mxu0 %v6541
        %v6543 = vand.u32 %v6290, 4294901760
        %v6544 = vsub.f32 %v6290, %v6543
        %v6545 = vand.u32 %v6544, 4294901760
        %v6546 = vsub.f32 %v6544, %v6545
        %v6547 = vand.u32 %v6546, 4294901760
        %6548 = vmatprep.subr.mxu0 %v6547
        %v6549 = vand.u32 %v6289, 4294901760
        %v6550 = vsub.f32 %v6289, %v6549
        %v6551 = vand.u32 %v6550, 4294901760
        %v6552 = vsub.f32 %v6550, %v6551
        %v6553 = vand.u32 %v6552, 4294901760
        %6554 = vmatpush1.msra.mxu0 %v6553
        %v6555 = vand.u32 %v6287, 4294901760
        %v6556 = vsub.f32 %v6287, %v6555
        %v6557 = vand.u32 %v6556, 4294901760
        %v6558 = vsub.f32 %v6556, %v6557
        %v6559 = vand.u32 %v6558, 4294901760
        %6560 = vmatprep.subr.mxu0 %v6559
        %v6561 = vand.u32 %v6286, 4294901760
        %v6562 = vsub.f32 %v6286, %v6561
        %v6563 = vand.u32 %v6562, 4294901760
        %v6564 = vsub.f32 %v6562, %v6563
        %v6565 = vand.u32 %v6564, 4294901760
        %6566 = vmatpush1.msra.mxu0 %v6565
        %v6567 = vand.u32 %v6284, 4294901760
        %v6568 = vsub.f32 %v6284, %v6567
        %v6569 = vand.u32 %v6568, 4294901760
        %v6570 = vsub.f32 %v6568, %v6569
        %v6571 = vand.u32 %v6570, 4294901760
        %6572 = vmatprep.subr.mxu0 %v6571
        %v6573 = vand.u32 %v6283, 4294901760
        %v6574 = vsub.f32 %v6283, %v6573
        %v6575 = vand.u32 %v6574, 4294901760
        %v6576 = vsub.f32 %v6574, %v6575
        %v6577 = vand.u32 %v6576, 4294901760
        %6578 = vmatpush1.msra.mxu0 %v6577
        %v6579 = vand.u32 %v6281, 4294901760
        %v6580 = vsub.f32 %v6281, %v6579
        %v6581 = vand.u32 %v6580, 4294901760
        %v6582 = vsub.f32 %v6580, %v6581
        %v6583 = vand.u32 %v6582, 4294901760
        %6584 = vmatprep.subr.mxu0 %v6583
        %v6585 = vand.u32 %v6280, 4294901760
        %v6586 = vsub.f32 %v6280, %v6585
        %v6587 = vand.u32 %v6586, 4294901760
        %v6588 = vsub.f32 %v6586, %v6587
        %v6589 = vand.u32 %v6588, 4294901760
        %6590 = vmatpush1.msra.mxu0 %v6589
        %v6591 = vand.u32 %v6278, 4294901760
        %v6592 = vsub.f32 %v6278, %v6591
        %v6593 = vand.u32 %v6592, 4294901760
        %v6594 = vsub.f32 %v6592, %v6593
        %v6595 = vand.u32 %v6594, 4294901760
        %6596 = vmatprep.subr.mxu0 %v6595
        %v6597 = vand.u32 %v6277, 4294901760
        %v6598 = vsub.f32 %v6277, %v6597
        %v6599 = vand.u32 %v6598, 4294901760
        %v6600 = vsub.f32 %v6598, %v6599
        %v6601 = vand.u32 %v6600, 4294901760
        %6602 = vmatpush1.msra.mxu0 %v6601
        %v6603 = vand.u32 %v6275, 4294901760
        %v6604 = vsub.f32 %v6275, %v6603
        %v6605 = vand.u32 %v6604, 4294901760
        %v6606 = vsub.f32 %v6604, %v6605
        %v6607 = vand.u32 %v6606, 4294901760
        %6608 = vmatprep.subr.mxu0 %v6607
        %v6609 = vand.u32 %v6274, 4294901760
        %v6610 = vsub.f32 %v6274, %v6609
        %v6611 = vand.u32 %v6610, 4294901760
        %v6612 = vsub.f32 %v6610, %v6611
        %v6613 = vand.u32 %v6612, 4294901760
        %6614 = vmatpush1.msra.mxu0 %v6613
        %v6615 = vand.u32 %v6272, 4294901760
        %v6616 = vsub.f32 %v6272, %v6615
        %v6617 = vand.u32 %v6616, 4294901760
        %v6618 = vsub.f32 %v6616, %v6617
        %v6619 = vand.u32 %v6618, 4294901760
        %6620 = vmatprep.subr.mxu0 %v6619
        %v6621 = vand.u32 %v6271, 4294901760
        %v6622 = vsub.f32 %v6271, %v6621
        %v6623 = vand.u32 %v6622, 4294901760
        %v6624 = vsub.f32 %v6622, %v6623
        %v6625 = vand.u32 %v6624, 4294901760
        %6626 = vmatpush1.msra.mxu0 %v6625
        %v6627 = vand.u32 %v6269, 4294901760
        %v6628 = vsub.f32 %v6269, %v6627
        %v6629 = vand.u32 %v6628, 4294901760
        %v6630 = vsub.f32 %v6628, %v6629
        %v6631 = vand.u32 %v6630, 4294901760
        %6632 = vmatprep.subr.mxu0 %v6631
        %v6633 = vand.u32 %v6268, 4294901760
        %v6634 = vsub.f32 %v6268, %v6633
        %v6635 = vand.u32 %v6634, 4294901760
        %v6636 = vsub.f32 %v6634, %v6635
        %v6637 = vand.u32 %v6636, 4294901760
        %6638 = vmatpush1.msra.mxu0 %v6637
        %v6639 = vand.u32 %v6266, 4294901760
        %v6640 = vsub.f32 %v6266, %v6639
        %v6641 = vand.u32 %v6640, 4294901760
        %v6642 = vsub.f32 %v6640, %v6641
        %v6643 = vand.u32 %v6642, 4294901760
        %6644 = vmatprep.subr.mxu0 %v6643
        %v6645 = vand.u32 %v6265, 4294901760
        %v6646 = vsub.f32 %v6265, %v6645
        %v6647 = vand.u32 %v6646, 4294901760
        %v6648 = vsub.f32 %v6646, %v6647
        %v6649 = vand.u32 %v6648, 4294901760
        %6650 = vmatpush1.msra.mxu0 %v6649
        %6651 = vmatprep.subr.mxu0 0.0
        %6652 = vmatpush2.msra.mxu0 0.0
        %6653 = vmatprep.subr.mxu0 0.0
        %6654 = vmatpush2.msra.mxu0 0.0
        %6655 = vmatprep.subr.mxu0 0.0
        %6656 = vmatpush2.msra.mxu0 0.0
        %6657 = vmatprep.subr.mxu0 0.0
        %6658 = vmatpush2.msra.mxu0 0.0
        %6659 = vmatprep.subr.mxu0 0.0
        %6660 = vmatpush2.msra.mxu0 0.0
        %6661 = vmatprep.subr.mxu0 0.0
        %6662 = vmatpush2.msra.mxu0 0.0
        %6663 = vmatprep.subr.mxu0 0.0
        %6664 = vmatpush2.msra.mxu0 0.0
        %6665 = vmatprep.subr.mxu0 0.0
        %6666 = vmatpush2.msra.mxu0 0.0
        %6667 = vmatprep.subr.mxu0 0.0
        %6668 = vmatpush2.msra.mxu0 0.0
        %6669 = vmatprep.subr.mxu0 0.0
        %6670 = vmatpush2.msra.mxu0 0.0
        %6671 = vmatprep.subr.mxu0 0.0
        %6672 = vmatpush2.msra.mxu0 0.0
        %6673 = vmatprep.subr.mxu0 0.0
        %6674 = vmatpush2.msra.mxu0 0.0
        %6675 = vmatprep.subr.mxu0 0.0
        %6676 = vmatpush2.msra.mxu0 0.0
        %6677 = vmatprep.subr.mxu0 0.0
        %6678 = vmatpush2.msra.mxu0 0.0
        %6679 = vmatprep.subr.mxu0 0.0
        %6680 = vmatpush2.msra.mxu0 0.0
        %6681 = vmatprep.subr.mxu0 0.0
        %6682 = vmatpush2.msra.mxu0 0.0
        %6683 = vmatprep.mubr.f32.mxu0 0.0
        %v6684 = vand.u32 %v523, 4294901760
        %6685 = vmatmul.mubr.f32.gmra.mxu0 %v6684
        %v6686 = vpop.f32.mrf.mxu0
        %v6687 = vadd.f32 %v6444, %v6686
        %v6688 = vpop.f32.mrf.mxu0
        %v6689 = vadd.f32 %v6446, %v6688
        %6690 = vmatprep.mubr.f32.mxu0 0.0
        %v6691 = vand.u32 %v524, 4294901760
        %6692 = vmatmul.mubr.f32.gmra.mxu0 %v6691
        %v6693 = vpop.f32.mrf.mxu0
        %v6694 = vadd.f32 %v6455, %v6693
        %v6695 = vpop.f32.mrf.mxu0
        %v6696 = vadd.f32 %v6457, %v6695
        %6697 = vdwg.mxu0
        %v6698 = vand.u32 %v6311, 4294901760
        %v6699 = vsub.f32 %v6311, %v6698
        %6700 = vmatprep.subr.mxu0 %v6699
        %v6701 = vand.u32 %v6310, 4294901760
        %v6702 = vsub.f32 %v6310, %v6701
        %6703 = vmatpush1.msra.mxu0 %v6702
        %v6704 = vand.u32 %v6308, 4294901760
        %v6705 = vsub.f32 %v6308, %v6704
        %6706 = vmatprep.subr.mxu0 %v6705
        %v6707 = vand.u32 %v6307, 4294901760
        %v6708 = vsub.f32 %v6307, %v6707
        %6709 = vmatpush1.msra.mxu0 %v6708
        %v6710 = vand.u32 %v6305, 4294901760
        %v6711 = vsub.f32 %v6305, %v6710
        %6712 = vmatprep.subr.mxu0 %v6711
        %v6713 = vand.u32 %v6304, 4294901760
        %v6714 = vsub.f32 %v6304, %v6713
        %6715 = vmatpush1.msra.mxu0 %v6714
        %v6716 = vand.u32 %v6302, 4294901760
        %v6717 = vsub.f32 %v6302, %v6716
        %6718 = vmatprep.subr.mxu0 %v6717
        %v6719 = vand.u32 %v6301, 4294901760
        %v6720 = vsub.f32 %v6301, %v6719
        %6721 = vmatpush1.msra.mxu0 %v6720
        %v6722 = vand.u32 %v6299, 4294901760
        %v6723 = vsub.f32 %v6299, %v6722
        %6724 = vmatprep.subr.mxu0 %v6723
        %v6725 = vand.u32 %v6298, 4294901760
        %v6726 = vsub.f32 %v6298, %v6725
        %6727 = vmatpush1.msra.mxu0 %v6726
        %v6728 = vand.u32 %v6296, 4294901760
        %v6729 = vsub.f32 %v6296, %v6728
        %6730 = vmatprep.subr.mxu0 %v6729
        %v6731 = vand.u32 %v6295, 4294901760
        %v6732 = vsub.f32 %v6295, %v6731
        %6733 = vmatpush1.msra.mxu0 %v6732
        %v6734 = vand.u32 %v6293, 4294901760
        %v6735 = vsub.f32 %v6293, %v6734
        %6736 = vmatprep.subr.mxu0 %v6735
        %v6737 = vand.u32 %v6292, 4294901760
        %v6738 = vsub.f32 %v6292, %v6737
        %6739 = vmatpush1.msra.mxu0 %v6738
        %v6740 = vand.u32 %v6290, 4294901760
        %v6741 = vsub.f32 %v6290, %v6740
        %6742 = vmatprep.subr.mxu0 %v6741
        %v6743 = vand.u32 %v6289, 4294901760
        %v6744 = vsub.f32 %v6289, %v6743
        %6745 = vmatpush1.msra.mxu0 %v6744
        %v6746 = vand.u32 %v6287, 4294901760
        %v6747 = vsub.f32 %v6287, %v6746
        %6748 = vmatprep.subr.mxu0 %v6747
        %v6749 = vand.u32 %v6286, 4294901760
        %v6750 = vsub.f32 %v6286, %v6749
        %6751 = vmatpush1.msra.mxu0 %v6750
        %v6752 = vand.u32 %v6284, 4294901760
        %v6753 = vsub.f32 %v6284, %v6752
        %6754 = vmatprep.subr.mxu0 %v6753
        %v6755 = vand.u32 %v6283, 4294901760
        %v6756 = vsub.f32 %v6283, %v6755
        %6757 = vmatpush1.msra.mxu0 %v6756
        %v6758 = vand.u32 %v6281, 4294901760
        %v6759 = vsub.f32 %v6281, %v6758
        %6760 = vmatprep.subr.mxu0 %v6759
        %v6761 = vand.u32 %v6280, 4294901760
        %v6762 = vsub.f32 %v6280, %v6761
        %6763 = vmatpush1.msra.mxu0 %v6762
        %v6764 = vand.u32 %v6278, 4294901760
        %v6765 = vsub.f32 %v6278, %v6764
        %6766 = vmatprep.subr.mxu0 %v6765
        %v6767 = vand.u32 %v6277, 4294901760
        %v6768 = vsub.f32 %v6277, %v6767
        %6769 = vmatpush1.msra.mxu0 %v6768
        %v6770 = vand.u32 %v6275, 4294901760
        %v6771 = vsub.f32 %v6275, %v6770
        %6772 = vmatprep.subr.mxu0 %v6771
        %v6773 = vand.u32 %v6274, 4294901760
        %v6774 = vsub.f32 %v6274, %v6773
        %6775 = vmatpush1.msra.mxu0 %v6774
        %v6776 = vand.u32 %v6272, 4294901760
        %v6777 = vsub.f32 %v6272, %v6776
        %6778 = vmatprep.subr.mxu0 %v6777
        %v6779 = vand.u32 %v6271, 4294901760
        %v6780 = vsub.f32 %v6271, %v6779
        %6781 = vmatpush1.msra.mxu0 %v6780
        %v6782 = vand.u32 %v6269, 4294901760
        %v6783 = vsub.f32 %v6269, %v6782
        %6784 = vmatprep.subr.mxu0 %v6783
        %v6785 = vand.u32 %v6268, 4294901760
        %v6786 = vsub.f32 %v6268, %v6785
        %6787 = vmatpush1.msra.mxu0 %v6786
        %v6788 = vand.u32 %v6266, 4294901760
        %v6789 = vsub.f32 %v6266, %v6788
        %6790 = vmatprep.subr.mxu0 %v6789
        %v6791 = vand.u32 %v6265, 4294901760
        %v6792 = vsub.f32 %v6265, %v6791
        %6793 = vmatpush1.msra.mxu0 %v6792
        %6794 = vmatprep.subr.mxu0 0.0
        %6795 = vmatpush2.msra.mxu0 0.0
        %6796 = vmatprep.subr.mxu0 0.0
        %6797 = vmatpush2.msra.mxu0 0.0
        %6798 = vmatprep.subr.mxu0 0.0
        %6799 = vmatpush2.msra.mxu0 0.0
        %6800 = vmatprep.subr.mxu0 0.0
        %6801 = vmatpush2.msra.mxu0 0.0
        %6802 = vmatprep.subr.mxu0 0.0
        %6803 = vmatpush2.msra.mxu0 0.0
        %6804 = vmatprep.subr.mxu0 0.0
        %6805 = vmatpush2.msra.mxu0 0.0
        %6806 = vmatprep.subr.mxu0 0.0
        %6807 = vmatpush2.msra.mxu0 0.0
        %6808 = vmatprep.subr.mxu0 0.0
        %6809 = vmatpush2.msra.mxu0 0.0
        %6810 = vmatprep.subr.mxu0 0.0
        %6811 = vmatpush2.msra.mxu0 0.0
        %6812 = vmatprep.subr.mxu0 0.0
        %6813 = vmatpush2.msra.mxu0 0.0
        %6814 = vmatprep.subr.mxu0 0.0
        %6815 = vmatpush2.msra.mxu0 0.0
        %6816 = vmatprep.subr.mxu0 0.0
        %6817 = vmatpush2.msra.mxu0 0.0
        %6818 = vmatprep.subr.mxu0 0.0
        %6819 = vmatpush2.msra.mxu0 0.0
        %6820 = vmatprep.subr.mxu0 0.0
        %6821 = vmatpush2.msra.mxu0 0.0
        %6822 = vmatprep.subr.mxu0 0.0
        %6823 = vmatpush2.msra.mxu0 0.0
        %6824 = vmatprep.subr.mxu0 0.0
        %6825 = vmatpush2.msra.mxu0 0.0
        %6826 = vmatprep.mubr.f32.mxu0 0.0
        %v6827 = vand.u32 %v523, 4294901760
        %v6828 = vsub.f32 %v523, %v6827
        %6829 = vmatmul.mubr.f32.gmra.mxu0 %v6828
        %v6830 = vpop.f32.mrf.mxu0
        %v6831 = vadd.f32 %v6687, %v6830
        %v6832 = vpop.f32.mrf.mxu0
        %v6833 = vadd.f32 %v6689, %v6832
        %6834 = vmatprep.mubr.f32.mxu0 0.0
        %v6835 = vand.u32 %v524, 4294901760
        %v6836 = vsub.f32 %v524, %v6835
        %6837 = vmatmul.mubr.f32.gmra.mxu0 %v6836
        %v6838 = vpop.f32.mrf.mxu0
        %v6839 = vadd.f32 %v6694, %v6838
        %v6840 = vpop.f32.mrf.mxu0
        %v6841 = vadd.f32 %v6696, %v6840
        %6842 = vdwg.mxu0
        %v6843 = vand.u32 %v6311, 4294901760
        %6844 = vmatprep.subr.mxu0 %v6843
        %v6845 = vand.u32 %v6310, 4294901760
        %6846 = vmatpush1.msra.mxu0 %v6845
        %v6847 = vand.u32 %v6308, 4294901760
        %6848 = vmatprep.subr.mxu0 %v6847
        %v6849 = vand.u32 %v6307, 4294901760
        %6850 = vmatpush1.msra.mxu0 %v6849
        %v6851 = vand.u32 %v6305, 4294901760
        %6852 = vmatprep.subr.mxu0 %v6851
        %v6853 = vand.u32 %v6304, 4294901760
        %6854 = vmatpush1.msra.mxu0 %v6853
        %v6855 = vand.u32 %v6302, 4294901760
        %6856 = vmatprep.subr.mxu0 %v6855
        %v6857 = vand.u32 %v6301, 4294901760
        %6858 = vmatpush1.msra.mxu0 %v6857
        %v6859 = vand.u32 %v6299, 4294901760
        %6860 = vmatprep.subr.mxu0 %v6859
        %v6861 = vand.u32 %v6298, 4294901760
        %6862 = vmatpush1.msra.mxu0 %v6861
        %v6863 = vand.u32 %v6296, 4294901760
        %6864 = vmatprep.subr.mxu0 %v6863
        %v6865 = vand.u32 %v6295, 4294901760
        %6866 = vmatpush1.msra.mxu0 %v6865
        %v6867 = vand.u32 %v6293, 4294901760
        %6868 = vmatprep.subr.mxu0 %v6867
        %v6869 = vand.u32 %v6292, 4294901760
        %6870 = vmatpush1.msra.mxu0 %v6869
        %v6871 = vand.u32 %v6290, 4294901760
        %6872 = vmatprep.subr.mxu0 %v6871
        %v6873 = vand.u32 %v6289, 4294901760
        %6874 = vmatpush1.msra.mxu0 %v6873
        %v6875 = vand.u32 %v6287, 4294901760
        %6876 = vmatprep.subr.mxu0 %v6875
        %v6877 = vand.u32 %v6286, 4294901760
        %6878 = vmatpush1.msra.mxu0 %v6877
        %v6879 = vand.u32 %v6284, 4294901760
        %6880 = vmatprep.subr.mxu0 %v6879
        %v6881 = vand.u32 %v6283, 4294901760
        %6882 = vmatpush1.msra.mxu0 %v6881
        %v6883 = vand.u32 %v6281, 4294901760
        %6884 = vmatprep.subr.mxu0 %v6883
        %v6885 = vand.u32 %v6280, 4294901760
        %6886 = vmatpush1.msra.mxu0 %v6885
        %v6887 = vand.u32 %v6278, 4294901760
        %6888 = vmatprep.subr.mxu0 %v6887
        %v6889 = vand.u32 %v6277, 4294901760
        %6890 = vmatpush1.msra.mxu0 %v6889
        %v6891 = vand.u32 %v6275, 4294901760
        %6892 = vmatprep.subr.mxu0 %v6891
        %v6893 = vand.u32 %v6274, 4294901760
        %6894 = vmatpush1.msra.mxu0 %v6893
        %v6895 = vand.u32 %v6272, 4294901760
        %6896 = vmatprep.subr.mxu0 %v6895
        %v6897 = vand.u32 %v6271, 4294901760
        %6898 = vmatpush1.msra.mxu0 %v6897
        %v6899 = vand.u32 %v6269, 4294901760
        %6900 = vmatprep.subr.mxu0 %v6899
        %v6901 = vand.u32 %v6268, 4294901760
        %6902 = vmatpush1.msra.mxu0 %v6901
        %v6903 = vand.u32 %v6266, 4294901760
        %6904 = vmatprep.subr.mxu0 %v6903
        %v6905 = vand.u32 %v6265, 4294901760
        %6906 = vmatpush1.msra.mxu0 %v6905
        %6907 = vmatprep.subr.mxu0 0.0
        %6908 = vmatpush2.msra.mxu0 0.0
        %6909 = vmatprep.subr.mxu0 0.0
        %6910 = vmatpush2.msra.mxu0 0.0
        %6911 = vmatprep.subr.mxu0 0.0
        %6912 = vmatpush2.msra.mxu0 0.0
        %6913 = vmatprep.subr.mxu0 0.0
        %6914 = vmatpush2.msra.mxu0 0.0
        %6915 = vmatprep.subr.mxu0 0.0
        %6916 = vmatpush2.msra.mxu0 0.0
        %6917 = vmatprep.subr.mxu0 0.0
        %6918 = vmatpush2.msra.mxu0 0.0
        %6919 = vmatprep.subr.mxu0 0.0
        %6920 = vmatpush2.msra.mxu0 0.0
        %6921 = vmatprep.subr.mxu0 0.0
        %6922 = vmatpush2.msra.mxu0 0.0
        %6923 = vmatprep.subr.mxu0 0.0
        %6924 = vmatpush2.msra.mxu0 0.0
        %6925 = vmatprep.subr.mxu0 0.0
        %6926 = vmatpush2.msra.mxu0 0.0
        %6927 = vmatprep.subr.mxu0 0.0
        %6928 = vmatpush2.msra.mxu0 0.0
        %6929 = vmatprep.subr.mxu0 0.0
        %6930 = vmatpush2.msra.mxu0 0.0
        %6931 = vmatprep.subr.mxu0 0.0
        %6932 = vmatpush2.msra.mxu0 0.0
        %6933 = vmatprep.subr.mxu0 0.0
        %6934 = vmatpush2.msra.mxu0 0.0
        %6935 = vmatprep.subr.mxu0 0.0
        %6936 = vmatpush2.msra.mxu0 0.0
        %6937 = vmatprep.subr.mxu0 0.0
        %6938 = vmatpush2.msra.mxu0 0.0
        %6939 = vmatprep.mubr.f32.mxu0 0.0
        %v6940 = vand.u32 %v523, 4294901760
        %v6941 = vsub.f32 %v523, %v6940
        %v6942 = vand.u32 %v6941, 4294901760
        %6943 = vmatmul.mubr.f32.gmra.mxu0 %v6942
        %v6944 = vpop.f32.mrf.mxu0
        %v6945 = vadd.f32 %v6831, %v6944
        %v6946 = vpop.f32.mrf.mxu0
        %v6947 = vadd.f32 %v6833, %v6946
        %6948 = vmatprep.mubr.f32.mxu0 0.0
        %v6949 = vand.u32 %v524, 4294901760
        %v6950 = vsub.f32 %v524, %v6949
        %v6951 = vand.u32 %v6950, 4294901760
        %6952 = vmatmul.mubr.f32.gmra.mxu0 %v6951
        %v6953 = vpop.f32.mrf.mxu0
        %v6954 = vadd.f32 %v6839, %v6953
        %v6955 = vpop.f32.mrf.mxu0
        %v6956 = vadd.f32 %v6841, %v6955
        %6957 = vdwg.mxu0
        %v6958 = vand.u32 %v6311, 4294901760
        %v6959 = vsub.f32 %v6311, %v6958
        %v6960 = vand.u32 %v6959, 4294901760
        %6961 = vmatprep.subr.mxu0 %v6960
        %v6962 = vand.u32 %v6310, 4294901760
        %v6963 = vsub.f32 %v6310, %v6962
        %v6964 = vand.u32 %v6963, 4294901760
        %6965 = vmatpush1.msra.mxu0 %v6964
        %v6966 = vand.u32 %v6308, 4294901760
        %v6967 = vsub.f32 %v6308, %v6966
        %v6968 = vand.u32 %v6967, 4294901760
        %6969 = vmatprep.subr.mxu0 %v6968
        %v6970 = vand.u32 %v6307, 4294901760
        %v6971 = vsub.f32 %v6307, %v6970
        %v6972 = vand.u32 %v6971, 4294901760
        %6973 = vmatpush1.msra.mxu0 %v6972
        %v6974 = vand.u32 %v6305, 4294901760
        %v6975 = vsub.f32 %v6305, %v6974
        %v6976 = vand.u32 %v6975, 4294901760
        %6977 = vmatprep.subr.mxu0 %v6976
        %v6978 = vand.u32 %v6304, 4294901760
        %v6979 = vsub.f32 %v6304, %v6978
        %v6980 = vand.u32 %v6979, 4294901760
        %6981 = vmatpush1.msra.mxu0 %v6980
        %v6982 = vand.u32 %v6302, 4294901760
        %v6983 = vsub.f32 %v6302, %v6982
        %v6984 = vand.u32 %v6983, 4294901760
        %6985 = vmatprep.subr.mxu0 %v6984
        %v6986 = vand.u32 %v6301, 4294901760
        %v6987 = vsub.f32 %v6301, %v6986
        %v6988 = vand.u32 %v6987, 4294901760
        %6989 = vmatpush1.msra.mxu0 %v6988
        %v6990 = vand.u32 %v6299, 4294901760
        %v6991 = vsub.f32 %v6299, %v6990
        %v6992 = vand.u32 %v6991, 4294901760
        %6993 = vmatprep.subr.mxu0 %v6992
        %v6994 = vand.u32 %v6298, 4294901760
        %v6995 = vsub.f32 %v6298, %v6994
        %v6996 = vand.u32 %v6995, 4294901760
        %6997 = vmatpush1.msra.mxu0 %v6996
        %v6998 = vand.u32 %v6296, 4294901760
        %v6999 = vsub.f32 %v6296, %v6998
        %v7000 = vand.u32 %v6999, 4294901760
        %7001 = vmatprep.subr.mxu0 %v7000
        %v7002 = vand.u32 %v6295, 4294901760
        %v7003 = vsub.f32 %v6295, %v7002
        %v7004 = vand.u32 %v7003, 4294901760
        %7005 = vmatpush1.msra.mxu0 %v7004
        %v7006 = vand.u32 %v6293, 4294901760
        %v7007 = vsub.f32 %v6293, %v7006
        %v7008 = vand.u32 %v7007, 4294901760
        %7009 = vmatprep.subr.mxu0 %v7008
        %v7010 = vand.u32 %v6292, 4294901760
        %v7011 = vsub.f32 %v6292, %v7010
        %v7012 = vand.u32 %v7011, 4294901760
        %7013 = vmatpush1.msra.mxu0 %v7012
        %v7014 = vand.u32 %v6290, 4294901760
        %v7015 = vsub.f32 %v6290, %v7014
        %v7016 = vand.u32 %v7015, 4294901760
        %7017 = vmatprep.subr.mxu0 %v7016
        %v7018 = vand.u32 %v6289, 4294901760
        %v7019 = vsub.f32 %v6289, %v7018
        %v7020 = vand.u32 %v7019, 4294901760
        %7021 = vmatpush1.msra.mxu0 %v7020
        %v7022 = vand.u32 %v6287, 4294901760
        %v7023 = vsub.f32 %v6287, %v7022
        %v7024 = vand.u32 %v7023, 4294901760
        %7025 = vmatprep.subr.mxu0 %v7024
        %v7026 = vand.u32 %v6286, 4294901760
        %v7027 = vsub.f32 %v6286, %v7026
        %v7028 = vand.u32 %v7027, 4294901760
        %7029 = vmatpush1.msra.mxu0 %v7028
        %v7030 = vand.u32 %v6284, 4294901760
        %v7031 = vsub.f32 %v6284, %v7030
        %v7032 = vand.u32 %v7031, 4294901760
        %7033 = vmatprep.subr.mxu0 %v7032
        %v7034 = vand.u32 %v6283, 4294901760
        %v7035 = vsub.f32 %v6283, %v7034
        %v7036 = vand.u32 %v7035, 4294901760
        %7037 = vmatpush1.msra.mxu0 %v7036
        %v7038 = vand.u32 %v6281, 4294901760
        %v7039 = vsub.f32 %v6281, %v7038
        %v7040 = vand.u32 %v7039, 4294901760
        %7041 = vmatprep.subr.mxu0 %v7040
        %v7042 = vand.u32 %v6280, 4294901760
        %v7043 = vsub.f32 %v6280, %v7042
        %v7044 = vand.u32 %v7043, 4294901760
        %7045 = vmatpush1.msra.mxu0 %v7044
        %v7046 = vand.u32 %v6278, 4294901760
        %v7047 = vsub.f32 %v6278, %v7046
        %v7048 = vand.u32 %v7047, 4294901760
        %7049 = vmatprep.subr.mxu0 %v7048
        %v7050 = vand.u32 %v6277, 4294901760
        %v7051 = vsub.f32 %v6277, %v7050
        %v7052 = vand.u32 %v7051, 4294901760
        %7053 = vmatpush1.msra.mxu0 %v7052
        %v7054 = vand.u32 %v6275, 4294901760
        %v7055 = vsub.f32 %v6275, %v7054
        %v7056 = vand.u32 %v7055, 4294901760
        %7057 = vmatprep.subr.mxu0 %v7056
        %v7058 = vand.u32 %v6274, 4294901760
        %v7059 = vsub.f32 %v6274, %v7058
        %v7060 = vand.u32 %v7059, 4294901760
        %7061 = vmatpush1.msra.mxu0 %v7060
        %v7062 = vand.u32 %v6272, 4294901760
        %v7063 = vsub.f32 %v6272, %v7062
        %v7064 = vand.u32 %v7063, 4294901760
        %7065 = vmatprep.subr.mxu0 %v7064
        %v7066 = vand.u32 %v6271, 4294901760
        %v7067 = vsub.f32 %v6271, %v7066
        %v7068 = vand.u32 %v7067, 4294901760
        %7069 = vmatpush1.msra.mxu0 %v7068
        %v7070 = vand.u32 %v6269, 4294901760
        %v7071 = vsub.f32 %v6269, %v7070
        %v7072 = vand.u32 %v7071, 4294901760
        %7073 = vmatprep.subr.mxu0 %v7072
        %v7074 = vand.u32 %v6268, 4294901760
        %v7075 = vsub.f32 %v6268, %v7074
        %v7076 = vand.u32 %v7075, 4294901760
        %7077 = vmatpush1.msra.mxu0 %v7076
        %v7078 = vand.u32 %v6266, 4294901760
        %v7079 = vsub.f32 %v6266, %v7078
        %v7080 = vand.u32 %v7079, 4294901760
        %7081 = vmatprep.subr.mxu0 %v7080
        %v7082 = vand.u32 %v6265, 4294901760
        %v7083 = vsub.f32 %v6265, %v7082
        %v7084 = vand.u32 %v7083, 4294901760
        %7085 = vmatpush1.msra.mxu0 %v7084
        %7086 = vmatprep.subr.mxu0 0.0
        %7087 = vmatpush2.msra.mxu0 0.0
        %7088 = vmatprep.subr.mxu0 0.0
        %7089 = vmatpush2.msra.mxu0 0.0
        %7090 = vmatprep.subr.mxu0 0.0
        %7091 = vmatpush2.msra.mxu0 0.0
        %7092 = vmatprep.subr.mxu0 0.0
        %7093 = vmatpush2.msra.mxu0 0.0
        %7094 = vmatprep.subr.mxu0 0.0
        %7095 = vmatpush2.msra.mxu0 0.0
        %7096 = vmatprep.subr.mxu0 0.0
        %7097 = vmatpush2.msra.mxu0 0.0
        %7098 = vmatprep.subr.mxu0 0.0
        %7099 = vmatpush2.msra.mxu0 0.0
        %7100 = vmatprep.subr.mxu0 0.0
        %7101 = vmatpush2.msra.mxu0 0.0
        %7102 = vmatprep.subr.mxu0 0.0
        %7103 = vmatpush2.msra.mxu0 0.0
        %7104 = vmatprep.subr.mxu0 0.0
        %7105 = vmatpush2.msra.mxu0 0.0
        %7106 = vmatprep.subr.mxu0 0.0
        %7107 = vmatpush2.msra.mxu0 0.0
        %7108 = vmatprep.subr.mxu0 0.0
        %7109 = vmatpush2.msra.mxu0 0.0
        %7110 = vmatprep.subr.mxu0 0.0
        %7111 = vmatpush2.msra.mxu0 0.0
        %7112 = vmatprep.subr.mxu0 0.0
        %7113 = vmatpush2.msra.mxu0 0.0
        %7114 = vmatprep.subr.mxu0 0.0
        %7115 = vmatpush2.msra.mxu0 0.0
        %7116 = vmatprep.subr.mxu0 0.0
        %7117 = vmatpush2.msra.mxu0 0.0
        %7118 = vmatprep.mubr.f32.mxu0 0.0
        %v7119 = vand.u32 %v523, 4294901760
        %7120 = vmatmul.mubr.f32.gmra.mxu0 %v7119
        %v7121 = vpop.f32.mrf.mxu0
        %v7122 = vadd.f32 %v6945, %v7121
        %v7123 = vpop.f32.mrf.mxu0
        %v7124 = vadd.f32 %v6947, %v7123
        %7125 = vmatprep.mubr.f32.mxu0 0.0
        %v7126 = vand.u32 %v524, 4294901760
        %7127 = vmatmul.mubr.f32.gmra.mxu0 %v7126
        %v7128 = vpop.f32.mrf.mxu0
        %v7129 = vadd.f32 %v6954, %v7128
        %v7130 = vpop.f32.mrf.mxu0
        %v7131 = vadd.f32 %v6956, %v7130
        %7132 = vdwg.mxu0
        %v7133 = vand.u32 %v6311, 4294901760
        %7134 = vmatprep.subr.mxu0 %v7133
        %v7135 = vand.u32 %v6310, 4294901760
        %7136 = vmatpush1.msra.mxu0 %v7135
        %v7137 = vand.u32 %v6308, 4294901760
        %7138 = vmatprep.subr.mxu0 %v7137
        %v7139 = vand.u32 %v6307, 4294901760
        %7140 = vmatpush1.msra.mxu0 %v7139
        %v7141 = vand.u32 %v6305, 4294901760
        %7142 = vmatprep.subr.mxu0 %v7141
        %v7143 = vand.u32 %v6304, 4294901760
        %7144 = vmatpush1.msra.mxu0 %v7143
        %v7145 = vand.u32 %v6302, 4294901760
        %7146 = vmatprep.subr.mxu0 %v7145
        %v7147 = vand.u32 %v6301, 4294901760
        %7148 = vmatpush1.msra.mxu0 %v7147
        %v7149 = vand.u32 %v6299, 4294901760
        %7150 = vmatprep.subr.mxu0 %v7149
        %v7151 = vand.u32 %v6298, 4294901760
        %7152 = vmatpush1.msra.mxu0 %v7151
        %v7153 = vand.u32 %v6296, 4294901760
        %7154 = vmatprep.subr.mxu0 %v7153
        %v7155 = vand.u32 %v6295, 4294901760
        %7156 = vmatpush1.msra.mxu0 %v7155
        %v7157 = vand.u32 %v6293, 4294901760
        %7158 = vmatprep.subr.mxu0 %v7157
        %v7159 = vand.u32 %v6292, 4294901760
        %7160 = vmatpush1.msra.mxu0 %v7159
        %v7161 = vand.u32 %v6290, 4294901760
        %7162 = vmatprep.subr.mxu0 %v7161
        %v7163 = vand.u32 %v6289, 4294901760
        %7164 = vmatpush1.msra.mxu0 %v7163
        %v7165 = vand.u32 %v6287, 4294901760
        %7166 = vmatprep.subr.mxu0 %v7165
        %v7167 = vand.u32 %v6286, 4294901760
        %7168 = vmatpush1.msra.mxu0 %v7167
        %v7169 = vand.u32 %v6284, 4294901760
        %7170 = vmatprep.subr.mxu0 %v7169
        %v7171 = vand.u32 %v6283, 4294901760
        %7172 = vmatpush1.msra.mxu0 %v7171
        %v7173 = vand.u32 %v6281, 4294901760
        %7174 = vmatprep.subr.mxu0 %v7173
        %v7175 = vand.u32 %v6280, 4294901760
        %7176 = vmatpush1.msra.mxu0 %v7175
        %v7177 = vand.u32 %v6278, 4294901760
        %7178 = vmatprep.subr.mxu0 %v7177
        %v7179 = vand.u32 %v6277, 4294901760
        %7180 = vmatpush1.msra.mxu0 %v7179
        %v7181 = vand.u32 %v6275, 4294901760
        %7182 = vmatprep.subr.mxu0 %v7181
        %v7183 = vand.u32 %v6274, 4294901760
        %7184 = vmatpush1.msra.mxu0 %v7183
        %v7185 = vand.u32 %v6272, 4294901760
        %7186 = vmatprep.subr.mxu0 %v7185
        %v7187 = vand.u32 %v6271, 4294901760
        %7188 = vmatpush1.msra.mxu0 %v7187
        %v7189 = vand.u32 %v6269, 4294901760
        %7190 = vmatprep.subr.mxu0 %v7189
        %v7191 = vand.u32 %v6268, 4294901760
        %7192 = vmatpush1.msra.mxu0 %v7191
        %v7193 = vand.u32 %v6266, 4294901760
        %7194 = vmatprep.subr.mxu0 %v7193
        %v7195 = vand.u32 %v6265, 4294901760
        %7196 = vmatpush1.msra.mxu0 %v7195
        %7197 = vmatprep.subr.mxu0 0.0
        %7198 = vmatpush2.msra.mxu0 0.0
        %7199 = vmatprep.subr.mxu0 0.0
        %7200 = vmatpush2.msra.mxu0 0.0
        %7201 = vmatprep.subr.mxu0 0.0
        %7202 = vmatpush2.msra.mxu0 0.0
        %7203 = vmatprep.subr.mxu0 0.0
        %7204 = vmatpush2.msra.mxu0 0.0
        %7205 = vmatprep.subr.mxu0 0.0
        %7206 = vmatpush2.msra.mxu0 0.0
        %7207 = vmatprep.subr.mxu0 0.0
        %7208 = vmatpush2.msra.mxu0 0.0
        %7209 = vmatprep.subr.mxu0 0.0
        %7210 = vmatpush2.msra.mxu0 0.0
        %7211 = vmatprep.subr.mxu0 0.0
        %7212 = vmatpush2.msra.mxu0 0.0
        %7213 = vmatprep.subr.mxu0 0.0
        %7214 = vmatpush2.msra.mxu0 0.0
        %7215 = vmatprep.subr.mxu0 0.0
        %7216 = vmatpush2.msra.mxu0 0.0
        %7217 = vmatprep.subr.mxu0 0.0
        %7218 = vmatpush2.msra.mxu0 0.0
        %7219 = vmatprep.subr.mxu0 0.0
        %7220 = vmatpush2.msra.mxu0 0.0
        %7221 = vmatprep.subr.mxu0 0.0
        %7222 = vmatpush2.msra.mxu0 0.0
        %7223 = vmatprep.subr.mxu0 0.0
        %7224 = vmatpush2.msra.mxu0 0.0
        %7225 = vmatprep.subr.mxu0 0.0
        %7226 = vmatpush2.msra.mxu0 0.0
        %7227 = vmatprep.subr.mxu0 0.0
        %7228 = vmatpush2.msra.mxu0 0.0
        %7229 = vmatprep.mubr.f32.mxu0 0.0
        %v7230 = vand.u32 %v523, 4294901760
        %7231 = vmatmul.mubr.f32.gmra.mxu0 %v7230
        %v7232 = vpop.f32.mrf.mxu0
        %v7233 = vadd.f32 %v7122, %v7232
        %v7234 = vpop.f32.mrf.mxu0
        %v7235 = vadd.f32 %v7124, %v7234
        %7236 = vmatprep.mubr.f32.mxu0 0.0
        %v7237 = vand.u32 %v524, 4294901760
        %7238 = vmatmul.mubr.f32.gmra.mxu0 %v7237
        %v7239 = vpop.f32.mrf.mxu0
        %v7240 = vadd.f32 %v7129, %v7239
        %v7241 = vpop.f32.mrf.mxu0
        %v7242 = vadd.f32 %v7131, %v7241
        %7243 = vdwg.mxu0
        %7244 = vmatprep.subr.mxu0 0.0
        %v7245 = vand.u32 %v6312, 4294901760
        %7246 = vmatpush1.msra.mxu0 %v7245
        %7247 = vmatprep.subr.mxu0 0.0
        %v7248 = vand.u32 %v6309, 4294901760
        %7249 = vmatpush1.msra.mxu0 %v7248
        %7250 = vmatprep.subr.mxu0 0.0
        %v7251 = vand.u32 %v6306, 4294901760
        %7252 = vmatpush1.msra.mxu0 %v7251
        %7253 = vmatprep.subr.mxu0 0.0
        %v7254 = vand.u32 %v6303, 4294901760
        %7255 = vmatpush1.msra.mxu0 %v7254
        %7256 = vmatprep.subr.mxu0 0.0
        %v7257 = vand.u32 %v6300, 4294901760
        %7258 = vmatpush1.msra.mxu0 %v7257
        %7259 = vmatprep.subr.mxu0 0.0
        %v7260 = vand.u32 %v6297, 4294901760
        %7261 = vmatpush1.msra.mxu0 %v7260
        %7262 = vmatprep.subr.mxu0 0.0
        %v7263 = vand.u32 %v6294, 4294901760
        %7264 = vmatpush1.msra.mxu0 %v7263
        %7265 = vmatprep.subr.mxu0 0.0
        %v7266 = vand.u32 %v6291, 4294901760
        %7267 = vmatpush1.msra.mxu0 %v7266
        %7268 = vmatprep.subr.mxu0 0.0
        %v7269 = vand.u32 %v6288, 4294901760
        %7270 = vmatpush1.msra.mxu0 %v7269
        %7271 = vmatprep.subr.mxu0 0.0
        %v7272 = vand.u32 %v6285, 4294901760
        %7273 = vmatpush1.msra.mxu0 %v7272
        %7274 = vmatprep.subr.mxu0 0.0
        %v7275 = vand.u32 %v6282, 4294901760
        %7276 = vmatpush1.msra.mxu0 %v7275
        %7277 = vmatprep.subr.mxu0 0.0
        %v7278 = vand.u32 %v6279, 4294901760
        %7279 = vmatpush1.msra.mxu0 %v7278
        %7280 = vmatprep.subr.mxu0 0.0
        %v7281 = vand.u32 %v6276, 4294901760
        %7282 = vmatpush1.msra.mxu0 %v7281
        %7283 = vmatprep.subr.mxu0 0.0
        %v7284 = vand.u32 %v6273, 4294901760
        %7285 = vmatpush1.msra.mxu0 %v7284
        %7286 = vmatprep.subr.mxu0 0.0
        %v7287 = vand.u32 %v6270, 4294901760
        %7288 = vmatpush1.msra.mxu0 %v7287
        %7289 = vmatprep.subr.mxu0 0.0
        %v7290 = vand.u32 %v6267, 4294901760
        %7291 = vmatpush1.msra.mxu0 %v7290
        %7292 = vmatprep.subr.mxu0 0.0
        %7293 = vmatpush2.msra.mxu0 0.0
        %7294 = vmatprep.subr.mxu0 0.0
        %7295 = vmatpush2.msra.mxu0 0.0
        %7296 = vmatprep.subr.mxu0 0.0
        %7297 = vmatpush2.msra.mxu0 0.0
        %7298 = vmatprep.subr.mxu0 0.0
        %7299 = vmatpush2.msra.mxu0 0.0
        %7300 = vmatprep.subr.mxu0 0.0
        %7301 = vmatpush2.msra.mxu0 0.0
        %7302 = vmatprep.subr.mxu0 0.0
        %7303 = vmatpush2.msra.mxu0 0.0
        %7304 = vmatprep.subr.mxu0 0.0
        %7305 = vmatpush2.msra.mxu0 0.0
        %7306 = vmatprep.subr.mxu0 0.0
        %7307 = vmatpush2.msra.mxu0 0.0
        %7308 = vmatprep.subr.mxu0 0.0
        %7309 = vmatpush2.msra.mxu0 0.0
        %7310 = vmatprep.subr.mxu0 0.0
        %7311 = vmatpush2.msra.mxu0 0.0
        %7312 = vmatprep.subr.mxu0 0.0
        %7313 = vmatpush2.msra.mxu0 0.0
        %7314 = vmatprep.subr.mxu0 0.0
        %7315 = vmatpush2.msra.mxu0 0.0
        %7316 = vmatprep.subr.mxu0 0.0
        %7317 = vmatpush2.msra.mxu0 0.0
        %7318 = vmatprep.subr.mxu0 0.0
        %7319 = vmatpush2.msra.mxu0 0.0
        %7320 = vmatprep.subr.mxu0 0.0
        %7321 = vmatpush2.msra.mxu0 0.0
        %7322 = vmatprep.subr.mxu0 0.0
        %7323 = vmatpush2.msra.mxu0 0.0
        %7324 = vmatprep.mubr.f32.mxu0 0.0
        %v7325 = vand.u32 %v523, 4294901760
        %v7326 = vsub.f32 %v523, %v7325
        %v7327 = vand.u32 %v7326, 4294901760
        %v7328 = vsub.f32 %v7326, %v7327
        %v7329 = vand.u32 %v7328, 4294901760
        %7330 = vmatmul.mubr.f32.gmra.mxu0 %v7329
        %v7331 = vpop.f32.mrf.mxu0
        %v7332 = vadd.f32 %v6339, %v7331
        %v7333 = vpop.f32.mrf.mxu0
        %7334 = vmatprep.mubr.f32.mxu0 0.0
        %v7335 = vand.u32 %v524, 4294901760
        %v7336 = vsub.f32 %v524, %v7335
        %v7337 = vand.u32 %v7336, 4294901760
        %v7338 = vsub.f32 %v7336, %v7337
        %v7339 = vand.u32 %v7338, 4294901760
        %7340 = vmatmul.mubr.f32.gmra.mxu0 %v7339
        %v7341 = vpop.f32.mrf.mxu0
        %v7342 = vadd.f32 %v6339, %v7341
        %v7343 = vpop.f32.mrf.mxu0
        %7344 = vdwg.mxu0
        %7345 = vmatprep.subr.mxu0 0.0
        %v7346 = vand.u32 %v6312, 4294901760
        %v7347 = vsub.f32 %v6312, %v7346
        %v7348 = vand.u32 %v7347, 4294901760
        %v7349 = vsub.f32 %v7347, %v7348
        %v7350 = vand.u32 %v7349, 4294901760
        %7351 = vmatpush1.msra.mxu0 %v7350
        %7352 = vmatprep.subr.mxu0 0.0
        %v7353 = vand.u32 %v6309, 4294901760
        %v7354 = vsub.f32 %v6309, %v7353
        %v7355 = vand.u32 %v7354, 4294901760
        %v7356 = vsub.f32 %v7354, %v7355
        %v7357 = vand.u32 %v7356, 4294901760
        %7358 = vmatpush1.msra.mxu0 %v7357
        %7359 = vmatprep.subr.mxu0 0.0
        %v7360 = vand.u32 %v6306, 4294901760
        %v7361 = vsub.f32 %v6306, %v7360
        %v7362 = vand.u32 %v7361, 4294901760
        %v7363 = vsub.f32 %v7361, %v7362
        %v7364 = vand.u32 %v7363, 4294901760
        %7365 = vmatpush1.msra.mxu0 %v7364
        %7366 = vmatprep.subr.mxu0 0.0
        %v7367 = vand.u32 %v6303, 4294901760
        %v7368 = vsub.f32 %v6303, %v7367
        %v7369 = vand.u32 %v7368, 4294901760
        %v7370 = vsub.f32 %v7368, %v7369
        %v7371 = vand.u32 %v7370, 4294901760
        %7372 = vmatpush1.msra.mxu0 %v7371
        %7373 = vmatprep.subr.mxu0 0.0
        %v7374 = vand.u32 %v6300, 4294901760
        %v7375 = vsub.f32 %v6300, %v7374
        %v7376 = vand.u32 %v7375, 4294901760
        %v7377 = vsub.f32 %v7375, %v7376
        %v7378 = vand.u32 %v7377, 4294901760
        %7379 = vmatpush1.msra.mxu0 %v7378
        %7380 = vmatprep.subr.mxu0 0.0
        %v7381 = vand.u32 %v6297, 4294901760
        %v7382 = vsub.f32 %v6297, %v7381
        %v7383 = vand.u32 %v7382, 4294901760
        %v7384 = vsub.f32 %v7382, %v7383
        %v7385 = vand.u32 %v7384, 4294901760
        %7386 = vmatpush1.msra.mxu0 %v7385
        %7387 = vmatprep.subr.mxu0 0.0
        %v7388 = vand.u32 %v6294, 4294901760
        %v7389 = vsub.f32 %v6294, %v7388
        %v7390 = vand.u32 %v7389, 4294901760
        %v7391 = vsub.f32 %v7389, %v7390
        %v7392 = vand.u32 %v7391, 4294901760
        %7393 = vmatpush1.msra.mxu0 %v7392
        %7394 = vmatprep.subr.mxu0 0.0
        %v7395 = vand.u32 %v6291, 4294901760
        %v7396 = vsub.f32 %v6291, %v7395
        %v7397 = vand.u32 %v7396, 4294901760
        %v7398 = vsub.f32 %v7396, %v7397
        %v7399 = vand.u32 %v7398, 4294901760
        %7400 = vmatpush1.msra.mxu0 %v7399
        %7401 = vmatprep.subr.mxu0 0.0
        %v7402 = vand.u32 %v6288, 4294901760
        %v7403 = vsub.f32 %v6288, %v7402
        %v7404 = vand.u32 %v7403, 4294901760
        %v7405 = vsub.f32 %v7403, %v7404
        %v7406 = vand.u32 %v7405, 4294901760
        %7407 = vmatpush1.msra.mxu0 %v7406
        %7408 = vmatprep.subr.mxu0 0.0
        %v7409 = vand.u32 %v6285, 4294901760
        %v7410 = vsub.f32 %v6285, %v7409
        %v7411 = vand.u32 %v7410, 4294901760
        %v7412 = vsub.f32 %v7410, %v7411
        %v7413 = vand.u32 %v7412, 4294901760
        %7414 = vmatpush1.msra.mxu0 %v7413
        %7415 = vmatprep.subr.mxu0 0.0
        %v7416 = vand.u32 %v6282, 4294901760
        %v7417 = vsub.f32 %v6282, %v7416
        %v7418 = vand.u32 %v7417, 4294901760
        %v7419 = vsub.f32 %v7417, %v7418
        %v7420 = vand.u32 %v7419, 4294901760
        %7421 = vmatpush1.msra.mxu0 %v7420
        %7422 = vmatprep.subr.mxu0 0.0
        %v7423 = vand.u32 %v6279, 4294901760
        %v7424 = vsub.f32 %v6279, %v7423
        %v7425 = vand.u32 %v7424, 4294901760
        %v7426 = vsub.f32 %v7424, %v7425
        %v7427 = vand.u32 %v7426, 4294901760
        %7428 = vmatpush1.msra.mxu0 %v7427
        %7429 = vmatprep.subr.mxu0 0.0
        %v7430 = vand.u32 %v6276, 4294901760
        %v7431 = vsub.f32 %v6276, %v7430
        %v7432 = vand.u32 %v7431, 4294901760
        %v7433 = vsub.f32 %v7431, %v7432
        %v7434 = vand.u32 %v7433, 4294901760
        %7435 = vmatpush1.msra.mxu0 %v7434
        %7436 = vmatprep.subr.mxu0 0.0
        %v7437 = vand.u32 %v6273, 4294901760
        %v7438 = vsub.f32 %v6273, %v7437
        %v7439 = vand.u32 %v7438, 4294901760
        %v7440 = vsub.f32 %v7438, %v7439
        %v7441 = vand.u32 %v7440, 4294901760
        %7442 = vmatpush1.msra.mxu0 %v7441
        %7443 = vmatprep.subr.mxu0 0.0
        %v7444 = vand.u32 %v6270, 4294901760
        %v7445 = vsub.f32 %v6270, %v7444
        %v7446 = vand.u32 %v7445, 4294901760
        %v7447 = vsub.f32 %v7445, %v7446
        %v7448 = vand.u32 %v7447, 4294901760
        %7449 = vmatpush1.msra.mxu0 %v7448
        %7450 = vmatprep.subr.mxu0 0.0
        %v7451 = vand.u32 %v6267, 4294901760
        %v7452 = vsub.f32 %v6267, %v7451
        %v7453 = vand.u32 %v7452, 4294901760
        %v7454 = vsub.f32 %v7452, %v7453
        %v7455 = vand.u32 %v7454, 4294901760
        %7456 = vmatpush1.msra.mxu0 %v7455
        %7457 = vmatprep.subr.mxu0 0.0
        %7458 = vmatpush2.msra.mxu0 0.0
        %7459 = vmatprep.subr.mxu0 0.0
        %7460 = vmatpush2.msra.mxu0 0.0
        %7461 = vmatprep.subr.mxu0 0.0
        %7462 = vmatpush2.msra.mxu0 0.0
        %7463 = vmatprep.subr.mxu0 0.0
        %7464 = vmatpush2.msra.mxu0 0.0
        %7465 = vmatprep.subr.mxu0 0.0
        %7466 = vmatpush2.msra.mxu0 0.0
        %7467 = vmatprep.subr.mxu0 0.0
        %7468 = vmatpush2.msra.mxu0 0.0
        %7469 = vmatprep.subr.mxu0 0.0
        %7470 = vmatpush2.msra.mxu0 0.0
        %7471 = vmatprep.subr.mxu0 0.0
        %7472 = vmatpush2.msra.mxu0 0.0
        %7473 = vmatprep.subr.mxu0 0.0
        %7474 = vmatpush2.msra.mxu0 0.0
        %7475 = vmatprep.subr.mxu0 0.0
        %7476 = vmatpush2.msra.mxu0 0.0
        %7477 = vmatprep.subr.mxu0 0.0
        %7478 = vmatpush2.msra.mxu0 0.0
        %7479 = vmatprep.subr.mxu0 0.0
        %7480 = vmatpush2.msra.mxu0 0.0
        %7481 = vmatprep.subr.mxu0 0.0
        %7482 = vmatpush2.msra.mxu0 0.0
        %7483 = vmatprep.subr.mxu0 0.0
        %7484 = vmatpush2.msra.mxu0 0.0
        %7485 = vmatprep.subr.mxu0 0.0
        %7486 = vmatpush2.msra.mxu0 0.0
        %7487 = vmatprep.subr.mxu0 0.0
        %7488 = vmatpush2.msra.mxu0 0.0
        %7489 = vmatprep.mubr.f32.mxu0 0.0
        %v7490 = vand.u32 %v523, 4294901760
        %7491 = vmatmul.mubr.f32.gmra.mxu0 %v7490
        %v7492 = vpop.f32.mrf.mxu0
        %v7493 = vadd.f32 %v7332, %v7492
        %v7494 = vpop.f32.mrf.mxu0
        %7495 = vmatprep.mubr.f32.mxu0 0.0
        %v7496 = vand.u32 %v524, 4294901760
        %7497 = vmatmul.mubr.f32.gmra.mxu0 %v7496
        %v7498 = vpop.f32.mrf.mxu0
        %v7499 = vadd.f32 %v7342, %v7498
        %v7500 = vpop.f32.mrf.mxu0
        %7501 = vdwg.mxu0
        %7502 = vmatprep.subr.mxu0 0.0
        %v7503 = vand.u32 %v6312, 4294901760
        %v7504 = vsub.f32 %v6312, %v7503
        %7505 = vmatpush1.msra.mxu0 %v7504
        %7506 = vmatprep.subr.mxu0 0.0
        %v7507 = vand.u32 %v6309, 4294901760
        %v7508 = vsub.f32 %v6309, %v7507
        %7509 = vmatpush1.msra.mxu0 %v7508
        %7510 = vmatprep.subr.mxu0 0.0
        %v7511 = vand.u32 %v6306, 4294901760
        %v7512 = vsub.f32 %v6306, %v7511
        %7513 = vmatpush1.msra.mxu0 %v7512
        %7514 = vmatprep.subr.mxu0 0.0
        %v7515 = vand.u32 %v6303, 4294901760
        %v7516 = vsub.f32 %v6303, %v7515
        %7517 = vmatpush1.msra.mxu0 %v7516
        %7518 = vmatprep.subr.mxu0 0.0
        %v7519 = vand.u32 %v6300, 4294901760
        %v7520 = vsub.f32 %v6300, %v7519
        %7521 = vmatpush1.msra.mxu0 %v7520
        %7522 = vmatprep.subr.mxu0 0.0
        %v7523 = vand.u32 %v6297, 4294901760
        %v7524 = vsub.f32 %v6297, %v7523
        %7525 = vmatpush1.msra.mxu0 %v7524
        %7526 = vmatprep.subr.mxu0 0.0
        %v7527 = vand.u32 %v6294, 4294901760
        %v7528 = vsub.f32 %v6294, %v7527
        %7529 = vmatpush1.msra.mxu0 %v7528
        %7530 = vmatprep.subr.mxu0 0.0
        %v7531 = vand.u32 %v6291, 4294901760
        %v7532 = vsub.f32 %v6291, %v7531
        %7533 = vmatpush1.msra.mxu0 %v7532
        %7534 = vmatprep.subr.mxu0 0.0
        %v7535 = vand.u32 %v6288, 4294901760
        %v7536 = vsub.f32 %v6288, %v7535
        %7537 = vmatpush1.msra.mxu0 %v7536
        %7538 = vmatprep.subr.mxu0 0.0
        %v7539 = vand.u32 %v6285, 4294901760
        %v7540 = vsub.f32 %v6285, %v7539
        %7541 = vmatpush1.msra.mxu0 %v7540
        %7542 = vmatprep.subr.mxu0 0.0
        %v7543 = vand.u32 %v6282, 4294901760
        %v7544 = vsub.f32 %v6282, %v7543
        %7545 = vmatpush1.msra.mxu0 %v7544
        %7546 = vmatprep.subr.mxu0 0.0
        %v7547 = vand.u32 %v6279, 4294901760
        %v7548 = vsub.f32 %v6279, %v7547
        %7549 = vmatpush1.msra.mxu0 %v7548
        %7550 = vmatprep.subr.mxu0 0.0
        %v7551 = vand.u32 %v6276, 4294901760
        %v7552 = vsub.f32 %v6276, %v7551
        %7553 = vmatpush1.msra.mxu0 %v7552
        %7554 = vmatprep.subr.mxu0 0.0
        %v7555 = vand.u32 %v6273, 4294901760
        %v7556 = vsub.f32 %v6273, %v7555
        %7557 = vmatpush1.msra.mxu0 %v7556
        %7558 = vmatprep.subr.mxu0 0.0
        %v7559 = vand.u32 %v6270, 4294901760
        %v7560 = vsub.f32 %v6270, %v7559
        %7561 = vmatpush1.msra.mxu0 %v7560
        %7562 = vmatprep.subr.mxu0 0.0
        %v7563 = vand.u32 %v6267, 4294901760
        %v7564 = vsub.f32 %v6267, %v7563
        %7565 = vmatpush1.msra.mxu0 %v7564
        %7566 = vmatprep.subr.mxu0 0.0
        %7567 = vmatpush2.msra.mxu0 0.0
        %7568 = vmatprep.subr.mxu0 0.0
        %7569 = vmatpush2.msra.mxu0 0.0
        %7570 = vmatprep.subr.mxu0 0.0
        %7571 = vmatpush2.msra.mxu0 0.0
        %7572 = vmatprep.subr.mxu0 0.0
        %7573 = vmatpush2.msra.mxu0 0.0
        %7574 = vmatprep.subr.mxu0 0.0
        %7575 = vmatpush2.msra.mxu0 0.0
        %7576 = vmatprep.subr.mxu0 0.0
        %7577 = vmatpush2.msra.mxu0 0.0
        %7578 = vmatprep.subr.mxu0 0.0
        %7579 = vmatpush2.msra.mxu0 0.0
        %7580 = vmatprep.subr.mxu0 0.0
        %7581 = vmatpush2.msra.mxu0 0.0
        %7582 = vmatprep.subr.mxu0 0.0
        %7583 = vmatpush2.msra.mxu0 0.0
        %7584 = vmatprep.subr.mxu0 0.0
        %7585 = vmatpush2.msra.mxu0 0.0
        %7586 = vmatprep.subr.mxu0 0.0
        %7587 = vmatpush2.msra.mxu0 0.0
        %7588 = vmatprep.subr.mxu0 0.0
        %7589 = vmatpush2.msra.mxu0 0.0
        %7590 = vmatprep.subr.mxu0 0.0
        %7591 = vmatpush2.msra.mxu0 0.0
        %7592 = vmatprep.subr.mxu0 0.0
        %7593 = vmatpush2.msra.mxu0 0.0
        %7594 = vmatprep.subr.mxu0 0.0
        %7595 = vmatpush2.msra.mxu0 0.0
        %7596 = vmatprep.subr.mxu0 0.0
        %7597 = vmatpush2.msra.mxu0 0.0
        %7598 = vmatprep.mubr.f32.mxu0 0.0
        %v7599 = vand.u32 %v523, 4294901760
        %v7600 = vsub.f32 %v523, %v7599
        %7601 = vmatmul.mubr.f32.gmra.mxu0 %v7600
        %v7602 = vpop.f32.mrf.mxu0
        %v7603 = vadd.f32 %v7493, %v7602
        %v7604 = vpop.f32.mrf.mxu0
        %7605 = vmatprep.mubr.f32.mxu0 0.0
        %v7606 = vand.u32 %v524, 4294901760
        %v7607 = vsub.f32 %v524, %v7606
        %7608 = vmatmul.mubr.f32.gmra.mxu0 %v7607
        %v7609 = vpop.f32.mrf.mxu0
        %v7610 = vadd.f32 %v7499, %v7609
        %v7611 = vpop.f32.mrf.mxu0
        %7612 = vdwg.mxu0
        %7613 = vmatprep.subr.mxu0 0.0
        %v7614 = vand.u32 %v6312, 4294901760
        %7615 = vmatpush1.msra.mxu0 %v7614
        %7616 = vmatprep.subr.mxu0 0.0
        %v7617 = vand.u32 %v6309, 4294901760
        %7618 = vmatpush1.msra.mxu0 %v7617
        %7619 = vmatprep.subr.mxu0 0.0
        %v7620 = vand.u32 %v6306, 4294901760
        %7621 = vmatpush1.msra.mxu0 %v7620
        %7622 = vmatprep.subr.mxu0 0.0
        %v7623 = vand.u32 %v6303, 4294901760
        %7624 = vmatpush1.msra.mxu0 %v7623
        %7625 = vmatprep.subr.mxu0 0.0
        %v7626 = vand.u32 %v6300, 4294901760
        %7627 = vmatpush1.msra.mxu0 %v7626
        %7628 = vmatprep.subr.mxu0 0.0
        %v7629 = vand.u32 %v6297, 4294901760
        %7630 = vmatpush1.msra.mxu0 %v7629
        %7631 = vmatprep.subr.mxu0 0.0
        %v7632 = vand.u32 %v6294, 4294901760
        %7633 = vmatpush1.msra.mxu0 %v7632
        %7634 = vmatprep.subr.mxu0 0.0
        %v7635 = vand.u32 %v6291, 4294901760
        %7636 = vmatpush1.msra.mxu0 %v7635
        %7637 = vmatprep.subr.mxu0 0.0
        %v7638 = vand.u32 %v6288, 4294901760
        %7639 = vmatpush1.msra.mxu0 %v7638
        %7640 = vmatprep.subr.mxu0 0.0
        %v7641 = vand.u32 %v6285, 4294901760
        %7642 = vmatpush1.msra.mxu0 %v7641
        %7643 = vmatprep.subr.mxu0 0.0
        %v7644 = vand.u32 %v6282, 4294901760
        %7645 = vmatpush1.msra.mxu0 %v7644
        %7646 = vmatprep.subr.mxu0 0.0
        %v7647 = vand.u32 %v6279, 4294901760
        %7648 = vmatpush1.msra.mxu0 %v7647
        %7649 = vmatprep.subr.mxu0 0.0
        %v7650 = vand.u32 %v6276, 4294901760
        %7651 = vmatpush1.msra.mxu0 %v7650
        %7652 = vmatprep.subr.mxu0 0.0
        %v7653 = vand.u32 %v6273, 4294901760
        %7654 = vmatpush1.msra.mxu0 %v7653
        %7655 = vmatprep.subr.mxu0 0.0
        %v7656 = vand.u32 %v6270, 4294901760
        %7657 = vmatpush1.msra.mxu0 %v7656
        %7658 = vmatprep.subr.mxu0 0.0
        %v7659 = vand.u32 %v6267, 4294901760
        %7660 = vmatpush1.msra.mxu0 %v7659
        %7661 = vmatprep.subr.mxu0 0.0
        %7662 = vmatpush2.msra.mxu0 0.0
        %7663 = vmatprep.subr.mxu0 0.0
        %7664 = vmatpush2.msra.mxu0 0.0
        %7665 = vmatprep.subr.mxu0 0.0
        %7666 = vmatpush2.msra.mxu0 0.0
        %7667 = vmatprep.subr.mxu0 0.0
        %7668 = vmatpush2.msra.mxu0 0.0
        %7669 = vmatprep.subr.mxu0 0.0
        %7670 = vmatpush2.msra.mxu0 0.0
        %7671 = vmatprep.subr.mxu0 0.0
        %7672 = vmatpush2.msra.mxu0 0.0
        %7673 = vmatprep.subr.mxu0 0.0
        %7674 = vmatpush2.msra.mxu0 0.0
        %7675 = vmatprep.subr.mxu0 0.0
        %7676 = vmatpush2.msra.mxu0 0.0
        %7677 = vmatprep.subr.mxu0 0.0
        %7678 = vmatpush2.msra.mxu0 0.0
        %7679 = vmatprep.subr.mxu0 0.0
        %7680 = vmatpush2.msra.mxu0 0.0
        %7681 = vmatprep.subr.mxu0 0.0
        %7682 = vmatpush2.msra.mxu0 0.0
        %7683 = vmatprep.subr.mxu0 0.0
        %7684 = vmatpush2.msra.mxu0 0.0
        %7685 = vmatprep.subr.mxu0 0.0
        %7686 = vmatpush2.msra.mxu0 0.0
        %7687 = vmatprep.subr.mxu0 0.0
        %7688 = vmatpush2.msra.mxu0 0.0
        %7689 = vmatprep.subr.mxu0 0.0
        %7690 = vmatpush2.msra.mxu0 0.0
        %7691 = vmatprep.subr.mxu0 0.0
        %7692 = vmatpush2.msra.mxu0 0.0
        %7693 = vmatprep.mubr.f32.mxu0 0.0
        %v7694 = vand.u32 %v523, 4294901760
        %v7695 = vsub.f32 %v523, %v7694
        %v7696 = vand.u32 %v7695, 4294901760
        %7697 = vmatmul.mubr.f32.gmra.mxu0 %v7696
        %v7698 = vpop.f32.mrf.mxu0
        %v7699 = vadd.f32 %v7603, %v7698
        %v7700 = vpop.f32.mrf.mxu0
        %7701 = vmatprep.mubr.f32.mxu0 0.0
        %v7702 = vand.u32 %v524, 4294901760
        %v7703 = vsub.f32 %v524, %v7702
        %v7704 = vand.u32 %v7703, 4294901760
        %7705 = vmatmul.mubr.f32.gmra.mxu0 %v7704
        %v7706 = vpop.f32.mrf.mxu0
        %v7707 = vadd.f32 %v7610, %v7706
        %v7708 = vpop.f32.mrf.mxu0
        %7709 = vdwg.mxu0
        %7710 = vmatprep.subr.mxu0 0.0
        %v7711 = vand.u32 %v6312, 4294901760
        %v7712 = vsub.f32 %v6312, %v7711
        %v7713 = vand.u32 %v7712, 4294901760
        %7714 = vmatpush1.msra.mxu0 %v7713
        %7715 = vmatprep.subr.mxu0 0.0
        %v7716 = vand.u32 %v6309, 4294901760
        %v7717 = vsub.f32 %v6309, %v7716
        %v7718 = vand.u32 %v7717, 4294901760
        %7719 = vmatpush1.msra.mxu0 %v7718
        %7720 = vmatprep.subr.mxu0 0.0
        %v7721 = vand.u32 %v6306, 4294901760
        %v7722 = vsub.f32 %v6306, %v7721
        %v7723 = vand.u32 %v7722, 4294901760
        %7724 = vmatpush1.msra.mxu0 %v7723
        %7725 = vmatprep.subr.mxu0 0.0
        %v7726 = vand.u32 %v6303, 4294901760
        %v7727 = vsub.f32 %v6303, %v7726
        %v7728 = vand.u32 %v7727, 4294901760
        %7729 = vmatpush1.msra.mxu0 %v7728
        %7730 = vmatprep.subr.mxu0 0.0
        %v7731 = vand.u32 %v6300, 4294901760
        %v7732 = vsub.f32 %v6300, %v7731
        %v7733 = vand.u32 %v7732, 4294901760
        %7734 = vmatpush1.msra.mxu0 %v7733
        %7735 = vmatprep.subr.mxu0 0.0
        %v7736 = vand.u32 %v6297, 4294901760
        %v7737 = vsub.f32 %v6297, %v7736
        %v7738 = vand.u32 %v7737, 4294901760
        %7739 = vmatpush1.msra.mxu0 %v7738
        %7740 = vmatprep.subr.mxu0 0.0
        %v7741 = vand.u32 %v6294, 4294901760
        %v7742 = vsub.f32 %v6294, %v7741
        %v7743 = vand.u32 %v7742, 4294901760
        %7744 = vmatpush1.msra.mxu0 %v7743
        %7745 = vmatprep.subr.mxu0 0.0
        %v7746 = vand.u32 %v6291, 4294901760
        %v7747 = vsub.f32 %v6291, %v7746
        %v7748 = vand.u32 %v7747, 4294901760
        %7749 = vmatpush1.msra.mxu0 %v7748
        %7750 = vmatprep.subr.mxu0 0.0
        %v7751 = vand.u32 %v6288, 4294901760
        %v7752 = vsub.f32 %v6288, %v7751
        %v7753 = vand.u32 %v7752, 4294901760
        %7754 = vmatpush1.msra.mxu0 %v7753
        %7755 = vmatprep.subr.mxu0 0.0
        %v7756 = vand.u32 %v6285, 4294901760
        %v7757 = vsub.f32 %v6285, %v7756
        %v7758 = vand.u32 %v7757, 4294901760
        %7759 = vmatpush1.msra.mxu0 %v7758
        %7760 = vmatprep.subr.mxu0 0.0
        %v7761 = vand.u32 %v6282, 4294901760
        %v7762 = vsub.f32 %v6282, %v7761
        %v7763 = vand.u32 %v7762, 4294901760
        %7764 = vmatpush1.msra.mxu0 %v7763
        %7765 = vmatprep.subr.mxu0 0.0
        %v7766 = vand.u32 %v6279, 4294901760
        %v7767 = vsub.f32 %v6279, %v7766
        %v7768 = vand.u32 %v7767, 4294901760
        %7769 = vmatpush1.msra.mxu0 %v7768
        %7770 = vmatprep.subr.mxu0 0.0
        %v7771 = vand.u32 %v6276, 4294901760
        %v7772 = vsub.f32 %v6276, %v7771
        %v7773 = vand.u32 %v7772, 4294901760
        %7774 = vmatpush1.msra.mxu0 %v7773
        %7775 = vmatprep.subr.mxu0 0.0
        %v7776 = vand.u32 %v6273, 4294901760
        %v7777 = vsub.f32 %v6273, %v7776
        %v7778 = vand.u32 %v7777, 4294901760
        %7779 = vmatpush1.msra.mxu0 %v7778
        %7780 = vmatprep.subr.mxu0 0.0
        %v7781 = vand.u32 %v6270, 4294901760
        %v7782 = vsub.f32 %v6270, %v7781
        %v7783 = vand.u32 %v7782, 4294901760
        %7784 = vmatpush1.msra.mxu0 %v7783
        %7785 = vmatprep.subr.mxu0 0.0
        %v7786 = vand.u32 %v6267, 4294901760
        %v7787 = vsub.f32 %v6267, %v7786
        %v7788 = vand.u32 %v7787, 4294901760
        %7789 = vmatpush1.msra.mxu0 %v7788
        %7790 = vmatprep.subr.mxu0 0.0
        %7791 = vmatpush2.msra.mxu0 0.0
        %7792 = vmatprep.subr.mxu0 0.0
        %7793 = vmatpush2.msra.mxu0 0.0
        %7794 = vmatprep.subr.mxu0 0.0
        %7795 = vmatpush2.msra.mxu0 0.0
        %7796 = vmatprep.subr.mxu0 0.0
        %7797 = vmatpush2.msra.mxu0 0.0
        %7798 = vmatprep.subr.mxu0 0.0
        %7799 = vmatpush2.msra.mxu0 0.0
        %7800 = vmatprep.subr.mxu0 0.0
        %7801 = vmatpush2.msra.mxu0 0.0
        %7802 = vmatprep.subr.mxu0 0.0
        %7803 = vmatpush2.msra.mxu0 0.0
        %7804 = vmatprep.subr.mxu0 0.0
        %7805 = vmatpush2.msra.mxu0 0.0
        %7806 = vmatprep.subr.mxu0 0.0
        %7807 = vmatpush2.msra.mxu0 0.0
        %7808 = vmatprep.subr.mxu0 0.0
        %7809 = vmatpush2.msra.mxu0 0.0
        %7810 = vmatprep.subr.mxu0 0.0
        %7811 = vmatpush2.msra.mxu0 0.0
        %7812 = vmatprep.subr.mxu0 0.0
        %7813 = vmatpush2.msra.mxu0 0.0
        %7814 = vmatprep.subr.mxu0 0.0
        %7815 = vmatpush2.msra.mxu0 0.0
        %7816 = vmatprep.subr.mxu0 0.0
        %7817 = vmatpush2.msra.mxu0 0.0
        %7818 = vmatprep.subr.mxu0 0.0
        %7819 = vmatpush2.msra.mxu0 0.0
        %7820 = vmatprep.subr.mxu0 0.0
        %7821 = vmatpush2.msra.mxu0 0.0
        %7822 = vmatprep.mubr.f32.mxu0 0.0
        %v7823 = vand.u32 %v523, 4294901760
        %7824 = vmatmul.mubr.f32.gmra.mxu0 %v7823
        %v7825 = vpop.f32.mrf.mxu0
        %v7826 = vadd.f32 %v7699, %v7825
        %v7827 = vpop.f32.mrf.mxu0
        %7828 = vmatprep.mubr.f32.mxu0 0.0
        %v7829 = vand.u32 %v524, 4294901760
        %7830 = vmatmul.mubr.f32.gmra.mxu0 %v7829
        %v7831 = vpop.f32.mrf.mxu0
        %v7832 = vadd.f32 %v7707, %v7831
        %v7833 = vpop.f32.mrf.mxu0
        %7834 = vdwg.mxu0
        %7835 = vmatprep.subr.mxu0 0.0
        %v7836 = vand.u32 %v6312, 4294901760
        %7837 = vmatpush1.msra.mxu0 %v7836
        %7838 = vmatprep.subr.mxu0 0.0
        %v7839 = vand.u32 %v6309, 4294901760
        %7840 = vmatpush1.msra.mxu0 %v7839
        %7841 = vmatprep.subr.mxu0 0.0
        %v7842 = vand.u32 %v6306, 4294901760
        %7843 = vmatpush1.msra.mxu0 %v7842
        %7844 = vmatprep.subr.mxu0 0.0
        %v7845 = vand.u32 %v6303, 4294901760
        %7846 = vmatpush1.msra.mxu0 %v7845
        %7847 = vmatprep.subr.mxu0 0.0
        %v7848 = vand.u32 %v6300, 4294901760
        %7849 = vmatpush1.msra.mxu0 %v7848
        %7850 = vmatprep.subr.mxu0 0.0
        %v7851 = vand.u32 %v6297, 4294901760
        %7852 = vmatpush1.msra.mxu0 %v7851
        %7853 = vmatprep.subr.mxu0 0.0
        %v7854 = vand.u32 %v6294, 4294901760
        %7855 = vmatpush1.msra.mxu0 %v7854
        %7856 = vmatprep.subr.mxu0 0.0
        %v7857 = vand.u32 %v6291, 4294901760
        %7858 = vmatpush1.msra.mxu0 %v7857
        %7859 = vmatprep.subr.mxu0 0.0
        %v7860 = vand.u32 %v6288, 4294901760
        %7861 = vmatpush1.msra.mxu0 %v7860
        %7862 = vmatprep.subr.mxu0 0.0
        %v7863 = vand.u32 %v6285, 4294901760
        %7864 = vmatpush1.msra.mxu0 %v7863
        %7865 = vmatprep.subr.mxu0 0.0
        %v7866 = vand.u32 %v6282, 4294901760
        %7867 = vmatpush1.msra.mxu0 %v7866
        %7868 = vmatprep.subr.mxu0 0.0
        %v7869 = vand.u32 %v6279, 4294901760
        %7870 = vmatpush1.msra.mxu0 %v7869
        %7871 = vmatprep.subr.mxu0 0.0
        %v7872 = vand.u32 %v6276, 4294901760
        %7873 = vmatpush1.msra.mxu0 %v7872
        %7874 = vmatprep.subr.mxu0 0.0
        %v7875 = vand.u32 %v6273, 4294901760
        %7876 = vmatpush1.msra.mxu0 %v7875
        %7877 = vmatprep.subr.mxu0 0.0
        %v7878 = vand.u32 %v6270, 4294901760
        %7879 = vmatpush1.msra.mxu0 %v7878
        %7880 = vmatprep.subr.mxu0 0.0
        %v7881 = vand.u32 %v6267, 4294901760
        %7882 = vmatpush1.msra.mxu0 %v7881
        %7883 = vmatprep.subr.mxu0 0.0
        %7884 = vmatpush2.msra.mxu0 0.0
        %7885 = vmatprep.subr.mxu0 0.0
        %7886 = vmatpush2.msra.mxu0 0.0
        %7887 = vmatprep.subr.mxu0 0.0
        %7888 = vmatpush2.msra.mxu0 0.0
        %7889 = vmatprep.subr.mxu0 0.0
        %7890 = vmatpush2.msra.mxu0 0.0
        %7891 = vmatprep.subr.mxu0 0.0
        %7892 = vmatpush2.msra.mxu0 0.0
        %7893 = vmatprep.subr.mxu0 0.0
        %7894 = vmatpush2.msra.mxu0 0.0
        %7895 = vmatprep.subr.mxu0 0.0
        %7896 = vmatpush2.msra.mxu0 0.0
        %7897 = vmatprep.subr.mxu0 0.0
        %7898 = vmatpush2.msra.mxu0 0.0
        %7899 = vmatprep.subr.mxu0 0.0
        %7900 = vmatpush2.msra.mxu0 0.0
        %7901 = vmatprep.subr.mxu0 0.0
        %7902 = vmatpush2.msra.mxu0 0.0
        %7903 = vmatprep.subr.mxu0 0.0
        %7904 = vmatpush2.msra.mxu0 0.0
        %7905 = vmatprep.subr.mxu0 0.0
        %7906 = vmatpush2.msra.mxu0 0.0
        %7907 = vmatprep.subr.mxu0 0.0
        %7908 = vmatpush2.msra.mxu0 0.0
        %7909 = vmatprep.subr.mxu0 0.0
        %7910 = vmatpush2.msra.mxu0 0.0
        %7911 = vmatprep.subr.mxu0 0.0
        %7912 = vmatpush2.msra.mxu0 0.0
        %7913 = vmatprep.subr.mxu0 0.0
        %7914 = vmatpush2.msra.mxu0 0.0
        %7915 = vmatprep.mubr.f32.mxu0 0.0
        %v7916 = vand.u32 %v523, 4294901760
        %7917 = vmatmul.mubr.f32.gmra.mxu0 %v7916
        %v7918 = vpop.f32.mrf.mxu0
        %v7919 = vadd.f32 %v7826, %v7918
        %v7920 = vpop.f32.mrf.mxu0
        %7921 = vmatprep.mubr.f32.mxu0 0.0
        %v7922 = vand.u32 %v524, 4294901760
        %7923 = vmatmul.mubr.f32.gmra.mxu0 %v7922
        %v7924 = vpop.f32.mrf.mxu0
        %v7925 = vadd.f32 %v7832, %v7924
        %v7926 = vpop.f32.mrf.mxu0
        %7927 = vdwg.mxu0
        %v7928 = vadd.f32 %v6258, %v7233
        %v7929 = vadd.f32 %v6261, %v7240
        %v7930 = vxor.u32 %v7928, 2147483648
        %v7931 = vxor.u32 %v7929, 2147483648
        %v7932 = vmul.f32 %v7930, 1.442695
        %v7933 = vpow.pop %v7932
        %v7934 = vmul.f32 %v7931, 1.442695
        %v7935 = vpow.pop %v7934
        %v7936 = vadd.f32 %v7933, 1.0
        %v7937 = vadd.f32 %v7935, 1.0
        %v7938 = vrcp.pop %v7936
        %v7939 = vmul.f32 1.0, %v7938
        %v7940 = vrcp.pop %v7937
        %v7941 = vmul.f32 1.0, %v7940
        %v7942 = vadd.f32 %v6259, %v7235
        %v7943 = vadd.f32 %v6262, %v7242
        %v7944 = vxor.u32 %v7942, 2147483648
        %v7945 = vxor.u32 %v7943, 2147483648
        %v7946 = vmul.f32 %v7944, 1.442695
        %v7947 = vpow.pop %v7946
        %v7948 = vmul.f32 %v7945, 1.442695
        %v7949 = vpow.pop %v7948
        %v7950 = vadd.f32 %v7947, 1.0
        %v7951 = vadd.f32 %v7949, 1.0
        %v7952 = vrcp.pop %v7950
        %v7953 = vmul.f32 1.0, %v7952
        %v7954 = vrcp.pop %v7951
        %v7955 = vmul.f32 1.0, %v7954
        %v7956 = vmul.f32 %v7939, %v7919
        %v7957 = vmul.f32 %v7941, %v7925
        %v7958 = vadd.f32 %v6260, %v7956
        %v7959 = vadd.f32 %v6263, %v7957
        %v7960 = vtanh.pop %v7958
        %v7961 = vtanh.pop %v7959
        %v7962 = vsub.f32 %v523, %v7960
        %v7963 = vsub.f32 %v524, %v7961
        %v7964 = vmul.f32 %v7953, %v7962
        %v7965 = vmul.f32 %v7955, %v7963
        %v7966 = vadd.f32 %v7960, %v7964
        %v7967 = vadd.f32 %v7961, %v7965
        %7968 = vst [vmem:[%s522] sm:$0xff] %v7966
        %7969 = vst [vmem:[%s522 + $0x8] sm:$0xff] %v7967
        %s7970 = sand.u32 %s223, 1
        %s7971 = scalar_lea.sflag [#allocation4], %s7970
        %s7972 = sand.u32 %s223, 1
        %s7973 = smul.addr %s7972, 16
        %s7974 = scalar_lea.vmem [#allocation14], %s7973
        // Predicated region
        $region77: #{tpu_custom_call.1} parent=47 // pred_check
          %p7975 = pneg %p233
        $region78: #{tpu_custom_call.1} parent=47 // pred_check_branch
          %7977 = sbr.rel (%p7975) target = $region80
        $region79: #{tpu_custom_call.1} parent=47 // pred_region
          %s7979 = ssub.s32 256, 256
          %7980 = vsyncadd %s7971, %s7979
          %s7981 = smul.addr %s33, 2
          %s7982 = smul.addr %s7981, 128
          %s7983 = scalar_lea.hbm %s7, %s7982
          %s7984 = sshll.u32 %s7974, 4
          %s7985 = int_to_ptr.vmem [resolvable:$true] %s7984
          %7990 = dma.vmem_to_hbm [thread:$0]  %s7985, 256, %s7983, %s7971, 128, 128, 8
        $region80: #{tpu_custom_call.1} parent=47 // pred_fallthru
          _
      $region48: #{tpu_custom_call.1} parent=5 // pred_fallthru
        _
      %p7991 = scmp.le.s32.totalorder 2, %s28
      // Predicated region
      $region81: #{tpu_custom_call.1} parent=5 // pred_check
        %p7992 = pneg %p7991
      $region82: #{tpu_custom_call.1} parent=5 // pred_check_branch
        %7994 = sbr.rel (%p7992) target = $region84
      $region83: #{tpu_custom_call.1} parent=5 // pred_region
        %s7995 = ssub.s32 %s28, 2
        // Predicated region
        $region85: #{tpu_custom_call.1} parent=83 // pred_check
          %p7996 = pneg %p239
        $region86: #{tpu_custom_call.1} parent=83 // pred_check_branch
          %7998 = sbr.rel (%p7996) target = $region88
        $region87: #{tpu_custom_call.1} parent=83 // pred_region
          %s7999 = sand.u32 %s224, 1
          %s8000 = scalar_lea.sflag [#allocation4], %s7999
          %s8001 = sand.u32 %s224, 1
          %s8002 = smul.addr %s8001, 16
          %s8003 = scalar_lea.vmem [#allocation14], %s8002
          %8004 = dma.done %s8000, 256
        $region88: #{tpu_custom_call.1} parent=83 // pred_fallthru
          _
      $region84: #{tpu_custom_call.1} parent=5 // pred_fallthru
        _
    $region6: #{tpu_custom_call.1} parent=1 // loop_footer
      %s32 = sadd.s32 1, %s28
    $region7: #{tpu_custom_call.1} parent=1 // loop_footer_branch
      %27 = sbr.rel target = $region3
    $region8: #{tpu_custom_call.1} parent=1 // loop_exit
      _
    %8005 = vsyncpa [#allocation3], 1
    %s8006 = scalar_lea.sflag [#allocation3], 1
    %8007 = vsyncpa %s8006, 1
    %8008 = vsyncpa [#allocation6], 1
    %s8009 = scalar_lea.sflag [#allocation6], 1
    %8010 = vsyncpa %s8009, 1
    %8011 = vsyncpa [#allocation9], 1
    %s8012 = scalar_lea.sflag [#allocation9], 1
    %8013 = vsyncpa %s8012, 1
    %8014 = vsyncpa [#allocation12], 1
    %s8015 = scalar_lea.sflag [#allocation12], 1
    %8016 = vsyncpa %s8015, 1
    %8017 = vsyncpa [#allocation4], 1
    %s8018 = scalar_lea.sflag [#allocation4], 1
    %8019 = vsyncpa %s8018, 1

</llo_original>
